<compile_context>
chip_gen: v5e
topology: v5e:2x2
jax: 0.10.0
libtpu: 0.0.40
codegen_flags: <defaults>
</compile_context>

<pallas_src>
import functools

import numpy as np
import jax
import jax.numpy as jnp
from jax import lax
from jax.experimental import pallas as pl
from jax.experimental.pallas import tpu as pltpu


# ----------------------------------------------------------------------------
# Fused RFS3Cell Pallas kernel
# ----------------------------------------------------------------------------
def _rfs3_cell_kernel(*refs, H, W, cin0, f, n_layers):
    """Fused conv stack for one batch element (one grid step).

    refs = (x, ref_y, w0, b0, ..., w_{L-1}, b_{L-1},   # inputs
            out,                                       # output
            act_pad)                                   # VMEM scratch
    x       : (H+2, W+2, cin0)  f32   spatially pre-padded input (batch squeezed)
    ref_y   : (1, H*W)          f32   luma residual
    w_0     : (9*cin0, f)       bf16
    w_l     : (9*f, f)          bf16  for 0 < l < L-1
    w_{L-1} : (cout_last, 9*f)  bf16  (pre-transposed)
    b_l     : (1, f) / (cout_last, 1) f32
    out     : (cout_last, H*W)  f32   (lane-dense store)
    act_pad : (H+2, W+2, f)     f32   padded activation (zero border == pad=1)
    """
    x_ref = refs[0]
    refy_ref = refs[1]
    w_refs = [refs[2 + 2 * l] for l in range(n_layers)]
    b_refs = [refs[3 + 2 * l] for l in range(n_layers)]
    o_ref = refs[2 + 2 * n_layers]
    act_pad = refs[3 + 2 * n_layers]

    def im2col_bf16(src_ref, cin):
        # Build the (H*W, 9*cin) bf16 im2col slab as one lane concatenation of
        # the nine taps.  Each tap is a Ref slice (only that window is loaded)
        # cast to bf16 immediately, and the slab is fed straight into the MXU
        # dot (no f32 col scratch, no masked 32-lane column stores).
        # TODO(synk): the dx=1,2 taps could use pltpu.roll on the idle XLU
        # instead of sublane-offset slices.
        pieces = []
        for dy in range(3):
            for dx in range(3):
                p = src_ref[dy:dy + H, dx:dx + W, :].astype(jnp.bfloat16)
                pieces.append(p.reshape(H * W, cin))
        return jnp.concatenate(pieces, axis=1)

    # Keep the 1-pixel zero border of the activation scratch valid (this is
    # what implements padding=1 for layers >= 1).  Only the top/bottom rows
    # need explicit zeroing here; the left/right zero columns are written as
    # part of the aligned full-width interior store below.  Doing this every
    # grid step (instead of only at program_id==0) keeps it correct when the
    # batch grid is split across v7x's two TensorCores (per-core scratch).
    zero_row = jnp.zeros((1, W + 2, f), jnp.float32)
    act_pad[0:1, :, :] = zero_row
    act_pad[H + 1:H + 2, :, :] = zero_row
    zero_col = jnp.zeros((H, 1, f), jnp.float32)

    act = None
    for l in range(n_layers):
        if l == 0:
            col = im2col_bf16(x_ref, cin0)                    # (H*W, 9*cin0)
        else:
            # Aligned, full-width writeback of the previous activation (zero
            # left/right border columns folded into the stored value).
            act_pad[1:H + 1, :, :] = jnp.concatenate(
                [zero_col, act.reshape(H, W, f), zero_col], axis=1)
            col = im2col_bf16(act_pad, f)                     # (H*W, 9*f)

        if l < n_layers - 1:
            # (H*W, K) @ (K, f) on the MXU; bias + ReLU in f32.
            acc = jnp.dot(col, w_refs[l][...],
                          preferred_element_type=jnp.float32)
            act = jnp.maximum(acc + b_refs[l][...], 0.0)      # f32 (H*W, f)
        else:
            # Output layer computed transposed (contract last dims) so the
            # result (cout_last, H*W) stores lane-dense.
            y_t = lax.dot_general(
                w_refs[l][...], col,
                dimension_numbers=(((1,), (1,)), ((), ())),
                preferred_element_type=jnp.float32)           # (cout_last, H*W)
            o_ref[...] = y_t + b_refs[l][...] + refy_ref[...]


def pack_rfs3_params(params):
    """Pack raw conv params once at init for the fused kernel.

    params: [(w (3,3,Cin,Cout) f32, b (Cout,) f32), ...]
    returns [(wk bf16, bk f32), ...] with
        layer 0    : wk (9*cin0, f),        bk (1, f)
        middle     : wk (9*f, f),           bk (1, f)
        last layer : wk (cout_last, 9*f),   bk (cout_last, 1)   (pre-transposed)
    """
    n_layers = len(params)
    f = params[0][0].shape[-1]
    packed = []
    for li, (w, b) in enumerate(params):
        kh, kw, cin, cout = w.shape
        assert (kh, kw) == (3, 3), "RFS3Cell uses 3x3 convs"
        if li > 0:
            assert cin == f, "middle/output layers must have cin == f"
        if li < n_layers - 1:
            assert cout == f, "block1/middle layers must have cout == f"
        wk = w.reshape(9 * cin, cout)           # row = (3*dy+dx)*cin + c
        if li == n_layers - 1:
            wk = wk.T                           # (cout_last, 9*f)
            bk = b.reshape(cout, 1)
        else:
            bk = b.reshape(1, cout)
        packed.append((wk.astype(jnp.bfloat16), bk.astype(jnp.float32)))
    return packed


def rfs3_cell(x_nhwc, ref_y_nchw, packed_params):
    """Fused RFS3Cell.

    x_nhwc:        (N, H, W, cin0) f32   stacked LR frames, channels-last
    ref_y_nchw:    (N, 1, H, W)    f32   reference-frame luma
    packed_params: output of pack_rfs3_params
    returns        (N, cout_last, H, W) f32  (NCHW, cout_last = nb_out*zoom^2)
    """
    N, H, W, cin0 = x_nhwc.shape
    n_layers = len(packed_params)
    f = packed_params[0][0].shape[1]
    cout_last = packed_params[-1][0].shape[0]
    assert packed_params[0][0].shape[0] == 9 * cin0, (
        "layer-0 packed weight does not match the input channel count")

    # Spatial pad=1 once; input channels are NOT padded (layer 0 runs K=9*cin0).
    xp = jnp.pad(x_nhwc.astype(jnp.float32), ((0, 0), (1, 1), (1, 1), (0, 0)))
    refy = ref_y_nchw.reshape(N, 1, H * W).astype(jnp.float32)

    args = [xp, refy]
    in_specs = [
        pl.BlockSpec((None, H + 2, W + 2, cin0), lambda i: (i, 0, 0, 0)),
        pl.BlockSpec((None, 1, H * W), lambda i: (i, 0, 0)),
    ]
    for wk, bk in packed_params:
        args += [wk, bk]
        in_specs += [pl.BlockSpec(wk.shape, lambda i: (0, 0)),
                     pl.BlockSpec(bk.shape, lambda i: (0, 0))]

    kernel = functools.partial(_rfs3_cell_kernel, H=H, W=W, cin0=cin0, f=f,
                               n_layers=n_layers)

    y = pl.pallas_call(
        kernel,
        out_shape=jax.ShapeDtypeStruct((N, cout_last, H * W), jnp.float32),
        grid=(N,),
        in_specs=in_specs,
        out_specs=pl.BlockSpec((None, cout_last, H * W), lambda i: (i, 0, 0)),
        scratch_shapes=[pltpu.VMEM((H + 2, W + 2, f), jnp.float32)],
        compiler_params=pltpu.CompilerParams(
            dimension_semantics=("parallel",)),
    )(*args)
    return y.reshape(N, cout_last, H, W)


# ----------------------------------------------------------------------------
# Plain-JAX glue
# ----------------------------------------------------------------------------
def rgb2ycbcr(x_nchw):
    # TODO(synk): rgb2ycbcr_torch source not provided; using MATLAB/BT.601
    # conversion for inputs in [0, 1] (second arg == 1).
    r, g, b = x_nchw[:, 0], x_nchw[:, 1], x_nchw[:, 2]
    y = 16.0 / 255.0 + (65.481 * r + 128.553 * g + 24.966 * b) / 255.0
    cb = 128.0 / 255.0 + (-37.797 * r - 74.203 * g + 112.0 * b) / 255.0
    cr = 128.0 / 255.0 + (112.0 * r - 93.786 * g - 18.214 * b) / 255.0
    return jnp.stack([y, cb, cr], axis=1)


def _cubic_weight(t, A=-0.75):
    t = np.abs(t)
    return np.where(
        t <= 1.0, ((A + 2.0) * t - (A + 3.0)) * t * t + 1.0,
        np.where(t < 2.0, ((A * t - 5.0 * A) * t + 8.0 * A) * t - 4.0 * A, 0.0))


def bicubic_upsample_matrix(in_size, scale):
    """Dense (in_size*scale, in_size) PyTorch-style bicubic (align_corners=False)."""
    out_size = in_size * scale
    M = np.zeros((out_size, in_size), np.float64)
    for j in range(out_size):
        x = (j + 0.5) / scale - 0.5
        x0 = int(np.floor(x))
        t = x - x0
        for k in range(-1, 3):
            idx = min(max(x0 + k, 0), in_size - 1)
            M[j, idx] += float(_cubic_weight(np.float64(t - k)))
    return jnp.asarray(M, jnp.float32)


def pixel_shuffle_nchw(y, zoom):
    """(N, co*zoom^2, H, W) -> (N, co, H*zoom, W*zoom) (torch PixelShuffle)."""
    N, Cz, H, W = y.shape
    co = Cz // (zoom * zoom)
    y = y.reshape(N, co, zoom, zoom, H, W)
    y = y.transpose(0, 1, 4, 2, 5, 3)              # (N, co, H, zy, W, zx)
    return y.reshape(N, co, H * zoom, W * zoom)


# ----------------------------------------------------------------------------
# Parameter init (deterministic xavier-uniform, zero bias)
# ----------------------------------------------------------------------------
def xavier_conv(key, cin, cout, k=3):
    fan_in, fan_out = cin * k * k, cout * k * k
    bound = float(np.sqrt(6.0 / (fan_in + fan_out)))
    # torch weight layout (Cout, Cin, kh, kw) -> kernel layout (kh, kw, Cin, Cout)
    w = jax.random.uniform(key, (cout, cin, k, k), jnp.float32, -bound, bound)
    return jnp.transpose(w, (2, 3, 1, 0)), jnp.zeros((cout,), jnp.float32)


def init_rfs3_params(key, *, f, n, zoom, nb_in_channels, nb_out_channels):
    params = []
    keys = jax.random.split(key, n)
    params.append(xavier_conv(keys[0], nb_in_channels * 3, f))      # block1
    for i in range(n - 2):                                          # middle
        params.append(xavier_conv(keys[1 + i], f, f))
    params.append(xavier_conv(keys[n - 1], f,                       # output
                              nb_out_channels * zoom * zoom))
    return params


# ----------------------------------------------------------------------------
# RFS3 forward
# ----------------------------------------------------------------------------
def rfs3_forward(packed_params, images, zoom):
    """images: (3, N, 3, H, W) float32 NCHW, values in [0, 1]."""
    reference_frame = images[1]
    ycbcr = rgb2ycbcr(reference_frame)
    ref_y = ycbcr[:, 0:1]
    ref_cb = ycbcr[:, 1:2]
    ref_cr = ycbcr[:, 2:3]

    lrflow = jnp.concatenate([images[0], reference_frame, images[2]], axis=1)
    x_nhwc = jnp.transpose(lrflow, (0, 2, 3, 1))       # NCHW -> NHWC

    y_nchw = rfs3_cell(x_nhwc, ref_y, packed_params)   # (N, zoom^2, H, W)
    y_hr = pixel_shuffle_nchw(y_nchw, zoom)            # (N, 1, H*z, W*z)

    H, W = reference_frame.shape[2], reference_frame.shape[3]
    Mh = bicubic_upsample_matrix(H, zoom)
    Mw = bicubic_upsample_matrix(W, zoom)
    cb_up = jnp.einsum('oh,nchw,pw->ncop', Mh, ref_cb, Mw)
    cr_up = jnp.einsum('oh,nchw,pw->ncop', Mh, ref_cr, Mw)

    return jnp.concatenate([y_hr, cb_up, cr_up], axis=1)   # (N, 3, H*z, W*z)


# ----------------------------------------------------------------------------
# XLA reference for the fused cell (correctness check only)
# ----------------------------------------------------------------------------
def _rfs3_cell_reference(x_nhwc, ref_y_nchw, params):
    a = x_nhwc
    for w, b in params[:-1]:
        a = lax.conv_general_dilated(
            a, w, (1, 1), 'SAME', dimension_numbers=('NHWC', 'HWIO', 'NHWC'))
        a = jnp.maximum(a + b, 0.0)
    w, b = params[-1]
    y = lax.conv_general_dilated(
        a, w, (1, 1), 'SAME', dimension_numbers=('NHWC', 'HWIO', 'NHWC')) + b
    return y + jnp.transpose(ref_y_nchw, (0, 2, 3, 1))      # (N,H,W,cout_last)


# ----------------------------------------------------------------------------
if __name__ == "__main__":
    zoom_factor = 2
    f = 32
    n = 4                   # block1 + (n-2) middle convs + output layer
    nb_in_channels = 3
    nb_out_channels = 1
    N, H, W = 2, 16, 16

    key = jax.random.PRNGKey(0)
    k_img, k_par = jax.random.split(key)

    images = jax.random.uniform(k_img, (3, N, 3, H, W), jnp.float32)
    params = init_rfs3_params(k_par, f=f, n=n, zoom=zoom_factor,
                              nb_in_channels=nb_in_channels,
                              nb_out_channels=nb_out_channels)
    packed = pack_rfs3_params(params)       # pre-pack weights once (bf16, transposed)

    fwd = jax.jit(rfs3_forward, static_argnames=("zoom",))
    out = fwd(packed, images, zoom=zoom_factor)
    out = jax.block_until_ready(out)

    expected = (N, 3, H * zoom_factor, W * zoom_factor)
    assert out.shape == expected, (out.shape, expected)
    assert bool(jnp.all(jnp.isfinite(out)))

    # Light correctness check of the fused Pallas cell vs an XLA conv reference
    # (bf16 MXU matmuls / bf16 activations at the dot -> loose tolerance; this
    # is an intentional precision choice).
    ref_frame = images[1]
    ycbcr = rgb2ycbcr(ref_frame)
    x_nhwc = jnp.transpose(
        jnp.concatenate([images[0], ref_frame, images[2]], axis=1),
        (0, 2, 3, 1))
    y_pallas = rfs3_cell(x_nhwc, ycbcr[:, 0:1], packed)          # (N, z^2, H, W)
    y_ref = jnp.transpose(
        _rfs3_cell_reference(x_nhwc, ycbcr[:, 0:1], params), (0, 3, 1, 2))
    max_err = float(jnp.max(jnp.abs(y_pallas - y_ref)))
    assert max_err < 0.1, max_err

    print("KERNEL_OK")
</pallas_src>

<mosaic_0001>
module attributes {stable_mosaic.version = 11 : i64} {
  func.func @_rfs3_cell_kernel(%arg0: i32, %arg1: memref<1x18x18x9xf32, #tpu.memory_space<vmem>>, %arg2: memref<1x1x256xf32, #tpu.memory_space<vmem>>, %arg3: memref<81x32xbf16, #tpu.memory_space<vmem>>, %arg4: memref<1x32xf32, #tpu.memory_space<vmem>>, %arg5: memref<288x32xbf16, #tpu.memory_space<vmem>>, %arg6: memref<1x32xf32, #tpu.memory_space<vmem>>, %arg7: memref<288x32xbf16, #tpu.memory_space<vmem>>, %arg8: memref<1x32xf32, #tpu.memory_space<vmem>>, %arg9: memref<4x288xbf16, #tpu.memory_space<vmem>>, %arg10: memref<4x1xf32, #tpu.memory_space<vmem>>, %arg11: memref<1x4x256xf32, #tpu.memory_space<vmem>>, %arg12: memref<18x18x32xf32, #tpu.memory_space<vmem>>) attributes {dimension_semantics = [#tpu.dimension_semantics<parallel>], iteration_bounds = array<i64: 2>, scalar_prefetch = 0 : i64, scratch_operands = 1 : i64, tpu.core_type = #tpu.core_type<tc>, window_params = [{transform_indices = @transform_0, window_bounds = array<i64: 1, 18, 18, 9>}, {transform_indices = @transform_1, window_bounds = array<i64: 1, 1, 256>}, {pipeline_mode = #tpu.pipeline_mode<synchronous>, transform_indices = @transform_2, window_bounds = array<i64: 81, 32>}, {pipeline_mode = #tpu.pipeline_mode<synchronous>, transform_indices = @transform_3, window_bounds = array<i64: 1, 32>}, {pipeline_mode = #tpu.pipeline_mode<synchronous>, transform_indices = @transform_4, window_bounds = array<i64: 288, 32>}, {pipeline_mode = #tpu.pipeline_mode<synchronous>, transform_indices = @transform_5, window_bounds = array<i64: 1, 32>}, {pipeline_mode = #tpu.pipeline_mode<synchronous>, transform_indices = @transform_6, window_bounds = array<i64: 288, 32>}, {pipeline_mode = #tpu.pipeline_mode<synchronous>, transform_indices = @transform_7, window_bounds = array<i64: 1, 32>}, {pipeline_mode = #tpu.pipeline_mode<synchronous>, transform_indices = @transform_8, window_bounds = array<i64: 4, 288>}, {pipeline_mode = #tpu.pipeline_mode<synchronous>, transform_indices = @transform_9, window_bounds = array<i64: 4, 1>}, {transform_indices = @transform_10, window_bounds = array<i64: 1, 4, 256>}]} {
    %cst = arith.constant 0.000000e+00 : f32
    %0 = vector.broadcast %cst : f32 to vector<1x18x32xf32>
    %c0 = arith.constant 0 : index
    %c0_0 = arith.constant 0 : index
    %c0_1 = arith.constant 0 : index
    %1 = vector.load %arg12[%c0, %c0_0, %c0_1] : memref<18x18x32xf32, #tpu.memory_space<vmem>>, vector<1x18x32xf32>
    tpu.vector_store %arg12[%c0, %c0_0, %c0_1], %0 {strides = array<i32>} : memref<18x18x32xf32, #tpu.memory_space<vmem>>, vector<1x18x32xf32>,
    %c17 = arith.constant 17 : index
    %c0_2 = arith.constant 0 : index
    %c0_3 = arith.constant 0 : index
    %2 = vector.load %arg12[%c17, %c0_2, %c0_3] : memref<18x18x32xf32, #tpu.memory_space<vmem>>, vector<1x18x32xf32>
    tpu.vector_store %arg12[%c17, %c0_2, %c0_3], %0 {strides = array<i32>} : memref<18x18x32xf32, #tpu.memory_space<vmem>>, vector<1x18x32xf32>,
    %cst_4 = arith.constant 0.000000e+00 : f32
    %3 = vector.broadcast %cst_4 : f32 to vector<16x1x32xf32>
    %c0_5 = arith.constant 0 : index
    %c0_6 = arith.constant 0 : index
    %c0_7 = arith.constant 0 : index
    %c0_8 = arith.constant 0 : index
    %4 = vector.load %arg1[%c0_5, %c0_6, %c0_7, %c0_8] : memref<1x18x18x9xf32, #tpu.memory_space<vmem>>, vector<1x16x16x9xf32>
    %5 = vector.shape_cast %4 : vector<1x16x16x9xf32> to vector<16x16x9xf32>
    %6 = arith.truncf %5 : vector<16x16x9xf32> to vector<16x16x9xbf16>
    %7 = vector.shape_cast %6 : vector<16x16x9xbf16> to vector<256x9xbf16>
    %c0_9 = arith.constant 0 : index
    %c0_10 = arith.constant 0 : index
    %c1 = arith.constant 1 : index
    %c0_11 = arith.constant 0 : index
    %8 = vector.load %arg1[%c0_9, %c0_10, %c1, %c0_11] : memref<1x18x18x9xf32, #tpu.memory_space<vmem>>, vector<1x16x16x9xf32>
    %9 = vector.shape_cast %8 : vector<1x16x16x9xf32> to vector<16x16x9xf32>
    %10 = arith.truncf %9 : vector<16x16x9xf32> to vector<16x16x9xbf16>
    %11 = vector.shape_cast %10 : vector<16x16x9xbf16> to vector<256x9xbf16>
    %c0_12 = arith.constant 0 : index
    %c0_13 = arith.constant 0 : index
    %c2 = arith.constant 2 : index
    %c0_14 = arith.constant 0 : index
    %12 = vector.load %arg1[%c0_12, %c0_13, %c2, %c0_14] : memref<1x18x18x9xf32, #tpu.memory_space<vmem>>, vector<1x16x16x9xf32>
    %13 = vector.shape_cast %12 : vector<1x16x16x9xf32> to vector<16x16x9xf32>
    %14 = arith.truncf %13 : vector<16x16x9xf32> to vector<16x16x9xbf16>
    %15 = vector.shape_cast %14 : vector<16x16x9xbf16> to vector<256x9xbf16>
    %c0_15 = arith.constant 0 : index
    %c1_16 = arith.constant 1 : index
    %c0_17 = arith.constant 0 : index
    %c0_18 = arith.constant 0 : index
    %16 = vector.load %arg1[%c0_15, %c1_16, %c0_17, %c0_18] : memref<1x18x18x9xf32, #tpu.memory_space<vmem>>, vector<1x16x16x9xf32>
    %17 = vector.shape_cast %16 : vector<1x16x16x9xf32> to vector<16x16x9xf32>
    %18 = arith.truncf %17 : vector<16x16x9xf32> to vector<16x16x9xbf16>
    %19 = vector.shape_cast %18 : vector<16x16x9xbf16> to vector<256x9xbf16>
    %c0_19 = arith.constant 0 : index
    %c1_20 = arith.constant 1 : index
    %c1_21 = arith.constant 1 : index
    %c0_22 = arith.constant 0 : index
    %20 = vector.load %arg1[%c0_19, %c1_20, %c1_21, %c0_22] : memref<1x18x18x9xf32, #tpu.memory_space<vmem>>, vector<1x16x16x9xf32>
    %21 = vector.shape_cast %20 : vector<1x16x16x9xf32> to vector<16x16x9xf32>
    %22 = arith.truncf %21 : vector<16x16x9xf32> to vector<16x16x9xbf16>
    %23 = vector.shape_cast %22 : vector<16x16x9xbf16> to vector<256x9xbf16>
    %c0_23 = arith.constant 0 : index
    %c1_24 = arith.constant 1 : index
    %c2_25 = arith.constant 2 : index
    %c0_26 = arith.constant 0 : index
    %24 = vector.load %arg1[%c0_23, %c1_24, %c2_25, %c0_26] : memref<1x18x18x9xf32, #tpu.memory_space<vmem>>, vector<1x16x16x9xf32>
    %25 = vector.shape_cast %24 : vector<1x16x16x9xf32> to vector<16x16x9xf32>
    %26 = arith.truncf %25 : vector<16x16x9xf32> to vector<16x16x9xbf16>
    %27 = vector.shape_cast %26 : vector<16x16x9xbf16> to vector<256x9xbf16>
    %c0_27 = arith.constant 0 : index
    %c2_28 = arith.constant 2 : index
    %c0_29 = arith.constant 0 : index
    %c0_30 = arith.constant 0 : index
    %28 = vector.load %arg1[%c0_27, %c2_28, %c0_29, %c0_30] : memref<1x18x18x9xf32, #tpu.memory_space<vmem>>, vector<1x16x16x9xf32>
    %29 = vector.shape_cast %28 : vector<1x16x16x9xf32> to vector<16x16x9xf32>
    %30 = arith.truncf %29 : vector<16x16x9xf32> to vector<16x16x9xbf16>
    %31 = vector.shape_cast %30 : vector<16x16x9xbf16> to vector<256x9xbf16>
    %c0_31 = arith.constant 0 : index
    %c2_32 = arith.constant 2 : index
    %c1_33 = arith.constant 1 : index
    %c0_34 = arith.constant 0 : index
    %32 = vector.load %arg1[%c0_31, %c2_32, %c1_33, %c0_34] : memref<1x18x18x9xf32, #tpu.memory_space<vmem>>, vector<1x16x16x9xf32>
    %33 = vector.shape_cast %32 : vector<1x16x16x9xf32> to vector<16x16x9xf32>
    %34 = arith.truncf %33 : vector<16x16x9xf32> to vector<16x16x9xbf16>
    %35 = vector.shape_cast %34 : vector<16x16x9xbf16> to vector<256x9xbf16>
    %c0_35 = arith.constant 0 : index
    %c2_36 = arith.constant 2 : index
    %c2_37 = arith.constant 2 : index
    %c0_38 = arith.constant 0 : index
    %36 = vector.load %arg1[%c0_35, %c2_36, %c2_37, %c0_38] : memref<1x18x18x9xf32, #tpu.memory_space<vmem>>, vector<1x16x16x9xf32>
    %37 = vector.shape_cast %36 : vector<1x16x16x9xf32> to vector<16x16x9xf32>
    %38 = arith.truncf %37 : vector<16x16x9xf32> to vector<16x16x9xbf16>
    %39 = vector.shape_cast %38 : vector<16x16x9xbf16> to vector<256x9xbf16>
    %40 = tpu.concatenate %7, %11, %15, %19, %23, %27, %31, %35, %39 in 1 : vector<256x9xbf16>, vector<256x9xbf16>, vector<256x9xbf16>, vector<256x9xbf16>, vector<256x9xbf16>, vector<256x9xbf16>, vector<256x9xbf16>, vector<256x9xbf16>, vector<256x9xbf16> -> vector<256x81xbf16>
    %c0_39 = arith.constant 0 : index
    %c0_40 = arith.constant 0 : index
    %41 = vector.load %arg3[%c0_39, %c0_40] : memref<81x32xbf16, #tpu.memory_space<vmem>>, vector<81x32xbf16>
    %cst_41 = arith.constant dense<0.000000e+00> : vector<256x32xf32>
    %42 = tpu.matmul %40, %41, %cst_41 {dimension_numbers = #tpu.dot_dimension_numbers<[1], [0], [0], [1], [0, 0, 1, 1], [], []>} : vector<256x81xbf16>, vector<81x32xbf16>, vector<256x32xf32> -> vector<256x32xf32>
    %c0_42 = arith.constant 0 : index
    %c0_43 = arith.constant 0 : index
    %43 = vector.load %arg4[%c0_42, %c0_43] : memref<1x32xf32, #tpu.memory_space<vmem>>, vector<1x32xf32>
    %44 = vector.broadcast %43 : vector<1x32xf32> to vector<256x32xf32>
    %45 = arith.addf %42, %44 : vector<256x32xf32>
    %cst_44 = arith.constant 0.000000e+00 : f32
    %46 = vector.broadcast %cst_44 : f32 to vector<256x32xf32>
    %47 = arith.maximumf %45, %46 : vector<256x32xf32>
    %48 = vector.shape_cast %47 : vector<256x32xf32> to vector<16x16x32xf32>
    %49 = tpu.concatenate %3, %48, %3 in 1 : vector<16x1x32xf32>, vector<16x16x32xf32>, vector<16x1x32xf32> -> vector<16x18x32xf32>
    %c1_45 = arith.constant 1 : index
    %c0_46 = arith.constant 0 : index
    %c0_47 = arith.constant 0 : index
    %50 = vector.load %arg12[%c1_45, %c0_46, %c0_47] : memref<18x18x32xf32, #tpu.memory_space<vmem>>, vector<16x18x32xf32>
    tpu.vector_store %arg12[%c1_45, %c0_46, %c0_47], %49 {strides = array<i32>} : memref<18x18x32xf32, #tpu.memory_space<vmem>>, vector<16x18x32xf32>,
    %c0_48 = arith.constant 0 : index
    %c0_49 = arith.constant 0 : index
    %c0_50 = arith.constant 0 : index
    %51 = vector.load %arg12[%c0_48, %c0_49, %c0_50] : memref<18x18x32xf32, #tpu.memory_space<vmem>>, vector<16x16x32xf32>
    %52 = arith.truncf %51 : vector<16x16x32xf32> to vector<16x16x32xbf16>
    %53 = vector.shape_cast %52 : vector<16x16x32xbf16> to vector<256x32xbf16>
    %c0_51 = arith.constant 0 : index
    %c1_52 = arith.constant 1 : index
    %c0_53 = arith.constant 0 : index
    %54 = vector.load %arg12[%c0_51, %c1_52, %c0_53] : memref<18x18x32xf32, #tpu.memory_space<vmem>>, vector<16x16x32xf32>
    %55 = arith.truncf %54 : vector<16x16x32xf32> to vector<16x16x32xbf16>
    %56 = vector.shape_cast %55 : vector<16x16x32xbf16> to vector<256x32xbf16>
    %c0_54 = arith.constant 0 : index
    %c2_55 = arith.constant 2 : index
    %c0_56 = arith.constant 0 : index
    %57 = vector.load %arg12[%c0_54, %c2_55, %c0_56] : memref<18x18x32xf32, #tpu.memory_space<vmem>>, vector<16x16x32xf32>
    %58 = arith.truncf %57 : vector<16x16x32xf32> to vector<16x16x32xbf16>
    %59 = vector.shape_cast %58 : vector<16x16x32xbf16> to vector<256x32xbf16>
    %c1_57 = arith.constant 1 : index
    %c0_58 = arith.constant 0 : index
    %c0_59 = arith.constant 0 : index
    %60 = vector.load %arg12[%c1_57, %c0_58, %c0_59] : memref<18x18x32xf32, #tpu.memory_space<vmem>>, vector<16x16x32xf32>
    %61 = arith.truncf %60 : vector<16x16x32xf32> to vector<16x16x32xbf16>
    %62 = vector.shape_cast %61 : vector<16x16x32xbf16> to vector<256x32xbf16>
    %c1_60 = arith.constant 1 : index
    %c1_61 = arith.constant 1 : index
    %c0_62 = arith.constant 0 : index
    %63 = vector.load %arg12[%c1_60, %c1_61, %c0_62] : memref<18x18x32xf32, #tpu.memory_space<vmem>>, vector<16x16x32xf32>
    %64 = arith.truncf %63 : vector<16x16x32xf32> to vector<16x16x32xbf16>
    %65 = vector.shape_cast %64 : vector<16x16x32xbf16> to vector<256x32xbf16>
    %c1_63 = arith.constant 1 : index
    %c2_64 = arith.constant 2 : index
    %c0_65 = arith.constant 0 : index
    %66 = vector.load %arg12[%c1_63, %c2_64, %c0_65] : memref<18x18x32xf32, #tpu.memory_space<vmem>>, vector<16x16x32xf32>
    %67 = arith.truncf %66 : vector<16x16x32xf32> to vector<16x16x32xbf16>
    %68 = vector.shape_cast %67 : vector<16x16x32xbf16> to vector<256x32xbf16>
    %c2_66 = arith.constant 2 : index
    %c0_67 = arith.constant 0 : index
    %c0_68 = arith.constant 0 : index
    %69 = vector.load %arg12[%c2_66, %c0_67, %c0_68] : memref<18x18x32xf32, #tpu.memory_space<vmem>>, vector<16x16x32xf32>
    %70 = arith.truncf %69 : vector<16x16x32xf32> to vector<16x16x32xbf16>
    %71 = vector.shape_cast %70 : vector<16x16x32xbf16> to vector<256x32xbf16>
    %c2_69 = arith.constant 2 : index
    %c1_70 = arith.constant 1 : index
    %c0_71 = arith.constant 0 : index
    %72 = vector.load %arg12[%c2_69, %c1_70, %c0_71] : memref<18x18x32xf32, #tpu.memory_space<vmem>>, vector<16x16x32xf32>
    %73 = arith.truncf %72 : vector<16x16x32xf32> to vector<16x16x32xbf16>
    %74 = vector.shape_cast %73 : vector<16x16x32xbf16> to vector<256x32xbf16>
    %c2_72 = arith.constant 2 : index
    %c2_73 = arith.constant 2 : index
    %c0_74 = arith.constant 0 : index
    %75 = vector.load %arg12[%c2_72, %c2_73, %c0_74] : memref<18x18x32xf32, #tpu.memory_space<vmem>>, vector<16x16x32xf32>
    %76 = arith.truncf %75 : vector<16x16x32xf32> to vector<16x16x32xbf16>
    %77 = vector.shape_cast %76 : vector<16x16x32xbf16> to vector<256x32xbf16>
    %78 = tpu.concatenate %53, %56, %59, %62, %65, %68, %71, %74, %77 in 1 : vector<256x32xbf16>, vector<256x32xbf16>, vector<256x32xbf16>, vector<256x32xbf16>, vector<256x32xbf16>, vector<256x32xbf16>, vector<256x32xbf16>, vector<256x32xbf16>, vector<256x32xbf16> -> vector<256x288xbf16>
    %c0_75 = arith.constant 0 : index
    %c0_76 = arith.constant 0 : index
    %79 = vector.load %arg5[%c0_75, %c0_76] : memref<288x32xbf16, #tpu.memory_space<vmem>>, vector<288x32xbf16>
    %cst_77 = arith.constant dense<0.000000e+00> : vector<256x32xf32>
    %80 = tpu.matmul %78, %79, %cst_77 {dimension_numbers = #tpu.dot_dimension_numbers<[1], [0], [0], [1], [0, 0, 1, 1], [], []>} : vector<256x288xbf16>, vector<288x32xbf16>, vector<256x32xf32> -> vector<256x32xf32>
    %c0_78 = arith.constant 0 : index
    %c0_79 = arith.constant 0 : index
    %81 = vector.load %arg6[%c0_78, %c0_79] : memref<1x32xf32, #tpu.memory_space<vmem>>, vector<1x32xf32>
    %82 = vector.broadcast %81 : vector<1x32xf32> to vector<256x32xf32>
    %83 = arith.addf %80, %82 : vector<256x32xf32>
    %cst_80 = arith.constant 0.000000e+00 : f32
    %84 = vector.broadcast %cst_80 : f32 to vector<256x32xf32>
    %85 = arith.maximumf %83, %84 : vector<256x32xf32>
    %86 = vector.shape_cast %85 : vector<256x32xf32> to vector<16x16x32xf32>
    %87 = tpu.concatenate %3, %86, %3 in 1 : vector<16x1x32xf32>, vector<16x16x32xf32>, vector<16x1x32xf32> -> vector<16x18x32xf32>
    %c1_81 = arith.constant 1 : index
    %c0_82 = arith.constant 0 : index
    %c0_83 = arith.constant 0 : index
    %88 = vector.load %arg12[%c1_81, %c0_82, %c0_83] : memref<18x18x32xf32, #tpu.memory_space<vmem>>, vector<16x18x32xf32>
    tpu.vector_store %arg12[%c1_81, %c0_82, %c0_83], %87 {strides = array<i32>} : memref<18x18x32xf32, #tpu.memory_space<vmem>>, vector<16x18x32xf32>,
    %c0_84 = arith.constant 0 : index
    %c0_85 = arith.constant 0 : index
    %c0_86 = arith.constant 0 : index
    %89 = vector.load %arg12[%c0_84, %c0_85, %c0_86] : memref<18x18x32xf32, #tpu.memory_space<vmem>>, vector<16x16x32xf32>
    %90 = arith.truncf %89 : vector<16x16x32xf32> to vector<16x16x32xbf16>
    %91 = vector.shape_cast %90 : vector<16x16x32xbf16> to vector<256x32xbf16>
    %c0_87 = arith.constant 0 : index
    %c1_88 = arith.constant 1 : index
    %c0_89 = arith.constant 0 : index
    %92 = vector.load %arg12[%c0_87, %c1_88, %c0_89] : memref<18x18x32xf32, #tpu.memory_space<vmem>>, vector<16x16x32xf32>
    %93 = arith.truncf %92 : vector<16x16x32xf32> to vector<16x16x32xbf16>
    %94 = vector.shape_cast %93 : vector<16x16x32xbf16> to vector<256x32xbf16>
    %c0_90 = arith.constant 0 : index
    %c2_91 = arith.constant 2 : index
    %c0_92 = arith.constant 0 : index
    %95 = vector.load %arg12[%c0_90, %c2_91, %c0_92] : memref<18x18x32xf32, #tpu.memory_space<vmem>>, vector<16x16x32xf32>
    %96 = arith.truncf %95 : vector<16x16x32xf32> to vector<16x16x32xbf16>
    %97 = vector.shape_cast %96 : vector<16x16x32xbf16> to vector<256x32xbf16>
    %c1_93 = arith.constant 1 : index
    %c0_94 = arith.constant 0 : index
    %c0_95 = arith.constant 0 : index
    %98 = vector.load %arg12[%c1_93, %c0_94, %c0_95] : memref<18x18x32xf32, #tpu.memory_space<vmem>>, vector<16x16x32xf32>
    %99 = arith.truncf %98 : vector<16x16x32xf32> to vector<16x16x32xbf16>
    %100 = vector.shape_cast %99 : vector<16x16x32xbf16> to vector<256x32xbf16>
    %c1_96 = arith.constant 1 : index
    %c1_97 = arith.constant 1 : index
    %c0_98 = arith.constant 0 : index
    %101 = vector.load %arg12[%c1_96, %c1_97, %c0_98] : memref<18x18x32xf32, #tpu.memory_space<vmem>>, vector<16x16x32xf32>
    %102 = arith.truncf %101 : vector<16x16x32xf32> to vector<16x16x32xbf16>
    %103 = vector.shape_cast %102 : vector<16x16x32xbf16> to vector<256x32xbf16>
    %c1_99 = arith.constant 1 : index
    %c2_100 = arith.constant 2 : index
    %c0_101 = arith.constant 0 : index
    %104 = vector.load %arg12[%c1_99, %c2_100, %c0_101] : memref<18x18x32xf32, #tpu.memory_space<vmem>>, vector<16x16x32xf32>
    %105 = arith.truncf %104 : vector<16x16x32xf32> to vector<16x16x32xbf16>
    %106 = vector.shape_cast %105 : vector<16x16x32xbf16> to vector<256x32xbf16>
    %c2_102 = arith.constant 2 : index
    %c0_103 = arith.constant 0 : index
    %c0_104 = arith.constant 0 : index
    %107 = vector.load %arg12[%c2_102, %c0_103, %c0_104] : memref<18x18x32xf32, #tpu.memory_space<vmem>>, vector<16x16x32xf32>
    %108 = arith.truncf %107 : vector<16x16x32xf32> to vector<16x16x32xbf16>
    %109 = vector.shape_cast %108 : vector<16x16x32xbf16> to vector<256x32xbf16>
    %c2_105 = arith.constant 2 : index
    %c1_106 = arith.constant 1 : index
    %c0_107 = arith.constant 0 : index
    %110 = vector.load %arg12[%c2_105, %c1_106, %c0_107] : memref<18x18x32xf32, #tpu.memory_space<vmem>>, vector<16x16x32xf32>
    %111 = arith.truncf %110 : vector<16x16x32xf32> to vector<16x16x32xbf16>
    %112 = vector.shape_cast %111 : vector<16x16x32xbf16> to vector<256x32xbf16>
    %c2_108 = arith.constant 2 : index
    %c2_109 = arith.constant 2 : index
    %c0_110 = arith.constant 0 : index
    %113 = vector.load %arg12[%c2_108, %c2_109, %c0_110] : memref<18x18x32xf32, #tpu.memory_space<vmem>>, vector<16x16x32xf32>
    %114 = arith.truncf %113 : vector<16x16x32xf32> to vector<16x16x32xbf16>
    %115 = vector.shape_cast %114 : vector<16x16x32xbf16> to vector<256x32xbf16>
    %116 = tpu.concatenate %91, %94, %97, %100, %103, %106, %109, %112, %115 in 1 : vector<256x32xbf16>, vector<256x32xbf16>, vector<256x32xbf16>, vector<256x32xbf16>, vector<256x32xbf16>, vector<256x32xbf16>, vector<256x32xbf16>, vector<256x32xbf16>, vector<256x32xbf16> -> vector<256x288xbf16>
    %c0_111 = arith.constant 0 : index
    %c0_112 = arith.constant 0 : index
    %117 = vector.load %arg7[%c0_111, %c0_112] : memref<288x32xbf16, #tpu.memory_space<vmem>>, vector<288x32xbf16>
    %cst_113 = arith.constant dense<0.000000e+00> : vector<256x32xf32>
    %118 = tpu.matmul %116, %117, %cst_113 {dimension_numbers = #tpu.dot_dimension_numbers<[1], [0], [0], [1], [0, 0, 1, 1], [], []>} : vector<256x288xbf16>, vector<288x32xbf16>, vector<256x32xf32> -> vector<256x32xf32>
    %c0_114 = arith.constant 0 : index
    %c0_115 = arith.constant 0 : index
    %119 = vector.load %arg8[%c0_114, %c0_115] : memref<1x32xf32, #tpu.memory_space<vmem>>, vector<1x32xf32>
    %120 = vector.broadcast %119 : vector<1x32xf32> to vector<256x32xf32>
    %121 = arith.addf %118, %120 : vector<256x32xf32>
    %cst_116 = arith.constant 0.000000e+00 : f32
    %122 = vector.broadcast %cst_116 : f32 to vector<256x32xf32>
    %123 = arith.maximumf %121, %122 : vector<256x32xf32>
    %124 = vector.shape_cast %123 : vector<256x32xf32> to vector<16x16x32xf32>
    %125 = tpu.concatenate %3, %124, %3 in 1 : vector<16x1x32xf32>, vector<16x16x32xf32>, vector<16x1x32xf32> -> vector<16x18x32xf32>
    %c1_117 = arith.constant 1 : index
    %c0_118 = arith.constant 0 : index
    %c0_119 = arith.constant 0 : index
    %126 = vector.load %arg12[%c1_117, %c0_118, %c0_119] : memref<18x18x32xf32, #tpu.memory_space<vmem>>, vector<16x18x32xf32>
    tpu.vector_store %arg12[%c1_117, %c0_118, %c0_119], %125 {strides = array<i32>} : memref<18x18x32xf32, #tpu.memory_space<vmem>>, vector<16x18x32xf32>,
    %c0_120 = arith.constant 0 : index
    %c0_121 = arith.constant 0 : index
    %c0_122 = arith.constant 0 : index
    %127 = vector.load %arg12[%c0_120, %c0_121, %c0_122] : memref<18x18x32xf32, #tpu.memory_space<vmem>>, vector<16x16x32xf32>
    %128 = arith.truncf %127 : vector<16x16x32xf32> to vector<16x16x32xbf16>
    %129 = vector.shape_cast %128 : vector<16x16x32xbf16> to vector<256x32xbf16>
    %c0_123 = arith.constant 0 : index
    %c1_124 = arith.constant 1 : index
    %c0_125 = arith.constant 0 : index
    %130 = vector.load %arg12[%c0_123, %c1_124, %c0_125] : memref<18x18x32xf32, #tpu.memory_space<vmem>>, vector<16x16x32xf32>
    %131 = arith.truncf %130 : vector<16x16x32xf32> to vector<16x16x32xbf16>
    %132 = vector.shape_cast %131 : vector<16x16x32xbf16> to vector<256x32xbf16>
    %c0_126 = arith.constant 0 : index
    %c2_127 = arith.constant 2 : index
    %c0_128 = arith.constant 0 : index
    %133 = vector.load %arg12[%c0_126, %c2_127, %c0_128] : memref<18x18x32xf32, #tpu.memory_space<vmem>>, vector<16x16x32xf32>
    %134 = arith.truncf %133 : vector<16x16x32xf32> to vector<16x16x32xbf16>
    %135 = vector.shape_cast %134 : vector<16x16x32xbf16> to vector<256x32xbf16>
    %c1_129 = arith.constant 1 : index
    %c0_130 = arith.constant 0 : index
    %c0_131 = arith.constant 0 : index
    %136 = vector.load %arg12[%c1_129, %c0_130, %c0_131] : memref<18x18x32xf32, #tpu.memory_space<vmem>>, vector<16x16x32xf32>
    %137 = arith.truncf %136 : vector<16x16x32xf32> to vector<16x16x32xbf16>
    %138 = vector.shape_cast %137 : vector<16x16x32xbf16> to vector<256x32xbf16>
    %c1_132 = arith.constant 1 : index
    %c1_133 = arith.constant 1 : index
    %c0_134 = arith.constant 0 : index
    %139 = vector.load %arg12[%c1_132, %c1_133, %c0_134] : memref<18x18x32xf32, #tpu.memory_space<vmem>>, vector<16x16x32xf32>
    %140 = arith.truncf %139 : vector<16x16x32xf32> to vector<16x16x32xbf16>
    %141 = vector.shape_cast %140 : vector<16x16x32xbf16> to vector<256x32xbf16>
    %c1_135 = arith.constant 1 : index
    %c2_136 = arith.constant 2 : index
    %c0_137 = arith.constant 0 : index
    %142 = vector.load %arg12[%c1_135, %c2_136, %c0_137] : memref<18x18x32xf32, #tpu.memory_space<vmem>>, vector<16x16x32xf32>
    %143 = arith.truncf %142 : vector<16x16x32xf32> to vector<16x16x32xbf16>
    %144 = vector.shape_cast %143 : vector<16x16x32xbf16> to vector<256x32xbf16>
    %c2_138 = arith.constant 2 : index
    %c0_139 = arith.constant 0 : index
    %c0_140 = arith.constant 0 : index
    %145 = vector.load %arg12[%c2_138, %c0_139, %c0_140] : memref<18x18x32xf32, #tpu.memory_space<vmem>>, vector<16x16x32xf32>
    %146 = arith.truncf %145 : vector<16x16x32xf32> to vector<16x16x32xbf16>
    %147 = vector.shape_cast %146 : vector<16x16x32xbf16> to vector<256x32xbf16>
    %c2_141 = arith.constant 2 : index
    %c1_142 = arith.constant 1 : index
    %c0_143 = arith.constant 0 : index
    %148 = vector.load %arg12[%c2_141, %c1_142, %c0_143] : memref<18x18x32xf32, #tpu.memory_space<vmem>>, vector<16x16x32xf32>
    %149 = arith.truncf %148 : vector<16x16x32xf32> to vector<16x16x32xbf16>
    %150 = vector.shape_cast %149 : vector<16x16x32xbf16> to vector<256x32xbf16>
    %c2_144 = arith.constant 2 : index
    %c2_145 = arith.constant 2 : index
    %c0_146 = arith.constant 0 : index
    %151 = vector.load %arg12[%c2_144, %c2_145, %c0_146] : memref<18x18x32xf32, #tpu.memory_space<vmem>>, vector<16x16x32xf32>
    %152 = arith.truncf %151 : vector<16x16x32xf32> to vector<16x16x32xbf16>
    %153 = vector.shape_cast %152 : vector<16x16x32xbf16> to vector<256x32xbf16>
    %154 = tpu.concatenate %129, %132, %135, %138, %141, %144, %147, %150, %153 in 1 : vector<256x32xbf16>, vector<256x32xbf16>, vector<256x32xbf16>, vector<256x32xbf16>, vector<256x32xbf16>, vector<256x32xbf16>, vector<256x32xbf16>, vector<256x32xbf16>, vector<256x32xbf16> -> vector<256x288xbf16>
    %c0_147 = arith.constant 0 : index
    %c0_148 = arith.constant 0 : index
    %155 = vector.load %arg9[%c0_147, %c0_148] : memref<4x288xbf16, #tpu.memory_space<vmem>>, vector<4x288xbf16>
    %cst_149 = arith.constant dense<0.000000e+00> : vector<4x256xf32>
    %156 = tpu.matmul %155, %154, %cst_149 {dimension_numbers = #tpu.dot_dimension_numbers<[1], [1], [0], [0], [0, 0, 1, 0], [], []>} : vector<4x288xbf16>, vector<256x288xbf16>, vector<4x256xf32> -> vector<4x256xf32>
    %c0_150 = arith.constant 0 : index
    %c0_151 = arith.constant 0 : index
    %157 = vector.load %arg10[%c0_150, %c0_151] : memref<4x1xf32, #tpu.memory_space<vmem>>, vector<4x1xf32>
    %158 = vector.broadcast %157 : vector<4x1xf32> to vector<4x256xf32>
    %159 = arith.addf %156, %158 : vector<4x256xf32>
    %c0_152 = arith.constant 0 : index
    %c0_153 = arith.constant 0 : index
    %c0_154 = arith.constant 0 : index
    %160 = vector.load %arg2[%c0_152, %c0_153, %c0_154] : memref<1x1x256xf32, #tpu.memory_space<vmem>>, vector<1x1x256xf32>
    %161 = vector.shape_cast %160 : vector<1x1x256xf32> to vector<1x256xf32>
    %162 = vector.broadcast %161 : vector<1x256xf32> to vector<4x256xf32>
    %163 = arith.addf %159, %162 : vector<4x256xf32>
    %c0_155 = arith.constant 0 : index
    %c0_156 = arith.constant 0 : index
    %c0_157 = arith.constant 0 : index
    %164 = vector.load %arg11[%c0_155, %c0_156, %c0_157] : memref<1x4x256xf32, #tpu.memory_space<vmem>>, vector<1x4x256xf32>
    %165 = vector.shape_cast %164 : vector<1x4x256xf32> to vector<4x256xf32>
    %166 = vector.shape_cast %163 : vector<4x256xf32> to vector<1x4x256xf32>
    tpu.vector_store %arg11[%c0_155, %c0_156, %c0_157], %166 {strides = array<i32>} : memref<1x4x256xf32, #tpu.memory_space<vmem>>, vector<1x4x256xf32>,
    return
  }
  func.func @transform_0(%arg0: i32) -> (i32, i32, i32, i32) {
    %c0_i32 = arith.constant 0 : i32
    %c0_i32_0 = arith.constant 0 : i32
    %c0_i32_1 = arith.constant 0 : i32
    %c0_i32_2 = arith.constant 0 : i32
    return %arg0, %c0_i32, %c0_i32_0, %c0_i32_1 : i32, i32, i32, i32
  }
  func.func @transform_1(%arg0: i32) -> (i32, i32, i32) {
    %c0_i32 = arith.constant 0 : i32
    %c0_i32_0 = arith.constant 0 : i32
    %c0_i32_1 = arith.constant 0 : i32
    return %arg0, %c0_i32, %c0_i32_0 : i32, i32, i32
  }
  func.func @transform_2(%arg0: i32) -> (i32, i32) {
    %c0_i32 = arith.constant 0 : i32
    %c0_i32_0 = arith.constant 0 : i32
    %c0_i32_1 = arith.constant 0 : i32
    return %c0_i32, %c0_i32_0 : i32, i32
  }
  func.func @transform_3(%arg0: i32) -> (i32, i32) {
    %c0_i32 = arith.constant 0 : i32
    %c0_i32_0 = arith.constant 0 : i32
    %c0_i32_1 = arith.constant 0 : i32
    return %c0_i32, %c0_i32_0 : i32, i32
  }
  func.func @transform_4(%arg0: i32) -> (i32, i32) {
    %c0_i32 = arith.constant 0 : i32
    %c0_i32_0 = arith.constant 0 : i32
    %c0_i32_1 = arith.constant 0 : i32
    return %c0_i32, %c0_i32_0 : i32, i32
  }
  func.func @transform_5(%arg0: i32) -> (i32, i32) {
    %c0_i32 = arith.constant 0 : i32
    %c0_i32_0 = arith.constant 0 : i32
    %c0_i32_1 = arith.constant 0 : i32
    return %c0_i32, %c0_i32_0 : i32, i32
  }
  func.func @transform_6(%arg0: i32) -> (i32, i32) {
    %c0_i32 = arith.constant 0 : i32
    %c0_i32_0 = arith.constant 0 : i32
    %c0_i32_1 = arith.constant 0 : i32
    return %c0_i32, %c0_i32_0 : i32, i32
  }
  func.func @transform_7(%arg0: i32) -> (i32, i32) {
    %c0_i32 = arith.constant 0 : i32
    %c0_i32_0 = arith.constant 0 : i32
    %c0_i32_1 = arith.constant 0 : i32
    return %c0_i32, %c0_i32_0 : i32, i32
  }
  func.func @transform_8(%arg0: i32) -> (i32, i32) {
    %c0_i32 = arith.constant 0 : i32
    %c0_i32_0 = arith.constant 0 : i32
    %c0_i32_1 = arith.constant 0 : i32
    return %c0_i32, %c0_i32_0 : i32, i32
  }
  func.func @transform_9(%arg0: i32) -> (i32, i32) {
    %c0_i32 = arith.constant 0 : i32
    %c0_i32_0 = arith.constant 0 : i32
    %c0_i32_1 = arith.constant 0 : i32
    return %c0_i32, %c0_i32_0 : i32, i32
  }
  func.func @transform_10(%arg0: i32) -> (i32, i32, i32) {
    %c0_i32 = arith.constant 0 : i32
    %c0_i32_0 = arith.constant 0 : i32
    %c0_i32_1 = arith.constant 0 : i32
    return %arg0, %c0_i32, %c0_i32_0 : i32, i32, i32
  }
}

</mosaic_0001>

<llo_original>
// kernel: rfs3_forward.1
$region0: #{rfs3_forward.1}
  #allocation0 [shape = 'u32[]', space=smem, size = 0x4, offset = 0x4, fixed_abs, tag = 'smem constant byte address 0x4 - core index']
  #allocation1 [shape = 'u32[72,128]{1,0:T(1,128)}', space=vmem, size = 0x9000, scoped, tag = 'internal scratch']
  #allocation2 [shape = 'f32[18,18,32]{2,1,0:T(8,128)}', space=vmem, size = 0x36000, scoped, tag = 'scratch operand']
  %s0 = inlined_call_operand.vmem [shape: f32[2,18,18,9], index: 0, kind: input, shape index: {}]
  %s1 = inlined_call_operand.vmem [shape: f32[2,1,256], index: 1, kind: input, shape index: {}]
  %s2 = inlined_call_operand.vmem [shape: bf16[81,32], index: 2, kind: input, shape index: {}]
  %s3 = inlined_call_operand.vmem [shape: f32[1,32], index: 3, kind: input, shape index: {}]
  %s4 = inlined_call_operand.vmem [shape: bf16[288,32], index: 4, kind: input, shape index: {}]
  %s5 = inlined_call_operand.vmem [shape: f32[1,32], index: 5, kind: input, shape index: {}]
  %s6 = inlined_call_operand.vmem [shape: bf16[288,32], index: 6, kind: input, shape index: {}]
  %s7 = inlined_call_operand.vmem [shape: f32[1,32], index: 7, kind: input, shape index: {}]
  %s8 = inlined_call_operand.vmem [shape: bf16[4,288], index: 8, kind: input, shape index: {}]
  %s9 = inlined_call_operand.vmem [shape: f32[4,1], index: 9, kind: input, shape index: {}]
  %s10 = inlined_call_operand.vmem [shape: f32[2,4,256], index: 10, kind: output, shape index: {}]
  %s11 = sld [smem:[#allocation0]]
  $region73: #{rfs3_forward.1} parent=0
    _
  %s13 = ssub.s32 1, %s11
  %s14 = scalar_select 0, %s13, %s11
  loop: start=0, step=1, limit=4
  $region2: #{rfs3_forward.1} parent=0 // loop_pre_header
    _
  $region3: #{rfs3_forward.1} parent=0 // loop_header
    %s16 = sphi 0, %s20
    %p17 = scmp.ge.s32.totalorder %s16, 4
    %s26 = sphi 0, %s28
    %s29 = sphi 0, %s26
    %s30 = sphi 0, %s29
    %s46 = sphi 0, %s30
    %s52 = sphi 0, %s54
    %s55 = sphi 0, %s52
    %s56 = sphi 0, %s55
    %s72 = sphi 0, %s56
    %s76 = sphi 0, %s76
    %s78 = sphi 0, %s76
    %s79 = sphi 0, %s78
    %s93 = sphi 0, %s79
    %s97 = sphi 0, %s97
    %s99 = sphi 0, %s97
    %s100 = sphi 0, %s99
    %s114 = sphi 0, %s100
    %s118 = sphi 0, %s118
    %s120 = sphi 0, %s118
    %s121 = sphi 0, %s120
    %s135 = sphi 0, %s121
    %s139 = sphi 0, %s139
    %s141 = sphi 0, %s139
    %s142 = sphi 0, %s141
    %s156 = sphi 0, %s142
    %s160 = sphi 0, %s160
    %s162 = sphi 0, %s160
    %s163 = sphi 0, %s162
    %s177 = sphi 0, %s163
    %s181 = sphi 0, %s181
    %s183 = sphi 0, %s181
    %s184 = sphi 0, %s183
    %s198 = sphi 0, %s184
    %s202 = sphi 0, %s202
    %s204 = sphi 0, %s202
    %s205 = sphi 0, %s204
    %s219 = sphi 0, %s205
    %s223 = sphi 0, %s223
    %s225 = sphi 0, %s223
    %s226 = sphi 0, %s225
    %s240 = sphi 0, %s226
    %s246 = sphi 0, %s248
    %s249 = sphi 0, %s246
    %s250 = sphi 0, %s249
    %s266 = sphi 0, %s250
  $region4: #{rfs3_forward.1} parent=0 // loop_header_branch
    %19 = sbr.rel (%p17) target = $region8
  $region5: #{rfs3_forward.1} parent=0 // loop_body
    %s21 = ssub.s32 %s16, 1
    %s22 = ssub.s32 %s16, 2
    %s23 = sadd.s32 %s16, 1
    %s24 = ssub.s32 %s16, %s23
    %p25 = scmp.eq.s32.totalorder %s24, 0
    %s27 = sadd.s32 %s26, 1
    %s28 = scalar_select %p25, %s26, %s27
    %p31 = pneg %p25
    %p32 = scmp.eq.s32.totalorder %s16, 1
    %p33 = por %p31, %p32
    %p34 = scmp.ne.s32.totalorder %s26, %s29
    %p35 = scmp.eq.s32.totalorder %s16, 0
    %p36 = por %p34, %p35
    %p37 = scmp.ne.s32.totalorder %s26, %s29
    %p38 = scmp.eq.s32.totalorder %s21, 1
    %p39 = por %p37, %p38
    %p40 = scmp.ne.s32.totalorder %s29, %s30
    %p41 = scmp.eq.s32.totalorder %s21, 0
    %p42 = por %p40, %p41
    %p43 = scmp.ne.s32.totalorder %s29, %s30
    %p44 = scmp.eq.s32.totalorder %s22, 1
    %p45 = por %p43, %p44
    %p47 = scmp.ne.s32.totalorder %s30, %s46
    %p48 = scmp.eq.s32.totalorder %s22, 0
    %p49 = por %p47, %p48
    %s50 = ssub.s32 %s16, %s23
    %p51 = scmp.eq.s32.totalorder %s50, 0
    %s53 = sadd.s32 %s52, 1
    %s54 = scalar_select %p51, %s52, %s53
    %p57 = pneg %p51
    %p58 = scmp.eq.s32.totalorder %s16, 1
    %p59 = por %p57, %p58
    %p60 = scmp.ne.s32.totalorder %s52, %s55
    %p61 = scmp.eq.s32.totalorder %s16, 0
    %p62 = por %p60, %p61
    %p63 = scmp.ne.s32.totalorder %s52, %s55
    %p64 = scmp.eq.s32.totalorder %s21, 1
    %p65 = por %p63, %p64
    %p66 = scmp.ne.s32.totalorder %s55, %s56
    %p67 = scmp.eq.s32.totalorder %s21, 0
    %p68 = por %p66, %p67
    %p69 = scmp.ne.s32.totalorder %s55, %s56
    %p70 = scmp.eq.s32.totalorder %s22, 1
    %p71 = por %p69, %p70
    %p73 = scmp.ne.s32.totalorder %s56, %s72
    %p74 = scmp.eq.s32.totalorder %s22, 0
    %p75 = por %p73, %p74
    %s77 = sadd.s32 %s76, 1
    %p80 = scmp.eq.s32.totalorder %s16, 1
    %p81 = scmp.ne.s32.totalorder %s76, %s78
    %p82 = scmp.eq.s32.totalorder %s16, 0
    %p83 = por %p81, %p82
    %p84 = scmp.ne.s32.totalorder %s76, %s78
    %p85 = scmp.eq.s32.totalorder %s21, 1
    %p86 = por %p84, %p85
    %p87 = scmp.ne.s32.totalorder %s78, %s79
    %p88 = scmp.eq.s32.totalorder %s21, 0
    %p89 = por %p87, %p88
    %p90 = scmp.ne.s32.totalorder %s78, %s79
    %p91 = scmp.eq.s32.totalorder %s22, 1
    %p92 = por %p90, %p91
    %p94 = scmp.ne.s32.totalorder %s79, %s93
    %p95 = scmp.eq.s32.totalorder %s22, 0
    %p96 = por %p94, %p95
    %s98 = sadd.s32 %s97, 1
    %p101 = scmp.eq.s32.totalorder %s16, 1
    %p102 = scmp.ne.s32.totalorder %s97, %s99
    %p103 = scmp.eq.s32.totalorder %s16, 0
    %p104 = por %p102, %p103
    %p105 = scmp.ne.s32.totalorder %s97, %s99
    %p106 = scmp.eq.s32.totalorder %s21, 1
    %p107 = por %p105, %p106
    %p108 = scmp.ne.s32.totalorder %s99, %s100
    %p109 = scmp.eq.s32.totalorder %s21, 0
    %p110 = por %p108, %p109
    %p111 = scmp.ne.s32.totalorder %s99, %s100
    %p112 = scmp.eq.s32.totalorder %s22, 1
    %p113 = por %p111, %p112
    %p115 = scmp.ne.s32.totalorder %s100, %s114
    %p116 = scmp.eq.s32.totalorder %s22, 0
    %p117 = por %p115, %p116
    %s119 = sadd.s32 %s118, 1
    %p122 = scmp.eq.s32.totalorder %s16, 1
    %p123 = scmp.ne.s32.totalorder %s118, %s120
    %p124 = scmp.eq.s32.totalorder %s16, 0
    %p125 = por %p123, %p124
    %p126 = scmp.ne.s32.totalorder %s118, %s120
    %p127 = scmp.eq.s32.totalorder %s21, 1
    %p128 = por %p126, %p127
    %p129 = scmp.ne.s32.totalorder %s120, %s121
    %p130 = scmp.eq.s32.totalorder %s21, 0
    %p131 = por %p129, %p130
    %p132 = scmp.ne.s32.totalorder %s120, %s121
    %p133 = scmp.eq.s32.totalorder %s22, 1
    %p134 = por %p132, %p133
    %p136 = scmp.ne.s32.totalorder %s121, %s135
    %p137 = scmp.eq.s32.totalorder %s22, 0
    %p138 = por %p136, %p137
    %s140 = sadd.s32 %s139, 1
    %p143 = scmp.eq.s32.totalorder %s16, 1
    %p144 = scmp.ne.s32.totalorder %s139, %s141
    %p145 = scmp.eq.s32.totalorder %s16, 0
    %p146 = por %p144, %p145
    %p147 = scmp.ne.s32.totalorder %s139, %s141
    %p148 = scmp.eq.s32.totalorder %s21, 1
    %p149 = por %p147, %p148
    %p150 = scmp.ne.s32.totalorder %s141, %s142
    %p151 = scmp.eq.s32.totalorder %s21, 0
    %p152 = por %p150, %p151
    %p153 = scmp.ne.s32.totalorder %s141, %s142
    %p154 = scmp.eq.s32.totalorder %s22, 1
    %p155 = por %p153, %p154
    %p157 = scmp.ne.s32.totalorder %s142, %s156
    %p158 = scmp.eq.s32.totalorder %s22, 0
    %p159 = por %p157, %p158
    %s161 = sadd.s32 %s160, 1
    %p164 = scmp.eq.s32.totalorder %s16, 1
    %p165 = scmp.ne.s32.totalorder %s160, %s162
    %p166 = scmp.eq.s32.totalorder %s16, 0
    %p167 = por %p165, %p166
    %p168 = scmp.ne.s32.totalorder %s160, %s162
    %p169 = scmp.eq.s32.totalorder %s21, 1
    %p170 = por %p168, %p169
    %p171 = scmp.ne.s32.totalorder %s162, %s163
    %p172 = scmp.eq.s32.totalorder %s21, 0
    %p173 = por %p171, %p172
    %p174 = scmp.ne.s32.totalorder %s162, %s163
    %p175 = scmp.eq.s32.totalorder %s22, 1
    %p176 = por %p174, %p175
    %p178 = scmp.ne.s32.totalorder %s163, %s177
    %p179 = scmp.eq.s32.totalorder %s22, 0
    %p180 = por %p178, %p179
    %s182 = sadd.s32 %s181, 1
    %p185 = scmp.eq.s32.totalorder %s16, 1
    %p186 = scmp.ne.s32.totalorder %s181, %s183
    %p187 = scmp.eq.s32.totalorder %s16, 0
    %p188 = por %p186, %p187
    %p189 = scmp.ne.s32.totalorder %s181, %s183
    %p190 = scmp.eq.s32.totalorder %s21, 1
    %p191 = por %p189, %p190
    %p192 = scmp.ne.s32.totalorder %s183, %s184
    %p193 = scmp.eq.s32.totalorder %s21, 0
    %p194 = por %p192, %p193
    %p195 = scmp.ne.s32.totalorder %s183, %s184
    %p196 = scmp.eq.s32.totalorder %s22, 1
    %p197 = por %p195, %p196
    %p199 = scmp.ne.s32.totalorder %s184, %s198
    %p200 = scmp.eq.s32.totalorder %s22, 0
    %p201 = por %p199, %p200
    %s203 = sadd.s32 %s202, 1
    %p206 = scmp.eq.s32.totalorder %s16, 1
    %p207 = scmp.ne.s32.totalorder %s202, %s204
    %p208 = scmp.eq.s32.totalorder %s16, 0
    %p209 = por %p207, %p208
    %p210 = scmp.ne.s32.totalorder %s202, %s204
    %p211 = scmp.eq.s32.totalorder %s21, 1
    %p212 = por %p210, %p211
    %p213 = scmp.ne.s32.totalorder %s204, %s205
    %p214 = scmp.eq.s32.totalorder %s21, 0
    %p215 = por %p213, %p214
    %p216 = scmp.ne.s32.totalorder %s204, %s205
    %p217 = scmp.eq.s32.totalorder %s22, 1
    %p218 = por %p216, %p217
    %p220 = scmp.ne.s32.totalorder %s205, %s219
    %p221 = scmp.eq.s32.totalorder %s22, 0
    %p222 = por %p220, %p221
    %s224 = sadd.s32 %s223, 1
    %p227 = scmp.eq.s32.totalorder %s16, 1
    %p228 = scmp.ne.s32.totalorder %s223, %s225
    %p229 = scmp.eq.s32.totalorder %s16, 0
    %p230 = por %p228, %p229
    %p231 = scmp.ne.s32.totalorder %s223, %s225
    %p232 = scmp.eq.s32.totalorder %s21, 1
    %p233 = por %p231, %p232
    %p234 = scmp.ne.s32.totalorder %s225, %s226
    %p235 = scmp.eq.s32.totalorder %s21, 0
    %p236 = por %p234, %p235
    %p237 = scmp.ne.s32.totalorder %s225, %s226
    %p238 = scmp.eq.s32.totalorder %s22, 1
    %p239 = por %p237, %p238
    %p241 = scmp.ne.s32.totalorder %s226, %s240
    %p242 = scmp.eq.s32.totalorder %s22, 0
    %p243 = por %p241, %p242
    %s244 = ssub.s32 %s16, %s23
    %p245 = scmp.eq.s32.totalorder %s244, 0
    %s247 = sadd.s32 %s246, 1
    %s248 = scalar_select %p245, %s246, %s247
    %p251 = pneg %p245
    %p252 = scmp.eq.s32.totalorder %s16, 1
    %p253 = por %p251, %p252
    %p254 = scmp.ne.s32.totalorder %s246, %s249
    %p255 = scmp.eq.s32.totalorder %s16, 0
    %p256 = por %p254, %p255
    %p257 = scmp.ne.s32.totalorder %s246, %s249
    %p258 = scmp.eq.s32.totalorder %s21, 1
    %p259 = por %p257, %p258
    %p260 = scmp.ne.s32.totalorder %s249, %s250
    %p261 = scmp.eq.s32.totalorder %s21, 0
    %p262 = por %p260, %p261
    %p263 = scmp.ne.s32.totalorder %s249, %s250
    %p264 = scmp.eq.s32.totalorder %s22, 1
    %p265 = por %p263, %p264
    %p267 = scmp.ne.s32.totalorder %s250, %s266
    %p268 = scmp.eq.s32.totalorder %s22, 0
    %p269 = por %p267, %p268
    %p270 = scmp.le.s32.totalorder 1, %s16
    %p271 = scmp.lt.s32.totalorder %s16, 3
    %p272 = pnand %p270, %p271
    %p273 = pneg %p272
    // Predicated region
    $region9: #{rfs3_forward.1} parent=5 // pred_check
      _
    $region10: #{rfs3_forward.1} parent=5 // pred_check_branch
      %275 = sbr.rel (%p272) target = $region12
    $region11: #{rfs3_forward.1} parent=5 // pred_region
      %s276 = ssub.s32 %s16, 1
      // Predicated region
      $region13: #{rfs3_forward.1} parent=11 // pred_check
        %p277 = pneg %p89
      $region14: #{rfs3_forward.1} parent=11 // pred_check_branch
        %279 = sbr.rel (%p277) target = $region16
      $region15: #{rfs3_forward.1} parent=11 // pred_region
        _
      $region16: #{rfs3_forward.1} parent=11 // pred_fallthru
        _
      // Predicated region
      $region17: #{rfs3_forward.1} parent=11 // pred_check
        %p280 = pneg %p110
      $region18: #{rfs3_forward.1} parent=11 // pred_check_branch
        %282 = sbr.rel (%p280) target = $region20
      $region19: #{rfs3_forward.1} parent=11 // pred_region
        _
      $region20: #{rfs3_forward.1} parent=11 // pred_fallthru
        _
      // Predicated region
      $region21: #{rfs3_forward.1} parent=11 // pred_check
        %p283 = pneg %p131
      $region22: #{rfs3_forward.1} parent=11 // pred_check_branch
        %285 = sbr.rel (%p283) target = $region24
      $region23: #{rfs3_forward.1} parent=11 // pred_region
        _
      $region24: #{rfs3_forward.1} parent=11 // pred_fallthru
        _
      // Predicated region
      $region25: #{rfs3_forward.1} parent=11 // pred_check
        %p286 = pneg %p152
      $region26: #{rfs3_forward.1} parent=11 // pred_check_branch
        %288 = sbr.rel (%p286) target = $region28
      $region27: #{rfs3_forward.1} parent=11 // pred_region
        _
      $region28: #{rfs3_forward.1} parent=11 // pred_fallthru
        _
      // Predicated region
      $region29: #{rfs3_forward.1} parent=11 // pred_check
        %p289 = pneg %p173
      $region30: #{rfs3_forward.1} parent=11 // pred_check_branch
        %291 = sbr.rel (%p289) target = $region32
      $region31: #{rfs3_forward.1} parent=11 // pred_region
        _
      $region32: #{rfs3_forward.1} parent=11 // pred_fallthru
        _
      // Predicated region
      $region33: #{rfs3_forward.1} parent=11 // pred_check
        %p292 = pneg %p194
      $region34: #{rfs3_forward.1} parent=11 // pred_check_branch
        %294 = sbr.rel (%p292) target = $region36
      $region35: #{rfs3_forward.1} parent=11 // pred_region
        _
      $region36: #{rfs3_forward.1} parent=11 // pred_fallthru
        _
      // Predicated region
      $region37: #{rfs3_forward.1} parent=11 // pred_check
        %p295 = pneg %p215
      $region38: #{rfs3_forward.1} parent=11 // pred_check_branch
        %297 = sbr.rel (%p295) target = $region40
      $region39: #{rfs3_forward.1} parent=11 // pred_region
        _
      $region40: #{rfs3_forward.1} parent=11 // pred_fallthru
        _
      // Predicated region
      $region41: #{rfs3_forward.1} parent=11 // pred_check
        %p298 = pneg %p236
      $region42: #{rfs3_forward.1} parent=11 // pred_check_branch
        %300 = sbr.rel (%p298) target = $region44
      $region43: #{rfs3_forward.1} parent=11 // pred_region
        _
      $region44: #{rfs3_forward.1} parent=11 // pred_fallthru
        _
    $region12: #{rfs3_forward.1} parent=5 // pred_fallthru
      _
    %p301 = scmp.lt.s32.totalorder %s16, 2
    // Predicated region
    $region45: #{rfs3_forward.1} parent=5 // pred_check
      %p302 = pneg %p301
    $region46: #{rfs3_forward.1} parent=5 // pred_check_branch
      %304 = sbr.rel (%p302) target = $region48
    $region47: #{rfs3_forward.1} parent=5 // pred_region
      // Predicated region
      $region49: #{rfs3_forward.1} parent=47 // pred_check
        %p305 = pneg %p36
      $region50: #{rfs3_forward.1} parent=47 // pred_check_branch
        %307 = sbr.rel (%p305) target = $region52
      $region51: #{rfs3_forward.1} parent=47 // pred_region
        %p308 = scmp.lt.s32.totalorder %s16, 1
        %s309 = scalar_select %p308, %s16, 1
        %s310 = smul.addr %s309, 54
        %s311 = smul.addr %s310, 8
        %s312 = scalar_lea.vmem %s0, %s311
      $region52: #{rfs3_forward.1} parent=47 // pred_fallthru
        _
      // Predicated region
      $region53: #{rfs3_forward.1} parent=47 // pred_check
        %p313 = pneg %p62
      $region54: #{rfs3_forward.1} parent=47 // pred_check_branch
        %315 = sbr.rel (%p313) target = $region56
      $region55: #{rfs3_forward.1} parent=47 // pred_region
        %p316 = scmp.lt.s32.totalorder %s16, 1
        %s317 = scalar_select %p316, %s16, 1
        %s318 = smul.addr %s317, 2
        %s319 = scalar_lea.vmem %s1, %s318
      $region56: #{rfs3_forward.1} parent=47 // pred_fallthru
        _
    $region48: #{rfs3_forward.1} parent=5 // pred_fallthru
      _
    %p320 = scmp.le.s32.totalorder 1, %s16
    %p321 = scmp.lt.s32.totalorder %s16, 3
    %p322 = pnand %p320, %p321
    %p323 = pneg %p322
    // Predicated region
    $region57: #{rfs3_forward.1} parent=5 // pred_check
      _
    $region58: #{rfs3_forward.1} parent=5 // pred_check_branch
      %325 = sbr.rel (%p322) target = $region60
    $region59: #{rfs3_forward.1} parent=5 // pred_region
      %s326 = ssub.s32 %s16, 1
      %p327 = scmp.lt.s32.totalorder %s21, 1
      %s328 = scalar_select %p327, %s21, 1
      %s329 = smul.addr %s328, 54
      %s330 = smul.addr %s329, 8
      %s331 = scalar_lea.vmem %s0, %s330
      %p332 = pneg %p42
      %p333 = pneg %p39
      %p334 = scmp.lt.s32.totalorder %s21, 1
      %s335 = scalar_select %p334, %s21, 1
      %s336 = smul.addr %s335, 2
      %s337 = scalar_lea.vmem %s1, %s336
      %p338 = pneg %p68
      %p339 = pneg %p65
      %p340 = pneg %p89
      %p341 = pneg %p86
      %p342 = pneg %p110
      %p343 = pneg %p107
      %p344 = pneg %p131
      %p345 = pneg %p128
      %p346 = pneg %p152
      %p347 = pneg %p149
      %p348 = pneg %p173
      %p349 = pneg %p170
      %p350 = pneg %p194
      %p351 = pneg %p191
      %p352 = pneg %p215
      %p353 = pneg %p212
      %p354 = pneg %p236
      %p355 = pneg %p233
      %p356 = pneg %p262
      %p357 = pneg %p259
      %p358 = scmp.lt.s32.totalorder %s21, 1
      %s359 = scalar_select %p358, %s21, 1
      %s360 = smul.addr %s359, 2
      %s361 = smul.addr %s360, 4
      %s362 = scalar_lea.vmem %s10, %s361
      %p363 = scmp.lt.s32.totalorder %s21, 1
      %s364 = scalar_select %p363, %s21, 1
      %s365 = smul.addr %s364, 54
      %s366 = smul.addr %s365, 8
      %s367 = scalar_lea.vmem %s0, %s366
      %p368 = scmp.lt.s32.totalorder %s21, 1
      %s369 = scalar_select %p368, %s21, 1
      %s370 = smul.addr %s369, 2
      %s371 = scalar_lea.vmem %s1, %s370
      %p372 = scmp.lt.s32.totalorder %s21, 1
      %s373 = scalar_select %p372, %s21, 1
      %s374 = smul.addr %s373, 2
      %s375 = smul.addr %s374, 4
      %s376 = scalar_lea.vmem %s10, %s375
      %vm378 = vcmask 261120
      %379 = vst.msk [vmem:[#allocation2] sm:$0xff] %vm378, 0.0
      %380 = vst.msk [vmem:[#allocation2 + $0x8] sm:$0xff] %vm378, 0.0
      %vm381 = vcmask 254976
      %382 = vst.msk [vmem:[#allocation2 + $0x10] sm:$0x3] %vm381, 0.0
      %s383 = scalar_lea.vmem [#allocation2], 408
      %384 = vst.msk [vmem:[%s383] sm:$0xff] %vm378, 0.0
      %385 = vst.msk [vmem:[%s383 + $0x8] sm:$0xff] %vm378, 0.0
      %386 = vst.msk [vmem:[%s383 + $0x10] sm:$0x3] %vm381, 0.0
      %v387 = vld [vmem:[%s367] sm:$0xff]
      %v388 = vld [vmem:[%s367 + $0x8] sm:$0xff]
      %v389 = vld [vmem:[%s367 + $0x18] sm:$0xff]
      %v390 = vld [vmem:[%s367 + $0x20] sm:$0xff]
      %v391 = vld [vmem:[%s367 + $0x30] sm:$0xff]
      %v392 = vld [vmem:[%s367 + $0x38] sm:$0xff]
      %v393 = vld [vmem:[%s367 + $0x48] sm:$0xff]
      %v394 = vld [vmem:[%s367 + $0x50] sm:$0xff]
      %v395 = vld [vmem:[%s367 + $0x60] sm:$0xff]
      %v396 = vld [vmem:[%s367 + $0x68] sm:$0xff]
      %v397 = vld [vmem:[%s367 + $0x78] sm:$0xff]
      %v398 = vld [vmem:[%s367 + $0x80] sm:$0xff]
      %v399 = vld [vmem:[%s367 + $0x90] sm:$0xff]
      %v400 = vld [vmem:[%s367 + $0x98] sm:$0xff]
      %v401 = vld [vmem:[%s367 + $0xa8] sm:$0xff]
      %v402 = vld [vmem:[%s367 + $0xb0] sm:$0xff]
      %v403 = vld [vmem:[%s367 + $0xc0] sm:$0xff]
      %v404 = vld [vmem:[%s367 + $0xc8] sm:$0xff]
      %v405 = vld [vmem:[%s367 + $0xd8] sm:$0xff]
      %v406 = vld [vmem:[%s367 + $0xe0] sm:$0xff]
      %v407 = vld [vmem:[%s367 + $0xf0] sm:$0xff]
      %v408 = vld [vmem:[%s367 + $0xf8] sm:$0xff]
      %v409 = vld [vmem:[%s367 + $0x108] sm:$0xff]
      %v410 = vld [vmem:[%s367 + $0x110] sm:$0xff]
      %v411 = vld [vmem:[%s367 + $0x120] sm:$0xff]
      %v412 = vld [vmem:[%s367 + $0x128] sm:$0xff]
      %v413 = vld [vmem:[%s367 + $0x138] sm:$0xff]
      %v414 = vld [vmem:[%s367 + $0x140] sm:$0xff]
      %v415 = vld [vmem:[%s367 + $0x150] sm:$0xff]
      %v416 = vld [vmem:[%s367 + $0x158] sm:$0xff]
      %v417 = vld [vmem:[%s367 + $0x168] sm:$0xff]
      %v418 = vld [vmem:[%s367 + $0x170] sm:$0xff]
      %v419 = vpack.c.bf16 %v387, %v387
      %v420 = vpack.c.bf16 %v388, %v388
      %v421 = vpack.c.bf16 %v389, %v389
      %v422 = vpack.c.bf16 %v390, %v390
      %v423 = vpack.c.bf16 %v391, %v391
      %v424 = vpack.c.bf16 %v392, %v392
      %v425 = vpack.c.bf16 %v393, %v393
      %v426 = vpack.c.bf16 %v394, %v394
      %v427 = vpack.c.bf16 %v395, %v395
      %v428 = vpack.c.bf16 %v396, %v396
      %v429 = vpack.c.bf16 %v397, %v397
      %v430 = vpack.c.bf16 %v398, %v398
      %v431 = vpack.c.bf16 %v399, %v399
      %v432 = vpack.c.bf16 %v400, %v400
      %v433 = vpack.c.bf16 %v401, %v401
      %v434 = vpack.c.bf16 %v402, %v402
      %v435 = vpack.c.bf16 %v403, %v403
      %v436 = vpack.c.bf16 %v404, %v404
      %v437 = vpack.c.bf16 %v405, %v405
      %v438 = vpack.c.bf16 %v406, %v406
      %v439 = vpack.c.bf16 %v407, %v407
      %v440 = vpack.c.bf16 %v408, %v408
      %v441 = vpack.c.bf16 %v409, %v409
      %v442 = vpack.c.bf16 %v410, %v410
      %v443 = vpack.c.bf16 %v411, %v411
      %v444 = vpack.c.bf16 %v412, %v412
      %v445 = vpack.c.bf16 %v413, %v413
      %v446 = vpack.c.bf16 %v414, %v414
      %v447 = vpack.c.bf16 %v415, %v415
      %v448 = vpack.c.bf16 %v416, %v416
      %v449 = vpack.c.bf16 %v417, %v417
      %v450 = vpack.c.bf16 %v418, %v418
      %v451 = vld [vmem:[%s367 + $0x1] sm:$0xff]
      %v452 = vld [vmem:[%s367 + $0x9] sm:$0xff]
      %v453 = vld [vmem:[%s367 + $0x19] sm:$0xff]
      %v454 = vld [vmem:[%s367 + $0x21] sm:$0xff]
      %v455 = vld [vmem:[%s367 + $0x31] sm:$0xff]
      %v456 = vld [vmem:[%s367 + $0x39] sm:$0xff]
      %v457 = vld [vmem:[%s367 + $0x49] sm:$0xff]
      %v458 = vld [vmem:[%s367 + $0x51] sm:$0xff]
      %v459 = vld [vmem:[%s367 + $0x61] sm:$0xff]
      %v460 = vld [vmem:[%s367 + $0x69] sm:$0xff]
      %v461 = vld [vmem:[%s367 + $0x79] sm:$0xff]
      %v462 = vld [vmem:[%s367 + $0x81] sm:$0xff]
      %v463 = vld [vmem:[%s367 + $0x91] sm:$0xff]
      %v464 = vld [vmem:[%s367 + $0x99] sm:$0xff]
      %v465 = vld [vmem:[%s367 + $0xa9] sm:$0xff]
      %v466 = vld [vmem:[%s367 + $0xb1] sm:$0xff]
      %v467 = vld [vmem:[%s367 + $0xc1] sm:$0xff]
      %v468 = vld [vmem:[%s367 + $0xc9] sm:$0xff]
      %v469 = vld [vmem:[%s367 + $0xd9] sm:$0xff]
      %v470 = vld [vmem:[%s367 + $0xe1] sm:$0xff]
      %v471 = vld [vmem:[%s367 + $0xf1] sm:$0xff]
      %v472 = vld [vmem:[%s367 + $0xf9] sm:$0xff]
      %v473 = vld [vmem:[%s367 + $0x109] sm:$0xff]
      %v474 = vld [vmem:[%s367 + $0x111] sm:$0xff]
      %v475 = vld [vmem:[%s367 + $0x121] sm:$0xff]
      %v476 = vld [vmem:[%s367 + $0x129] sm:$0xff]
      %v477 = vld [vmem:[%s367 + $0x139] sm:$0xff]
      %v478 = vld [vmem:[%s367 + $0x141] sm:$0xff]
      %v479 = vld [vmem:[%s367 + $0x151] sm:$0xff]
      %v480 = vld [vmem:[%s367 + $0x159] sm:$0xff]
      %v481 = vld [vmem:[%s367 + $0x169] sm:$0xff]
      %v482 = vld [vmem:[%s367 + $0x171] sm:$0xff]
      %v483 = vpack.c.bf16 %v451, %v451
      %v484 = vpack.c.bf16 %v452, %v452
      %v485 = vpack.c.bf16 %v453, %v453
      %v486 = vpack.c.bf16 %v454, %v454
      %v487 = vpack.c.bf16 %v455, %v455
      %v488 = vpack.c.bf16 %v456, %v456
      %v489 = vpack.c.bf16 %v457, %v457
      %v490 = vpack.c.bf16 %v458, %v458
      %v491 = vpack.c.bf16 %v459, %v459
      %v492 = vpack.c.bf16 %v460, %v460
      %v493 = vpack.c.bf16 %v461, %v461
      %v494 = vpack.c.bf16 %v462, %v462
      %v495 = vpack.c.bf16 %v463, %v463
      %v496 = vpack.c.bf16 %v464, %v464
      %v497 = vpack.c.bf16 %v465, %v465
      %v498 = vpack.c.bf16 %v466, %v466
      %v499 = vpack.c.bf16 %v467, %v467
      %v500 = vpack.c.bf16 %v468, %v468
      %v501 = vpack.c.bf16 %v469, %v469
      %v502 = vpack.c.bf16 %v470, %v470
      %v503 = vpack.c.bf16 %v471, %v471
      %v504 = vpack.c.bf16 %v472, %v472
      %v505 = vpack.c.bf16 %v473, %v473
      %v506 = vpack.c.bf16 %v474, %v474
      %v507 = vpack.c.bf16 %v475, %v475
      %v508 = vpack.c.bf16 %v476, %v476
      %v509 = vpack.c.bf16 %v477, %v477
      %v510 = vpack.c.bf16 %v478, %v478
      %v511 = vpack.c.bf16 %v479, %v479
      %v512 = vpack.c.bf16 %v480, %v480
      %v513 = vpack.c.bf16 %v481, %v481
      %v514 = vpack.c.bf16 %v482, %v482
      %v515 = vld [vmem:[%s367 + $0x2] sm:$0xff]
      %v516 = vld [vmem:[%s367 + $0xa] sm:$0xff]
      %v517 = vld [vmem:[%s367 + $0x1a] sm:$0xff]
      %v518 = vld [vmem:[%s367 + $0x22] sm:$0xff]
      %v519 = vld [vmem:[%s367 + $0x32] sm:$0xff]
      %v520 = vld [vmem:[%s367 + $0x3a] sm:$0xff]
      %v521 = vld [vmem:[%s367 + $0x4a] sm:$0xff]
      %v522 = vld [vmem:[%s367 + $0x52] sm:$0xff]
      %v523 = vld [vmem:[%s367 + $0x62] sm:$0xff]
      %v524 = vld [vmem:[%s367 + $0x6a] sm:$0xff]
      %v525 = vld [vmem:[%s367 + $0x7a] sm:$0xff]
      %v526 = vld [vmem:[%s367 + $0x82] sm:$0xff]
      %v527 = vld [vmem:[%s367 + $0x92] sm:$0xff]
      %v528 = vld [vmem:[%s367 + $0x9a] sm:$0xff]
      %v529 = vld [vmem:[%s367 + $0xaa] sm:$0xff]
      %v530 = vld [vmem:[%s367 + $0xb2] sm:$0xff]
      %v531 = vld [vmem:[%s367 + $0xc2] sm:$0xff]
      %v532 = vld [vmem:[%s367 + $0xca] sm:$0xff]
      %v533 = vld [vmem:[%s367 + $0xda] sm:$0xff]
      %v534 = vld [vmem:[%s367 + $0xe2] sm:$0xff]
      %v535 = vld [vmem:[%s367 + $0xf2] sm:$0xff]
      %v536 = vld [vmem:[%s367 + $0xfa] sm:$0xff]
      %v537 = vld [vmem:[%s367 + $0x10a] sm:$0xff]
      %v538 = vld [vmem:[%s367 + $0x112] sm:$0xff]
      %v539 = vld [vmem:[%s367 + $0x122] sm:$0xff]
      %v540 = vld [vmem:[%s367 + $0x12a] sm:$0xff]
      %v541 = vld [vmem:[%s367 + $0x13a] sm:$0xff]
      %v542 = vld [vmem:[%s367 + $0x142] sm:$0xff]
      %v543 = vld [vmem:[%s367 + $0x152] sm:$0xff]
      %v544 = vld [vmem:[%s367 + $0x15a] sm:$0xff]
      %v545 = vld [vmem:[%s367 + $0x16a] sm:$0xff]
      %v546 = vld [vmem:[%s367 + $0x172] sm:$0xff]
      %v547 = vpack.c.bf16 %v515, %v515
      %v548 = vpack.c.bf16 %v516, %v516
      %v549 = vpack.c.bf16 %v517, %v517
      %v550 = vpack.c.bf16 %v518, %v518
      %v551 = vpack.c.bf16 %v519, %v519
      %v552 = vpack.c.bf16 %v520, %v520
      %v553 = vpack.c.bf16 %v521, %v521
      %v554 = vpack.c.bf16 %v522, %v522
      %v555 = vpack.c.bf16 %v523, %v523
      %v556 = vpack.c.bf16 %v524, %v524
      %v557 = vpack.c.bf16 %v525, %v525
      %v558 = vpack.c.bf16 %v526, %v526
      %v559 = vpack.c.bf16 %v527, %v527
      %v560 = vpack.c.bf16 %v528, %v528
      %v561 = vpack.c.bf16 %v529, %v529
      %v562 = vpack.c.bf16 %v530, %v530
      %v563 = vpack.c.bf16 %v531, %v531
      %v564 = vpack.c.bf16 %v532, %v532
      %v565 = vpack.c.bf16 %v533, %v533
      %v566 = vpack.c.bf16 %v534, %v534
      %v567 = vpack.c.bf16 %v535, %v535
      %v568 = vpack.c.bf16 %v536, %v536
      %v569 = vpack.c.bf16 %v537, %v537
      %v570 = vpack.c.bf16 %v538, %v538
      %v571 = vpack.c.bf16 %v539, %v539
      %v572 = vpack.c.bf16 %v540, %v540
      %v573 = vpack.c.bf16 %v541, %v541
      %v574 = vpack.c.bf16 %v542, %v542
      %v575 = vpack.c.bf16 %v543, %v543
      %v576 = vpack.c.bf16 %v544, %v544
      %v577 = vpack.c.bf16 %v545, %v545
      %v578 = vpack.c.bf16 %v546, %v546
      %s579 = scalar_lea.vmem %s367, 24
      %v580 = vld [vmem:[%s579] sm:$0xff]
      %v581 = vld [vmem:[%s579 + $0x8] sm:$0xff]
      %v582 = vld [vmem:[%s579 + $0x18] sm:$0xff]
      %v583 = vld [vmem:[%s579 + $0x20] sm:$0xff]
      %v584 = vld [vmem:[%s579 + $0x30] sm:$0xff]
      %v585 = vld [vmem:[%s579 + $0x38] sm:$0xff]
      %v586 = vld [vmem:[%s579 + $0x48] sm:$0xff]
      %v587 = vld [vmem:[%s579 + $0x50] sm:$0xff]
      %v588 = vld [vmem:[%s579 + $0x60] sm:$0xff]
      %v589 = vld [vmem:[%s579 + $0x68] sm:$0xff]
      %v590 = vld [vmem:[%s579 + $0x78] sm:$0xff]
      %v591 = vld [vmem:[%s579 + $0x80] sm:$0xff]
      %v592 = vld [vmem:[%s579 + $0x90] sm:$0xff]
      %v593 = vld [vmem:[%s579 + $0x98] sm:$0xff]
      %v594 = vld [vmem:[%s579 + $0xa8] sm:$0xff]
      %v595 = vld [vmem:[%s579 + $0xb0] sm:$0xff]
      %v596 = vld [vmem:[%s579 + $0xc0] sm:$0xff]
      %v597 = vld [vmem:[%s579 + $0xc8] sm:$0xff]
      %v598 = vld [vmem:[%s579 + $0xd8] sm:$0xff]
      %v599 = vld [vmem:[%s579 + $0xe0] sm:$0xff]
      %v600 = vld [vmem:[%s579 + $0xf0] sm:$0xff]
      %v601 = vld [vmem:[%s579 + $0xf8] sm:$0xff]
      %v602 = vld [vmem:[%s579 + $0x108] sm:$0xff]
      %v603 = vld [vmem:[%s579 + $0x110] sm:$0xff]
      %v604 = vld [vmem:[%s579 + $0x120] sm:$0xff]
      %v605 = vld [vmem:[%s579 + $0x128] sm:$0xff]
      %v606 = vld [vmem:[%s579 + $0x138] sm:$0xff]
      %v607 = vld [vmem:[%s579 + $0x140] sm:$0xff]
      %v608 = vld [vmem:[%s579 + $0x150] sm:$0xff]
      %v609 = vld [vmem:[%s579 + $0x158] sm:$0xff]
      %v610 = vld [vmem:[%s579 + $0x168] sm:$0xff]
      %v611 = vld [vmem:[%s579 + $0x170] sm:$0xff]
      %v612 = vpack.c.bf16 %v580, %v580
      %v613 = vpack.c.bf16 %v581, %v581
      %v614 = vpack.c.bf16 %v582, %v582
      %v615 = vpack.c.bf16 %v583, %v583
      %v616 = vpack.c.bf16 %v584, %v584
      %v617 = vpack.c.bf16 %v585, %v585
      %v618 = vpack.c.bf16 %v586, %v586
      %v619 = vpack.c.bf16 %v587, %v587
      %v620 = vpack.c.bf16 %v588, %v588
      %v621 = vpack.c.bf16 %v589, %v589
      %v622 = vpack.c.bf16 %v590, %v590
      %v623 = vpack.c.bf16 %v591, %v591
      %v624 = vpack.c.bf16 %v592, %v592
      %v625 = vpack.c.bf16 %v593, %v593
      %v626 = vpack.c.bf16 %v594, %v594
      %v627 = vpack.c.bf16 %v595, %v595
      %v628 = vpack.c.bf16 %v596, %v596
      %v629 = vpack.c.bf16 %v597, %v597
      %v630 = vpack.c.bf16 %v598, %v598
      %v631 = vpack.c.bf16 %v599, %v599
      %v632 = vpack.c.bf16 %v600, %v600
      %v633 = vpack.c.bf16 %v601, %v601
      %v634 = vpack.c.bf16 %v602, %v602
      %v635 = vpack.c.bf16 %v603, %v603
      %v636 = vpack.c.bf16 %v604, %v604
      %v637 = vpack.c.bf16 %v605, %v605
      %v638 = vpack.c.bf16 %v606, %v606
      %v639 = vpack.c.bf16 %v607, %v607
      %v640 = vpack.c.bf16 %v608, %v608
      %v641 = vpack.c.bf16 %v609, %v609
      %v642 = vpack.c.bf16 %v610, %v610
      %v643 = vpack.c.bf16 %v611, %v611
      %v644 = vld [vmem:[%s579 + $0x1] sm:$0xff]
      %v645 = vld [vmem:[%s579 + $0x9] sm:$0xff]
      %v646 = vld [vmem:[%s579 + $0x19] sm:$0xff]
      %v647 = vld [vmem:[%s579 + $0x21] sm:$0xff]
      %v648 = vld [vmem:[%s579 + $0x31] sm:$0xff]
      %v649 = vld [vmem:[%s579 + $0x39] sm:$0xff]
      %v650 = vld [vmem:[%s579 + $0x49] sm:$0xff]
      %v651 = vld [vmem:[%s579 + $0x51] sm:$0xff]
      %v652 = vld [vmem:[%s579 + $0x61] sm:$0xff]
      %v653 = vld [vmem:[%s579 + $0x69] sm:$0xff]
      %v654 = vld [vmem:[%s579 + $0x79] sm:$0xff]
      %v655 = vld [vmem:[%s579 + $0x81] sm:$0xff]
      %v656 = vld [vmem:[%s579 + $0x91] sm:$0xff]
      %v657 = vld [vmem:[%s579 + $0x99] sm:$0xff]
      %v658 = vld [vmem:[%s579 + $0xa9] sm:$0xff]
      %v659 = vld [vmem:[%s579 + $0xb1] sm:$0xff]
      %v660 = vld [vmem:[%s579 + $0xc1] sm:$0xff]
      %v661 = vld [vmem:[%s579 + $0xc9] sm:$0xff]
      %v662 = vld [vmem:[%s579 + $0xd9] sm:$0xff]
      %v663 = vld [vmem:[%s579 + $0xe1] sm:$0xff]
      %v664 = vld [vmem:[%s579 + $0xf1] sm:$0xff]
      %v665 = vld [vmem:[%s579 + $0xf9] sm:$0xff]
      %v666 = vld [vmem:[%s579 + $0x109] sm:$0xff]
      %v667 = vld [vmem:[%s579 + $0x111] sm:$0xff]
      %v668 = vld [vmem:[%s579 + $0x121] sm:$0xff]
      %v669 = vld [vmem:[%s579 + $0x129] sm:$0xff]
      %v670 = vld [vmem:[%s579 + $0x139] sm:$0xff]
      %v671 = vld [vmem:[%s579 + $0x141] sm:$0xff]
      %v672 = vld [vmem:[%s579 + $0x151] sm:$0xff]
      %v673 = vld [vmem:[%s579 + $0x159] sm:$0xff]
      %v674 = vld [vmem:[%s579 + $0x169] sm:$0xff]
      %v675 = vld [vmem:[%s579 + $0x171] sm:$0xff]
      %v676 = vpack.c.bf16 %v644, %v644
      %v677 = vpack.c.bf16 %v645, %v645
      %v678 = vpack.c.bf16 %v646, %v646
      %v679 = vpack.c.bf16 %v647, %v647
      %v680 = vpack.c.bf16 %v648, %v648
      %v681 = vpack.c.bf16 %v649, %v649
      %v682 = vpack.c.bf16 %v650, %v650
      %v683 = vpack.c.bf16 %v651, %v651
      %v684 = vpack.c.bf16 %v652, %v652
      %v685 = vpack.c.bf16 %v653, %v653
      %v686 = vpack.c.bf16 %v654, %v654
      %v687 = vpack.c.bf16 %v655, %v655
      %v688 = vpack.c.bf16 %v656, %v656
      %v689 = vpack.c.bf16 %v657, %v657
      %v690 = vpack.c.bf16 %v658, %v658
      %v691 = vpack.c.bf16 %v659, %v659
      %v692 = vpack.c.bf16 %v660, %v660
      %v693 = vpack.c.bf16 %v661, %v661
      %v694 = vpack.c.bf16 %v662, %v662
      %v695 = vpack.c.bf16 %v663, %v663
      %v696 = vpack.c.bf16 %v664, %v664
      %v697 = vpack.c.bf16 %v665, %v665
      %v698 = vpack.c.bf16 %v666, %v666
      %v699 = vpack.c.bf16 %v667, %v667
      %v700 = vpack.c.bf16 %v668, %v668
      %v701 = vpack.c.bf16 %v669, %v669
      %v702 = vpack.c.bf16 %v670, %v670
      %v703 = vpack.c.bf16 %v671, %v671
      %v704 = vpack.c.bf16 %v672, %v672
      %v705 = vpack.c.bf16 %v673, %v673
      %v706 = vpack.c.bf16 %v674, %v674
      %v707 = vpack.c.bf16 %v675, %v675
      %v708 = vld [vmem:[%s579 + $0x2] sm:$0xff]
      %v709 = vld [vmem:[%s579 + $0xa] sm:$0xff]
      %v710 = vld [vmem:[%s579 + $0x1a] sm:$0xff]
      %v711 = vld [vmem:[%s579 + $0x22] sm:$0xff]
      %v712 = vld [vmem:[%s579 + $0x32] sm:$0xff]
      %v713 = vld [vmem:[%s579 + $0x3a] sm:$0xff]
      %v714 = vld [vmem:[%s579 + $0x4a] sm:$0xff]
      %v715 = vld [vmem:[%s579 + $0x52] sm:$0xff]
      %v716 = vld [vmem:[%s579 + $0x62] sm:$0xff]
      %v717 = vld [vmem:[%s579 + $0x6a] sm:$0xff]
      %v718 = vld [vmem:[%s579 + $0x7a] sm:$0xff]
      %v719 = vld [vmem:[%s579 + $0x82] sm:$0xff]
      %v720 = vld [vmem:[%s579 + $0x92] sm:$0xff]
      %v721 = vld [vmem:[%s579 + $0x9a] sm:$0xff]
      %v722 = vld [vmem:[%s579 + $0xaa] sm:$0xff]
      %v723 = vld [vmem:[%s579 + $0xb2] sm:$0xff]
      %v724 = vld [vmem:[%s579 + $0xc2] sm:$0xff]
      %v725 = vld [vmem:[%s579 + $0xca] sm:$0xff]
      %v726 = vld [vmem:[%s579 + $0xda] sm:$0xff]
      %v727 = vld [vmem:[%s579 + $0xe2] sm:$0xff]
      %v728 = vld [vmem:[%s579 + $0xf2] sm:$0xff]
      %v729 = vld [vmem:[%s579 + $0xfa] sm:$0xff]
      %v730 = vld [vmem:[%s579 + $0x10a] sm:$0xff]
      %v731 = vld [vmem:[%s579 + $0x112] sm:$0xff]
      %v732 = vld [vmem:[%s579 + $0x122] sm:$0xff]
      %v733 = vld [vmem:[%s579 + $0x12a] sm:$0xff]
      %v734 = vld [vmem:[%s579 + $0x13a] sm:$0xff]
      %v735 = vld [vmem:[%s579 + $0x142] sm:$0xff]
      %v736 = vld [vmem:[%s579 + $0x152] sm:$0xff]
      %v737 = vld [vmem:[%s579 + $0x15a] sm:$0xff]
      %v738 = vld [vmem:[%s579 + $0x16a] sm:$0xff]
      %v739 = vld [vmem:[%s579 + $0x172] sm:$0xff]
      %v740 = vpack.c.bf16 %v708, %v708
      %v741 = vpack.c.bf16 %v709, %v709
      %v742 = vpack.c.bf16 %v710, %v710
      %v743 = vpack.c.bf16 %v711, %v711
      %v744 = vpack.c.bf16 %v712, %v712
      %v745 = vpack.c.bf16 %v713, %v713
      %v746 = vpack.c.bf16 %v714, %v714
      %v747 = vpack.c.bf16 %v715, %v715
      %v748 = vpack.c.bf16 %v716, %v716
      %v749 = vpack.c.bf16 %v717, %v717
      %v750 = vpack.c.bf16 %v718, %v718
      %v751 = vpack.c.bf16 %v719, %v719
      %v752 = vpack.c.bf16 %v720, %v720
      %v753 = vpack.c.bf16 %v721, %v721
      %v754 = vpack.c.bf16 %v722, %v722
      %v755 = vpack.c.bf16 %v723, %v723
      %v756 = vpack.c.bf16 %v724, %v724
      %v757 = vpack.c.bf16 %v725, %v725
      %v758 = vpack.c.bf16 %v726, %v726
      %v759 = vpack.c.bf16 %v727, %v727
      %v760 = vpack.c.bf16 %v728, %v728
      %v761 = vpack.c.bf16 %v729, %v729
      %v762 = vpack.c.bf16 %v730, %v730
      %v763 = vpack.c.bf16 %v731, %v731
      %v764 = vpack.c.bf16 %v732, %v732
      %v765 = vpack.c.bf16 %v733, %v733
      %v766 = vpack.c.bf16 %v734, %v734
      %v767 = vpack.c.bf16 %v735, %v735
      %v768 = vpack.c.bf16 %v736, %v736
      %v769 = vpack.c.bf16 %v737, %v737
      %v770 = vpack.c.bf16 %v738, %v738
      %v771 = vpack.c.bf16 %v739, %v739
      %s772 = scalar_lea.vmem %s367, 48
      %v773 = vld [vmem:[%s772] sm:$0xff]
      %v774 = vld [vmem:[%s772 + $0x8] sm:$0xff]
      %v775 = vld [vmem:[%s772 + $0x18] sm:$0xff]
      %v776 = vld [vmem:[%s772 + $0x20] sm:$0xff]
      %v777 = vld [vmem:[%s772 + $0x30] sm:$0xff]
      %v778 = vld [vmem:[%s772 + $0x38] sm:$0xff]
      %v779 = vld [vmem:[%s772 + $0x48] sm:$0xff]
      %v780 = vld [vmem:[%s772 + $0x50] sm:$0xff]
      %v781 = vld [vmem:[%s772 + $0x60] sm:$0xff]
      %v782 = vld [vmem:[%s772 + $0x68] sm:$0xff]
      %v783 = vld [vmem:[%s772 + $0x78] sm:$0xff]
      %v784 = vld [vmem:[%s772 + $0x80] sm:$0xff]
      %v785 = vld [vmem:[%s772 + $0x90] sm:$0xff]
      %v786 = vld [vmem:[%s772 + $0x98] sm:$0xff]
      %v787 = vld [vmem:[%s772 + $0xa8] sm:$0xff]
      %v788 = vld [vmem:[%s772 + $0xb0] sm:$0xff]
      %v789 = vld [vmem:[%s772 + $0xc0] sm:$0xff]
      %v790 = vld [vmem:[%s772 + $0xc8] sm:$0xff]
      %v791 = vld [vmem:[%s772 + $0xd8] sm:$0xff]
      %v792 = vld [vmem:[%s772 + $0xe0] sm:$0xff]
      %v793 = vld [vmem:[%s772 + $0xf0] sm:$0xff]
      %v794 = vld [vmem:[%s772 + $0xf8] sm:$0xff]
      %v795 = vld [vmem:[%s772 + $0x108] sm:$0xff]
      %v796 = vld [vmem:[%s772 + $0x110] sm:$0xff]
      %v797 = vld [vmem:[%s772 + $0x120] sm:$0xff]
      %v798 = vld [vmem:[%s772 + $0x128] sm:$0xff]
      %v799 = vld [vmem:[%s772 + $0x138] sm:$0xff]
      %v800 = vld [vmem:[%s772 + $0x140] sm:$0xff]
      %v801 = vld [vmem:[%s772 + $0x150] sm:$0xff]
      %v802 = vld [vmem:[%s772 + $0x158] sm:$0xff]
      %v803 = vld [vmem:[%s772 + $0x168] sm:$0xff]
      %v804 = vld [vmem:[%s772 + $0x170] sm:$0xff]
      %v805 = vpack.c.bf16 %v773, %v773
      %v806 = vpack.c.bf16 %v774, %v774
      %v807 = vpack.c.bf16 %v775, %v775
      %v808 = vpack.c.bf16 %v776, %v776
      %v809 = vpack.c.bf16 %v777, %v777
      %v810 = vpack.c.bf16 %v778, %v778
      %v811 = vpack.c.bf16 %v779, %v779
      %v812 = vpack.c.bf16 %v780, %v780
      %v813 = vpack.c.bf16 %v781, %v781
      %v814 = vpack.c.bf16 %v782, %v782
      %v815 = vpack.c.bf16 %v783, %v783
      %v816 = vpack.c.bf16 %v784, %v784
      %v817 = vpack.c.bf16 %v785, %v785
      %v818 = vpack.c.bf16 %v786, %v786
      %v819 = vpack.c.bf16 %v787, %v787
      %v820 = vpack.c.bf16 %v788, %v788
      %v821 = vpack.c.bf16 %v789, %v789
      %v822 = vpack.c.bf16 %v790, %v790
      %v823 = vpack.c.bf16 %v791, %v791
      %v824 = vpack.c.bf16 %v792, %v792
      %v825 = vpack.c.bf16 %v793, %v793
      %v826 = vpack.c.bf16 %v794, %v794
      %v827 = vpack.c.bf16 %v795, %v795
      %v828 = vpack.c.bf16 %v796, %v796
      %v829 = vpack.c.bf16 %v797, %v797
      %v830 = vpack.c.bf16 %v798, %v798
      %v831 = vpack.c.bf16 %v799, %v799
      %v832 = vpack.c.bf16 %v800, %v800
      %v833 = vpack.c.bf16 %v801, %v801
      %v834 = vpack.c.bf16 %v802, %v802
      %v835 = vpack.c.bf16 %v803, %v803
      %v836 = vpack.c.bf16 %v804, %v804
      %v837 = vld [vmem:[%s772 + $0x1] sm:$0xff]
      %v838 = vld [vmem:[%s772 + $0x9] sm:$0xff]
      %v839 = vld [vmem:[%s772 + $0x19] sm:$0xff]
      %v840 = vld [vmem:[%s772 + $0x21] sm:$0xff]
      %v841 = vld [vmem:[%s772 + $0x31] sm:$0xff]
      %v842 = vld [vmem:[%s772 + $0x39] sm:$0xff]
      %v843 = vld [vmem:[%s772 + $0x49] sm:$0xff]
      %v844 = vld [vmem:[%s772 + $0x51] sm:$0xff]
      %v845 = vld [vmem:[%s772 + $0x61] sm:$0xff]
      %v846 = vld [vmem:[%s772 + $0x69] sm:$0xff]
      %v847 = vld [vmem:[%s772 + $0x79] sm:$0xff]
      %v848 = vld [vmem:[%s772 + $0x81] sm:$0xff]
      %v849 = vld [vmem:[%s772 + $0x91] sm:$0xff]
      %v850 = vld [vmem:[%s772 + $0x99] sm:$0xff]
      %v851 = vld [vmem:[%s772 + $0xa9] sm:$0xff]
      %v852 = vld [vmem:[%s772 + $0xb1] sm:$0xff]
      %v853 = vld [vmem:[%s772 + $0xc1] sm:$0xff]
      %v854 = vld [vmem:[%s772 + $0xc9] sm:$0xff]
      %v855 = vld [vmem:[%s772 + $0xd9] sm:$0xff]
      %v856 = vld [vmem:[%s772 + $0xe1] sm:$0xff]
      %v857 = vld [vmem:[%s772 + $0xf1] sm:$0xff]
      %v858 = vld [vmem:[%s772 + $0xf9] sm:$0xff]
      %v859 = vld [vmem:[%s772 + $0x109] sm:$0xff]
      %v860 = vld [vmem:[%s772 + $0x111] sm:$0xff]
      %v861 = vld [vmem:[%s772 + $0x121] sm:$0xff]
      %v862 = vld [vmem:[%s772 + $0x129] sm:$0xff]
      %v863 = vld [vmem:[%s772 + $0x139] sm:$0xff]
      %v864 = vld [vmem:[%s772 + $0x141] sm:$0xff]
      %v865 = vld [vmem:[%s772 + $0x151] sm:$0xff]
      %v866 = vld [vmem:[%s772 + $0x159] sm:$0xff]
      %v867 = vld [vmem:[%s772 + $0x169] sm:$0xff]
      %v868 = vld [vmem:[%s772 + $0x171] sm:$0xff]
      %v869 = vpack.c.bf16 %v837, %v837
      %v870 = vpack.c.bf16 %v838, %v838
      %v871 = vpack.c.bf16 %v839, %v839
      %v872 = vpack.c.bf16 %v840, %v840
      %v873 = vpack.c.bf16 %v841, %v841
      %v874 = vpack.c.bf16 %v842, %v842
      %v875 = vpack.c.bf16 %v843, %v843
      %v876 = vpack.c.bf16 %v844, %v844
      %v877 = vpack.c.bf16 %v845, %v845
      %v878 = vpack.c.bf16 %v846, %v846
      %v879 = vpack.c.bf16 %v847, %v847
      %v880 = vpack.c.bf16 %v848, %v848
      %v881 = vpack.c.bf16 %v849, %v849
      %v882 = vpack.c.bf16 %v850, %v850
      %v883 = vpack.c.bf16 %v851, %v851
      %v884 = vpack.c.bf16 %v852, %v852
      %v885 = vpack.c.bf16 %v853, %v853
      %v886 = vpack.c.bf16 %v854, %v854
      %v887 = vpack.c.bf16 %v855, %v855
      %v888 = vpack.c.bf16 %v856, %v856
      %v889 = vpack.c.bf16 %v857, %v857
      %v890 = vpack.c.bf16 %v858, %v858
      %v891 = vpack.c.bf16 %v859, %v859
      %v892 = vpack.c.bf16 %v860, %v860
      %v893 = vpack.c.bf16 %v861, %v861
      %v894 = vpack.c.bf16 %v862, %v862
      %v895 = vpack.c.bf16 %v863, %v863
      %v896 = vpack.c.bf16 %v864, %v864
      %v897 = vpack.c.bf16 %v865, %v865
      %v898 = vpack.c.bf16 %v866, %v866
      %v899 = vpack.c.bf16 %v867, %v867
      %v900 = vpack.c.bf16 %v868, %v868
      %v901 = vld [vmem:[%s772 + $0x2] sm:$0xff]
      %v902 = vld [vmem:[%s772 + $0xa] sm:$0xff]
      %v903 = vld [vmem:[%s772 + $0x1a] sm:$0xff]
      %v904 = vld [vmem:[%s772 + $0x22] sm:$0xff]
      %v905 = vld [vmem:[%s772 + $0x32] sm:$0xff]
      %v906 = vld [vmem:[%s772 + $0x3a] sm:$0xff]
      %v907 = vld [vmem:[%s772 + $0x4a] sm:$0xff]
      %v908 = vld [vmem:[%s772 + $0x52] sm:$0xff]
      %v909 = vld [vmem:[%s772 + $0x62] sm:$0xff]
      %v910 = vld [vmem:[%s772 + $0x6a] sm:$0xff]
      %v911 = vld [vmem:[%s772 + $0x7a] sm:$0xff]
      %v912 = vld [vmem:[%s772 + $0x82] sm:$0xff]
      %v913 = vld [vmem:[%s772 + $0x92] sm:$0xff]
      %v914 = vld [vmem:[%s772 + $0x9a] sm:$0xff]
      %v915 = vld [vmem:[%s772 + $0xaa] sm:$0xff]
      %v916 = vld [vmem:[%s772 + $0xb2] sm:$0xff]
      %v917 = vld [vmem:[%s772 + $0xc2] sm:$0xff]
      %v918 = vld [vmem:[%s772 + $0xca] sm:$0xff]
      %v919 = vld [vmem:[%s772 + $0xda] sm:$0xff]
      %v920 = vld [vmem:[%s772 + $0xe2] sm:$0xff]
      %v921 = vld [vmem:[%s772 + $0xf2] sm:$0xff]
      %v922 = vld [vmem:[%s772 + $0xfa] sm:$0xff]
      %v923 = vld [vmem:[%s772 + $0x10a] sm:$0xff]
      %v924 = vld [vmem:[%s772 + $0x112] sm:$0xff]
      %v925 = vld [vmem:[%s772 + $0x122] sm:$0xff]
      %v926 = vld [vmem:[%s772 + $0x12a] sm:$0xff]
      %v927 = vld [vmem:[%s772 + $0x13a] sm:$0xff]
      %v928 = vld [vmem:[%s772 + $0x142] sm:$0xff]
      %v929 = vld [vmem:[%s772 + $0x152] sm:$0xff]
      %v930 = vld [vmem:[%s772 + $0x15a] sm:$0xff]
      %v931 = vld [vmem:[%s772 + $0x16a] sm:$0xff]
      %v932 = vld [vmem:[%s772 + $0x172] sm:$0xff]
      %v933 = vpack.c.bf16 %v901, %v901
      %v934 = vpack.c.bf16 %v902, %v902
      %v935 = vpack.c.bf16 %v903, %v903
      %v936 = vpack.c.bf16 %v904, %v904
      %v937 = vpack.c.bf16 %v905, %v905
      %v938 = vpack.c.bf16 %v906, %v906
      %v939 = vpack.c.bf16 %v907, %v907
      %v940 = vpack.c.bf16 %v908, %v908
      %v941 = vpack.c.bf16 %v909, %v909
      %v942 = vpack.c.bf16 %v910, %v910
      %v943 = vpack.c.bf16 %v911, %v911
      %v944 = vpack.c.bf16 %v912, %v912
      %v945 = vpack.c.bf16 %v913, %v913
      %v946 = vpack.c.bf16 %v914, %v914
      %v947 = vpack.c.bf16 %v915, %v915
      %v948 = vpack.c.bf16 %v916, %v916
      %v949 = vpack.c.bf16 %v917, %v917
      %v950 = vpack.c.bf16 %v918, %v918
      %v951 = vpack.c.bf16 %v919, %v919
      %v952 = vpack.c.bf16 %v920, %v920
      %v953 = vpack.c.bf16 %v921, %v921
      %v954 = vpack.c.bf16 %v922, %v922
      %v955 = vpack.c.bf16 %v923, %v923
      %v956 = vpack.c.bf16 %v924, %v924
      %v957 = vpack.c.bf16 %v925, %v925
      %v958 = vpack.c.bf16 %v926, %v926
      %v959 = vpack.c.bf16 %v927, %v927
      %v960 = vpack.c.bf16 %v928, %v928
      %v961 = vpack.c.bf16 %v929, %v929
      %v962 = vpack.c.bf16 %v930, %v930
      %v963 = vpack.c.bf16 %v931, %v931
      %v964 = vpack.c.bf16 %v932, %v932
      %v997 = vunpack.c.l.b16 %v419
      %v998 = vunpack.c.l.b16 %v420
      %v999 = vunpack.c.l.b16 %v421
      %v1000 = vunpack.c.l.b16 %v422
      %v1001 = vunpack.c.l.b16 %v423
      %v1002 = vunpack.c.l.b16 %v424
      %v1003 = vunpack.c.l.b16 %v425
      %v1004 = vunpack.c.l.b16 %v426
      %v1005 = vunpack.c.l.b16 %v427
      %v1006 = vunpack.c.l.b16 %v428
      %v1007 = vunpack.c.l.b16 %v429
      %v1008 = vunpack.c.l.b16 %v430
      %v1009 = vunpack.c.l.b16 %v431
      %v1010 = vunpack.c.l.b16 %v432
      %v1011 = vunpack.c.l.b16 %v433
      %v1012 = vunpack.c.l.b16 %v434
      %v1013 = vunpack.c.l.b16 %v435
      %v1014 = vunpack.c.l.b16 %v436
      %v1015 = vunpack.c.l.b16 %v437
      %v1016 = vunpack.c.l.b16 %v438
      %v1017 = vunpack.c.l.b16 %v439
      %v1018 = vunpack.c.l.b16 %v440
      %v1019 = vunpack.c.l.b16 %v441
      %v1020 = vunpack.c.l.b16 %v442
      %v1021 = vunpack.c.l.b16 %v443
      %v1022 = vunpack.c.l.b16 %v444
      %v1023 = vunpack.c.l.b16 %v445
      %v1024 = vunpack.c.l.b16 %v446
      %v1025 = vunpack.c.l.b16 %v447
      %v1026 = vunpack.c.l.b16 %v448
      %v1027 = vunpack.c.l.b16 %v449
      %v1028 = vunpack.c.l.b16 %v450
      %v1029 = vpack.c.b16 %v998, %v997
      %v1030 = vpack.c.b16 %v1000, %v999
      %v1031 = vpack.c.b16 %v1002, %v1001
      %v1032 = vpack.c.b16 %v1004, %v1003
      %v1033 = vpack.c.b16 %v1006, %v1005
      %v1034 = vpack.c.b16 %v1008, %v1007
      %v1035 = vpack.c.b16 %v1010, %v1009
      %v1036 = vpack.c.b16 %v1012, %v1011
      %v1037 = vpack.c.b16 %v1014, %v1013
      %v1038 = vpack.c.b16 %v1016, %v1015
      %v1039 = vpack.c.b16 %v1018, %v1017
      %v1040 = vpack.c.b16 %v1020, %v1019
      %v1041 = vpack.c.b16 %v1022, %v1021
      %v1042 = vpack.c.b16 %v1024, %v1023
      %v1043 = vpack.c.b16 %v1026, %v1025
      %v1044 = vpack.c.b16 %v1028, %v1027
      %v1077 = vunpack.c.l.b16 %v483
      %v1078 = vunpack.c.l.b16 %v484
      %v1079 = vunpack.c.l.b16 %v485
      %v1080 = vunpack.c.l.b16 %v486
      %v1081 = vunpack.c.l.b16 %v487
      %v1082 = vunpack.c.l.b16 %v488
      %v1083 = vunpack.c.l.b16 %v489
      %v1084 = vunpack.c.l.b16 %v490
      %v1085 = vunpack.c.l.b16 %v491
      %v1086 = vunpack.c.l.b16 %v492
      %v1087 = vunpack.c.l.b16 %v493
      %v1088 = vunpack.c.l.b16 %v494
      %v1089 = vunpack.c.l.b16 %v495
      %v1090 = vunpack.c.l.b16 %v496
      %v1091 = vunpack.c.l.b16 %v497
      %v1092 = vunpack.c.l.b16 %v498
      %v1093 = vunpack.c.l.b16 %v499
      %v1094 = vunpack.c.l.b16 %v500
      %v1095 = vunpack.c.l.b16 %v501
      %v1096 = vunpack.c.l.b16 %v502
      %v1097 = vunpack.c.l.b16 %v503
      %v1098 = vunpack.c.l.b16 %v504
      %v1099 = vunpack.c.l.b16 %v505
      %v1100 = vunpack.c.l.b16 %v506
      %v1101 = vunpack.c.l.b16 %v507
      %v1102 = vunpack.c.l.b16 %v508
      %v1103 = vunpack.c.l.b16 %v509
      %v1104 = vunpack.c.l.b16 %v510
      %v1105 = vunpack.c.l.b16 %v511
      %v1106 = vunpack.c.l.b16 %v512
      %v1107 = vunpack.c.l.b16 %v513
      %v1108 = vunpack.c.l.b16 %v514
      %v1109 = vpack.c.b16 %v1078, %v1077
      %v1110 = vpack.c.b16 %v1080, %v1079
      %v1111 = vpack.c.b16 %v1082, %v1081
      %v1112 = vpack.c.b16 %v1084, %v1083
      %v1113 = vpack.c.b16 %v1086, %v1085
      %v1114 = vpack.c.b16 %v1088, %v1087
      %v1115 = vpack.c.b16 %v1090, %v1089
      %v1116 = vpack.c.b16 %v1092, %v1091
      %v1117 = vpack.c.b16 %v1094, %v1093
      %v1118 = vpack.c.b16 %v1096, %v1095
      %v1119 = vpack.c.b16 %v1098, %v1097
      %v1120 = vpack.c.b16 %v1100, %v1099
      %v1121 = vpack.c.b16 %v1102, %v1101
      %v1122 = vpack.c.b16 %v1104, %v1103
      %v1123 = vpack.c.b16 %v1106, %v1105
      %v1124 = vpack.c.b16 %v1108, %v1107
      %1125 = vrot.lane.b32.xlu0 %v1109, 9
      %v1126 = vpop.permute.xlu0 %1125
      %1127 = vrot.lane.b32.xlu0 %v1110, 9
      %v1128 = vpop.permute.xlu0 %1127
      %1129 = vrot.lane.b32.xlu0 %v1111, 9
      %v1130 = vpop.permute.xlu0 %1129
      %1131 = vrot.lane.b32.xlu0 %v1112, 9
      %v1132 = vpop.permute.xlu0 %1131
      %1133 = vrot.lane.b32.xlu0 %v1113, 9
      %v1134 = vpop.permute.xlu0 %1133
      %1135 = vrot.lane.b32.xlu0 %v1114, 9
      %v1136 = vpop.permute.xlu0 %1135
      %1137 = vrot.lane.b32.xlu0 %v1115, 9
      %v1138 = vpop.permute.xlu0 %1137
      %1139 = vrot.lane.b32.xlu0 %v1116, 9
      %v1140 = vpop.permute.xlu0 %1139
      %1141 = vrot.lane.b32.xlu0 %v1117, 9
      %v1142 = vpop.permute.xlu0 %1141
      %1143 = vrot.lane.b32.xlu0 %v1118, 9
      %v1144 = vpop.permute.xlu0 %1143
      %1145 = vrot.lane.b32.xlu0 %v1119, 9
      %v1146 = vpop.permute.xlu0 %1145
      %1147 = vrot.lane.b32.xlu0 %v1120, 9
      %v1148 = vpop.permute.xlu0 %1147
      %1149 = vrot.lane.b32.xlu0 %v1121, 9
      %v1150 = vpop.permute.xlu0 %1149
      %1151 = vrot.lane.b32.xlu0 %v1122, 9
      %v1152 = vpop.permute.xlu0 %1151
      %1153 = vrot.lane.b32.xlu0 %v1123, 9
      %v1154 = vpop.permute.xlu0 %1153
      %1155 = vrot.lane.b32.xlu0 %v1124, 9
      %v1156 = vpop.permute.xlu0 %1155
      %v1189 = vunpack.c.l.b16 %v547
      %v1190 = vunpack.c.l.b16 %v548
      %v1191 = vunpack.c.l.b16 %v549
      %v1192 = vunpack.c.l.b16 %v550
      %v1193 = vunpack.c.l.b16 %v551
      %v1194 = vunpack.c.l.b16 %v552
      %v1195 = vunpack.c.l.b16 %v553
      %v1196 = vunpack.c.l.b16 %v554
      %v1197 = vunpack.c.l.b16 %v555
      %v1198 = vunpack.c.l.b16 %v556
      %v1199 = vunpack.c.l.b16 %v557
      %v1200 = vunpack.c.l.b16 %v558
      %v1201 = vunpack.c.l.b16 %v559
      %v1202 = vunpack.c.l.b16 %v560
      %v1203 = vunpack.c.l.b16 %v561
      %v1204 = vunpack.c.l.b16 %v562
      %v1205 = vunpack.c.l.b16 %v563
      %v1206 = vunpack.c.l.b16 %v564
      %v1207 = vunpack.c.l.b16 %v565
      %v1208 = vunpack.c.l.b16 %v566
      %v1209 = vunpack.c.l.b16 %v567
      %v1210 = vunpack.c.l.b16 %v568
      %v1211 = vunpack.c.l.b16 %v569
      %v1212 = vunpack.c.l.b16 %v570
      %v1213 = vunpack.c.l.b16 %v571
      %v1214 = vunpack.c.l.b16 %v572
      %v1215 = vunpack.c.l.b16 %v573
      %v1216 = vunpack.c.l.b16 %v574
      %v1217 = vunpack.c.l.b16 %v575
      %v1218 = vunpack.c.l.b16 %v576
      %v1219 = vunpack.c.l.b16 %v577
      %v1220 = vunpack.c.l.b16 %v578
      %v1221 = vpack.c.b16 %v1190, %v1189
      %v1222 = vpack.c.b16 %v1192, %v1191
      %v1223 = vpack.c.b16 %v1194, %v1193
      %v1224 = vpack.c.b16 %v1196, %v1195
      %v1225 = vpack.c.b16 %v1198, %v1197
      %v1226 = vpack.c.b16 %v1200, %v1199
      %v1227 = vpack.c.b16 %v1202, %v1201
      %v1228 = vpack.c.b16 %v1204, %v1203
      %v1229 = vpack.c.b16 %v1206, %v1205
      %v1230 = vpack.c.b16 %v1208, %v1207
      %v1231 = vpack.c.b16 %v1210, %v1209
      %v1232 = vpack.c.b16 %v1212, %v1211
      %v1233 = vpack.c.b16 %v1214, %v1213
      %v1234 = vpack.c.b16 %v1216, %v1215
      %v1235 = vpack.c.b16 %v1218, %v1217
      %v1236 = vpack.c.b16 %v1220, %v1219
      %1237 = vrot.lane.b32.xlu0 %v1221, 18
      %v1238 = vpop.permute.xlu0 %1237
      %1239 = vrot.lane.b32.xlu0 %v1222, 18
      %v1240 = vpop.permute.xlu0 %1239
      %1241 = vrot.lane.b32.xlu0 %v1223, 18
      %v1242 = vpop.permute.xlu0 %1241
      %1243 = vrot.lane.b32.xlu0 %v1224, 18
      %v1244 = vpop.permute.xlu0 %1243
      %1245 = vrot.lane.b32.xlu0 %v1225, 18
      %v1246 = vpop.permute.xlu0 %1245
      %1247 = vrot.lane.b32.xlu0 %v1226, 18
      %v1248 = vpop.permute.xlu0 %1247
      %1249 = vrot.lane.b32.xlu0 %v1227, 18
      %v1250 = vpop.permute.xlu0 %1249
      %1251 = vrot.lane.b32.xlu0 %v1228, 18
      %v1252 = vpop.permute.xlu0 %1251
      %1253 = vrot.lane.b32.xlu0 %v1229, 18
      %v1254 = vpop.permute.xlu0 %1253
      %1255 = vrot.lane.b32.xlu0 %v1230, 18
      %v1256 = vpop.permute.xlu0 %1255
      %1257 = vrot.lane.b32.xlu0 %v1231, 18
      %v1258 = vpop.permute.xlu0 %1257
      %1259 = vrot.lane.b32.xlu0 %v1232, 18
      %v1260 = vpop.permute.xlu0 %1259
      %1261 = vrot.lane.b32.xlu0 %v1233, 18
      %v1262 = vpop.permute.xlu0 %1261
      %1263 = vrot.lane.b32.xlu0 %v1234, 18
      %v1264 = vpop.permute.xlu0 %1263
      %1265 = vrot.lane.b32.xlu0 %v1235, 18
      %v1266 = vpop.permute.xlu0 %1265
      %1267 = vrot.lane.b32.xlu0 %v1236, 18
      %v1268 = vpop.permute.xlu0 %1267
      %v1301 = vunpack.c.l.b16 %v612
      %v1302 = vunpack.c.l.b16 %v613
      %v1303 = vunpack.c.l.b16 %v614
      %v1304 = vunpack.c.l.b16 %v615
      %v1305 = vunpack.c.l.b16 %v616
      %v1306 = vunpack.c.l.b16 %v617
      %v1307 = vunpack.c.l.b16 %v618
      %v1308 = vunpack.c.l.b16 %v619
      %v1309 = vunpack.c.l.b16 %v620
      %v1310 = vunpack.c.l.b16 %v621
      %v1311 = vunpack.c.l.b16 %v622
      %v1312 = vunpack.c.l.b16 %v623
      %v1313 = vunpack.c.l.b16 %v624
      %v1314 = vunpack.c.l.b16 %v625
      %v1315 = vunpack.c.l.b16 %v626
      %v1316 = vunpack.c.l.b16 %v627
      %v1317 = vunpack.c.l.b16 %v628
      %v1318 = vunpack.c.l.b16 %v629
      %v1319 = vunpack.c.l.b16 %v630
      %v1320 = vunpack.c.l.b16 %v631
      %v1321 = vunpack.c.l.b16 %v632
      %v1322 = vunpack.c.l.b16 %v633
      %v1323 = vunpack.c.l.b16 %v634
      %v1324 = vunpack.c.l.b16 %v635
      %v1325 = vunpack.c.l.b16 %v636
      %v1326 = vunpack.c.l.b16 %v637
      %v1327 = vunpack.c.l.b16 %v638
      %v1328 = vunpack.c.l.b16 %v639
      %v1329 = vunpack.c.l.b16 %v640
      %v1330 = vunpack.c.l.b16 %v641
      %v1331 = vunpack.c.l.b16 %v642
      %v1332 = vunpack.c.l.b16 %v643
      %v1333 = vpack.c.b16 %v1302, %v1301
      %v1334 = vpack.c.b16 %v1304, %v1303
      %v1335 = vpack.c.b16 %v1306, %v1305
      %v1336 = vpack.c.b16 %v1308, %v1307
      %v1337 = vpack.c.b16 %v1310, %v1309
      %v1338 = vpack.c.b16 %v1312, %v1311
      %v1339 = vpack.c.b16 %v1314, %v1313
      %v1340 = vpack.c.b16 %v1316, %v1315
      %v1341 = vpack.c.b16 %v1318, %v1317
      %v1342 = vpack.c.b16 %v1320, %v1319
      %v1343 = vpack.c.b16 %v1322, %v1321
      %v1344 = vpack.c.b16 %v1324, %v1323
      %v1345 = vpack.c.b16 %v1326, %v1325
      %v1346 = vpack.c.b16 %v1328, %v1327
      %v1347 = vpack.c.b16 %v1330, %v1329
      %v1348 = vpack.c.b16 %v1332, %v1331
      %1349 = vrot.lane.b32.xlu0 %v1333, 27
      %v1350 = vpop.permute.xlu0 %1349
      %1351 = vrot.lane.b32.xlu0 %v1334, 27
      %v1352 = vpop.permute.xlu0 %1351
      %1353 = vrot.lane.b32.xlu0 %v1335, 27
      %v1354 = vpop.permute.xlu0 %1353
      %1355 = vrot.lane.b32.xlu0 %v1336, 27
      %v1356 = vpop.permute.xlu0 %1355
      %1357 = vrot.lane.b32.xlu0 %v1337, 27
      %v1358 = vpop.permute.xlu0 %1357
      %1359 = vrot.lane.b32.xlu0 %v1338, 27
      %v1360 = vpop.permute.xlu0 %1359
      %1361 = vrot.lane.b32.xlu0 %v1339, 27
      %v1362 = vpop.permute.xlu0 %1361
      %1363 = vrot.lane.b32.xlu0 %v1340, 27
      %v1364 = vpop.permute.xlu0 %1363
      %1365 = vrot.lane.b32.xlu0 %v1341, 27
      %v1366 = vpop.permute.xlu0 %1365
      %1367 = vrot.lane.b32.xlu0 %v1342, 27
      %v1368 = vpop.permute.xlu0 %1367
      %1369 = vrot.lane.b32.xlu0 %v1343, 27
      %v1370 = vpop.permute.xlu0 %1369
      %1371 = vrot.lane.b32.xlu0 %v1344, 27
      %v1372 = vpop.permute.xlu0 %1371
      %1373 = vrot.lane.b32.xlu0 %v1345, 27
      %v1374 = vpop.permute.xlu0 %1373
      %1375 = vrot.lane.b32.xlu0 %v1346, 27
      %v1376 = vpop.permute.xlu0 %1375
      %1377 = vrot.lane.b32.xlu0 %v1347, 27
      %v1378 = vpop.permute.xlu0 %1377
      %1379 = vrot.lane.b32.xlu0 %v1348, 27
      %v1380 = vpop.permute.xlu0 %1379
      %v1413 = vunpack.c.l.b16 %v676
      %v1414 = vunpack.c.l.b16 %v677
      %v1415 = vunpack.c.l.b16 %v678
      %v1416 = vunpack.c.l.b16 %v679
      %v1417 = vunpack.c.l.b16 %v680
      %v1418 = vunpack.c.l.b16 %v681
      %v1419 = vunpack.c.l.b16 %v682
      %v1420 = vunpack.c.l.b16 %v683
      %v1421 = vunpack.c.l.b16 %v684
      %v1422 = vunpack.c.l.b16 %v685
      %v1423 = vunpack.c.l.b16 %v686
      %v1424 = vunpack.c.l.b16 %v687
      %v1425 = vunpack.c.l.b16 %v688
      %v1426 = vunpack.c.l.b16 %v689
      %v1427 = vunpack.c.l.b16 %v690
      %v1428 = vunpack.c.l.b16 %v691
      %v1429 = vunpack.c.l.b16 %v692
      %v1430 = vunpack.c.l.b16 %v693
      %v1431 = vunpack.c.l.b16 %v694
      %v1432 = vunpack.c.l.b16 %v695
      %v1433 = vunpack.c.l.b16 %v696
      %v1434 = vunpack.c.l.b16 %v697
      %v1435 = vunpack.c.l.b16 %v698
      %v1436 = vunpack.c.l.b16 %v699
      %v1437 = vunpack.c.l.b16 %v700
      %v1438 = vunpack.c.l.b16 %v701
      %v1439 = vunpack.c.l.b16 %v702
      %v1440 = vunpack.c.l.b16 %v703
      %v1441 = vunpack.c.l.b16 %v704
      %v1442 = vunpack.c.l.b16 %v705
      %v1443 = vunpack.c.l.b16 %v706
      %v1444 = vunpack.c.l.b16 %v707
      %v1445 = vpack.c.b16 %v1414, %v1413
      %v1446 = vpack.c.b16 %v1416, %v1415
      %v1447 = vpack.c.b16 %v1418, %v1417
      %v1448 = vpack.c.b16 %v1420, %v1419
      %v1449 = vpack.c.b16 %v1422, %v1421
      %v1450 = vpack.c.b16 %v1424, %v1423
      %v1451 = vpack.c.b16 %v1426, %v1425
      %v1452 = vpack.c.b16 %v1428, %v1427
      %v1453 = vpack.c.b16 %v1430, %v1429
      %v1454 = vpack.c.b16 %v1432, %v1431
      %v1455 = vpack.c.b16 %v1434, %v1433
      %v1456 = vpack.c.b16 %v1436, %v1435
      %v1457 = vpack.c.b16 %v1438, %v1437
      %v1458 = vpack.c.b16 %v1440, %v1439
      %v1459 = vpack.c.b16 %v1442, %v1441
      %v1460 = vpack.c.b16 %v1444, %v1443
      %1461 = vrot.lane.b32.xlu0 %v1445, 36
      %v1462 = vpop.permute.xlu0 %1461
      %1463 = vrot.lane.b32.xlu0 %v1446, 36
      %v1464 = vpop.permute.xlu0 %1463
      %1465 = vrot.lane.b32.xlu0 %v1447, 36
      %v1466 = vpop.permute.xlu0 %1465
      %1467 = vrot.lane.b32.xlu0 %v1448, 36
      %v1468 = vpop.permute.xlu0 %1467
      %1469 = vrot.lane.b32.xlu0 %v1449, 36
      %v1470 = vpop.permute.xlu0 %1469
      %1471 = vrot.lane.b32.xlu0 %v1450, 36
      %v1472 = vpop.permute.xlu0 %1471
      %1473 = vrot.lane.b32.xlu0 %v1451, 36
      %v1474 = vpop.permute.xlu0 %1473
      %1475 = vrot.lane.b32.xlu0 %v1452, 36
      %v1476 = vpop.permute.xlu0 %1475
      %1477 = vrot.lane.b32.xlu0 %v1453, 36
      %v1478 = vpop.permute.xlu0 %1477
      %1479 = vrot.lane.b32.xlu0 %v1454, 36
      %v1480 = vpop.permute.xlu0 %1479
      %1481 = vrot.lane.b32.xlu0 %v1455, 36
      %v1482 = vpop.permute.xlu0 %1481
      %1483 = vrot.lane.b32.xlu0 %v1456, 36
      %v1484 = vpop.permute.xlu0 %1483
      %1485 = vrot.lane.b32.xlu0 %v1457, 36
      %v1486 = vpop.permute.xlu0 %1485
      %1487 = vrot.lane.b32.xlu0 %v1458, 36
      %v1488 = vpop.permute.xlu0 %1487
      %1489 = vrot.lane.b32.xlu0 %v1459, 36
      %v1490 = vpop.permute.xlu0 %1489
      %1491 = vrot.lane.b32.xlu0 %v1460, 36
      %v1492 = vpop.permute.xlu0 %1491
      %v1525 = vunpack.c.l.b16 %v740
      %v1526 = vunpack.c.l.b16 %v741
      %v1527 = vunpack.c.l.b16 %v742
      %v1528 = vunpack.c.l.b16 %v743
      %v1529 = vunpack.c.l.b16 %v744
      %v1530 = vunpack.c.l.b16 %v745
      %v1531 = vunpack.c.l.b16 %v746
      %v1532 = vunpack.c.l.b16 %v747
      %v1533 = vunpack.c.l.b16 %v748
      %v1534 = vunpack.c.l.b16 %v749
      %v1535 = vunpack.c.l.b16 %v750
      %v1536 = vunpack.c.l.b16 %v751
      %v1537 = vunpack.c.l.b16 %v752
      %v1538 = vunpack.c.l.b16 %v753
      %v1539 = vunpack.c.l.b16 %v754
      %v1540 = vunpack.c.l.b16 %v755
      %v1541 = vunpack.c.l.b16 %v756
      %v1542 = vunpack.c.l.b16 %v757
      %v1543 = vunpack.c.l.b16 %v758
      %v1544 = vunpack.c.l.b16 %v759
      %v1545 = vunpack.c.l.b16 %v760
      %v1546 = vunpack.c.l.b16 %v761
      %v1547 = vunpack.c.l.b16 %v762
      %v1548 = vunpack.c.l.b16 %v763
      %v1549 = vunpack.c.l.b16 %v764
      %v1550 = vunpack.c.l.b16 %v765
      %v1551 = vunpack.c.l.b16 %v766
      %v1552 = vunpack.c.l.b16 %v767
      %v1553 = vunpack.c.l.b16 %v768
      %v1554 = vunpack.c.l.b16 %v769
      %v1555 = vunpack.c.l.b16 %v770
      %v1556 = vunpack.c.l.b16 %v771
      %v1557 = vpack.c.b16 %v1526, %v1525
      %v1558 = vpack.c.b16 %v1528, %v1527
      %v1559 = vpack.c.b16 %v1530, %v1529
      %v1560 = vpack.c.b16 %v1532, %v1531
      %v1561 = vpack.c.b16 %v1534, %v1533
      %v1562 = vpack.c.b16 %v1536, %v1535
      %v1563 = vpack.c.b16 %v1538, %v1537
      %v1564 = vpack.c.b16 %v1540, %v1539
      %v1565 = vpack.c.b16 %v1542, %v1541
      %v1566 = vpack.c.b16 %v1544, %v1543
      %v1567 = vpack.c.b16 %v1546, %v1545
      %v1568 = vpack.c.b16 %v1548, %v1547
      %v1569 = vpack.c.b16 %v1550, %v1549
      %v1570 = vpack.c.b16 %v1552, %v1551
      %v1571 = vpack.c.b16 %v1554, %v1553
      %v1572 = vpack.c.b16 %v1556, %v1555
      %1573 = vrot.lane.b32.xlu0 %v1557, 45
      %v1574 = vpop.permute.xlu0 %1573
      %1575 = vrot.lane.b32.xlu0 %v1558, 45
      %v1576 = vpop.permute.xlu0 %1575
      %1577 = vrot.lane.b32.xlu0 %v1559, 45
      %v1578 = vpop.permute.xlu0 %1577
      %1579 = vrot.lane.b32.xlu0 %v1560, 45
      %v1580 = vpop.permute.xlu0 %1579
      %1581 = vrot.lane.b32.xlu0 %v1561, 45
      %v1582 = vpop.permute.xlu0 %1581
      %1583 = vrot.lane.b32.xlu0 %v1562, 45
      %v1584 = vpop.permute.xlu0 %1583
      %1585 = vrot.lane.b32.xlu0 %v1563, 45
      %v1586 = vpop.permute.xlu0 %1585
      %1587 = vrot.lane.b32.xlu0 %v1564, 45
      %v1588 = vpop.permute.xlu0 %1587
      %1589 = vrot.lane.b32.xlu0 %v1565, 45
      %v1590 = vpop.permute.xlu0 %1589
      %1591 = vrot.lane.b32.xlu0 %v1566, 45
      %v1592 = vpop.permute.xlu0 %1591
      %1593 = vrot.lane.b32.xlu0 %v1567, 45
      %v1594 = vpop.permute.xlu0 %1593
      %1595 = vrot.lane.b32.xlu0 %v1568, 45
      %v1596 = vpop.permute.xlu0 %1595
      %1597 = vrot.lane.b32.xlu0 %v1569, 45
      %v1598 = vpop.permute.xlu0 %1597
      %1599 = vrot.lane.b32.xlu0 %v1570, 45
      %v1600 = vpop.permute.xlu0 %1599
      %1601 = vrot.lane.b32.xlu0 %v1571, 45
      %v1602 = vpop.permute.xlu0 %1601
      %1603 = vrot.lane.b32.xlu0 %v1572, 45
      %v1604 = vpop.permute.xlu0 %1603
      %v1637 = vunpack.c.l.b16 %v805
      %v1638 = vunpack.c.l.b16 %v806
      %v1639 = vunpack.c.l.b16 %v807
      %v1640 = vunpack.c.l.b16 %v808
      %v1641 = vunpack.c.l.b16 %v809
      %v1642 = vunpack.c.l.b16 %v810
      %v1643 = vunpack.c.l.b16 %v811
      %v1644 = vunpack.c.l.b16 %v812
      %v1645 = vunpack.c.l.b16 %v813
      %v1646 = vunpack.c.l.b16 %v814
      %v1647 = vunpack.c.l.b16 %v815
      %v1648 = vunpack.c.l.b16 %v816
      %v1649 = vunpack.c.l.b16 %v817
      %v1650 = vunpack.c.l.b16 %v818
      %v1651 = vunpack.c.l.b16 %v819
      %v1652 = vunpack.c.l.b16 %v820
      %v1653 = vunpack.c.l.b16 %v821
      %v1654 = vunpack.c.l.b16 %v822
      %v1655 = vunpack.c.l.b16 %v823
      %v1656 = vunpack.c.l.b16 %v824
      %v1657 = vunpack.c.l.b16 %v825
      %v1658 = vunpack.c.l.b16 %v826
      %v1659 = vunpack.c.l.b16 %v827
      %v1660 = vunpack.c.l.b16 %v828
      %v1661 = vunpack.c.l.b16 %v829
      %v1662 = vunpack.c.l.b16 %v830
      %v1663 = vunpack.c.l.b16 %v831
      %v1664 = vunpack.c.l.b16 %v832
      %v1665 = vunpack.c.l.b16 %v833
      %v1666 = vunpack.c.l.b16 %v834
      %v1667 = vunpack.c.l.b16 %v835
      %v1668 = vunpack.c.l.b16 %v836
      %v1669 = vpack.c.b16 %v1638, %v1637
      %v1670 = vpack.c.b16 %v1640, %v1639
      %v1671 = vpack.c.b16 %v1642, %v1641
      %v1672 = vpack.c.b16 %v1644, %v1643
      %v1673 = vpack.c.b16 %v1646, %v1645
      %v1674 = vpack.c.b16 %v1648, %v1647
      %v1675 = vpack.c.b16 %v1650, %v1649
      %v1676 = vpack.c.b16 %v1652, %v1651
      %v1677 = vpack.c.b16 %v1654, %v1653
      %v1678 = vpack.c.b16 %v1656, %v1655
      %v1679 = vpack.c.b16 %v1658, %v1657
      %v1680 = vpack.c.b16 %v1660, %v1659
      %v1681 = vpack.c.b16 %v1662, %v1661
      %v1682 = vpack.c.b16 %v1664, %v1663
      %v1683 = vpack.c.b16 %v1666, %v1665
      %v1684 = vpack.c.b16 %v1668, %v1667
      %1685 = vrot.lane.b32.xlu0 %v1669, 54
      %v1686 = vpop.permute.xlu0 %1685
      %1687 = vrot.lane.b32.xlu0 %v1670, 54
      %v1688 = vpop.permute.xlu0 %1687
      %1689 = vrot.lane.b32.xlu0 %v1671, 54
      %v1690 = vpop.permute.xlu0 %1689
      %1691 = vrot.lane.b32.xlu0 %v1672, 54
      %v1692 = vpop.permute.xlu0 %1691
      %1693 = vrot.lane.b32.xlu0 %v1673, 54
      %v1694 = vpop.permute.xlu0 %1693
      %1695 = vrot.lane.b32.xlu0 %v1674, 54
      %v1696 = vpop.permute.xlu0 %1695
      %1697 = vrot.lane.b32.xlu0 %v1675, 54
      %v1698 = vpop.permute.xlu0 %1697
      %1699 = vrot.lane.b32.xlu0 %v1676, 54
      %v1700 = vpop.permute.xlu0 %1699
      %1701 = vrot.lane.b32.xlu0 %v1677, 54
      %v1702 = vpop.permute.xlu0 %1701
      %1703 = vrot.lane.b32.xlu0 %v1678, 54
      %v1704 = vpop.permute.xlu0 %1703
      %1705 = vrot.lane.b32.xlu0 %v1679, 54
      %v1706 = vpop.permute.xlu0 %1705
      %1707 = vrot.lane.b32.xlu0 %v1680, 54
      %v1708 = vpop.permute.xlu0 %1707
      %1709 = vrot.lane.b32.xlu0 %v1681, 54
      %v1710 = vpop.permute.xlu0 %1709
      %1711 = vrot.lane.b32.xlu0 %v1682, 54
      %v1712 = vpop.permute.xlu0 %1711
      %1713 = vrot.lane.b32.xlu0 %v1683, 54
      %v1714 = vpop.permute.xlu0 %1713
      %1715 = vrot.lane.b32.xlu0 %v1684, 54
      %v1716 = vpop.permute.xlu0 %1715
      %v1749 = vunpack.c.l.b16 %v869
      %v1750 = vunpack.c.l.b16 %v870
      %v1751 = vunpack.c.l.b16 %v871
      %v1752 = vunpack.c.l.b16 %v872
      %v1753 = vunpack.c.l.b16 %v873
      %v1754 = vunpack.c.l.b16 %v874
      %v1755 = vunpack.c.l.b16 %v875
      %v1756 = vunpack.c.l.b16 %v876
      %v1757 = vunpack.c.l.b16 %v877
      %v1758 = vunpack.c.l.b16 %v878
      %v1759 = vunpack.c.l.b16 %v879
      %v1760 = vunpack.c.l.b16 %v880
      %v1761 = vunpack.c.l.b16 %v881
      %v1762 = vunpack.c.l.b16 %v882
      %v1763 = vunpack.c.l.b16 %v883
      %v1764 = vunpack.c.l.b16 %v884
      %v1765 = vunpack.c.l.b16 %v885
      %v1766 = vunpack.c.l.b16 %v886
      %v1767 = vunpack.c.l.b16 %v887
      %v1768 = vunpack.c.l.b16 %v888
      %v1769 = vunpack.c.l.b16 %v889
      %v1770 = vunpack.c.l.b16 %v890
      %v1771 = vunpack.c.l.b16 %v891
      %v1772 = vunpack.c.l.b16 %v892
      %v1773 = vunpack.c.l.b16 %v893
      %v1774 = vunpack.c.l.b16 %v894
      %v1775 = vunpack.c.l.b16 %v895
      %v1776 = vunpack.c.l.b16 %v896
      %v1777 = vunpack.c.l.b16 %v897
      %v1778 = vunpack.c.l.b16 %v898
      %v1779 = vunpack.c.l.b16 %v899
      %v1780 = vunpack.c.l.b16 %v900
      %v1781 = vpack.c.b16 %v1750, %v1749
      %v1782 = vpack.c.b16 %v1752, %v1751
      %v1783 = vpack.c.b16 %v1754, %v1753
      %v1784 = vpack.c.b16 %v1756, %v1755
      %v1785 = vpack.c.b16 %v1758, %v1757
      %v1786 = vpack.c.b16 %v1760, %v1759
      %v1787 = vpack.c.b16 %v1762, %v1761
      %v1788 = vpack.c.b16 %v1764, %v1763
      %v1789 = vpack.c.b16 %v1766, %v1765
      %v1790 = vpack.c.b16 %v1768, %v1767
      %v1791 = vpack.c.b16 %v1770, %v1769
      %v1792 = vpack.c.b16 %v1772, %v1771
      %v1793 = vpack.c.b16 %v1774, %v1773
      %v1794 = vpack.c.b16 %v1776, %v1775
      %v1795 = vpack.c.b16 %v1778, %v1777
      %v1796 = vpack.c.b16 %v1780, %v1779
      %1797 = vrot.lane.b32.xlu0 %v1781, 63
      %v1798 = vpop.permute.xlu0 %1797
      %1799 = vrot.lane.b32.xlu0 %v1782, 63
      %v1800 = vpop.permute.xlu0 %1799
      %1801 = vrot.lane.b32.xlu0 %v1783, 63
      %v1802 = vpop.permute.xlu0 %1801
      %1803 = vrot.lane.b32.xlu0 %v1784, 63
      %v1804 = vpop.permute.xlu0 %1803
      %1805 = vrot.lane.b32.xlu0 %v1785, 63
      %v1806 = vpop.permute.xlu0 %1805
      %1807 = vrot.lane.b32.xlu0 %v1786, 63
      %v1808 = vpop.permute.xlu0 %1807
      %1809 = vrot.lane.b32.xlu0 %v1787, 63
      %v1810 = vpop.permute.xlu0 %1809
      %1811 = vrot.lane.b32.xlu0 %v1788, 63
      %v1812 = vpop.permute.xlu0 %1811
      %1813 = vrot.lane.b32.xlu0 %v1789, 63
      %v1814 = vpop.permute.xlu0 %1813
      %1815 = vrot.lane.b32.xlu0 %v1790, 63
      %v1816 = vpop.permute.xlu0 %1815
      %1817 = vrot.lane.b32.xlu0 %v1791, 63
      %v1818 = vpop.permute.xlu0 %1817
      %1819 = vrot.lane.b32.xlu0 %v1792, 63
      %v1820 = vpop.permute.xlu0 %1819
      %1821 = vrot.lane.b32.xlu0 %v1793, 63
      %v1822 = vpop.permute.xlu0 %1821
      %1823 = vrot.lane.b32.xlu0 %v1794, 63
      %v1824 = vpop.permute.xlu0 %1823
      %1825 = vrot.lane.b32.xlu0 %v1795, 63
      %v1826 = vpop.permute.xlu0 %1825
      %1827 = vrot.lane.b32.xlu0 %v1796, 63
      %v1828 = vpop.permute.xlu0 %1827
      %v1861 = vunpack.c.l.b16 %v933
      %v1862 = vunpack.c.l.b16 %v934
      %v1863 = vunpack.c.l.b16 %v935
      %v1864 = vunpack.c.l.b16 %v936
      %v1865 = vunpack.c.l.b16 %v937
      %v1866 = vunpack.c.l.b16 %v938
      %v1867 = vunpack.c.l.b16 %v939
      %v1868 = vunpack.c.l.b16 %v940
      %v1869 = vunpack.c.l.b16 %v941
      %v1870 = vunpack.c.l.b16 %v942
      %v1871 = vunpack.c.l.b16 %v943
      %v1872 = vunpack.c.l.b16 %v944
      %v1873 = vunpack.c.l.b16 %v945
      %v1874 = vunpack.c.l.b16 %v946
      %v1875 = vunpack.c.l.b16 %v947
      %v1876 = vunpack.c.l.b16 %v948
      %v1877 = vunpack.c.l.b16 %v949
      %v1878 = vunpack.c.l.b16 %v950
      %v1879 = vunpack.c.l.b16 %v951
      %v1880 = vunpack.c.l.b16 %v952
      %v1881 = vunpack.c.l.b16 %v953
      %v1882 = vunpack.c.l.b16 %v954
      %v1883 = vunpack.c.l.b16 %v955
      %v1884 = vunpack.c.l.b16 %v956
      %v1885 = vunpack.c.l.b16 %v957
      %v1886 = vunpack.c.l.b16 %v958
      %v1887 = vunpack.c.l.b16 %v959
      %v1888 = vunpack.c.l.b16 %v960
      %v1889 = vunpack.c.l.b16 %v961
      %v1890 = vunpack.c.l.b16 %v962
      %v1891 = vunpack.c.l.b16 %v963
      %v1892 = vunpack.c.l.b16 %v964
      %v1893 = vpack.c.b16 %v1862, %v1861
      %v1894 = vpack.c.b16 %v1864, %v1863
      %v1895 = vpack.c.b16 %v1866, %v1865
      %v1896 = vpack.c.b16 %v1868, %v1867
      %v1897 = vpack.c.b16 %v1870, %v1869
      %v1898 = vpack.c.b16 %v1872, %v1871
      %v1899 = vpack.c.b16 %v1874, %v1873
      %v1900 = vpack.c.b16 %v1876, %v1875
      %v1901 = vpack.c.b16 %v1878, %v1877
      %v1902 = vpack.c.b16 %v1880, %v1879
      %v1903 = vpack.c.b16 %v1882, %v1881
      %v1904 = vpack.c.b16 %v1884, %v1883
      %v1905 = vpack.c.b16 %v1886, %v1885
      %v1906 = vpack.c.b16 %v1888, %v1887
      %v1907 = vpack.c.b16 %v1890, %v1889
      %v1908 = vpack.c.b16 %v1892, %v1891
      %1909 = vrot.lane.b32.xlu0 %v1893, 72
      %v1910 = vpop.permute.xlu0 %1909
      %1911 = vrot.lane.b32.xlu0 %v1894, 72
      %v1912 = vpop.permute.xlu0 %1911
      %1913 = vrot.lane.b32.xlu0 %v1895, 72
      %v1914 = vpop.permute.xlu0 %1913
      %1915 = vrot.lane.b32.xlu0 %v1896, 72
      %v1916 = vpop.permute.xlu0 %1915
      %1917 = vrot.lane.b32.xlu0 %v1897, 72
      %v1918 = vpop.permute.xlu0 %1917
      %1919 = vrot.lane.b32.xlu0 %v1898, 72
      %v1920 = vpop.permute.xlu0 %1919
      %1921 = vrot.lane.b32.xlu0 %v1899, 72
      %v1922 = vpop.permute.xlu0 %1921
      %1923 = vrot.lane.b32.xlu0 %v1900, 72
      %v1924 = vpop.permute.xlu0 %1923
      %1925 = vrot.lane.b32.xlu0 %v1901, 72
      %v1926 = vpop.permute.xlu0 %1925
      %1927 = vrot.lane.b32.xlu0 %v1902, 72
      %v1928 = vpop.permute.xlu0 %1927
      %1929 = vrot.lane.b32.xlu0 %v1903, 72
      %v1930 = vpop.permute.xlu0 %1929
      %1931 = vrot.lane.b32.xlu0 %v1904, 72
      %v1932 = vpop.permute.xlu0 %1931
      %1933 = vrot.lane.b32.xlu0 %v1905, 72
      %v1934 = vpop.permute.xlu0 %1933
      %1935 = vrot.lane.b32.xlu0 %v1906, 72
      %v1936 = vpop.permute.xlu0 %1935
      %1937 = vrot.lane.b32.xlu0 %v1907, 72
      %v1938 = vpop.permute.xlu0 %1937
      %1939 = vrot.lane.b32.xlu0 %v1908, 72
      %v1940 = vpop.permute.xlu0 %1939
      %vm1941 = vcmask 72704
      %v1944 = vsel %vm1941, %v1029, %v1126
      %v1947 = vsel %vm1941, %v1030, %v1128
      %v1950 = vsel %vm1941, %v1031, %v1130
      %v1953 = vsel %vm1941, %v1032, %v1132
      %v1956 = vsel %vm1941, %v1033, %v1134
      %v1959 = vsel %vm1941, %v1034, %v1136
      %v1962 = vsel %vm1941, %v1035, %v1138
      %v1965 = vsel %vm1941, %v1036, %v1140
      %v1968 = vsel %vm1941, %v1037, %v1142
      %v1971 = vsel %vm1941, %v1038, %v1144
      %v1974 = vsel %vm1941, %v1039, %v1146
      %v1977 = vsel %vm1941, %v1040, %v1148
      %v1980 = vsel %vm1941, %v1041, %v1150
      %v1983 = vsel %vm1941, %v1042, %v1152
      %v1986 = vsel %vm1941, %v1043, %v1154
      %v1989 = vsel %vm1941, %v1044, %v1156
      %vm1990 = vcmask 146432
      %v1992 = vsel %vm1990, %v1944, %v1238
      %v1994 = vsel %vm1990, %v1947, %v1240
      %v1996 = vsel %vm1990, %v1950, %v1242
      %v1998 = vsel %vm1990, %v1953, %v1244
      %v2000 = vsel %vm1990, %v1956, %v1246
      %v2002 = vsel %vm1990, %v1959, %v1248
      %v2004 = vsel %vm1990, %v1962, %v1250
      %v2006 = vsel %vm1990, %v1965, %v1252
      %v2008 = vsel %vm1990, %v1968, %v1254
      %v2010 = vsel %vm1990, %v1971, %v1256
      %v2012 = vsel %vm1990, %v1974, %v1258
      %v2014 = vsel %vm1990, %v1977, %v1260
      %v2016 = vsel %vm1990, %v1980, %v1262
      %v2018 = vsel %vm1990, %v1983, %v1264
      %v2020 = vsel %vm1990, %v1986, %v1266
      %v2022 = vsel %vm1990, %v1989, %v1268
      %vm2023 = vcmask 220160
      %v2025 = vsel %vm2023, %v1992, %v1350
      %v2027 = vsel %vm2023, %v1994, %v1352
      %v2029 = vsel %vm2023, %v1996, %v1354
      %v2031 = vsel %vm2023, %v1998, %v1356
      %v2033 = vsel %vm2023, %v2000, %v1358
      %v2035 = vsel %vm2023, %v2002, %v1360
      %v2037 = vsel %vm2023, %v2004, %v1362
      %v2039 = vsel %vm2023, %v2006, %v1364
      %v2041 = vsel %vm2023, %v2008, %v1366
      %v2043 = vsel %vm2023, %v2010, %v1368
      %v2045 = vsel %vm2023, %v2012, %v1370
      %v2047 = vsel %vm2023, %v2014, %v1372
      %v2049 = vsel %vm2023, %v2016, %v1374
      %v2051 = vsel %vm2023, %v2018, %v1376
      %v2053 = vsel %vm2023, %v2020, %v1378
      %v2055 = vsel %vm2023, %v2022, %v1380
      %vm2056 = vcmask 293888
      %v2058 = vsel %vm2056, %v2025, %v1462
      %v2060 = vsel %vm2056, %v2027, %v1464
      %v2062 = vsel %vm2056, %v2029, %v1466
      %v2064 = vsel %vm2056, %v2031, %v1468
      %v2066 = vsel %vm2056, %v2033, %v1470
      %v2068 = vsel %vm2056, %v2035, %v1472
      %v2070 = vsel %vm2056, %v2037, %v1474
      %v2072 = vsel %vm2056, %v2039, %v1476
      %v2074 = vsel %vm2056, %v2041, %v1478
      %v2076 = vsel %vm2056, %v2043, %v1480
      %v2078 = vsel %vm2056, %v2045, %v1482
      %v2080 = vsel %vm2056, %v2047, %v1484
      %v2082 = vsel %vm2056, %v2049, %v1486
      %v2084 = vsel %vm2056, %v2051, %v1488
      %v2086 = vsel %vm2056, %v2053, %v1490
      %v2088 = vsel %vm2056, %v2055, %v1492
      %vm2089 = vcmask 367616
      %v2091 = vsel %vm2089, %v2058, %v1574
      %v2093 = vsel %vm2089, %v2060, %v1576
      %v2095 = vsel %vm2089, %v2062, %v1578
      %v2097 = vsel %vm2089, %v2064, %v1580
      %v2099 = vsel %vm2089, %v2066, %v1582
      %v2101 = vsel %vm2089, %v2068, %v1584
      %v2103 = vsel %vm2089, %v2070, %v1586
      %v2105 = vsel %vm2089, %v2072, %v1588
      %v2107 = vsel %vm2089, %v2074, %v1590
      %v2109 = vsel %vm2089, %v2076, %v1592
      %v2111 = vsel %vm2089, %v2078, %v1594
      %v2113 = vsel %vm2089, %v2080, %v1596
      %v2115 = vsel %vm2089, %v2082, %v1598
      %v2117 = vsel %vm2089, %v2084, %v1600
      %v2119 = vsel %vm2089, %v2086, %v1602
      %v2121 = vsel %vm2089, %v2088, %v1604
      %vm2122 = vcmask 441344
      %v2124 = vsel %vm2122, %v2091, %v1686
      %v2126 = vsel %vm2122, %v2093, %v1688
      %v2128 = vsel %vm2122, %v2095, %v1690
      %v2130 = vsel %vm2122, %v2097, %v1692
      %v2132 = vsel %vm2122, %v2099, %v1694
      %v2134 = vsel %vm2122, %v2101, %v1696
      %v2136 = vsel %vm2122, %v2103, %v1698
      %v2138 = vsel %vm2122, %v2105, %v1700
      %v2140 = vsel %vm2122, %v2107, %v1702
      %v2142 = vsel %vm2122, %v2109, %v1704
      %v2144 = vsel %vm2122, %v2111, %v1706
      %v2146 = vsel %vm2122, %v2113, %v1708
      %v2148 = vsel %vm2122, %v2115, %v1710
      %v2150 = vsel %vm2122, %v2117, %v1712
      %v2152 = vsel %vm2122, %v2119, %v1714
      %v2154 = vsel %vm2122, %v2121, %v1716
      %vm2155 = vcmask 515072
      %v2157 = vsel %vm2155, %v2124, %v1798
      %v2159 = vsel %vm2155, %v2126, %v1800
      %v2161 = vsel %vm2155, %v2128, %v1802
      %v2163 = vsel %vm2155, %v2130, %v1804
      %v2165 = vsel %vm2155, %v2132, %v1806
      %v2167 = vsel %vm2155, %v2134, %v1808
      %v2169 = vsel %vm2155, %v2136, %v1810
      %v2171 = vsel %vm2155, %v2138, %v1812
      %v2173 = vsel %vm2155, %v2140, %v1814
      %v2175 = vsel %vm2155, %v2142, %v1816
      %v2177 = vsel %vm2155, %v2144, %v1818
      %v2179 = vsel %vm2155, %v2146, %v1820
      %v2181 = vsel %vm2155, %v2148, %v1822
      %v2183 = vsel %vm2155, %v2150, %v1824
      %v2185 = vsel %vm2155, %v2152, %v1826
      %v2187 = vsel %vm2155, %v2154, %v1828
      %vm2188 = vcmask 588800
      %v2190 = vsel %vm2188, %v2157, %v1910
      %v2192 = vsel %vm2188, %v2159, %v1912
      %v2194 = vsel %vm2188, %v2161, %v1914
      %v2196 = vsel %vm2188, %v2163, %v1916
      %v2198 = vsel %vm2188, %v2165, %v1918
      %v2200 = vsel %vm2188, %v2167, %v1920
      %v2202 = vsel %vm2188, %v2169, %v1922
      %v2204 = vsel %vm2188, %v2171, %v1924
      %v2206 = vsel %vm2188, %v2173, %v1926
      %v2208 = vsel %vm2188, %v2175, %v1928
      %v2210 = vsel %vm2188, %v2177, %v1930
      %v2212 = vsel %vm2188, %v2179, %v1932
      %v2214 = vsel %vm2188, %v2181, %v1934
      %v2216 = vsel %vm2188, %v2183, %v1936
      %v2218 = vsel %vm2188, %v2185, %v1938
      %v2220 = vsel %vm2188, %v2187, %v1940
      %v2221 = vld [vmem:[%s2] sm:$0xf]
      %v2222 = vld [vmem:[%s2 + $0x4] sm:$0xf]
      %v2223 = vld [vmem:[%s2 + $0x8] sm:$0xf]
      %v2224 = vld [vmem:[%s2 + $0xc] sm:$0xf]
      %v2225 = vld [vmem:[%s2 + $0x10] sm:$0xf]
      %v2226 = vld [vmem:[%s2 + $0x14] sm:$0xf]
      %v2227 = vld [vmem:[%s2 + $0x18] sm:$0xf]
      %v2228 = vld [vmem:[%s2 + $0x1c] sm:$0xf]
      %v2229 = vld [vmem:[%s2 + $0x20] sm:$0xf]
      %v2230 = vld [vmem:[%s2 + $0x24] sm:$0xf]
      %v2231 = vld [vmem:[%s2 + $0x28] sm:$0x1]
      %v2232 = vld [vmem:[%s3] sm:$0x1]
      %v2234 = vperm.slane %v2232, 0
      %v2247 = vunpack.c.l.b16 %v2221
      %v2248 = vunpack.c.l.b16 %v2222
      %v2249 = vunpack.c.l.b16 %v2223
      %v2250 = vunpack.c.l.b16 %v2224
      %v2251 = vunpack.c.l.b16 %v2225
      %v2252 = vunpack.c.l.b16 %v2226
      %v2253 = vunpack.c.l.b16 %v2227
      %v2254 = vunpack.c.l.b16 %v2228
      %v2255 = vunpack.c.l.b16 %v2229
      %v2256 = vunpack.c.l.b16 %v2230
      %v2257 = vunpack.c.l.b16 %v2231
      %v2258 = vpack.c.b16 %v2248, %v2247
      %v2259 = vpack.c.b16 %v2250, %v2249
      %v2260 = vpack.c.b16 %v2252, %v2251
      %v2261 = vpack.c.b16 %v2254, %v2253
      %v2262 = vpack.c.b16 %v2256, %v2255
      %v2263 = vpack.c.b16 %v2257, %v2257
      %vm2269 = vcmask 662528
      %v2270 = vsel %vm2269, %v2190, 0
      %v2272 = vsel %vm2269, %v2192, 0
      %v2274 = vsel %vm2269, %v2194, 0
      %v2276 = vsel %vm2269, %v2196, 0
      %v2278 = vsel %vm2269, %v2198, 0
      %v2280 = vsel %vm2269, %v2200, 0
      %v2282 = vsel %vm2269, %v2202, 0
      %v2284 = vsel %vm2269, %v2204, 0
      %v2286 = vsel %vm2269, %v2206, 0
      %v2288 = vsel %vm2269, %v2208, 0
      %v2290 = vsel %vm2269, %v2210, 0
      %v2292 = vsel %vm2269, %v2212, 0
      %v2294 = vsel %vm2269, %v2214, 0
      %v2296 = vsel %vm2269, %v2216, 0
      %v2298 = vsel %vm2269, %v2218, 0
      %v2300 = vsel %vm2269, %v2220, 0
      %vm2302 = vcmask 1040384
      %v2303 = vsel 0, 4294967295, 65535
      %v2304 = vsel %vm2302, %v2303, 0
      %v2306 = vand.u32 %v2263, %v2304
      %2308 = vmatpush.bf16.msra.mxu0 0
      %2309 = vmatpush.bf16.msra.mxu0 0
      %2310 = vmatpush.bf16.msra.mxu0 %v2306
      %2311 = vmatpush.bf16.msra.mxu0 %v2262
      %2312 = vmatpush.bf16.msra.mxu0 %v2261
      %2313 = vmatpush.bf16.msra.mxu0 %v2260
      %2314 = vmatpush.bf16.msra.mxu0 %v2259
      %2315 = vmatpush.bf16.msra.mxu0 %v2258
      %2316 = vmatmul.bf16.gmra.mxu0 %v2270
      %v2317 = vpop.f32.mrf.mxu0
      %v2318 = vadd.f32 %v2234, %v2317
      %v2319 = vpop.f32.mrf.mxu0
      %v2320 = vadd.f32 %v2234, %v2319
      %2321 = vmatmul.bf16.gmra.mxu0 %v2272
      %v2322 = vpop.f32.mrf.mxu0
      %v2323 = vadd.f32 %v2234, %v2322
      %v2324 = vpop.f32.mrf.mxu0
      %v2325 = vadd.f32 %v2234, %v2324
      %2326 = vmatmul.bf16.gmra.mxu0 %v2274
      %v2327 = vpop.f32.mrf.mxu0
      %v2328 = vadd.f32 %v2234, %v2327
      %v2329 = vpop.f32.mrf.mxu0
      %v2330 = vadd.f32 %v2234, %v2329
      %2331 = vmatmul.bf16.gmra.mxu0 %v2276
      %v2332 = vpop.f32.mrf.mxu0
      %v2333 = vadd.f32 %v2234, %v2332
      %v2334 = vpop.f32.mrf.mxu0
      %v2335 = vadd.f32 %v2234, %v2334
      %2336 = vmatmul.bf16.gmra.mxu0 %v2278
      %v2337 = vpop.f32.mrf.mxu0
      %v2338 = vadd.f32 %v2234, %v2337
      %v2339 = vpop.f32.mrf.mxu0
      %v2340 = vadd.f32 %v2234, %v2339
      %2341 = vmatmul.bf16.gmra.mxu0 %v2280
      %v2342 = vpop.f32.mrf.mxu0
      %v2343 = vadd.f32 %v2234, %v2342
      %v2344 = vpop.f32.mrf.mxu0
      %v2345 = vadd.f32 %v2234, %v2344
      %2346 = vmatmul.bf16.gmra.mxu0 %v2282
      %v2347 = vpop.f32.mrf.mxu0
      %v2348 = vadd.f32 %v2234, %v2347
      %v2349 = vpop.f32.mrf.mxu0
      %v2350 = vadd.f32 %v2234, %v2349
      %2351 = vmatmul.bf16.gmra.mxu0 %v2284
      %v2352 = vpop.f32.mrf.mxu0
      %v2353 = vadd.f32 %v2234, %v2352
      %v2354 = vpop.f32.mrf.mxu0
      %v2355 = vadd.f32 %v2234, %v2354
      %2356 = vmatmul.bf16.gmra.mxu0 %v2286
      %v2357 = vpop.f32.mrf.mxu0
      %v2358 = vadd.f32 %v2234, %v2357
      %v2359 = vpop.f32.mrf.mxu0
      %v2360 = vadd.f32 %v2234, %v2359
      %2361 = vmatmul.bf16.gmra.mxu0 %v2288
      %v2362 = vpop.f32.mrf.mxu0
      %v2363 = vadd.f32 %v2234, %v2362
      %v2364 = vpop.f32.mrf.mxu0
      %v2365 = vadd.f32 %v2234, %v2364
      %2366 = vmatmul.bf16.gmra.mxu0 %v2290
      %v2367 = vpop.f32.mrf.mxu0
      %v2368 = vadd.f32 %v2234, %v2367
      %v2369 = vpop.f32.mrf.mxu0
      %v2370 = vadd.f32 %v2234, %v2369
      %2371 = vmatmul.bf16.gmra.mxu0 %v2292
      %v2372 = vpop.f32.mrf.mxu0
      %v2373 = vadd.f32 %v2234, %v2372
      %v2374 = vpop.f32.mrf.mxu0
      %v2375 = vadd.f32 %v2234, %v2374
      %2376 = vmatmul.bf16.gmra.mxu0 %v2294
      %v2377 = vpop.f32.mrf.mxu0
      %v2378 = vadd.f32 %v2234, %v2377
      %v2379 = vpop.f32.mrf.mxu0
      %v2380 = vadd.f32 %v2234, %v2379
      %2381 = vmatmul.bf16.gmra.mxu0 %v2296
      %v2382 = vpop.f32.mrf.mxu0
      %v2383 = vadd.f32 %v2234, %v2382
      %v2384 = vpop.f32.mrf.mxu0
      %v2385 = vadd.f32 %v2234, %v2384
      %2386 = vmatmul.bf16.gmra.mxu0 %v2298
      %v2387 = vpop.f32.mrf.mxu0
      %v2388 = vadd.f32 %v2234, %v2387
      %v2389 = vpop.f32.mrf.mxu0
      %v2390 = vadd.f32 %v2234, %v2389
      %2391 = vmatmul.bf16.gmra.mxu0 %v2300
      %v2392 = vpop.f32.mrf.mxu0
      %v2393 = vadd.f32 %v2234, %v2392
      %v2394 = vpop.f32.mrf.mxu0
      %v2395 = vadd.f32 %v2234, %v2394
      %2396 = vdwg.mxu0
      %v2397 = vmax.f32 %v2318, 0.0
      %v2398 = vmax.f32 %v2320, 0.0
      %v2399 = vmax.f32 %v2323, 0.0
      %v2400 = vmax.f32 %v2325, 0.0
      %v2401 = vmax.f32 %v2328, 0.0
      %v2402 = vmax.f32 %v2330, 0.0
      %v2403 = vmax.f32 %v2333, 0.0
      %v2404 = vmax.f32 %v2335, 0.0
      %v2405 = vmax.f32 %v2338, 0.0
      %v2406 = vmax.f32 %v2340, 0.0
      %v2407 = vmax.f32 %v2343, 0.0
      %v2408 = vmax.f32 %v2345, 0.0
      %v2409 = vmax.f32 %v2348, 0.0
      %v2410 = vmax.f32 %v2350, 0.0
      %v2411 = vmax.f32 %v2353, 0.0
      %v2412 = vmax.f32 %v2355, 0.0
      %v2413 = vmax.f32 %v2358, 0.0
      %v2414 = vmax.f32 %v2360, 0.0
      %v2415 = vmax.f32 %v2363, 0.0
      %v2416 = vmax.f32 %v2365, 0.0
      %v2417 = vmax.f32 %v2368, 0.0
      %v2418 = vmax.f32 %v2370, 0.0
      %v2419 = vmax.f32 %v2373, 0.0
      %v2420 = vmax.f32 %v2375, 0.0
      %v2421 = vmax.f32 %v2378, 0.0
      %v2422 = vmax.f32 %v2380, 0.0
      %v2423 = vmax.f32 %v2383, 0.0
      %v2424 = vmax.f32 %v2385, 0.0
      %v2425 = vmax.f32 %v2388, 0.0
      %v2426 = vmax.f32 %v2390, 0.0
      %v2427 = vmax.f32 %v2393, 0.0
      %v2428 = vmax.f32 %v2395, 0.0
      %v2461 = vrot.slane %v2397, 7
      %v2462 = vrot.slane %v2398, 7
      %v2463 = vsel %vm2302, %v2461, %v2462
      %v2464 = vrot.slane %v2399, 7
      %v2465 = vrot.slane %v2400, 7
      %v2466 = vsel %vm2302, %v2464, %v2465
      %v2467 = vrot.slane %v2401, 7
      %v2468 = vrot.slane %v2402, 7
      %v2469 = vsel %vm2302, %v2467, %v2468
      %v2470 = vrot.slane %v2403, 7
      %v2471 = vrot.slane %v2404, 7
      %v2472 = vsel %vm2302, %v2470, %v2471
      %v2473 = vrot.slane %v2405, 7
      %v2474 = vrot.slane %v2406, 7
      %v2475 = vsel %vm2302, %v2473, %v2474
      %v2476 = vrot.slane %v2407, 7
      %v2477 = vrot.slane %v2408, 7
      %v2478 = vsel %vm2302, %v2476, %v2477
      %v2479 = vrot.slane %v2409, 7
      %v2480 = vrot.slane %v2410, 7
      %v2481 = vsel %vm2302, %v2479, %v2480
      %v2482 = vrot.slane %v2411, 7
      %v2483 = vrot.slane %v2412, 7
      %v2484 = vsel %vm2302, %v2482, %v2483
      %v2485 = vrot.slane %v2413, 7
      %v2486 = vrot.slane %v2414, 7
      %v2487 = vsel %vm2302, %v2485, %v2486
      %v2488 = vrot.slane %v2415, 7
      %v2489 = vrot.slane %v2416, 7
      %v2490 = vsel %vm2302, %v2488, %v2489
      %v2491 = vrot.slane %v2417, 7
      %v2492 = vrot.slane %v2418, 7
      %v2493 = vsel %vm2302, %v2491, %v2492
      %v2494 = vrot.slane %v2419, 7
      %v2495 = vrot.slane %v2420, 7
      %v2496 = vsel %vm2302, %v2494, %v2495
      %v2497 = vrot.slane %v2421, 7
      %v2498 = vrot.slane %v2422, 7
      %v2499 = vsel %vm2302, %v2497, %v2498
      %v2500 = vrot.slane %v2423, 7
      %v2501 = vrot.slane %v2424, 7
      %v2502 = vsel %vm2302, %v2500, %v2501
      %v2503 = vrot.slane %v2425, 7
      %v2504 = vrot.slane %v2426, 7
      %v2505 = vsel %vm2302, %v2503, %v2504
      %v2506 = vrot.slane %v2427, 7
      %v2507 = vrot.slane %v2428, 7
      %v2508 = vsel %vm2302, %v2506, %v2507
      %v2557 = vsel %vm2302, 0.0, %v2461
      %v2558 = vsel %vm2302, 0.0, %v2464
      %v2559 = vsel %vm2302, 0.0, %v2467
      %v2560 = vsel %vm2302, 0.0, %v2470
      %v2561 = vsel %vm2302, 0.0, %v2473
      %v2562 = vsel %vm2302, 0.0, %v2476
      %v2563 = vsel %vm2302, 0.0, %v2479
      %v2564 = vsel %vm2302, 0.0, %v2482
      %v2565 = vsel %vm2302, 0.0, %v2485
      %v2566 = vsel %vm2302, 0.0, %v2488
      %v2567 = vsel %vm2302, 0.0, %v2491
      %v2568 = vsel %vm2302, 0.0, %v2494
      %v2569 = vsel %vm2302, 0.0, %v2497
      %v2570 = vsel %vm2302, 0.0, %v2500
      %v2571 = vsel %vm2302, 0.0, %v2503
      %v2572 = vsel %vm2302, 0.0, %v2506
      %v2573 = vsel %vm2302, %v2462, 0.0
      %v2574 = vsel %vm2302, %v2465, 0.0
      %v2575 = vsel %vm2302, %v2468, 0.0
      %v2576 = vsel %vm2302, %v2471, 0.0
      %v2577 = vsel %vm2302, %v2474, 0.0
      %v2578 = vsel %vm2302, %v2477, 0.0
      %v2579 = vsel %vm2302, %v2480, 0.0
      %v2580 = vsel %vm2302, %v2483, 0.0
      %v2581 = vsel %vm2302, %v2486, 0.0
      %v2582 = vsel %vm2302, %v2489, 0.0
      %v2583 = vsel %vm2302, %v2492, 0.0
      %v2584 = vsel %vm2302, %v2495, 0.0
      %v2585 = vsel %vm2302, %v2498, 0.0
      %v2586 = vsel %vm2302, %v2501, 0.0
      %v2587 = vsel %vm2302, %v2504, 0.0
      %v2588 = vsel %vm2302, %v2507, 0.0
      %s2589 = scalar_lea.vmem [#allocation2], 24
      %2590 = vst.msk [vmem:[%s2589] sm:$0xff] %vm378, %v2557
      %2591 = vst.msk [vmem:[%s2589 + $0x8] sm:$0xff] %vm378, %v2463
      %2592 = vst.msk [vmem:[%s2589 + $0x10] sm:$0x3] %vm381, %v2573
      %2593 = vst.msk [vmem:[%s2589 + $0x18] sm:$0xff] %vm378, %v2558
      %2594 = vst.msk [vmem:[%s2589 + $0x20] sm:$0xff] %vm378, %v2466
      %2595 = vst.msk [vmem:[%s2589 + $0x28] sm:$0x3] %vm381, %v2574
      %2596 = vst.msk [vmem:[%s2589 + $0x30] sm:$0xff] %vm378, %v2559
      %2597 = vst.msk [vmem:[%s2589 + $0x38] sm:$0xff] %vm378, %v2469
      %2598 = vst.msk [vmem:[%s2589 + $0x40] sm:$0x3] %vm381, %v2575
      %2599 = vst.msk [vmem:[%s2589 + $0x48] sm:$0xff] %vm378, %v2560
      %2600 = vst.msk [vmem:[%s2589 + $0x50] sm:$0xff] %vm378, %v2472
      %2601 = vst.msk [vmem:[%s2589 + $0x58] sm:$0x3] %vm381, %v2576
      %2602 = vst.msk [vmem:[%s2589 + $0x60] sm:$0xff] %vm378, %v2561
      %2603 = vst.msk [vmem:[%s2589 + $0x68] sm:$0xff] %vm378, %v2475
      %2604 = vst.msk [vmem:[%s2589 + $0x70] sm:$0x3] %vm381, %v2577
      %2605 = vst.msk [vmem:[%s2589 + $0x78] sm:$0xff] %vm378, %v2562
      %2606 = vst.msk [vmem:[%s2589 + $0x80] sm:$0xff] %vm378, %v2478
      %2607 = vst.msk [vmem:[%s2589 + $0x88] sm:$0x3] %vm381, %v2578
      %2608 = vst.msk [vmem:[%s2589 + $0x90] sm:$0xff] %vm378, %v2563
      %2609 = vst.msk [vmem:[%s2589 + $0x98] sm:$0xff] %vm378, %v2481
      %2610 = vst.msk [vmem:[%s2589 + $0xa0] sm:$0x3] %vm381, %v2579
      %2611 = vst.msk [vmem:[%s2589 + $0xa8] sm:$0xff] %vm378, %v2564
      %2612 = vst.msk [vmem:[%s2589 + $0xb0] sm:$0xff] %vm378, %v2484
      %2613 = vst.msk [vmem:[%s2589 + $0xb8] sm:$0x3] %vm381, %v2580
      %2614 = vst.msk [vmem:[%s2589 + $0xc0] sm:$0xff] %vm378, %v2565
      %2615 = vst.msk [vmem:[%s2589 + $0xc8] sm:$0xff] %vm378, %v2487
      %2616 = vst.msk [vmem:[%s2589 + $0xd0] sm:$0x3] %vm381, %v2581
      %2617 = vst.msk [vmem:[%s2589 + $0xd8] sm:$0xff] %vm378, %v2566
      %2618 = vst.msk [vmem:[%s2589 + $0xe0] sm:$0xff] %vm378, %v2490
      %2619 = vst.msk [vmem:[%s2589 + $0xe8] sm:$0x3] %vm381, %v2582
      %2620 = vst.msk [vmem:[%s2589 + $0xf0] sm:$0xff] %vm378, %v2567
      %2621 = vst.msk [vmem:[%s2589 + $0xf8] sm:$0xff] %vm378, %v2493
      %2622 = vst.msk [vmem:[%s2589 + $0x100] sm:$0x3] %vm381, %v2583
      %2623 = vst.msk [vmem:[%s2589 + $0x108] sm:$0xff] %vm378, %v2568
      %2624 = vst.msk [vmem:[%s2589 + $0x110] sm:$0xff] %vm378, %v2496
      %2625 = vst.msk [vmem:[%s2589 + $0x118] sm:$0x3] %vm381, %v2584
      %2626 = vst.msk [vmem:[%s2589 + $0x120] sm:$0xff] %vm378, %v2569
      %2627 = vst.msk [vmem:[%s2589 + $0x128] sm:$0xff] %vm378, %v2499
      %2628 = vst.msk [vmem:[%s2589 + $0x130] sm:$0x3] %vm381, %v2585
      %2629 = vst.msk [vmem:[%s2589 + $0x138] sm:$0xff] %vm378, %v2570
      %2630 = vst.msk [vmem:[%s2589 + $0x140] sm:$0xff] %vm378, %v2502
      %2631 = vst.msk [vmem:[%s2589 + $0x148] sm:$0x3] %vm381, %v2586
      %2632 = vst.msk [vmem:[%s2589 + $0x150] sm:$0xff] %vm378, %v2571
      %2633 = vst.msk [vmem:[%s2589 + $0x158] sm:$0xff] %vm378, %v2505
      %2634 = vst.msk [vmem:[%s2589 + $0x160] sm:$0x3] %vm381, %v2587
      %2635 = vst.msk [vmem:[%s2589 + $0x168] sm:$0xff] %vm378, %v2572
      %2636 = vst.msk [vmem:[%s2589 + $0x170] sm:$0xff] %vm378, %v2508
      %2637 = vst.msk [vmem:[%s2589 + $0x178] sm:$0x3] %vm381, %v2588
      %v2638 = vld [vmem:[#allocation2] sm:$0xff]
      %v2639 = vld [vmem:[#allocation2 + $0x8] sm:$0xff]
      %v2640 = vld [vmem:[#allocation2 + $0x18] sm:$0xff]
      %v2641 = vld [vmem:[#allocation2 + $0x20] sm:$0xff]
      %v2642 = vld [vmem:[#allocation2 + $0x30] sm:$0xff]
      %v2643 = vld [vmem:[#allocation2 + $0x38] sm:$0xff]
      %v2644 = vld [vmem:[#allocation2 + $0x48] sm:$0xff]
      %v2645 = vld [vmem:[#allocation2 + $0x50] sm:$0xff]
      %v2646 = vld [vmem:[#allocation2 + $0x60] sm:$0xff]
      %v2647 = vld [vmem:[#allocation2 + $0x68] sm:$0xff]
      %v2648 = vld [vmem:[#allocation2 + $0x78] sm:$0xff]
      %v2649 = vld [vmem:[#allocation2 + $0x80] sm:$0xff]
      %v2650 = vld [vmem:[#allocation2 + $0x90] sm:$0xff]
      %v2651 = vld [vmem:[#allocation2 + $0x98] sm:$0xff]
      %v2652 = vld [vmem:[#allocation2 + $0xa8] sm:$0xff]
      %v2653 = vld [vmem:[#allocation2 + $0xb0] sm:$0xff]
      %v2654 = vld [vmem:[#allocation2 + $0xc0] sm:$0xff]
      %v2655 = vld [vmem:[#allocation2 + $0xc8] sm:$0xff]
      %v2656 = vld [vmem:[#allocation2 + $0xd8] sm:$0xff]
      %v2657 = vld [vmem:[#allocation2 + $0xe0] sm:$0xff]
      %v2658 = vld [vmem:[#allocation2 + $0xf0] sm:$0xff]
      %v2659 = vld [vmem:[#allocation2 + $0xf8] sm:$0xff]
      %v2660 = vld [vmem:[#allocation2 + $0x108] sm:$0xff]
      %v2661 = vld [vmem:[#allocation2 + $0x110] sm:$0xff]
      %v2662 = vld [vmem:[#allocation2 + $0x120] sm:$0xff]
      %v2663 = vld [vmem:[#allocation2 + $0x128] sm:$0xff]
      %v2664 = vld [vmem:[#allocation2 + $0x138] sm:$0xff]
      %v2665 = vld [vmem:[#allocation2 + $0x140] sm:$0xff]
      %v2666 = vld [vmem:[#allocation2 + $0x150] sm:$0xff]
      %v2667 = vld [vmem:[#allocation2 + $0x158] sm:$0xff]
      %v2668 = vld [vmem:[#allocation2 + $0x168] sm:$0xff]
      %v2669 = vld [vmem:[#allocation2 + $0x170] sm:$0xff]
      %v2670 = vpack.c.bf16 %v2638, %v2638
      %v2671 = vpack.c.bf16 %v2639, %v2639
      %v2672 = vpack.c.bf16 %v2640, %v2640
      %v2673 = vpack.c.bf16 %v2641, %v2641
      %v2674 = vpack.c.bf16 %v2642, %v2642
      %v2675 = vpack.c.bf16 %v2643, %v2643
      %v2676 = vpack.c.bf16 %v2644, %v2644
      %v2677 = vpack.c.bf16 %v2645, %v2645
      %v2678 = vpack.c.bf16 %v2646, %v2646
      %v2679 = vpack.c.bf16 %v2647, %v2647
      %v2680 = vpack.c.bf16 %v2648, %v2648
      %v2681 = vpack.c.bf16 %v2649, %v2649
      %v2682 = vpack.c.bf16 %v2650, %v2650
      %v2683 = vpack.c.bf16 %v2651, %v2651
      %v2684 = vpack.c.bf16 %v2652, %v2652
      %v2685 = vpack.c.bf16 %v2653, %v2653
      %v2686 = vpack.c.bf16 %v2654, %v2654
      %v2687 = vpack.c.bf16 %v2655, %v2655
      %v2688 = vpack.c.bf16 %v2656, %v2656
      %v2689 = vpack.c.bf16 %v2657, %v2657
      %v2690 = vpack.c.bf16 %v2658, %v2658
      %v2691 = vpack.c.bf16 %v2659, %v2659
      %v2692 = vpack.c.bf16 %v2660, %v2660
      %v2693 = vpack.c.bf16 %v2661, %v2661
      %v2694 = vpack.c.bf16 %v2662, %v2662
      %v2695 = vpack.c.bf16 %v2663, %v2663
      %v2696 = vpack.c.bf16 %v2664, %v2664
      %v2697 = vpack.c.bf16 %v2665, %v2665
      %v2698 = vpack.c.bf16 %v2666, %v2666
      %v2699 = vpack.c.bf16 %v2667, %v2667
      %v2700 = vpack.c.bf16 %v2668, %v2668
      %v2701 = vpack.c.bf16 %v2669, %v2669
      %v2702 = vld [vmem:[#allocation2 + $0x1] sm:$0xff]
      %v2703 = vld [vmem:[#allocation2 + $0x9] sm:$0xff]
      %v2704 = vld [vmem:[#allocation2 + $0x19] sm:$0xff]
      %v2705 = vld [vmem:[#allocation2 + $0x21] sm:$0xff]
      %v2706 = vld [vmem:[#allocation2 + $0x31] sm:$0xff]
      %v2707 = vld [vmem:[#allocation2 + $0x39] sm:$0xff]
      %v2708 = vld [vmem:[#allocation2 + $0x49] sm:$0xff]
      %v2709 = vld [vmem:[#allocation2 + $0x51] sm:$0xff]
      %v2710 = vld [vmem:[#allocation2 + $0x61] sm:$0xff]
      %v2711 = vld [vmem:[#allocation2 + $0x69] sm:$0xff]
      %v2712 = vld [vmem:[#allocation2 + $0x79] sm:$0xff]
      %v2713 = vld [vmem:[#allocation2 + $0x81] sm:$0xff]
      %v2714 = vld [vmem:[#allocation2 + $0x91] sm:$0xff]
      %v2715 = vld [vmem:[#allocation2 + $0x99] sm:$0xff]
      %v2716 = vld [vmem:[#allocation2 + $0xa9] sm:$0xff]
      %v2717 = vld [vmem:[#allocation2 + $0xb1] sm:$0xff]
      %v2718 = vld [vmem:[#allocation2 + $0xc1] sm:$0xff]
      %v2719 = vld [vmem:[#allocation2 + $0xc9] sm:$0xff]
      %v2720 = vld [vmem:[#allocation2 + $0xd9] sm:$0xff]
      %v2721 = vld [vmem:[#allocation2 + $0xe1] sm:$0xff]
      %v2722 = vld [vmem:[#allocation2 + $0xf1] sm:$0xff]
      %v2723 = vld [vmem:[#allocation2 + $0xf9] sm:$0xff]
      %v2724 = vld [vmem:[#allocation2 + $0x109] sm:$0xff]
      %v2725 = vld [vmem:[#allocation2 + $0x111] sm:$0xff]
      %v2726 = vld [vmem:[#allocation2 + $0x121] sm:$0xff]
      %v2727 = vld [vmem:[#allocation2 + $0x129] sm:$0xff]
      %v2728 = vld [vmem:[#allocation2 + $0x139] sm:$0xff]
      %v2729 = vld [vmem:[#allocation2 + $0x141] sm:$0xff]
      %v2730 = vld [vmem:[#allocation2 + $0x151] sm:$0xff]
      %v2731 = vld [vmem:[#allocation2 + $0x159] sm:$0xff]
      %v2732 = vld [vmem:[#allocation2 + $0x169] sm:$0xff]
      %v2733 = vld [vmem:[#allocation2 + $0x171] sm:$0xff]
      %v2734 = vpack.c.bf16 %v2702, %v2702
      %v2735 = vpack.c.bf16 %v2703, %v2703
      %v2736 = vpack.c.bf16 %v2704, %v2704
      %v2737 = vpack.c.bf16 %v2705, %v2705
      %v2738 = vpack.c.bf16 %v2706, %v2706
      %v2739 = vpack.c.bf16 %v2707, %v2707
      %v2740 = vpack.c.bf16 %v2708, %v2708
      %v2741 = vpack.c.bf16 %v2709, %v2709
      %v2742 = vpack.c.bf16 %v2710, %v2710
      %v2743 = vpack.c.bf16 %v2711, %v2711
      %v2744 = vpack.c.bf16 %v2712, %v2712
      %v2745 = vpack.c.bf16 %v2713, %v2713
      %v2746 = vpack.c.bf16 %v2714, %v2714
      %v2747 = vpack.c.bf16 %v2715, %v2715
      %v2748 = vpack.c.bf16 %v2716, %v2716
      %v2749 = vpack.c.bf16 %v2717, %v2717
      %v2750 = vpack.c.bf16 %v2718, %v2718
      %v2751 = vpack.c.bf16 %v2719, %v2719
      %v2752 = vpack.c.bf16 %v2720, %v2720
      %v2753 = vpack.c.bf16 %v2721, %v2721
      %v2754 = vpack.c.bf16 %v2722, %v2722
      %v2755 = vpack.c.bf16 %v2723, %v2723
      %v2756 = vpack.c.bf16 %v2724, %v2724
      %v2757 = vpack.c.bf16 %v2725, %v2725
      %v2758 = vpack.c.bf16 %v2726, %v2726
      %v2759 = vpack.c.bf16 %v2727, %v2727
      %v2760 = vpack.c.bf16 %v2728, %v2728
      %v2761 = vpack.c.bf16 %v2729, %v2729
      %v2762 = vpack.c.bf16 %v2730, %v2730
      %v2763 = vpack.c.bf16 %v2731, %v2731
      %v2764 = vpack.c.bf16 %v2732, %v2732
      %v2765 = vpack.c.bf16 %v2733, %v2733
      %v2766 = vld [vmem:[#allocation2 + $0x2] sm:$0xff]
      %v2767 = vld [vmem:[#allocation2 + $0xa] sm:$0xff]
      %v2768 = vld [vmem:[#allocation2 + $0x1a] sm:$0xff]
      %v2769 = vld [vmem:[#allocation2 + $0x22] sm:$0xff]
      %v2770 = vld [vmem:[#allocation2 + $0x32] sm:$0xff]
      %v2771 = vld [vmem:[#allocation2 + $0x3a] sm:$0xff]
      %v2772 = vld [vmem:[#allocation2 + $0x4a] sm:$0xff]
      %v2773 = vld [vmem:[#allocation2 + $0x52] sm:$0xff]
      %v2774 = vld [vmem:[#allocation2 + $0x62] sm:$0xff]
      %v2775 = vld [vmem:[#allocation2 + $0x6a] sm:$0xff]
      %v2776 = vld [vmem:[#allocation2 + $0x7a] sm:$0xff]
      %v2777 = vld [vmem:[#allocation2 + $0x82] sm:$0xff]
      %v2778 = vld [vmem:[#allocation2 + $0x92] sm:$0xff]
      %v2779 = vld [vmem:[#allocation2 + $0x9a] sm:$0xff]
      %v2780 = vld [vmem:[#allocation2 + $0xaa] sm:$0xff]
      %v2781 = vld [vmem:[#allocation2 + $0xb2] sm:$0xff]
      %v2782 = vld [vmem:[#allocation2 + $0xc2] sm:$0xff]
      %v2783 = vld [vmem:[#allocation2 + $0xca] sm:$0xff]
      %v2784 = vld [vmem:[#allocation2 + $0xda] sm:$0xff]
      %v2785 = vld [vmem:[#allocation2 + $0xe2] sm:$0xff]
      %v2786 = vld [vmem:[#allocation2 + $0xf2] sm:$0xff]
      %v2787 = vld [vmem:[#allocation2 + $0xfa] sm:$0xff]
      %v2788 = vld [vmem:[#allocation2 + $0x10a] sm:$0xff]
      %v2789 = vld [vmem:[#allocation2 + $0x112] sm:$0xff]
      %v2790 = vld [vmem:[#allocation2 + $0x122] sm:$0xff]
      %v2791 = vld [vmem:[#allocation2 + $0x12a] sm:$0xff]
      %v2792 = vld [vmem:[#allocation2 + $0x13a] sm:$0xff]
      %v2793 = vld [vmem:[#allocation2 + $0x142] sm:$0xff]
      %v2794 = vld [vmem:[#allocation2 + $0x152] sm:$0xff]
      %v2795 = vld [vmem:[#allocation2 + $0x15a] sm:$0xff]
      %v2796 = vld [vmem:[#allocation2 + $0x16a] sm:$0xff]
      %v2797 = vld [vmem:[#allocation2 + $0x172] sm:$0xff]
      %v2798 = vpack.c.bf16 %v2766, %v2766
      %v2799 = vpack.c.bf16 %v2767, %v2767
      %v2800 = vpack.c.bf16 %v2768, %v2768
      %v2801 = vpack.c.bf16 %v2769, %v2769
      %v2802 = vpack.c.bf16 %v2770, %v2770
      %v2803 = vpack.c.bf16 %v2771, %v2771
      %v2804 = vpack.c.bf16 %v2772, %v2772
      %v2805 = vpack.c.bf16 %v2773, %v2773
      %v2806 = vpack.c.bf16 %v2774, %v2774
      %v2807 = vpack.c.bf16 %v2775, %v2775
      %v2808 = vpack.c.bf16 %v2776, %v2776
      %v2809 = vpack.c.bf16 %v2777, %v2777
      %v2810 = vpack.c.bf16 %v2778, %v2778
      %v2811 = vpack.c.bf16 %v2779, %v2779
      %v2812 = vpack.c.bf16 %v2780, %v2780
      %v2813 = vpack.c.bf16 %v2781, %v2781
      %v2814 = vpack.c.bf16 %v2782, %v2782
      %v2815 = vpack.c.bf16 %v2783, %v2783
      %v2816 = vpack.c.bf16 %v2784, %v2784
      %v2817 = vpack.c.bf16 %v2785, %v2785
      %v2818 = vpack.c.bf16 %v2786, %v2786
      %v2819 = vpack.c.bf16 %v2787, %v2787
      %v2820 = vpack.c.bf16 %v2788, %v2788
      %v2821 = vpack.c.bf16 %v2789, %v2789
      %v2822 = vpack.c.bf16 %v2790, %v2790
      %v2823 = vpack.c.bf16 %v2791, %v2791
      %v2824 = vpack.c.bf16 %v2792, %v2792
      %v2825 = vpack.c.bf16 %v2793, %v2793
      %v2826 = vpack.c.bf16 %v2794, %v2794
      %v2827 = vpack.c.bf16 %v2795, %v2795
      %v2828 = vpack.c.bf16 %v2796, %v2796
      %v2829 = vpack.c.bf16 %v2797, %v2797
      %v2830 = vld [vmem:[%s2589] sm:$0xff]
      %v2831 = vld [vmem:[%s2589 + $0x8] sm:$0xff]
      %v2832 = vld [vmem:[%s2589 + $0x18] sm:$0xff]
      %v2833 = vld [vmem:[%s2589 + $0x20] sm:$0xff]
      %v2834 = vld [vmem:[%s2589 + $0x30] sm:$0xff]
      %v2835 = vld [vmem:[%s2589 + $0x38] sm:$0xff]
      %v2836 = vld [vmem:[%s2589 + $0x48] sm:$0xff]
      %v2837 = vld [vmem:[%s2589 + $0x50] sm:$0xff]
      %v2838 = vld [vmem:[%s2589 + $0x60] sm:$0xff]
      %v2839 = vld [vmem:[%s2589 + $0x68] sm:$0xff]
      %v2840 = vld [vmem:[%s2589 + $0x78] sm:$0xff]
      %v2841 = vld [vmem:[%s2589 + $0x80] sm:$0xff]
      %v2842 = vld [vmem:[%s2589 + $0x90] sm:$0xff]
      %v2843 = vld [vmem:[%s2589 + $0x98] sm:$0xff]
      %v2844 = vld [vmem:[%s2589 + $0xa8] sm:$0xff]
      %v2845 = vld [vmem:[%s2589 + $0xb0] sm:$0xff]
      %v2846 = vld [vmem:[%s2589 + $0xc0] sm:$0xff]
      %v2847 = vld [vmem:[%s2589 + $0xc8] sm:$0xff]
      %v2848 = vld [vmem:[%s2589 + $0xd8] sm:$0xff]
      %v2849 = vld [vmem:[%s2589 + $0xe0] sm:$0xff]
      %v2850 = vld [vmem:[%s2589 + $0xf0] sm:$0xff]
      %v2851 = vld [vmem:[%s2589 + $0xf8] sm:$0xff]
      %v2852 = vld [vmem:[%s2589 + $0x108] sm:$0xff]
      %v2853 = vld [vmem:[%s2589 + $0x110] sm:$0xff]
      %v2854 = vld [vmem:[%s2589 + $0x120] sm:$0xff]
      %v2855 = vld [vmem:[%s2589 + $0x128] sm:$0xff]
      %v2856 = vld [vmem:[%s2589 + $0x138] sm:$0xff]
      %v2857 = vld [vmem:[%s2589 + $0x140] sm:$0xff]
      %v2858 = vld [vmem:[%s2589 + $0x150] sm:$0xff]
      %v2859 = vld [vmem:[%s2589 + $0x158] sm:$0xff]
      %v2860 = vld [vmem:[%s2589 + $0x168] sm:$0xff]
      %v2861 = vld [vmem:[%s2589 + $0x170] sm:$0xff]
      %v2862 = vpack.c.bf16 %v2830, %v2830
      %v2863 = vpack.c.bf16 %v2831, %v2831
      %v2864 = vpack.c.bf16 %v2832, %v2832
      %v2865 = vpack.c.bf16 %v2833, %v2833
      %v2866 = vpack.c.bf16 %v2834, %v2834
      %v2867 = vpack.c.bf16 %v2835, %v2835
      %v2868 = vpack.c.bf16 %v2836, %v2836
      %v2869 = vpack.c.bf16 %v2837, %v2837
      %v2870 = vpack.c.bf16 %v2838, %v2838
      %v2871 = vpack.c.bf16 %v2839, %v2839
      %v2872 = vpack.c.bf16 %v2840, %v2840
      %v2873 = vpack.c.bf16 %v2841, %v2841
      %v2874 = vpack.c.bf16 %v2842, %v2842
      %v2875 = vpack.c.bf16 %v2843, %v2843
      %v2876 = vpack.c.bf16 %v2844, %v2844
      %v2877 = vpack.c.bf16 %v2845, %v2845
      %v2878 = vpack.c.bf16 %v2846, %v2846
      %v2879 = vpack.c.bf16 %v2847, %v2847
      %v2880 = vpack.c.bf16 %v2848, %v2848
      %v2881 = vpack.c.bf16 %v2849, %v2849
      %v2882 = vpack.c.bf16 %v2850, %v2850
      %v2883 = vpack.c.bf16 %v2851, %v2851
      %v2884 = vpack.c.bf16 %v2852, %v2852
      %v2885 = vpack.c.bf16 %v2853, %v2853
      %v2886 = vpack.c.bf16 %v2854, %v2854
      %v2887 = vpack.c.bf16 %v2855, %v2855
      %v2888 = vpack.c.bf16 %v2856, %v2856
      %v2889 = vpack.c.bf16 %v2857, %v2857
      %v2890 = vpack.c.bf16 %v2858, %v2858
      %v2891 = vpack.c.bf16 %v2859, %v2859
      %v2892 = vpack.c.bf16 %v2860, %v2860
      %v2893 = vpack.c.bf16 %v2861, %v2861
      %v2894 = vld [vmem:[%s2589 + $0x1] sm:$0xff]
      %v2895 = vld [vmem:[%s2589 + $0x9] sm:$0xff]
      %v2896 = vld [vmem:[%s2589 + $0x19] sm:$0xff]
      %v2897 = vld [vmem:[%s2589 + $0x21] sm:$0xff]
      %v2898 = vld [vmem:[%s2589 + $0x31] sm:$0xff]
      %v2899 = vld [vmem:[%s2589 + $0x39] sm:$0xff]
      %v2900 = vld [vmem:[%s2589 + $0x49] sm:$0xff]
      %v2901 = vld [vmem:[%s2589 + $0x51] sm:$0xff]
      %v2902 = vld [vmem:[%s2589 + $0x61] sm:$0xff]
      %v2903 = vld [vmem:[%s2589 + $0x69] sm:$0xff]
      %v2904 = vld [vmem:[%s2589 + $0x79] sm:$0xff]
      %v2905 = vld [vmem:[%s2589 + $0x81] sm:$0xff]
      %v2906 = vld [vmem:[%s2589 + $0x91] sm:$0xff]
      %v2907 = vld [vmem:[%s2589 + $0x99] sm:$0xff]
      %v2908 = vld [vmem:[%s2589 + $0xa9] sm:$0xff]
      %v2909 = vld [vmem:[%s2589 + $0xb1] sm:$0xff]
      %v2910 = vld [vmem:[%s2589 + $0xc1] sm:$0xff]
      %v2911 = vld [vmem:[%s2589 + $0xc9] sm:$0xff]
      %v2912 = vld [vmem:[%s2589 + $0xd9] sm:$0xff]
      %v2913 = vld [vmem:[%s2589 + $0xe1] sm:$0xff]
      %v2914 = vld [vmem:[%s2589 + $0xf1] sm:$0xff]
      %v2915 = vld [vmem:[%s2589 + $0xf9] sm:$0xff]
      %v2916 = vld [vmem:[%s2589 + $0x109] sm:$0xff]
      %v2917 = vld [vmem:[%s2589 + $0x111] sm:$0xff]
      %v2918 = vld [vmem:[%s2589 + $0x121] sm:$0xff]
      %v2919 = vld [vmem:[%s2589 + $0x129] sm:$0xff]
      %v2920 = vld [vmem:[%s2589 + $0x139] sm:$0xff]
      %v2921 = vld [vmem:[%s2589 + $0x141] sm:$0xff]
      %v2922 = vld [vmem:[%s2589 + $0x151] sm:$0xff]
      %v2923 = vld [vmem:[%s2589 + $0x159] sm:$0xff]
      %v2924 = vld [vmem:[%s2589 + $0x169] sm:$0xff]
      %v2925 = vld [vmem:[%s2589 + $0x171] sm:$0xff]
      %v2926 = vpack.c.bf16 %v2894, %v2894
      %v2927 = vpack.c.bf16 %v2895, %v2895
      %v2928 = vpack.c.bf16 %v2896, %v2896
      %v2929 = vpack.c.bf16 %v2897, %v2897
      %v2930 = vpack.c.bf16 %v2898, %v2898
      %v2931 = vpack.c.bf16 %v2899, %v2899
      %v2932 = vpack.c.bf16 %v2900, %v2900
      %v2933 = vpack.c.bf16 %v2901, %v2901
      %v2934 = vpack.c.bf16 %v2902, %v2902
      %v2935 = vpack.c.bf16 %v2903, %v2903
      %v2936 = vpack.c.bf16 %v2904, %v2904
      %v2937 = vpack.c.bf16 %v2905, %v2905
      %v2938 = vpack.c.bf16 %v2906, %v2906
      %v2939 = vpack.c.bf16 %v2907, %v2907
      %v2940 = vpack.c.bf16 %v2908, %v2908
      %v2941 = vpack.c.bf16 %v2909, %v2909
      %v2942 = vpack.c.bf16 %v2910, %v2910
      %v2943 = vpack.c.bf16 %v2911, %v2911
      %v2944 = vpack.c.bf16 %v2912, %v2912
      %v2945 = vpack.c.bf16 %v2913, %v2913
      %v2946 = vpack.c.bf16 %v2914, %v2914
      %v2947 = vpack.c.bf16 %v2915, %v2915
      %v2948 = vpack.c.bf16 %v2916, %v2916
      %v2949 = vpack.c.bf16 %v2917, %v2917
      %v2950 = vpack.c.bf16 %v2918, %v2918
      %v2951 = vpack.c.bf16 %v2919, %v2919
      %v2952 = vpack.c.bf16 %v2920, %v2920
      %v2953 = vpack.c.bf16 %v2921, %v2921
      %v2954 = vpack.c.bf16 %v2922, %v2922
      %v2955 = vpack.c.bf16 %v2923, %v2923
      %v2956 = vpack.c.bf16 %v2924, %v2924
      %v2957 = vpack.c.bf16 %v2925, %v2925
      %v2958 = vld [vmem:[%s2589 + $0x2] sm:$0xff]
      %v2959 = vld [vmem:[%s2589 + $0xa] sm:$0xff]
      %v2960 = vld [vmem:[%s2589 + $0x1a] sm:$0xff]
      %v2961 = vld [vmem:[%s2589 + $0x22] sm:$0xff]
      %v2962 = vld [vmem:[%s2589 + $0x32] sm:$0xff]
      %v2963 = vld [vmem:[%s2589 + $0x3a] sm:$0xff]
      %v2964 = vld [vmem:[%s2589 + $0x4a] sm:$0xff]
      %v2965 = vld [vmem:[%s2589 + $0x52] sm:$0xff]
      %v2966 = vld [vmem:[%s2589 + $0x62] sm:$0xff]
      %v2967 = vld [vmem:[%s2589 + $0x6a] sm:$0xff]
      %v2968 = vld [vmem:[%s2589 + $0x7a] sm:$0xff]
      %v2969 = vld [vmem:[%s2589 + $0x82] sm:$0xff]
      %v2970 = vld [vmem:[%s2589 + $0x92] sm:$0xff]
      %v2971 = vld [vmem:[%s2589 + $0x9a] sm:$0xff]
      %v2972 = vld [vmem:[%s2589 + $0xaa] sm:$0xff]
      %v2973 = vld [vmem:[%s2589 + $0xb2] sm:$0xff]
      %v2974 = vld [vmem:[%s2589 + $0xc2] sm:$0xff]
      %v2975 = vld [vmem:[%s2589 + $0xca] sm:$0xff]
      %v2976 = vld [vmem:[%s2589 + $0xda] sm:$0xff]
      %v2977 = vld [vmem:[%s2589 + $0xe2] sm:$0xff]
      %v2978 = vld [vmem:[%s2589 + $0xf2] sm:$0xff]
      %v2979 = vld [vmem:[%s2589 + $0xfa] sm:$0xff]
      %v2980 = vld [vmem:[%s2589 + $0x10a] sm:$0xff]
      %v2981 = vld [vmem:[%s2589 + $0x112] sm:$0xff]
      %v2982 = vld [vmem:[%s2589 + $0x122] sm:$0xff]
      %v2983 = vld [vmem:[%s2589 + $0x12a] sm:$0xff]
      %v2984 = vld [vmem:[%s2589 + $0x13a] sm:$0xff]
      %v2985 = vld [vmem:[%s2589 + $0x142] sm:$0xff]
      %v2986 = vld [vmem:[%s2589 + $0x152] sm:$0xff]
      %v2987 = vld [vmem:[%s2589 + $0x15a] sm:$0xff]
      %v2988 = vld [vmem:[%s2589 + $0x16a] sm:$0xff]
      %v2989 = vld [vmem:[%s2589 + $0x172] sm:$0xff]
      %v2990 = vpack.c.bf16 %v2958, %v2958
      %v2991 = vpack.c.bf16 %v2959, %v2959
      %v2992 = vpack.c.bf16 %v2960, %v2960
      %v2993 = vpack.c.bf16 %v2961, %v2961
      %v2994 = vpack.c.bf16 %v2962, %v2962
      %v2995 = vpack.c.bf16 %v2963, %v2963
      %v2996 = vpack.c.bf16 %v2964, %v2964
      %v2997 = vpack.c.bf16 %v2965, %v2965
      %v2998 = vpack.c.bf16 %v2966, %v2966
      %v2999 = vpack.c.bf16 %v2967, %v2967
      %v3000 = vpack.c.bf16 %v2968, %v2968
      %v3001 = vpack.c.bf16 %v2969, %v2969
      %v3002 = vpack.c.bf16 %v2970, %v2970
      %v3003 = vpack.c.bf16 %v2971, %v2971
      %v3004 = vpack.c.bf16 %v2972, %v2972
      %v3005 = vpack.c.bf16 %v2973, %v2973
      %v3006 = vpack.c.bf16 %v2974, %v2974
      %v3007 = vpack.c.bf16 %v2975, %v2975
      %v3008 = vpack.c.bf16 %v2976, %v2976
      %v3009 = vpack.c.bf16 %v2977, %v2977
      %v3010 = vpack.c.bf16 %v2978, %v2978
      %v3011 = vpack.c.bf16 %v2979, %v2979
      %v3012 = vpack.c.bf16 %v2980, %v2980
      %v3013 = vpack.c.bf16 %v2981, %v2981
      %v3014 = vpack.c.bf16 %v2982, %v2982
      %v3015 = vpack.c.bf16 %v2983, %v2983
      %v3016 = vpack.c.bf16 %v2984, %v2984
      %v3017 = vpack.c.bf16 %v2985, %v2985
      %v3018 = vpack.c.bf16 %v2986, %v2986
      %v3019 = vpack.c.bf16 %v2987, %v2987
      %v3020 = vpack.c.bf16 %v2988, %v2988
      %v3021 = vpack.c.bf16 %v2989, %v2989
      %s3022 = scalar_lea.vmem [#allocation2], 48
      %v3023 = vld [vmem:[%s3022] sm:$0xff]
      %v3024 = vld [vmem:[%s3022 + $0x8] sm:$0xff]
      %v3025 = vld [vmem:[%s3022 + $0x18] sm:$0xff]
      %v3026 = vld [vmem:[%s3022 + $0x20] sm:$0xff]
      %v3027 = vld [vmem:[%s3022 + $0x30] sm:$0xff]
      %v3028 = vld [vmem:[%s3022 + $0x38] sm:$0xff]
      %v3029 = vld [vmem:[%s3022 + $0x48] sm:$0xff]
      %v3030 = vld [vmem:[%s3022 + $0x50] sm:$0xff]
      %v3031 = vld [vmem:[%s3022 + $0x60] sm:$0xff]
      %v3032 = vld [vmem:[%s3022 + $0x68] sm:$0xff]
      %v3033 = vld [vmem:[%s3022 + $0x78] sm:$0xff]
      %v3034 = vld [vmem:[%s3022 + $0x80] sm:$0xff]
      %v3035 = vld [vmem:[%s3022 + $0x90] sm:$0xff]
      %v3036 = vld [vmem:[%s3022 + $0x98] sm:$0xff]
      %v3037 = vld [vmem:[%s3022 + $0xa8] sm:$0xff]
      %v3038 = vld [vmem:[%s3022 + $0xb0] sm:$0xff]
      %v3039 = vld [vmem:[%s3022 + $0xc0] sm:$0xff]
      %v3040 = vld [vmem:[%s3022 + $0xc8] sm:$0xff]
      %v3041 = vld [vmem:[%s3022 + $0xd8] sm:$0xff]
      %v3042 = vld [vmem:[%s3022 + $0xe0] sm:$0xff]
      %v3043 = vld [vmem:[%s3022 + $0xf0] sm:$0xff]
      %v3044 = vld [vmem:[%s3022 + $0xf8] sm:$0xff]
      %v3045 = vld [vmem:[%s3022 + $0x108] sm:$0xff]
      %v3046 = vld [vmem:[%s3022 + $0x110] sm:$0xff]
      %v3047 = vld [vmem:[%s3022 + $0x120] sm:$0xff]
      %v3048 = vld [vmem:[%s3022 + $0x128] sm:$0xff]
      %v3049 = vld [vmem:[%s3022 + $0x138] sm:$0xff]
      %v3050 = vld [vmem:[%s3022 + $0x140] sm:$0xff]
      %v3051 = vld [vmem:[%s3022 + $0x150] sm:$0xff]
      %v3052 = vld [vmem:[%s3022 + $0x158] sm:$0xff]
      %v3053 = vld [vmem:[%s3022 + $0x168] sm:$0xff]
      %v3054 = vld [vmem:[%s3022 + $0x170] sm:$0xff]
      %v3055 = vpack.c.bf16 %v3023, %v3023
      %v3056 = vpack.c.bf16 %v3024, %v3024
      %v3057 = vpack.c.bf16 %v3025, %v3025
      %v3058 = vpack.c.bf16 %v3026, %v3026
      %v3059 = vpack.c.bf16 %v3027, %v3027
      %v3060 = vpack.c.bf16 %v3028, %v3028
      %v3061 = vpack.c.bf16 %v3029, %v3029
      %v3062 = vpack.c.bf16 %v3030, %v3030
      %v3063 = vpack.c.bf16 %v3031, %v3031
      %v3064 = vpack.c.bf16 %v3032, %v3032
      %v3065 = vpack.c.bf16 %v3033, %v3033
      %v3066 = vpack.c.bf16 %v3034, %v3034
      %v3067 = vpack.c.bf16 %v3035, %v3035
      %v3068 = vpack.c.bf16 %v3036, %v3036
      %v3069 = vpack.c.bf16 %v3037, %v3037
      %v3070 = vpack.c.bf16 %v3038, %v3038
      %v3071 = vpack.c.bf16 %v3039, %v3039
      %v3072 = vpack.c.bf16 %v3040, %v3040
      %v3073 = vpack.c.bf16 %v3041, %v3041
      %v3074 = vpack.c.bf16 %v3042, %v3042
      %v3075 = vpack.c.bf16 %v3043, %v3043
      %v3076 = vpack.c.bf16 %v3044, %v3044
      %v3077 = vpack.c.bf16 %v3045, %v3045
      %v3078 = vpack.c.bf16 %v3046, %v3046
      %v3079 = vpack.c.bf16 %v3047, %v3047
      %v3080 = vpack.c.bf16 %v3048, %v3048
      %v3081 = vpack.c.bf16 %v3049, %v3049
      %v3082 = vpack.c.bf16 %v3050, %v3050
      %v3083 = vpack.c.bf16 %v3051, %v3051
      %v3084 = vpack.c.bf16 %v3052, %v3052
      %v3085 = vpack.c.bf16 %v3053, %v3053
      %v3086 = vpack.c.bf16 %v3054, %v3054
      %v3087 = vld [vmem:[%s3022 + $0x1] sm:$0xff]
      %v3088 = vld [vmem:[%s3022 + $0x9] sm:$0xff]
      %v3089 = vld [vmem:[%s3022 + $0x19] sm:$0xff]
      %v3090 = vld [vmem:[%s3022 + $0x21] sm:$0xff]
      %v3091 = vld [vmem:[%s3022 + $0x31] sm:$0xff]
      %v3092 = vld [vmem:[%s3022 + $0x39] sm:$0xff]
      %v3093 = vld [vmem:[%s3022 + $0x49] sm:$0xff]
      %v3094 = vld [vmem:[%s3022 + $0x51] sm:$0xff]
      %v3095 = vld [vmem:[%s3022 + $0x61] sm:$0xff]
      %v3096 = vld [vmem:[%s3022 + $0x69] sm:$0xff]
      %v3097 = vld [vmem:[%s3022 + $0x79] sm:$0xff]
      %v3098 = vld [vmem:[%s3022 + $0x81] sm:$0xff]
      %v3099 = vld [vmem:[%s3022 + $0x91] sm:$0xff]
      %v3100 = vld [vmem:[%s3022 + $0x99] sm:$0xff]
      %v3101 = vld [vmem:[%s3022 + $0xa9] sm:$0xff]
      %v3102 = vld [vmem:[%s3022 + $0xb1] sm:$0xff]
      %v3103 = vld [vmem:[%s3022 + $0xc1] sm:$0xff]
      %v3104 = vld [vmem:[%s3022 + $0xc9] sm:$0xff]
      %v3105 = vld [vmem:[%s3022 + $0xd9] sm:$0xff]
      %v3106 = vld [vmem:[%s3022 + $0xe1] sm:$0xff]
      %v3107 = vld [vmem:[%s3022 + $0xf1] sm:$0xff]
      %v3108 = vld [vmem:[%s3022 + $0xf9] sm:$0xff]
      %v3109 = vld [vmem:[%s3022 + $0x109] sm:$0xff]
      %v3110 = vld [vmem:[%s3022 + $0x111] sm:$0xff]
      %v3111 = vld [vmem:[%s3022 + $0x121] sm:$0xff]
      %v3112 = vld [vmem:[%s3022 + $0x129] sm:$0xff]
      %v3113 = vld [vmem:[%s3022 + $0x139] sm:$0xff]
      %v3114 = vld [vmem:[%s3022 + $0x141] sm:$0xff]
      %v3115 = vld [vmem:[%s3022 + $0x151] sm:$0xff]
      %v3116 = vld [vmem:[%s3022 + $0x159] sm:$0xff]
      %v3117 = vld [vmem:[%s3022 + $0x169] sm:$0xff]
      %v3118 = vld [vmem:[%s3022 + $0x171] sm:$0xff]
      %v3119 = vpack.c.bf16 %v3087, %v3087
      %v3120 = vpack.c.bf16 %v3088, %v3088
      %v3121 = vpack.c.bf16 %v3089, %v3089
      %v3122 = vpack.c.bf16 %v3090, %v3090
      %v3123 = vpack.c.bf16 %v3091, %v3091
      %v3124 = vpack.c.bf16 %v3092, %v3092
      %v3125 = vpack.c.bf16 %v3093, %v3093
      %v3126 = vpack.c.bf16 %v3094, %v3094
      %v3127 = vpack.c.bf16 %v3095, %v3095
      %v3128 = vpack.c.bf16 %v3096, %v3096
      %v3129 = vpack.c.bf16 %v3097, %v3097
      %v3130 = vpack.c.bf16 %v3098, %v3098
      %v3131 = vpack.c.bf16 %v3099, %v3099
      %v3132 = vpack.c.bf16 %v3100, %v3100
      %v3133 = vpack.c.bf16 %v3101, %v3101
      %v3134 = vpack.c.bf16 %v3102, %v3102
      %v3135 = vpack.c.bf16 %v3103, %v3103
      %v3136 = vpack.c.bf16 %v3104, %v3104
      %v3137 = vpack.c.bf16 %v3105, %v3105
      %v3138 = vpack.c.bf16 %v3106, %v3106
      %v3139 = vpack.c.bf16 %v3107, %v3107
      %v3140 = vpack.c.bf16 %v3108, %v3108
      %v3141 = vpack.c.bf16 %v3109, %v3109
      %v3142 = vpack.c.bf16 %v3110, %v3110
      %v3143 = vpack.c.bf16 %v3111, %v3111
      %v3144 = vpack.c.bf16 %v3112, %v3112
      %v3145 = vpack.c.bf16 %v3113, %v3113
      %v3146 = vpack.c.bf16 %v3114, %v3114
      %v3147 = vpack.c.bf16 %v3115, %v3115
      %v3148 = vpack.c.bf16 %v3116, %v3116
      %v3149 = vpack.c.bf16 %v3117, %v3117
      %v3150 = vpack.c.bf16 %v3118, %v3118
      %v3151 = vld [vmem:[%s3022 + $0x2] sm:$0xff]
      %v3152 = vld [vmem:[%s3022 + $0xa] sm:$0xff]
      %v3153 = vld [vmem:[%s3022 + $0x1a] sm:$0xff]
      %v3154 = vld [vmem:[%s3022 + $0x22] sm:$0xff]
      %v3155 = vld [vmem:[%s3022 + $0x32] sm:$0xff]
      %v3156 = vld [vmem:[%s3022 + $0x3a] sm:$0xff]
      %v3157 = vld [vmem:[%s3022 + $0x4a] sm:$0xff]
      %v3158 = vld [vmem:[%s3022 + $0x52] sm:$0xff]
      %v3159 = vld [vmem:[%s3022 + $0x62] sm:$0xff]
      %v3160 = vld [vmem:[%s3022 + $0x6a] sm:$0xff]
      %v3161 = vld [vmem:[%s3022 + $0x7a] sm:$0xff]
      %v3162 = vld [vmem:[%s3022 + $0x82] sm:$0xff]
      %v3163 = vld [vmem:[%s3022 + $0x92] sm:$0xff]
      %v3164 = vld [vmem:[%s3022 + $0x9a] sm:$0xff]
      %v3165 = vld [vmem:[%s3022 + $0xaa] sm:$0xff]
      %v3166 = vld [vmem:[%s3022 + $0xb2] sm:$0xff]
      %v3167 = vld [vmem:[%s3022 + $0xc2] sm:$0xff]
      %v3168 = vld [vmem:[%s3022 + $0xca] sm:$0xff]
      %v3169 = vld [vmem:[%s3022 + $0xda] sm:$0xff]
      %v3170 = vld [vmem:[%s3022 + $0xe2] sm:$0xff]
      %v3171 = vld [vmem:[%s3022 + $0xf2] sm:$0xff]
      %v3172 = vld [vmem:[%s3022 + $0xfa] sm:$0xff]
      %v3173 = vld [vmem:[%s3022 + $0x10a] sm:$0xff]
      %v3174 = vld [vmem:[%s3022 + $0x112] sm:$0xff]
      %v3175 = vld [vmem:[%s3022 + $0x122] sm:$0xff]
      %v3176 = vld [vmem:[%s3022 + $0x12a] sm:$0xff]
      %v3177 = vld [vmem:[%s3022 + $0x13a] sm:$0xff]
      %v3178 = vld [vmem:[%s3022 + $0x142] sm:$0xff]
      %v3179 = vld [vmem:[%s3022 + $0x152] sm:$0xff]
      %v3180 = vld [vmem:[%s3022 + $0x15a] sm:$0xff]
      %v3181 = vld [vmem:[%s3022 + $0x16a] sm:$0xff]
      %v3182 = vld [vmem:[%s3022 + $0x172] sm:$0xff]
      %v3183 = vpack.c.bf16 %v3151, %v3151
      %v3184 = vpack.c.bf16 %v3152, %v3152
      %v3185 = vpack.c.bf16 %v3153, %v3153
      %v3186 = vpack.c.bf16 %v3154, %v3154
      %v3187 = vpack.c.bf16 %v3155, %v3155
      %v3188 = vpack.c.bf16 %v3156, %v3156
      %v3189 = vpack.c.bf16 %v3157, %v3157
      %v3190 = vpack.c.bf16 %v3158, %v3158
      %v3191 = vpack.c.bf16 %v3159, %v3159
      %v3192 = vpack.c.bf16 %v3160, %v3160
      %v3193 = vpack.c.bf16 %v3161, %v3161
      %v3194 = vpack.c.bf16 %v3162, %v3162
      %v3195 = vpack.c.bf16 %v3163, %v3163
      %v3196 = vpack.c.bf16 %v3164, %v3164
      %v3197 = vpack.c.bf16 %v3165, %v3165
      %v3198 = vpack.c.bf16 %v3166, %v3166
      %v3199 = vpack.c.bf16 %v3167, %v3167
      %v3200 = vpack.c.bf16 %v3168, %v3168
      %v3201 = vpack.c.bf16 %v3169, %v3169
      %v3202 = vpack.c.bf16 %v3170, %v3170
      %v3203 = vpack.c.bf16 %v3171, %v3171
      %v3204 = vpack.c.bf16 %v3172, %v3172
      %v3205 = vpack.c.bf16 %v3173, %v3173
      %v3206 = vpack.c.bf16 %v3174, %v3174
      %v3207 = vpack.c.bf16 %v3175, %v3175
      %v3208 = vpack.c.bf16 %v3176, %v3176
      %v3209 = vpack.c.bf16 %v3177, %v3177
      %v3210 = vpack.c.bf16 %v3178, %v3178
      %v3211 = vpack.c.bf16 %v3179, %v3179
      %v3212 = vpack.c.bf16 %v3180, %v3180
      %v3213 = vpack.c.bf16 %v3181, %v3181
      %v3214 = vpack.c.bf16 %v3182, %v3182
      %v3247 = vunpack.c.l.b16 %v2670
      %v3248 = vunpack.c.l.b16 %v2671
      %v3249 = vunpack.c.l.b16 %v2672
      %v3250 = vunpack.c.l.b16 %v2673
      %v3251 = vunpack.c.l.b16 %v2674
      %v3252 = vunpack.c.l.b16 %v2675
      %v3253 = vunpack.c.l.b16 %v2676
      %v3254 = vunpack.c.l.b16 %v2677
      %v3255 = vunpack.c.l.b16 %v2678
      %v3256 = vunpack.c.l.b16 %v2679
      %v3257 = vunpack.c.l.b16 %v2680
      %v3258 = vunpack.c.l.b16 %v2681
      %v3259 = vunpack.c.l.b16 %v2682
      %v3260 = vunpack.c.l.b16 %v2683
      %v3261 = vunpack.c.l.b16 %v2684
      %v3262 = vunpack.c.l.b16 %v2685
      %v3263 = vunpack.c.l.b16 %v2686
      %v3264 = vunpack.c.l.b16 %v2687
      %v3265 = vunpack.c.l.b16 %v2688
      %v3266 = vunpack.c.l.b16 %v2689
      %v3267 = vunpack.c.l.b16 %v2690
      %v3268 = vunpack.c.l.b16 %v2691
      %v3269 = vunpack.c.l.b16 %v2692
      %v3270 = vunpack.c.l.b16 %v2693
      %v3271 = vunpack.c.l.b16 %v2694
      %v3272 = vunpack.c.l.b16 %v2695
      %v3273 = vunpack.c.l.b16 %v2696
      %v3274 = vunpack.c.l.b16 %v2697
      %v3275 = vunpack.c.l.b16 %v2698
      %v3276 = vunpack.c.l.b16 %v2699
      %v3277 = vunpack.c.l.b16 %v2700
      %v3278 = vunpack.c.l.b16 %v2701
      %v3279 = vpack.c.b16 %v3248, %v3247
      %v3280 = vpack.c.b16 %v3250, %v3249
      %v3281 = vpack.c.b16 %v3252, %v3251
      %v3282 = vpack.c.b16 %v3254, %v3253
      %v3283 = vpack.c.b16 %v3256, %v3255
      %v3284 = vpack.c.b16 %v3258, %v3257
      %v3285 = vpack.c.b16 %v3260, %v3259
      %v3286 = vpack.c.b16 %v3262, %v3261
      %v3287 = vpack.c.b16 %v3264, %v3263
      %v3288 = vpack.c.b16 %v3266, %v3265
      %v3289 = vpack.c.b16 %v3268, %v3267
      %v3290 = vpack.c.b16 %v3270, %v3269
      %v3291 = vpack.c.b16 %v3272, %v3271
      %v3292 = vpack.c.b16 %v3274, %v3273
      %v3293 = vpack.c.b16 %v3276, %v3275
      %v3294 = vpack.c.b16 %v3278, %v3277
      %v3327 = vunpack.c.l.b16 %v2734
      %v3328 = vunpack.c.l.b16 %v2735
      %v3329 = vunpack.c.l.b16 %v2736
      %v3330 = vunpack.c.l.b16 %v2737
      %v3331 = vunpack.c.l.b16 %v2738
      %v3332 = vunpack.c.l.b16 %v2739
      %v3333 = vunpack.c.l.b16 %v2740
      %v3334 = vunpack.c.l.b16 %v2741
      %v3335 = vunpack.c.l.b16 %v2742
      %v3336 = vunpack.c.l.b16 %v2743
      %v3337 = vunpack.c.l.b16 %v2744
      %v3338 = vunpack.c.l.b16 %v2745
      %v3339 = vunpack.c.l.b16 %v2746
      %v3340 = vunpack.c.l.b16 %v2747
      %v3341 = vunpack.c.l.b16 %v2748
      %v3342 = vunpack.c.l.b16 %v2749
      %v3343 = vunpack.c.l.b16 %v2750
      %v3344 = vunpack.c.l.b16 %v2751
      %v3345 = vunpack.c.l.b16 %v2752
      %v3346 = vunpack.c.l.b16 %v2753
      %v3347 = vunpack.c.l.b16 %v2754
      %v3348 = vunpack.c.l.b16 %v2755
      %v3349 = vunpack.c.l.b16 %v2756
      %v3350 = vunpack.c.l.b16 %v2757
      %v3351 = vunpack.c.l.b16 %v2758
      %v3352 = vunpack.c.l.b16 %v2759
      %v3353 = vunpack.c.l.b16 %v2760
      %v3354 = vunpack.c.l.b16 %v2761
      %v3355 = vunpack.c.l.b16 %v2762
      %v3356 = vunpack.c.l.b16 %v2763
      %v3357 = vunpack.c.l.b16 %v2764
      %v3358 = vunpack.c.l.b16 %v2765
      %v3359 = vpack.c.b16 %v3328, %v3327
      %v3360 = vpack.c.b16 %v3330, %v3329
      %v3361 = vpack.c.b16 %v3332, %v3331
      %v3362 = vpack.c.b16 %v3334, %v3333
      %v3363 = vpack.c.b16 %v3336, %v3335
      %v3364 = vpack.c.b16 %v3338, %v3337
      %v3365 = vpack.c.b16 %v3340, %v3339
      %v3366 = vpack.c.b16 %v3342, %v3341
      %v3367 = vpack.c.b16 %v3344, %v3343
      %v3368 = vpack.c.b16 %v3346, %v3345
      %v3369 = vpack.c.b16 %v3348, %v3347
      %v3370 = vpack.c.b16 %v3350, %v3349
      %v3371 = vpack.c.b16 %v3352, %v3351
      %v3372 = vpack.c.b16 %v3354, %v3353
      %v3373 = vpack.c.b16 %v3356, %v3355
      %v3374 = vpack.c.b16 %v3358, %v3357
      %3375 = vrot.lane.b32.xlu0 %v3359, 32
      %v3376 = vpop.permute.xlu0 %3375
      %3377 = vrot.lane.b32.xlu0 %v3360, 32
      %v3378 = vpop.permute.xlu0 %3377
      %3379 = vrot.lane.b32.xlu0 %v3361, 32
      %v3380 = vpop.permute.xlu0 %3379
      %3381 = vrot.lane.b32.xlu0 %v3362, 32
      %v3382 = vpop.permute.xlu0 %3381
      %3383 = vrot.lane.b32.xlu0 %v3363, 32
      %v3384 = vpop.permute.xlu0 %3383
      %3385 = vrot.lane.b32.xlu0 %v3364, 32
      %v3386 = vpop.permute.xlu0 %3385
      %3387 = vrot.lane.b32.xlu0 %v3365, 32
      %v3388 = vpop.permute.xlu0 %3387
      %3389 = vrot.lane.b32.xlu0 %v3366, 32
      %v3390 = vpop.permute.xlu0 %3389
      %3391 = vrot.lane.b32.xlu0 %v3367, 32
      %v3392 = vpop.permute.xlu0 %3391
      %3393 = vrot.lane.b32.xlu0 %v3368, 32
      %v3394 = vpop.permute.xlu0 %3393
      %3395 = vrot.lane.b32.xlu0 %v3369, 32
      %v3396 = vpop.permute.xlu0 %3395
      %3397 = vrot.lane.b32.xlu0 %v3370, 32
      %v3398 = vpop.permute.xlu0 %3397
      %3399 = vrot.lane.b32.xlu0 %v3371, 32
      %v3400 = vpop.permute.xlu0 %3399
      %3401 = vrot.lane.b32.xlu0 %v3372, 32
      %v3402 = vpop.permute.xlu0 %3401
      %3403 = vrot.lane.b32.xlu0 %v3373, 32
      %v3404 = vpop.permute.xlu0 %3403
      %3405 = vrot.lane.b32.xlu0 %v3374, 32
      %v3406 = vpop.permute.xlu0 %3405
      %v3439 = vunpack.c.l.b16 %v2798
      %v3440 = vunpack.c.l.b16 %v2799
      %v3441 = vunpack.c.l.b16 %v2800
      %v3442 = vunpack.c.l.b16 %v2801
      %v3443 = vunpack.c.l.b16 %v2802
      %v3444 = vunpack.c.l.b16 %v2803
      %v3445 = vunpack.c.l.b16 %v2804
      %v3446 = vunpack.c.l.b16 %v2805
      %v3447 = vunpack.c.l.b16 %v2806
      %v3448 = vunpack.c.l.b16 %v2807
      %v3449 = vunpack.c.l.b16 %v2808
      %v3450 = vunpack.c.l.b16 %v2809
      %v3451 = vunpack.c.l.b16 %v2810
      %v3452 = vunpack.c.l.b16 %v2811
      %v3453 = vunpack.c.l.b16 %v2812
      %v3454 = vunpack.c.l.b16 %v2813
      %v3455 = vunpack.c.l.b16 %v2814
      %v3456 = vunpack.c.l.b16 %v2815
      %v3457 = vunpack.c.l.b16 %v2816
      %v3458 = vunpack.c.l.b16 %v2817
      %v3459 = vunpack.c.l.b16 %v2818
      %v3460 = vunpack.c.l.b16 %v2819
      %v3461 = vunpack.c.l.b16 %v2820
      %v3462 = vunpack.c.l.b16 %v2821
      %v3463 = vunpack.c.l.b16 %v2822
      %v3464 = vunpack.c.l.b16 %v2823
      %v3465 = vunpack.c.l.b16 %v2824
      %v3466 = vunpack.c.l.b16 %v2825
      %v3467 = vunpack.c.l.b16 %v2826
      %v3468 = vunpack.c.l.b16 %v2827
      %v3469 = vunpack.c.l.b16 %v2828
      %v3470 = vunpack.c.l.b16 %v2829
      %v3471 = vpack.c.b16 %v3440, %v3439
      %v3472 = vpack.c.b16 %v3442, %v3441
      %v3473 = vpack.c.b16 %v3444, %v3443
      %v3474 = vpack.c.b16 %v3446, %v3445
      %v3475 = vpack.c.b16 %v3448, %v3447
      %v3476 = vpack.c.b16 %v3450, %v3449
      %v3477 = vpack.c.b16 %v3452, %v3451
      %v3478 = vpack.c.b16 %v3454, %v3453
      %v3479 = vpack.c.b16 %v3456, %v3455
      %v3480 = vpack.c.b16 %v3458, %v3457
      %v3481 = vpack.c.b16 %v3460, %v3459
      %v3482 = vpack.c.b16 %v3462, %v3461
      %v3483 = vpack.c.b16 %v3464, %v3463
      %v3484 = vpack.c.b16 %v3466, %v3465
      %v3485 = vpack.c.b16 %v3468, %v3467
      %v3486 = vpack.c.b16 %v3470, %v3469
      %3487 = vrot.lane.b32.xlu0 %v3471, 64
      %v3488 = vpop.permute.xlu0 %3487
      %3489 = vrot.lane.b32.xlu0 %v3472, 64
      %v3490 = vpop.permute.xlu0 %3489
      %3491 = vrot.lane.b32.xlu0 %v3473, 64
      %v3492 = vpop.permute.xlu0 %3491
      %3493 = vrot.lane.b32.xlu0 %v3474, 64
      %v3494 = vpop.permute.xlu0 %3493
      %3495 = vrot.lane.b32.xlu0 %v3475, 64
      %v3496 = vpop.permute.xlu0 %3495
      %3497 = vrot.lane.b32.xlu0 %v3476, 64
      %v3498 = vpop.permute.xlu0 %3497
      %3499 = vrot.lane.b32.xlu0 %v3477, 64
      %v3500 = vpop.permute.xlu0 %3499
      %3501 = vrot.lane.b32.xlu0 %v3478, 64
      %v3502 = vpop.permute.xlu0 %3501
      %3503 = vrot.lane.b32.xlu0 %v3479, 64
      %v3504 = vpop.permute.xlu0 %3503
      %3505 = vrot.lane.b32.xlu0 %v3480, 64
      %v3506 = vpop.permute.xlu0 %3505
      %3507 = vrot.lane.b32.xlu0 %v3481, 64
      %v3508 = vpop.permute.xlu0 %3507
      %3509 = vrot.lane.b32.xlu0 %v3482, 64
      %v3510 = vpop.permute.xlu0 %3509
      %3511 = vrot.lane.b32.xlu0 %v3483, 64
      %v3512 = vpop.permute.xlu0 %3511
      %3513 = vrot.lane.b32.xlu0 %v3484, 64
      %v3514 = vpop.permute.xlu0 %3513
      %3515 = vrot.lane.b32.xlu0 %v3485, 64
      %v3516 = vpop.permute.xlu0 %3515
      %3517 = vrot.lane.b32.xlu0 %v3486, 64
      %v3518 = vpop.permute.xlu0 %3517
      %v3551 = vunpack.c.l.b16 %v2862
      %v3552 = vunpack.c.l.b16 %v2863
      %v3553 = vunpack.c.l.b16 %v2864
      %v3554 = vunpack.c.l.b16 %v2865
      %v3555 = vunpack.c.l.b16 %v2866
      %v3556 = vunpack.c.l.b16 %v2867
      %v3557 = vunpack.c.l.b16 %v2868
      %v3558 = vunpack.c.l.b16 %v2869
      %v3559 = vunpack.c.l.b16 %v2870
      %v3560 = vunpack.c.l.b16 %v2871
      %v3561 = vunpack.c.l.b16 %v2872
      %v3562 = vunpack.c.l.b16 %v2873
      %v3563 = vunpack.c.l.b16 %v2874
      %v3564 = vunpack.c.l.b16 %v2875
      %v3565 = vunpack.c.l.b16 %v2876
      %v3566 = vunpack.c.l.b16 %v2877
      %v3567 = vunpack.c.l.b16 %v2878
      %v3568 = vunpack.c.l.b16 %v2879
      %v3569 = vunpack.c.l.b16 %v2880
      %v3570 = vunpack.c.l.b16 %v2881
      %v3571 = vunpack.c.l.b16 %v2882
      %v3572 = vunpack.c.l.b16 %v2883
      %v3573 = vunpack.c.l.b16 %v2884
      %v3574 = vunpack.c.l.b16 %v2885
      %v3575 = vunpack.c.l.b16 %v2886
      %v3576 = vunpack.c.l.b16 %v2887
      %v3577 = vunpack.c.l.b16 %v2888
      %v3578 = vunpack.c.l.b16 %v2889
      %v3579 = vunpack.c.l.b16 %v2890
      %v3580 = vunpack.c.l.b16 %v2891
      %v3581 = vunpack.c.l.b16 %v2892
      %v3582 = vunpack.c.l.b16 %v2893
      %v3583 = vpack.c.b16 %v3552, %v3551
      %v3584 = vpack.c.b16 %v3554, %v3553
      %v3585 = vpack.c.b16 %v3556, %v3555
      %v3586 = vpack.c.b16 %v3558, %v3557
      %v3587 = vpack.c.b16 %v3560, %v3559
      %v3588 = vpack.c.b16 %v3562, %v3561
      %v3589 = vpack.c.b16 %v3564, %v3563
      %v3590 = vpack.c.b16 %v3566, %v3565
      %v3591 = vpack.c.b16 %v3568, %v3567
      %v3592 = vpack.c.b16 %v3570, %v3569
      %v3593 = vpack.c.b16 %v3572, %v3571
      %v3594 = vpack.c.b16 %v3574, %v3573
      %v3595 = vpack.c.b16 %v3576, %v3575
      %v3596 = vpack.c.b16 %v3578, %v3577
      %v3597 = vpack.c.b16 %v3580, %v3579
      %v3598 = vpack.c.b16 %v3582, %v3581
      %3599 = vrot.lane.b32.xlu0 %v3583, 96
      %v3600 = vpop.permute.xlu0 %3599
      %3601 = vrot.lane.b32.xlu0 %v3584, 96
      %v3602 = vpop.permute.xlu0 %3601
      %3603 = vrot.lane.b32.xlu0 %v3585, 96
      %v3604 = vpop.permute.xlu0 %3603
      %3605 = vrot.lane.b32.xlu0 %v3586, 96
      %v3606 = vpop.permute.xlu0 %3605
      %3607 = vrot.lane.b32.xlu0 %v3587, 96
      %v3608 = vpop.permute.xlu0 %3607
      %3609 = vrot.lane.b32.xlu0 %v3588, 96
      %v3610 = vpop.permute.xlu0 %3609
      %3611 = vrot.lane.b32.xlu0 %v3589, 96
      %v3612 = vpop.permute.xlu0 %3611
      %3613 = vrot.lane.b32.xlu0 %v3590, 96
      %v3614 = vpop.permute.xlu0 %3613
      %3615 = vrot.lane.b32.xlu0 %v3591, 96
      %v3616 = vpop.permute.xlu0 %3615
      %3617 = vrot.lane.b32.xlu0 %v3592, 96
      %v3618 = vpop.permute.xlu0 %3617
      %3619 = vrot.lane.b32.xlu0 %v3593, 96
      %v3620 = vpop.permute.xlu0 %3619
      %3621 = vrot.lane.b32.xlu0 %v3594, 96
      %v3622 = vpop.permute.xlu0 %3621
      %3623 = vrot.lane.b32.xlu0 %v3595, 96
      %v3624 = vpop.permute.xlu0 %3623
      %3625 = vrot.lane.b32.xlu0 %v3596, 96
      %v3626 = vpop.permute.xlu0 %3625
      %3627 = vrot.lane.b32.xlu0 %v3597, 96
      %v3628 = vpop.permute.xlu0 %3627
      %3629 = vrot.lane.b32.xlu0 %v3598, 96
      %v3630 = vpop.permute.xlu0 %3629
      %v3663 = vunpack.c.l.b16 %v2926
      %v3664 = vunpack.c.l.b16 %v2927
      %v3665 = vunpack.c.l.b16 %v2928
      %v3666 = vunpack.c.l.b16 %v2929
      %v3667 = vunpack.c.l.b16 %v2930
      %v3668 = vunpack.c.l.b16 %v2931
      %v3669 = vunpack.c.l.b16 %v2932
      %v3670 = vunpack.c.l.b16 %v2933
      %v3671 = vunpack.c.l.b16 %v2934
      %v3672 = vunpack.c.l.b16 %v2935
      %v3673 = vunpack.c.l.b16 %v2936
      %v3674 = vunpack.c.l.b16 %v2937
      %v3675 = vunpack.c.l.b16 %v2938
      %v3676 = vunpack.c.l.b16 %v2939
      %v3677 = vunpack.c.l.b16 %v2940
      %v3678 = vunpack.c.l.b16 %v2941
      %v3679 = vunpack.c.l.b16 %v2942
      %v3680 = vunpack.c.l.b16 %v2943
      %v3681 = vunpack.c.l.b16 %v2944
      %v3682 = vunpack.c.l.b16 %v2945
      %v3683 = vunpack.c.l.b16 %v2946
      %v3684 = vunpack.c.l.b16 %v2947
      %v3685 = vunpack.c.l.b16 %v2948
      %v3686 = vunpack.c.l.b16 %v2949
      %v3687 = vunpack.c.l.b16 %v2950
      %v3688 = vunpack.c.l.b16 %v2951
      %v3689 = vunpack.c.l.b16 %v2952
      %v3690 = vunpack.c.l.b16 %v2953
      %v3691 = vunpack.c.l.b16 %v2954
      %v3692 = vunpack.c.l.b16 %v2955
      %v3693 = vunpack.c.l.b16 %v2956
      %v3694 = vunpack.c.l.b16 %v2957
      %v3695 = vpack.c.b16 %v3664, %v3663
      %v3696 = vpack.c.b16 %v3666, %v3665
      %v3697 = vpack.c.b16 %v3668, %v3667
      %v3698 = vpack.c.b16 %v3670, %v3669
      %v3699 = vpack.c.b16 %v3672, %v3671
      %v3700 = vpack.c.b16 %v3674, %v3673
      %v3701 = vpack.c.b16 %v3676, %v3675
      %v3702 = vpack.c.b16 %v3678, %v3677
      %v3703 = vpack.c.b16 %v3680, %v3679
      %v3704 = vpack.c.b16 %v3682, %v3681
      %v3705 = vpack.c.b16 %v3684, %v3683
      %v3706 = vpack.c.b16 %v3686, %v3685
      %v3707 = vpack.c.b16 %v3688, %v3687
      %v3708 = vpack.c.b16 %v3690, %v3689
      %v3709 = vpack.c.b16 %v3692, %v3691
      %v3710 = vpack.c.b16 %v3694, %v3693
      %v3743 = vunpack.c.l.b16 %v2990
      %v3744 = vunpack.c.l.b16 %v2991
      %v3745 = vunpack.c.l.b16 %v2992
      %v3746 = vunpack.c.l.b16 %v2993
      %v3747 = vunpack.c.l.b16 %v2994
      %v3748 = vunpack.c.l.b16 %v2995
      %v3749 = vunpack.c.l.b16 %v2996
      %v3750 = vunpack.c.l.b16 %v2997
      %v3751 = vunpack.c.l.b16 %v2998
      %v3752 = vunpack.c.l.b16 %v2999
      %v3753 = vunpack.c.l.b16 %v3000
      %v3754 = vunpack.c.l.b16 %v3001
      %v3755 = vunpack.c.l.b16 %v3002
      %v3756 = vunpack.c.l.b16 %v3003
      %v3757 = vunpack.c.l.b16 %v3004
      %v3758 = vunpack.c.l.b16 %v3005
      %v3759 = vunpack.c.l.b16 %v3006
      %v3760 = vunpack.c.l.b16 %v3007
      %v3761 = vunpack.c.l.b16 %v3008
      %v3762 = vunpack.c.l.b16 %v3009
      %v3763 = vunpack.c.l.b16 %v3010
      %v3764 = vunpack.c.l.b16 %v3011
      %v3765 = vunpack.c.l.b16 %v3012
      %v3766 = vunpack.c.l.b16 %v3013
      %v3767 = vunpack.c.l.b16 %v3014
      %v3768 = vunpack.c.l.b16 %v3015
      %v3769 = vunpack.c.l.b16 %v3016
      %v3770 = vunpack.c.l.b16 %v3017
      %v3771 = vunpack.c.l.b16 %v3018
      %v3772 = vunpack.c.l.b16 %v3019
      %v3773 = vunpack.c.l.b16 %v3020
      %v3774 = vunpack.c.l.b16 %v3021
      %v3775 = vpack.c.b16 %v3744, %v3743
      %v3776 = vpack.c.b16 %v3746, %v3745
      %v3777 = vpack.c.b16 %v3748, %v3747
      %v3778 = vpack.c.b16 %v3750, %v3749
      %v3779 = vpack.c.b16 %v3752, %v3751
      %v3780 = vpack.c.b16 %v3754, %v3753
      %v3781 = vpack.c.b16 %v3756, %v3755
      %v3782 = vpack.c.b16 %v3758, %v3757
      %v3783 = vpack.c.b16 %v3760, %v3759
      %v3784 = vpack.c.b16 %v3762, %v3761
      %v3785 = vpack.c.b16 %v3764, %v3763
      %v3786 = vpack.c.b16 %v3766, %v3765
      %v3787 = vpack.c.b16 %v3768, %v3767
      %v3788 = vpack.c.b16 %v3770, %v3769
      %v3789 = vpack.c.b16 %v3772, %v3771
      %v3790 = vpack.c.b16 %v3774, %v3773
      %3791 = vrot.lane.b32.xlu0 %v3775, 32
      %v3792 = vpop.permute.xlu0 %3791
      %3793 = vrot.lane.b32.xlu0 %v3776, 32
      %v3794 = vpop.permute.xlu0 %3793
      %3795 = vrot.lane.b32.xlu0 %v3777, 32
      %v3796 = vpop.permute.xlu0 %3795
      %3797 = vrot.lane.b32.xlu0 %v3778, 32
      %v3798 = vpop.permute.xlu0 %3797
      %3799 = vrot.lane.b32.xlu0 %v3779, 32
      %v3800 = vpop.permute.xlu0 %3799
      %3801 = vrot.lane.b32.xlu0 %v3780, 32
      %v3802 = vpop.permute.xlu0 %3801
      %3803 = vrot.lane.b32.xlu0 %v3781, 32
      %v3804 = vpop.permute.xlu0 %3803
      %3805 = vrot.lane.b32.xlu0 %v3782, 32
      %v3806 = vpop.permute.xlu0 %3805
      %3807 = vrot.lane.b32.xlu0 %v3783, 32
      %v3808 = vpop.permute.xlu0 %3807
      %3809 = vrot.lane.b32.xlu0 %v3784, 32
      %v3810 = vpop.permute.xlu0 %3809
      %3811 = vrot.lane.b32.xlu0 %v3785, 32
      %v3812 = vpop.permute.xlu0 %3811
      %3813 = vrot.lane.b32.xlu0 %v3786, 32
      %v3814 = vpop.permute.xlu0 %3813
      %3815 = vrot.lane.b32.xlu0 %v3787, 32
      %v3816 = vpop.permute.xlu0 %3815
      %3817 = vrot.lane.b32.xlu0 %v3788, 32
      %v3818 = vpop.permute.xlu0 %3817
      %3819 = vrot.lane.b32.xlu0 %v3789, 32
      %v3820 = vpop.permute.xlu0 %3819
      %3821 = vrot.lane.b32.xlu0 %v3790, 32
      %v3822 = vpop.permute.xlu0 %3821
      %v3855 = vunpack.c.l.b16 %v3055
      %v3856 = vunpack.c.l.b16 %v3056
      %v3857 = vunpack.c.l.b16 %v3057
      %v3858 = vunpack.c.l.b16 %v3058
      %v3859 = vunpack.c.l.b16 %v3059
      %v3860 = vunpack.c.l.b16 %v3060
      %v3861 = vunpack.c.l.b16 %v3061
      %v3862 = vunpack.c.l.b16 %v3062
      %v3863 = vunpack.c.l.b16 %v3063
      %v3864 = vunpack.c.l.b16 %v3064
      %v3865 = vunpack.c.l.b16 %v3065
      %v3866 = vunpack.c.l.b16 %v3066
      %v3867 = vunpack.c.l.b16 %v3067
      %v3868 = vunpack.c.l.b16 %v3068
      %v3869 = vunpack.c.l.b16 %v3069
      %v3870 = vunpack.c.l.b16 %v3070
      %v3871 = vunpack.c.l.b16 %v3071
      %v3872 = vunpack.c.l.b16 %v3072
      %v3873 = vunpack.c.l.b16 %v3073
      %v3874 = vunpack.c.l.b16 %v3074
      %v3875 = vunpack.c.l.b16 %v3075
      %v3876 = vunpack.c.l.b16 %v3076
      %v3877 = vunpack.c.l.b16 %v3077
      %v3878 = vunpack.c.l.b16 %v3078
      %v3879 = vunpack.c.l.b16 %v3079
      %v3880 = vunpack.c.l.b16 %v3080
      %v3881 = vunpack.c.l.b16 %v3081
      %v3882 = vunpack.c.l.b16 %v3082
      %v3883 = vunpack.c.l.b16 %v3083
      %v3884 = vunpack.c.l.b16 %v3084
      %v3885 = vunpack.c.l.b16 %v3085
      %v3886 = vunpack.c.l.b16 %v3086
      %v3887 = vpack.c.b16 %v3856, %v3855
      %v3888 = vpack.c.b16 %v3858, %v3857
      %v3889 = vpack.c.b16 %v3860, %v3859
      %v3890 = vpack.c.b16 %v3862, %v3861
      %v3891 = vpack.c.b16 %v3864, %v3863
      %v3892 = vpack.c.b16 %v3866, %v3865
      %v3893 = vpack.c.b16 %v3868, %v3867
      %v3894 = vpack.c.b16 %v3870, %v3869
      %v3895 = vpack.c.b16 %v3872, %v3871
      %v3896 = vpack.c.b16 %v3874, %v3873
      %v3897 = vpack.c.b16 %v3876, %v3875
      %v3898 = vpack.c.b16 %v3878, %v3877
      %v3899 = vpack.c.b16 %v3880, %v3879
      %v3900 = vpack.c.b16 %v3882, %v3881
      %v3901 = vpack.c.b16 %v3884, %v3883
      %v3902 = vpack.c.b16 %v3886, %v3885
      %3903 = vrot.lane.b32.xlu0 %v3887, 64
      %v3904 = vpop.permute.xlu0 %3903
      %3905 = vrot.lane.b32.xlu0 %v3888, 64
      %v3906 = vpop.permute.xlu0 %3905
      %3907 = vrot.lane.b32.xlu0 %v3889, 64
      %v3908 = vpop.permute.xlu0 %3907
      %3909 = vrot.lane.b32.xlu0 %v3890, 64
      %v3910 = vpop.permute.xlu0 %3909
      %3911 = vrot.lane.b32.xlu0 %v3891, 64
      %v3912 = vpop.permute.xlu0 %3911
      %3913 = vrot.lane.b32.xlu0 %v3892, 64
      %v3914 = vpop.permute.xlu0 %3913
      %3915 = vrot.lane.b32.xlu0 %v3893, 64
      %v3916 = vpop.permute.xlu0 %3915
      %3917 = vrot.lane.b32.xlu0 %v3894, 64
      %v3918 = vpop.permute.xlu0 %3917
      %3919 = vrot.lane.b32.xlu0 %v3895, 64
      %v3920 = vpop.permute.xlu0 %3919
      %3921 = vrot.lane.b32.xlu0 %v3896, 64
      %v3922 = vpop.permute.xlu0 %3921
      %3923 = vrot.lane.b32.xlu0 %v3897, 64
      %v3924 = vpop.permute.xlu0 %3923
      %3925 = vrot.lane.b32.xlu0 %v3898, 64
      %v3926 = vpop.permute.xlu0 %3925
      %3927 = vrot.lane.b32.xlu0 %v3899, 64
      %v3928 = vpop.permute.xlu0 %3927
      %3929 = vrot.lane.b32.xlu0 %v3900, 64
      %v3930 = vpop.permute.xlu0 %3929
      %3931 = vrot.lane.b32.xlu0 %v3901, 64
      %v3932 = vpop.permute.xlu0 %3931
      %3933 = vrot.lane.b32.xlu0 %v3902, 64
      %v3934 = vpop.permute.xlu0 %3933
      %v3967 = vunpack.c.l.b16 %v3119
      %v3968 = vunpack.c.l.b16 %v3120
      %v3969 = vunpack.c.l.b16 %v3121
      %v3970 = vunpack.c.l.b16 %v3122
      %v3971 = vunpack.c.l.b16 %v3123
      %v3972 = vunpack.c.l.b16 %v3124
      %v3973 = vunpack.c.l.b16 %v3125
      %v3974 = vunpack.c.l.b16 %v3126
      %v3975 = vunpack.c.l.b16 %v3127
      %v3976 = vunpack.c.l.b16 %v3128
      %v3977 = vunpack.c.l.b16 %v3129
      %v3978 = vunpack.c.l.b16 %v3130
      %v3979 = vunpack.c.l.b16 %v3131
      %v3980 = vunpack.c.l.b16 %v3132
      %v3981 = vunpack.c.l.b16 %v3133
      %v3982 = vunpack.c.l.b16 %v3134
      %v3983 = vunpack.c.l.b16 %v3135
      %v3984 = vunpack.c.l.b16 %v3136
      %v3985 = vunpack.c.l.b16 %v3137
      %v3986 = vunpack.c.l.b16 %v3138
      %v3987 = vunpack.c.l.b16 %v3139
      %v3988 = vunpack.c.l.b16 %v3140
      %v3989 = vunpack.c.l.b16 %v3141
      %v3990 = vunpack.c.l.b16 %v3142
      %v3991 = vunpack.c.l.b16 %v3143
      %v3992 = vunpack.c.l.b16 %v3144
      %v3993 = vunpack.c.l.b16 %v3145
      %v3994 = vunpack.c.l.b16 %v3146
      %v3995 = vunpack.c.l.b16 %v3147
      %v3996 = vunpack.c.l.b16 %v3148
      %v3997 = vunpack.c.l.b16 %v3149
      %v3998 = vunpack.c.l.b16 %v3150
      %v3999 = vpack.c.b16 %v3968, %v3967
      %v4000 = vpack.c.b16 %v3970, %v3969
      %v4001 = vpack.c.b16 %v3972, %v3971
      %v4002 = vpack.c.b16 %v3974, %v3973
      %v4003 = vpack.c.b16 %v3976, %v3975
      %v4004 = vpack.c.b16 %v3978, %v3977
      %v4005 = vpack.c.b16 %v3980, %v3979
      %v4006 = vpack.c.b16 %v3982, %v3981
      %v4007 = vpack.c.b16 %v3984, %v3983
      %v4008 = vpack.c.b16 %v3986, %v3985
      %v4009 = vpack.c.b16 %v3988, %v3987
      %v4010 = vpack.c.b16 %v3990, %v3989
      %v4011 = vpack.c.b16 %v3992, %v3991
      %v4012 = vpack.c.b16 %v3994, %v3993
      %v4013 = vpack.c.b16 %v3996, %v3995
      %v4014 = vpack.c.b16 %v3998, %v3997
      %4015 = vrot.lane.b32.xlu0 %v3999, 96
      %v4016 = vpop.permute.xlu0 %4015
      %4017 = vrot.lane.b32.xlu0 %v4000, 96
      %v4018 = vpop.permute.xlu0 %4017
      %4019 = vrot.lane.b32.xlu0 %v4001, 96
      %v4020 = vpop.permute.xlu0 %4019
      %4021 = vrot.lane.b32.xlu0 %v4002, 96
      %v4022 = vpop.permute.xlu0 %4021
      %4023 = vrot.lane.b32.xlu0 %v4003, 96
      %v4024 = vpop.permute.xlu0 %4023
      %4025 = vrot.lane.b32.xlu0 %v4004, 96
      %v4026 = vpop.permute.xlu0 %4025
      %4027 = vrot.lane.b32.xlu0 %v4005, 96
      %v4028 = vpop.permute.xlu0 %4027
      %4029 = vrot.lane.b32.xlu0 %v4006, 96
      %v4030 = vpop.permute.xlu0 %4029
      %4031 = vrot.lane.b32.xlu0 %v4007, 96
      %v4032 = vpop.permute.xlu0 %4031
      %4033 = vrot.lane.b32.xlu0 %v4008, 96
      %v4034 = vpop.permute.xlu0 %4033
      %4035 = vrot.lane.b32.xlu0 %v4009, 96
      %v4036 = vpop.permute.xlu0 %4035
      %4037 = vrot.lane.b32.xlu0 %v4010, 96
      %v4038 = vpop.permute.xlu0 %4037
      %4039 = vrot.lane.b32.xlu0 %v4011, 96
      %v4040 = vpop.permute.xlu0 %4039
      %4041 = vrot.lane.b32.xlu0 %v4012, 96
      %v4042 = vpop.permute.xlu0 %4041
      %4043 = vrot.lane.b32.xlu0 %v4013, 96
      %v4044 = vpop.permute.xlu0 %4043
      %4045 = vrot.lane.b32.xlu0 %v4014, 96
      %v4046 = vpop.permute.xlu0 %4045
      %v4079 = vunpack.c.l.b16 %v3183
      %v4080 = vunpack.c.l.b16 %v3184
      %v4081 = vunpack.c.l.b16 %v3185
      %v4082 = vunpack.c.l.b16 %v3186
      %v4083 = vunpack.c.l.b16 %v3187
      %v4084 = vunpack.c.l.b16 %v3188
      %v4085 = vunpack.c.l.b16 %v3189
      %v4086 = vunpack.c.l.b16 %v3190
      %v4087 = vunpack.c.l.b16 %v3191
      %v4088 = vunpack.c.l.b16 %v3192
      %v4089 = vunpack.c.l.b16 %v3193
      %v4090 = vunpack.c.l.b16 %v3194
      %v4091 = vunpack.c.l.b16 %v3195
      %v4092 = vunpack.c.l.b16 %v3196
      %v4093 = vunpack.c.l.b16 %v3197
      %v4094 = vunpack.c.l.b16 %v3198
      %v4095 = vunpack.c.l.b16 %v3199
      %v4096 = vunpack.c.l.b16 %v3200
      %v4097 = vunpack.c.l.b16 %v3201
      %v4098 = vunpack.c.l.b16 %v3202
      %v4099 = vunpack.c.l.b16 %v3203
      %v4100 = vunpack.c.l.b16 %v3204
      %v4101 = vunpack.c.l.b16 %v3205
      %v4102 = vunpack.c.l.b16 %v3206
      %v4103 = vunpack.c.l.b16 %v3207
      %v4104 = vunpack.c.l.b16 %v3208
      %v4105 = vunpack.c.l.b16 %v3209
      %v4106 = vunpack.c.l.b16 %v3210
      %v4107 = vunpack.c.l.b16 %v3211
      %v4108 = vunpack.c.l.b16 %v3212
      %v4109 = vunpack.c.l.b16 %v3213
      %v4110 = vunpack.c.l.b16 %v3214
      %v4111 = vpack.c.b16 %v4080, %v4079
      %v4112 = vpack.c.b16 %v4082, %v4081
      %v4113 = vpack.c.b16 %v4084, %v4083
      %v4114 = vpack.c.b16 %v4086, %v4085
      %v4115 = vpack.c.b16 %v4088, %v4087
      %v4116 = vpack.c.b16 %v4090, %v4089
      %v4117 = vpack.c.b16 %v4092, %v4091
      %v4118 = vpack.c.b16 %v4094, %v4093
      %v4119 = vpack.c.b16 %v4096, %v4095
      %v4120 = vpack.c.b16 %v4098, %v4097
      %v4121 = vpack.c.b16 %v4100, %v4099
      %v4122 = vpack.c.b16 %v4102, %v4101
      %v4123 = vpack.c.b16 %v4104, %v4103
      %v4124 = vpack.c.b16 %v4106, %v4105
      %v4125 = vpack.c.b16 %v4108, %v4107
      %v4126 = vpack.c.b16 %v4110, %v4109
      %v4129 = vsel %vm378, %v3279, %v3376
      %v4132 = vsel %vm378, %v3280, %v3378
      %v4135 = vsel %vm378, %v3281, %v3380
      %v4138 = vsel %vm378, %v3282, %v3382
      %v4141 = vsel %vm378, %v3283, %v3384
      %v4144 = vsel %vm378, %v3284, %v3386
      %v4147 = vsel %vm378, %v3285, %v3388
      %v4150 = vsel %vm378, %v3286, %v3390
      %v4153 = vsel %vm378, %v3287, %v3392
      %v4156 = vsel %vm378, %v3288, %v3394
      %v4159 = vsel %vm378, %v3289, %v3396
      %v4162 = vsel %vm378, %v3290, %v3398
      %v4165 = vsel %vm378, %v3291, %v3400
      %v4168 = vsel %vm378, %v3292, %v3402
      %v4171 = vsel %vm378, %v3293, %v3404
      %v4174 = vsel %vm378, %v3294, %v3406
      %vm4175 = vcmask 523264
      %v4177 = vsel %vm4175, %v4129, %v3488
      %v4179 = vsel %vm4175, %v4132, %v3490
      %v4181 = vsel %vm4175, %v4135, %v3492
      %v4183 = vsel %vm4175, %v4138, %v3494
      %v4185 = vsel %vm4175, %v4141, %v3496
      %v4187 = vsel %vm4175, %v4144, %v3498
      %v4189 = vsel %vm4175, %v4147, %v3500
      %v4191 = vsel %vm4175, %v4150, %v3502
      %v4193 = vsel %vm4175, %v4153, %v3504
      %v4195 = vsel %vm4175, %v4156, %v3506
      %v4197 = vsel %vm4175, %v4159, %v3508
      %v4199 = vsel %vm4175, %v4162, %v3510
      %v4201 = vsel %vm4175, %v4165, %v3512
      %v4203 = vsel %vm4175, %v4168, %v3514
      %v4205 = vsel %vm4175, %v4171, %v3516
      %v4207 = vsel %vm4175, %v4174, %v3518
      %vm4208 = vcmask 785408
      %v4210 = vsel %vm4208, %v4177, %v3600
      %v4213 = vsel %vm4208, %v4179, %v3602
      %v4216 = vsel %vm4208, %v4181, %v3604
      %v4219 = vsel %vm4208, %v4183, %v3606
      %v4222 = vsel %vm4208, %v4185, %v3608
      %v4225 = vsel %vm4208, %v4187, %v3610
      %v4228 = vsel %vm4208, %v4189, %v3612
      %v4231 = vsel %vm4208, %v4191, %v3614
      %v4234 = vsel %vm4208, %v4193, %v3616
      %v4237 = vsel %vm4208, %v4195, %v3618
      %v4240 = vsel %vm4208, %v4197, %v3620
      %v4243 = vsel %vm4208, %v4199, %v3622
      %v4246 = vsel %vm4208, %v4201, %v3624
      %v4249 = vsel %vm4208, %v4203, %v3626
      %v4252 = vsel %vm4208, %v4205, %v3628
      %v4255 = vsel %vm4208, %v4207, %v3630
      %v4259 = vsel %vm378, %v3695, %v3792
      %v4262 = vsel %vm378, %v3696, %v3794
      %v4265 = vsel %vm378, %v3697, %v3796
      %v4268 = vsel %vm378, %v3698, %v3798
      %v4271 = vsel %vm378, %v3699, %v3800
      %v4274 = vsel %vm378, %v3700, %v3802
      %v4277 = vsel %vm378, %v3701, %v3804
      %v4280 = vsel %vm378, %v3702, %v3806
      %v4283 = vsel %vm378, %v3703, %v3808
      %v4286 = vsel %vm378, %v3704, %v3810
      %v4289 = vsel %vm378, %v3705, %v3812
      %v4292 = vsel %vm378, %v3706, %v3814
      %v4295 = vsel %vm378, %v3707, %v3816
      %v4298 = vsel %vm378, %v3708, %v3818
      %v4301 = vsel %vm378, %v3709, %v3820
      %v4304 = vsel %vm378, %v3710, %v3822
      %v4306 = vsel %vm4175, %v4259, %v3904
      %v4308 = vsel %vm4175, %v4262, %v3906
      %v4310 = vsel %vm4175, %v4265, %v3908
      %v4312 = vsel %vm4175, %v4268, %v3910
      %v4314 = vsel %vm4175, %v4271, %v3912
      %v4316 = vsel %vm4175, %v4274, %v3914
      %v4318 = vsel %vm4175, %v4277, %v3916
      %v4320 = vsel %vm4175, %v4280, %v3918
      %v4322 = vsel %vm4175, %v4283, %v3920
      %v4324 = vsel %vm4175, %v4286, %v3922
      %v4326 = vsel %vm4175, %v4289, %v3924
      %v4328 = vsel %vm4175, %v4292, %v3926
      %v4330 = vsel %vm4175, %v4295, %v3928
      %v4332 = vsel %vm4175, %v4298, %v3930
      %v4334 = vsel %vm4175, %v4301, %v3932
      %v4336 = vsel %vm4175, %v4304, %v3934
      %v4338 = vsel %vm4208, %v4306, %v4016
      %v4341 = vsel %vm4208, %v4308, %v4018
      %v4344 = vsel %vm4208, %v4310, %v4020
      %v4347 = vsel %vm4208, %v4312, %v4022
      %v4350 = vsel %vm4208, %v4314, %v4024
      %v4353 = vsel %vm4208, %v4316, %v4026
      %v4356 = vsel %vm4208, %v4318, %v4028
      %v4359 = vsel %vm4208, %v4320, %v4030
      %v4362 = vsel %vm4208, %v4322, %v4032
      %v4365 = vsel %vm4208, %v4324, %v4034
      %v4368 = vsel %vm4208, %v4326, %v4036
      %v4371 = vsel %vm4208, %v4328, %v4038
      %v4374 = vsel %vm4208, %v4330, %v4040
      %v4377 = vsel %vm4208, %v4332, %v4042
      %v4380 = vsel %vm4208, %v4334, %v4044
      %v4383 = vsel %vm4208, %v4336, %v4046
      %v4385 = vld [vmem:[%s4] sm:$0xf]
      %v4386 = vld [vmem:[%s4 + $0x4] sm:$0xf]
      %v4387 = vld [vmem:[%s4 + $0x8] sm:$0xf]
      %v4388 = vld [vmem:[%s4 + $0xc] sm:$0xf]
      %v4389 = vld [vmem:[%s4 + $0x10] sm:$0xf]
      %v4390 = vld [vmem:[%s4 + $0x14] sm:$0xf]
      %v4391 = vld [vmem:[%s4 + $0x18] sm:$0xf]
      %v4392 = vld [vmem:[%s4 + $0x1c] sm:$0xf]
      %v4393 = vld [vmem:[%s4 + $0x20] sm:$0xf]
      %v4394 = vld [vmem:[%s4 + $0x24] sm:$0xf]
      %v4395 = vld [vmem:[%s4 + $0x28] sm:$0xf]
      %v4396 = vld [vmem:[%s4 + $0x2c] sm:$0xf]
      %v4397 = vld [vmem:[%s4 + $0x30] sm:$0xf]
      %v4398 = vld [vmem:[%s4 + $0x34] sm:$0xf]
      %v4399 = vld [vmem:[%s4 + $0x38] sm:$0xf]
      %v4400 = vld [vmem:[%s4 + $0x3c] sm:$0xf]
      %v4401 = vld [vmem:[%s4 + $0x40] sm:$0xf]
      %v4402 = vld [vmem:[%s4 + $0x44] sm:$0xf]
      %v4403 = vld [vmem:[%s4 + $0x48] sm:$0xf]
      %v4404 = vld [vmem:[%s4 + $0x4c] sm:$0xf]
      %v4405 = vld [vmem:[%s4 + $0x50] sm:$0xf]
      %v4406 = vld [vmem:[%s4 + $0x54] sm:$0xf]
      %v4407 = vld [vmem:[%s4 + $0x58] sm:$0xf]
      %v4408 = vld [vmem:[%s4 + $0x5c] sm:$0xf]
      %v4409 = vld [vmem:[%s4 + $0x60] sm:$0xf]
      %v4410 = vld [vmem:[%s4 + $0x64] sm:$0xf]
      %v4411 = vld [vmem:[%s4 + $0x68] sm:$0xf]
      %v4412 = vld [vmem:[%s4 + $0x6c] sm:$0xf]
      %v4413 = vld [vmem:[%s4 + $0x70] sm:$0xf]
      %v4414 = vld [vmem:[%s4 + $0x74] sm:$0xf]
      %v4415 = vld [vmem:[%s4 + $0x78] sm:$0xf]
      %v4416 = vld [vmem:[%s4 + $0x7c] sm:$0xf]
      %v4417 = vld [vmem:[%s4 + $0x80] sm:$0xf]
      %v4418 = vld [vmem:[%s4 + $0x84] sm:$0xf]
      %v4419 = vld [vmem:[%s4 + $0x88] sm:$0xf]
      %v4420 = vld [vmem:[%s4 + $0x8c] sm:$0xf]
      %v4421 = vld [vmem:[%s5] sm:$0x1]
      %v4423 = vperm.slane %v4421, 0
      %v4461 = vunpack.c.l.b16 %v4385
      %v4462 = vunpack.c.l.b16 %v4386
      %v4463 = vunpack.c.l.b16 %v4387
      %v4464 = vunpack.c.l.b16 %v4388
      %v4465 = vunpack.c.l.b16 %v4389
      %v4466 = vunpack.c.l.b16 %v4390
      %v4467 = vunpack.c.l.b16 %v4391
      %v4468 = vunpack.c.l.b16 %v4392
      %v4469 = vunpack.c.l.b16 %v4393
      %v4470 = vunpack.c.l.b16 %v4394
      %v4471 = vunpack.c.l.b16 %v4395
      %v4472 = vunpack.c.l.b16 %v4396
      %v4473 = vunpack.c.l.b16 %v4397
      %v4474 = vunpack.c.l.b16 %v4398
      %v4475 = vunpack.c.l.b16 %v4399
      %v4476 = vunpack.c.l.b16 %v4400
      %v4477 = vunpack.c.l.b16 %v4401
      %v4478 = vunpack.c.l.b16 %v4402
      %v4479 = vunpack.c.l.b16 %v4403
      %v4480 = vunpack.c.l.b16 %v4404
      %v4481 = vunpack.c.l.b16 %v4405
      %v4482 = vunpack.c.l.b16 %v4406
      %v4483 = vunpack.c.l.b16 %v4407
      %v4484 = vunpack.c.l.b16 %v4408
      %v4485 = vunpack.c.l.b16 %v4409
      %v4486 = vunpack.c.l.b16 %v4410
      %v4487 = vunpack.c.l.b16 %v4411
      %v4488 = vunpack.c.l.b16 %v4412
      %v4489 = vunpack.c.l.b16 %v4413
      %v4490 = vunpack.c.l.b16 %v4414
      %v4491 = vunpack.c.l.b16 %v4415
      %v4492 = vunpack.c.l.b16 %v4416
      %v4493 = vunpack.c.l.b16 %v4417
      %v4494 = vunpack.c.l.b16 %v4418
      %v4495 = vunpack.c.l.b16 %v4419
      %v4496 = vunpack.c.l.b16 %v4420
      %v4497 = vpack.c.b16 %v4462, %v4461
      %v4498 = vpack.c.b16 %v4464, %v4463
      %v4499 = vpack.c.b16 %v4466, %v4465
      %v4500 = vpack.c.b16 %v4468, %v4467
      %v4501 = vpack.c.b16 %v4470, %v4469
      %v4502 = vpack.c.b16 %v4472, %v4471
      %v4503 = vpack.c.b16 %v4474, %v4473
      %v4504 = vpack.c.b16 %v4476, %v4475
      %v4505 = vpack.c.b16 %v4478, %v4477
      %v4506 = vpack.c.b16 %v4480, %v4479
      %v4507 = vpack.c.b16 %v4482, %v4481
      %v4508 = vpack.c.b16 %v4484, %v4483
      %v4509 = vpack.c.b16 %v4486, %v4485
      %v4510 = vpack.c.b16 %v4488, %v4487
      %v4511 = vpack.c.b16 %v4490, %v4489
      %v4512 = vpack.c.b16 %v4492, %v4491
      %v4513 = vpack.c.b16 %v4494, %v4493
      %v4514 = vpack.c.b16 %v4496, %v4495
      %v4534 = vsel %vm378, %v4111, 0
      %v4537 = vsel %vm378, %v4112, 0
      %v4540 = vsel %vm378, %v4113, 0
      %v4543 = vsel %vm378, %v4114, 0
      %v4546 = vsel %vm378, %v4115, 0
      %v4549 = vsel %vm378, %v4116, 0
      %v4552 = vsel %vm378, %v4117, 0
      %v4555 = vsel %vm378, %v4118, 0
      %v4558 = vsel %vm378, %v4119, 0
      %v4561 = vsel %vm378, %v4120, 0
      %v4564 = vsel %vm378, %v4121, 0
      %v4567 = vsel %vm378, %v4122, 0
      %v4570 = vsel %vm378, %v4123, 0
      %v4573 = vsel %vm378, %v4124, 0
      %v4576 = vsel %vm378, %v4125, 0
      %v4579 = vsel %vm378, %v4126, 0
      %4581 = vmatpush.bf16.msra.mxu0 %v4504
      %4582 = vmatpush.bf16.msra.mxu0 %v4503
      %4583 = vmatpush.bf16.msra.mxu0 %v4502
      %4584 = vmatpush.bf16.msra.mxu0 %v4501
      %4585 = vmatpush.bf16.msra.mxu0 %v4500
      %4586 = vmatpush.bf16.msra.mxu0 %v4499
      %4587 = vmatpush.bf16.msra.mxu0 %v4498
      %4588 = vmatpush.bf16.msra.mxu0 %v4497
      %4589 = vmatmul.bf16.gmra.mxu0 %v4210
      %v4590 = vpop.f32.mrf.mxu0
      %v4591 = vadd.f32 %v4423, %v4590
      %v4592 = vpop.f32.mrf.mxu0
      %v4593 = vadd.f32 %v4423, %v4592
      %4594 = vmatmul.bf16.gmra.mxu0 %v4213
      %v4595 = vpop.f32.mrf.mxu0
      %v4596 = vadd.f32 %v4423, %v4595
      %v4597 = vpop.f32.mrf.mxu0
      %v4598 = vadd.f32 %v4423, %v4597
      %4599 = vmatmul.bf16.gmra.mxu0 %v4216
      %v4600 = vpop.f32.mrf.mxu0
      %v4601 = vadd.f32 %v4423, %v4600
      %v4602 = vpop.f32.mrf.mxu0
      %v4603 = vadd.f32 %v4423, %v4602
      %4604 = vmatmul.bf16.gmra.mxu0 %v4219
      %v4605 = vpop.f32.mrf.mxu0
      %v4606 = vadd.f32 %v4423, %v4605
      %v4607 = vpop.f32.mrf.mxu0
      %v4608 = vadd.f32 %v4423, %v4607
      %4609 = vmatmul.bf16.gmra.mxu0 %v4222
      %v4610 = vpop.f32.mrf.mxu0
      %v4611 = vadd.f32 %v4423, %v4610
      %v4612 = vpop.f32.mrf.mxu0
      %v4613 = vadd.f32 %v4423, %v4612
      %4614 = vmatmul.bf16.gmra.mxu0 %v4225
      %v4615 = vpop.f32.mrf.mxu0
      %v4616 = vadd.f32 %v4423, %v4615
      %v4617 = vpop.f32.mrf.mxu0
      %v4618 = vadd.f32 %v4423, %v4617
      %4619 = vmatmul.bf16.gmra.mxu0 %v4228
      %v4620 = vpop.f32.mrf.mxu0
      %v4621 = vadd.f32 %v4423, %v4620
      %v4622 = vpop.f32.mrf.mxu0
      %v4623 = vadd.f32 %v4423, %v4622
      %4624 = vmatmul.bf16.gmra.mxu0 %v4231
      %v4625 = vpop.f32.mrf.mxu0
      %v4626 = vadd.f32 %v4423, %v4625
      %v4627 = vpop.f32.mrf.mxu0
      %v4628 = vadd.f32 %v4423, %v4627
      %4629 = vmatmul.bf16.gmra.mxu0 %v4234
      %v4630 = vpop.f32.mrf.mxu0
      %v4631 = vadd.f32 %v4423, %v4630
      %v4632 = vpop.f32.mrf.mxu0
      %v4633 = vadd.f32 %v4423, %v4632
      %4634 = vmatmul.bf16.gmra.mxu0 %v4237
      %v4635 = vpop.f32.mrf.mxu0
      %v4636 = vadd.f32 %v4423, %v4635
      %v4637 = vpop.f32.mrf.mxu0
      %v4638 = vadd.f32 %v4423, %v4637
      %4639 = vmatmul.bf16.gmra.mxu0 %v4240
      %v4640 = vpop.f32.mrf.mxu0
      %v4641 = vadd.f32 %v4423, %v4640
      %v4642 = vpop.f32.mrf.mxu0
      %v4643 = vadd.f32 %v4423, %v4642
      %4644 = vmatmul.bf16.gmra.mxu0 %v4243
      %v4645 = vpop.f32.mrf.mxu0
      %v4646 = vadd.f32 %v4423, %v4645
      %v4647 = vpop.f32.mrf.mxu0
      %v4648 = vadd.f32 %v4423, %v4647
      %4649 = vmatmul.bf16.gmra.mxu0 %v4246
      %v4650 = vpop.f32.mrf.mxu0
      %v4651 = vadd.f32 %v4423, %v4650
      %v4652 = vpop.f32.mrf.mxu0
      %v4653 = vadd.f32 %v4423, %v4652
      %4654 = vmatmul.bf16.gmra.mxu0 %v4249
      %v4655 = vpop.f32.mrf.mxu0
      %v4656 = vadd.f32 %v4423, %v4655
      %v4657 = vpop.f32.mrf.mxu0
      %v4658 = vadd.f32 %v4423, %v4657
      %4659 = vmatmul.bf16.gmra.mxu0 %v4252
      %v4660 = vpop.f32.mrf.mxu0
      %v4661 = vadd.f32 %v4423, %v4660
      %v4662 = vpop.f32.mrf.mxu0
      %v4663 = vadd.f32 %v4423, %v4662
      %4664 = vmatmul.bf16.gmra.mxu0 %v4255
      %v4665 = vpop.f32.mrf.mxu0
      %v4666 = vadd.f32 %v4423, %v4665
      %v4667 = vpop.f32.mrf.mxu0
      %v4668 = vadd.f32 %v4423, %v4667
      %4669 = vdwg.mxu0
      %4670 = vmatpush.bf16.msra.mxu0 %v4512
      %4671 = vmatpush.bf16.msra.mxu0 %v4511
      %4672 = vmatpush.bf16.msra.mxu0 %v4510
      %4673 = vmatpush.bf16.msra.mxu0 %v4509
      %4674 = vmatpush.bf16.msra.mxu0 %v4508
      %4675 = vmatpush.bf16.msra.mxu0 %v4507
      %4676 = vmatpush.bf16.msra.mxu0 %v4506
      %4677 = vmatpush.bf16.msra.mxu0 %v4505
      %4678 = vmatmul.bf16.gmra.mxu0 %v4338
      %v4679 = vpop.f32.mrf.mxu0
      %v4680 = vadd.f32 %v4591, %v4679
      %v4681 = vpop.f32.mrf.mxu0
      %v4682 = vadd.f32 %v4593, %v4681
      %4683 = vmatmul.bf16.gmra.mxu0 %v4341
      %v4684 = vpop.f32.mrf.mxu0
      %v4685 = vadd.f32 %v4596, %v4684
      %v4686 = vpop.f32.mrf.mxu0
      %v4687 = vadd.f32 %v4598, %v4686
      %4688 = vmatmul.bf16.gmra.mxu0 %v4344
      %v4689 = vpop.f32.mrf.mxu0
      %v4690 = vadd.f32 %v4601, %v4689
      %v4691 = vpop.f32.mrf.mxu0
      %v4692 = vadd.f32 %v4603, %v4691
      %4693 = vmatmul.bf16.gmra.mxu0 %v4347
      %v4694 = vpop.f32.mrf.mxu0
      %v4695 = vadd.f32 %v4606, %v4694
      %v4696 = vpop.f32.mrf.mxu0
      %v4697 = vadd.f32 %v4608, %v4696
      %4698 = vmatmul.bf16.gmra.mxu0 %v4350
      %v4699 = vpop.f32.mrf.mxu0
      %v4700 = vadd.f32 %v4611, %v4699
      %v4701 = vpop.f32.mrf.mxu0
      %v4702 = vadd.f32 %v4613, %v4701
      %4703 = vmatmul.bf16.gmra.mxu0 %v4353
      %v4704 = vpop.f32.mrf.mxu0
      %v4705 = vadd.f32 %v4616, %v4704
      %v4706 = vpop.f32.mrf.mxu0
      %v4707 = vadd.f32 %v4618, %v4706
      %4708 = vmatmul.bf16.gmra.mxu0 %v4356
      %v4709 = vpop.f32.mrf.mxu0
      %v4710 = vadd.f32 %v4621, %v4709
      %v4711 = vpop.f32.mrf.mxu0
      %v4712 = vadd.f32 %v4623, %v4711
      %4713 = vmatmul.bf16.gmra.mxu0 %v4359
      %v4714 = vpop.f32.mrf.mxu0
      %v4715 = vadd.f32 %v4626, %v4714
      %v4716 = vpop.f32.mrf.mxu0
      %v4717 = vadd.f32 %v4628, %v4716
      %4718 = vmatmul.bf16.gmra.mxu0 %v4362
      %v4719 = vpop.f32.mrf.mxu0
      %v4720 = vadd.f32 %v4631, %v4719
      %v4721 = vpop.f32.mrf.mxu0
      %v4722 = vadd.f32 %v4633, %v4721
      %4723 = vmatmul.bf16.gmra.mxu0 %v4365
      %v4724 = vpop.f32.mrf.mxu0
      %v4725 = vadd.f32 %v4636, %v4724
      %v4726 = vpop.f32.mrf.mxu0
      %v4727 = vadd.f32 %v4638, %v4726
      %4728 = vmatmul.bf16.gmra.mxu0 %v4368
      %v4729 = vpop.f32.mrf.mxu0
      %v4730 = vadd.f32 %v4641, %v4729
      %v4731 = vpop.f32.mrf.mxu0
      %v4732 = vadd.f32 %v4643, %v4731
      %4733 = vmatmul.bf16.gmra.mxu0 %v4371
      %v4734 = vpop.f32.mrf.mxu0
      %v4735 = vadd.f32 %v4646, %v4734
      %v4736 = vpop.f32.mrf.mxu0
      %v4737 = vadd.f32 %v4648, %v4736
      %4738 = vmatmul.bf16.gmra.mxu0 %v4374
      %v4739 = vpop.f32.mrf.mxu0
      %v4740 = vadd.f32 %v4651, %v4739
      %v4741 = vpop.f32.mrf.mxu0
      %v4742 = vadd.f32 %v4653, %v4741
      %4743 = vmatmul.bf16.gmra.mxu0 %v4377
      %v4744 = vpop.f32.mrf.mxu0
      %v4745 = vadd.f32 %v4656, %v4744
      %v4746 = vpop.f32.mrf.mxu0
      %v4747 = vadd.f32 %v4658, %v4746
      %4748 = vmatmul.bf16.gmra.mxu0 %v4380
      %v4749 = vpop.f32.mrf.mxu0
      %v4750 = vadd.f32 %v4661, %v4749
      %v4751 = vpop.f32.mrf.mxu0
      %v4752 = vadd.f32 %v4663, %v4751
      %4753 = vmatmul.bf16.gmra.mxu0 %v4383
      %v4754 = vpop.f32.mrf.mxu0
      %v4755 = vadd.f32 %v4666, %v4754
      %v4756 = vpop.f32.mrf.mxu0
      %v4757 = vadd.f32 %v4668, %v4756
      %4758 = vdwg.mxu0
      %4759 = vmatpush.bf16.msra.mxu0 0
      %4760 = vmatpush.bf16.msra.mxu0 0
      %4761 = vmatpush.bf16.msra.mxu0 0
      %4762 = vmatpush.bf16.msra.mxu0 0
      %4763 = vmatpush.bf16.msra.mxu0 0
      %4764 = vmatpush.bf16.msra.mxu0 0
      %4765 = vmatpush.bf16.msra.mxu0 %v4514
      %4766 = vmatpush.bf16.msra.mxu0 %v4513
      %4767 = vmatmul.bf16.gmra.mxu0 %v4534
      %v4768 = vpop.f32.mrf.mxu0
      %v4769 = vadd.f32 %v4680, %v4768
      %v4770 = vpop.f32.mrf.mxu0
      %v4771 = vadd.f32 %v4682, %v4770
      %4772 = vmatmul.bf16.gmra.mxu0 %v4537
      %v4773 = vpop.f32.mrf.mxu0
      %v4774 = vadd.f32 %v4685, %v4773
      %v4775 = vpop.f32.mrf.mxu0
      %v4776 = vadd.f32 %v4687, %v4775
      %4777 = vmatmul.bf16.gmra.mxu0 %v4540
      %v4778 = vpop.f32.mrf.mxu0
      %v4779 = vadd.f32 %v4690, %v4778
      %v4780 = vpop.f32.mrf.mxu0
      %v4781 = vadd.f32 %v4692, %v4780
      %4782 = vmatmul.bf16.gmra.mxu0 %v4543
      %v4783 = vpop.f32.mrf.mxu0
      %v4784 = vadd.f32 %v4695, %v4783
      %v4785 = vpop.f32.mrf.mxu0
      %v4786 = vadd.f32 %v4697, %v4785
      %4787 = vmatmul.bf16.gmra.mxu0 %v4546
      %v4788 = vpop.f32.mrf.mxu0
      %v4789 = vadd.f32 %v4700, %v4788
      %v4790 = vpop.f32.mrf.mxu0
      %v4791 = vadd.f32 %v4702, %v4790
      %4792 = vmatmul.bf16.gmra.mxu0 %v4549
      %v4793 = vpop.f32.mrf.mxu0
      %v4794 = vadd.f32 %v4705, %v4793
      %v4795 = vpop.f32.mrf.mxu0
      %v4796 = vadd.f32 %v4707, %v4795
      %4797 = vmatmul.bf16.gmra.mxu0 %v4552
      %v4798 = vpop.f32.mrf.mxu0
      %v4799 = vadd.f32 %v4710, %v4798
      %v4800 = vpop.f32.mrf.mxu0
      %v4801 = vadd.f32 %v4712, %v4800
      %4802 = vmatmul.bf16.gmra.mxu0 %v4555
      %v4803 = vpop.f32.mrf.mxu0
      %v4804 = vadd.f32 %v4715, %v4803
      %v4805 = vpop.f32.mrf.mxu0
      %v4806 = vadd.f32 %v4717, %v4805
      %4807 = vmatmul.bf16.gmra.mxu0 %v4558
      %v4808 = vpop.f32.mrf.mxu0
      %v4809 = vadd.f32 %v4720, %v4808
      %v4810 = vpop.f32.mrf.mxu0
      %v4811 = vadd.f32 %v4722, %v4810
      %4812 = vmatmul.bf16.gmra.mxu0 %v4561
      %v4813 = vpop.f32.mrf.mxu0
      %v4814 = vadd.f32 %v4725, %v4813
      %v4815 = vpop.f32.mrf.mxu0
      %v4816 = vadd.f32 %v4727, %v4815
      %4817 = vmatmul.bf16.gmra.mxu0 %v4564
      %v4818 = vpop.f32.mrf.mxu0
      %v4819 = vadd.f32 %v4730, %v4818
      %v4820 = vpop.f32.mrf.mxu0
      %v4821 = vadd.f32 %v4732, %v4820
      %4822 = vmatmul.bf16.gmra.mxu0 %v4567
      %v4823 = vpop.f32.mrf.mxu0
      %v4824 = vadd.f32 %v4735, %v4823
      %v4825 = vpop.f32.mrf.mxu0
      %v4826 = vadd.f32 %v4737, %v4825
      %4827 = vmatmul.bf16.gmra.mxu0 %v4570
      %v4828 = vpop.f32.mrf.mxu0
      %v4829 = vadd.f32 %v4740, %v4828
      %v4830 = vpop.f32.mrf.mxu0
      %v4831 = vadd.f32 %v4742, %v4830
      %4832 = vmatmul.bf16.gmra.mxu0 %v4573
      %v4833 = vpop.f32.mrf.mxu0
      %v4834 = vadd.f32 %v4745, %v4833
      %v4835 = vpop.f32.mrf.mxu0
      %v4836 = vadd.f32 %v4747, %v4835
      %4837 = vmatmul.bf16.gmra.mxu0 %v4576
      %v4838 = vpop.f32.mrf.mxu0
      %v4839 = vadd.f32 %v4750, %v4838
      %v4840 = vpop.f32.mrf.mxu0
      %v4841 = vadd.f32 %v4752, %v4840
      %4842 = vmatmul.bf16.gmra.mxu0 %v4579
      %v4843 = vpop.f32.mrf.mxu0
      %v4844 = vadd.f32 %v4755, %v4843
      %v4845 = vpop.f32.mrf.mxu0
      %v4846 = vadd.f32 %v4757, %v4845
      %4847 = vdwg.mxu0
      %v4848 = vmax.f32 %v4769, 0.0
      %v4849 = vmax.f32 %v4771, 0.0
      %v4850 = vmax.f32 %v4774, 0.0
      %v4851 = vmax.f32 %v4776, 0.0
      %v4852 = vmax.f32 %v4779, 0.0
      %v4853 = vmax.f32 %v4781, 0.0
      %v4854 = vmax.f32 %v4784, 0.0
      %v4855 = vmax.f32 %v4786, 0.0
      %v4856 = vmax.f32 %v4789, 0.0
      %v4857 = vmax.f32 %v4791, 0.0
      %v4858 = vmax.f32 %v4794, 0.0
      %v4859 = vmax.f32 %v4796, 0.0
      %v4860 = vmax.f32 %v4799, 0.0
      %v4861 = vmax.f32 %v4801, 0.0
      %v4862 = vmax.f32 %v4804, 0.0
      %v4863 = vmax.f32 %v4806, 0.0
      %v4864 = vmax.f32 %v4809, 0.0
      %v4865 = vmax.f32 %v4811, 0.0
      %v4866 = vmax.f32 %v4814, 0.0
      %v4867 = vmax.f32 %v4816, 0.0
      %v4868 = vmax.f32 %v4819, 0.0
      %v4869 = vmax.f32 %v4821, 0.0
      %v4870 = vmax.f32 %v4824, 0.0
      %v4871 = vmax.f32 %v4826, 0.0
      %v4872 = vmax.f32 %v4829, 0.0
      %v4873 = vmax.f32 %v4831, 0.0
      %v4874 = vmax.f32 %v4834, 0.0
      %v4875 = vmax.f32 %v4836, 0.0
      %v4876 = vmax.f32 %v4839, 0.0
      %v4877 = vmax.f32 %v4841, 0.0
      %v4878 = vmax.f32 %v4844, 0.0
      %v4879 = vmax.f32 %v4846, 0.0
      %v4912 = vrot.slane %v4848, 7
      %v4913 = vrot.slane %v4849, 7
      %v4914 = vsel %vm2302, %v4912, %v4913
      %v4915 = vrot.slane %v4850, 7
      %v4916 = vrot.slane %v4851, 7
      %v4917 = vsel %vm2302, %v4915, %v4916
      %v4918 = vrot.slane %v4852, 7
      %v4919 = vrot.slane %v4853, 7
      %v4920 = vsel %vm2302, %v4918, %v4919
      %v4921 = vrot.slane %v4854, 7
      %v4922 = vrot.slane %v4855, 7
      %v4923 = vsel %vm2302, %v4921, %v4922
      %v4924 = vrot.slane %v4856, 7
      %v4925 = vrot.slane %v4857, 7
      %v4926 = vsel %vm2302, %v4924, %v4925
      %v4927 = vrot.slane %v4858, 7
      %v4928 = vrot.slane %v4859, 7
      %v4929 = vsel %vm2302, %v4927, %v4928
      %v4930 = vrot.slane %v4860, 7
      %v4931 = vrot.slane %v4861, 7
      %v4932 = vsel %vm2302, %v4930, %v4931
      %v4933 = vrot.slane %v4862, 7
      %v4934 = vrot.slane %v4863, 7
      %v4935 = vsel %vm2302, %v4933, %v4934
      %v4936 = vrot.slane %v4864, 7
      %v4937 = vrot.slane %v4865, 7
      %v4938 = vsel %vm2302, %v4936, %v4937
      %v4939 = vrot.slane %v4866, 7
      %v4940 = vrot.slane %v4867, 7
      %v4941 = vsel %vm2302, %v4939, %v4940
      %v4942 = vrot.slane %v4868, 7
      %v4943 = vrot.slane %v4869, 7
      %v4944 = vsel %vm2302, %v4942, %v4943
      %v4945 = vrot.slane %v4870, 7
      %v4946 = vrot.slane %v4871, 7
      %v4947 = vsel %vm2302, %v4945, %v4946
      %v4948 = vrot.slane %v4872, 7
      %v4949 = vrot.slane %v4873, 7
      %v4950 = vsel %vm2302, %v4948, %v4949
      %v4951 = vrot.slane %v4874, 7
      %v4952 = vrot.slane %v4875, 7
      %v4953 = vsel %vm2302, %v4951, %v4952
      %v4954 = vrot.slane %v4876, 7
      %v4955 = vrot.slane %v4877, 7
      %v4956 = vsel %vm2302, %v4954, %v4955
      %v4957 = vrot.slane %v4878, 7
      %v4958 = vrot.slane %v4879, 7
      %v4959 = vsel %vm2302, %v4957, %v4958
      %v5008 = vsel %vm2302, 0.0, %v4912
      %v5009 = vsel %vm2302, 0.0, %v4915
      %v5010 = vsel %vm2302, 0.0, %v4918
      %v5011 = vsel %vm2302, 0.0, %v4921
      %v5012 = vsel %vm2302, 0.0, %v4924
      %v5013 = vsel %vm2302, 0.0, %v4927
      %v5014 = vsel %vm2302, 0.0, %v4930
      %v5015 = vsel %vm2302, 0.0, %v4933
      %v5016 = vsel %vm2302, 0.0, %v4936
      %v5017 = vsel %vm2302, 0.0, %v4939
      %v5018 = vsel %vm2302, 0.0, %v4942
      %v5019 = vsel %vm2302, 0.0, %v4945
      %v5020 = vsel %vm2302, 0.0, %v4948
      %v5021 = vsel %vm2302, 0.0, %v4951
      %v5022 = vsel %vm2302, 0.0, %v4954
      %v5023 = vsel %vm2302, 0.0, %v4957
      %v5024 = vsel %vm2302, %v4913, 0.0
      %v5025 = vsel %vm2302, %v4916, 0.0
      %v5026 = vsel %vm2302, %v4919, 0.0
      %v5027 = vsel %vm2302, %v4922, 0.0
      %v5028 = vsel %vm2302, %v4925, 0.0
      %v5029 = vsel %vm2302, %v4928, 0.0
      %v5030 = vsel %vm2302, %v4931, 0.0
      %v5031 = vsel %vm2302, %v4934, 0.0
      %v5032 = vsel %vm2302, %v4937, 0.0
      %v5033 = vsel %vm2302, %v4940, 0.0
      %v5034 = vsel %vm2302, %v4943, 0.0
      %v5035 = vsel %vm2302, %v4946, 0.0
      %v5036 = vsel %vm2302, %v4949, 0.0
      %v5037 = vsel %vm2302, %v4952, 0.0
      %v5038 = vsel %vm2302, %v4955, 0.0
      %v5039 = vsel %vm2302, %v4958, 0.0
      %5040 = vst.msk [vmem:[%s2589] sm:$0xff] %vm378, %v5008
      %5041 = vst.msk [vmem:[%s2589 + $0x8] sm:$0xff] %vm378, %v4914
      %5042 = vst.msk [vmem:[%s2589 + $0x10] sm:$0x3] %vm381, %v5024
      %5043 = vst.msk [vmem:[%s2589 + $0x18] sm:$0xff] %vm378, %v5009
      %5044 = vst.msk [vmem:[%s2589 + $0x20] sm:$0xff] %vm378, %v4917
      %5045 = vst.msk [vmem:[%s2589 + $0x28] sm:$0x3] %vm381, %v5025
      %5046 = vst.msk [vmem:[%s2589 + $0x30] sm:$0xff] %vm378, %v5010
      %5047 = vst.msk [vmem:[%s2589 + $0x38] sm:$0xff] %vm378, %v4920
      %5048 = vst.msk [vmem:[%s2589 + $0x40] sm:$0x3] %vm381, %v5026
      %5049 = vst.msk [vmem:[%s2589 + $0x48] sm:$0xff] %vm378, %v5011
      %5050 = vst.msk [vmem:[%s2589 + $0x50] sm:$0xff] %vm378, %v4923
      %5051 = vst.msk [vmem:[%s2589 + $0x58] sm:$0x3] %vm381, %v5027
      %5052 = vst.msk [vmem:[%s2589 + $0x60] sm:$0xff] %vm378, %v5012
      %5053 = vst.msk [vmem:[%s2589 + $0x68] sm:$0xff] %vm378, %v4926
      %5054 = vst.msk [vmem:[%s2589 + $0x70] sm:$0x3] %vm381, %v5028
      %5055 = vst.msk [vmem:[%s2589 + $0x78] sm:$0xff] %vm378, %v5013
      %5056 = vst.msk [vmem:[%s2589 + $0x80] sm:$0xff] %vm378, %v4929
      %5057 = vst.msk [vmem:[%s2589 + $0x88] sm:$0x3] %vm381, %v5029
      %5058 = vst.msk [vmem:[%s2589 + $0x90] sm:$0xff] %vm378, %v5014
      %5059 = vst.msk [vmem:[%s2589 + $0x98] sm:$0xff] %vm378, %v4932
      %5060 = vst.msk [vmem:[%s2589 + $0xa0] sm:$0x3] %vm381, %v5030
      %5061 = vst.msk [vmem:[%s2589 + $0xa8] sm:$0xff] %vm378, %v5015
      %5062 = vst.msk [vmem:[%s2589 + $0xb0] sm:$0xff] %vm378, %v4935
      %5063 = vst.msk [vmem:[%s2589 + $0xb8] sm:$0x3] %vm381, %v5031
      %5064 = vst.msk [vmem:[%s2589 + $0xc0] sm:$0xff] %vm378, %v5016
      %5065 = vst.msk [vmem:[%s2589 + $0xc8] sm:$0xff] %vm378, %v4938
      %5066 = vst.msk [vmem:[%s2589 + $0xd0] sm:$0x3] %vm381, %v5032
      %5067 = vst.msk [vmem:[%s2589 + $0xd8] sm:$0xff] %vm378, %v5017
      %5068 = vst.msk [vmem:[%s2589 + $0xe0] sm:$0xff] %vm378, %v4941
      %5069 = vst.msk [vmem:[%s2589 + $0xe8] sm:$0x3] %vm381, %v5033
      %5070 = vst.msk [vmem:[%s2589 + $0xf0] sm:$0xff] %vm378, %v5018
      %5071 = vst.msk [vmem:[%s2589 + $0xf8] sm:$0xff] %vm378, %v4944
      %5072 = vst.msk [vmem:[%s2589 + $0x100] sm:$0x3] %vm381, %v5034
      %5073 = vst.msk [vmem:[%s2589 + $0x108] sm:$0xff] %vm378, %v5019
      %5074 = vst.msk [vmem:[%s2589 + $0x110] sm:$0xff] %vm378, %v4947
      %5075 = vst.msk [vmem:[%s2589 + $0x118] sm:$0x3] %vm381, %v5035
      %5076 = vst.msk [vmem:[%s2589 + $0x120] sm:$0xff] %vm378, %v5020
      %5077 = vst.msk [vmem:[%s2589 + $0x128] sm:$0xff] %vm378, %v4950
      %5078 = vst.msk [vmem:[%s2589 + $0x130] sm:$0x3] %vm381, %v5036
      %5079 = vst.msk [vmem:[%s2589 + $0x138] sm:$0xff] %vm378, %v5021
      %5080 = vst.msk [vmem:[%s2589 + $0x140] sm:$0xff] %vm378, %v4953
      %5081 = vst.msk [vmem:[%s2589 + $0x148] sm:$0x3] %vm381, %v5037
      %5082 = vst.msk [vmem:[%s2589 + $0x150] sm:$0xff] %vm378, %v5022
      %5083 = vst.msk [vmem:[%s2589 + $0x158] sm:$0xff] %vm378, %v4956
      %5084 = vst.msk [vmem:[%s2589 + $0x160] sm:$0x3] %vm381, %v5038
      %5085 = vst.msk [vmem:[%s2589 + $0x168] sm:$0xff] %vm378, %v5023
      %5086 = vst.msk [vmem:[%s2589 + $0x170] sm:$0xff] %vm378, %v4959
      %5087 = vst.msk [vmem:[%s2589 + $0x178] sm:$0x3] %vm381, %v5039
      %v5088 = vld [vmem:[#allocation2] sm:$0xff]
      %v5089 = vld [vmem:[#allocation2 + $0x8] sm:$0xff]
      %v5090 = vld [vmem:[#allocation2 + $0x18] sm:$0xff]
      %v5091 = vld [vmem:[#allocation2 + $0x20] sm:$0xff]
      %v5092 = vld [vmem:[#allocation2 + $0x30] sm:$0xff]
      %v5093 = vld [vmem:[#allocation2 + $0x38] sm:$0xff]
      %v5094 = vld [vmem:[#allocation2 + $0x48] sm:$0xff]
      %v5095 = vld [vmem:[#allocation2 + $0x50] sm:$0xff]
      %v5096 = vld [vmem:[#allocation2 + $0x60] sm:$0xff]
      %v5097 = vld [vmem:[#allocation2 + $0x68] sm:$0xff]
      %v5098 = vld [vmem:[#allocation2 + $0x78] sm:$0xff]
      %v5099 = vld [vmem:[#allocation2 + $0x80] sm:$0xff]
      %v5100 = vld [vmem:[#allocation2 + $0x90] sm:$0xff]
      %v5101 = vld [vmem:[#allocation2 + $0x98] sm:$0xff]
      %v5102 = vld [vmem:[#allocation2 + $0xa8] sm:$0xff]
      %v5103 = vld [vmem:[#allocation2 + $0xb0] sm:$0xff]
      %v5104 = vld [vmem:[#allocation2 + $0xc0] sm:$0xff]
      %v5105 = vld [vmem:[#allocation2 + $0xc8] sm:$0xff]
      %v5106 = vld [vmem:[#allocation2 + $0xd8] sm:$0xff]
      %v5107 = vld [vmem:[#allocation2 + $0xe0] sm:$0xff]
      %v5108 = vld [vmem:[#allocation2 + $0xf0] sm:$0xff]
      %v5109 = vld [vmem:[#allocation2 + $0xf8] sm:$0xff]
      %v5110 = vld [vmem:[#allocation2 + $0x108] sm:$0xff]
      %v5111 = vld [vmem:[#allocation2 + $0x110] sm:$0xff]
      %v5112 = vld [vmem:[#allocation2 + $0x120] sm:$0xff]
      %v5113 = vld [vmem:[#allocation2 + $0x128] sm:$0xff]
      %v5114 = vld [vmem:[#allocation2 + $0x138] sm:$0xff]
      %v5115 = vld [vmem:[#allocation2 + $0x140] sm:$0xff]
      %v5116 = vld [vmem:[#allocation2 + $0x150] sm:$0xff]
      %v5117 = vld [vmem:[#allocation2 + $0x158] sm:$0xff]
      %v5118 = vld [vmem:[#allocation2 + $0x168] sm:$0xff]
      %v5119 = vld [vmem:[#allocation2 + $0x170] sm:$0xff]
      %v5120 = vpack.c.bf16 %v5088, %v5088
      %v5121 = vpack.c.bf16 %v5089, %v5089
      %v5122 = vpack.c.bf16 %v5090, %v5090
      %v5123 = vpack.c.bf16 %v5091, %v5091
      %v5124 = vpack.c.bf16 %v5092, %v5092
      %v5125 = vpack.c.bf16 %v5093, %v5093
      %v5126 = vpack.c.bf16 %v5094, %v5094
      %v5127 = vpack.c.bf16 %v5095, %v5095
      %v5128 = vpack.c.bf16 %v5096, %v5096
      %v5129 = vpack.c.bf16 %v5097, %v5097
      %v5130 = vpack.c.bf16 %v5098, %v5098
      %v5131 = vpack.c.bf16 %v5099, %v5099
      %v5132 = vpack.c.bf16 %v5100, %v5100
      %v5133 = vpack.c.bf16 %v5101, %v5101
      %v5134 = vpack.c.bf16 %v5102, %v5102
      %v5135 = vpack.c.bf16 %v5103, %v5103
      %v5136 = vpack.c.bf16 %v5104, %v5104
      %v5137 = vpack.c.bf16 %v5105, %v5105
      %v5138 = vpack.c.bf16 %v5106, %v5106
      %v5139 = vpack.c.bf16 %v5107, %v5107
      %v5140 = vpack.c.bf16 %v5108, %v5108
      %v5141 = vpack.c.bf16 %v5109, %v5109
      %v5142 = vpack.c.bf16 %v5110, %v5110
      %v5143 = vpack.c.bf16 %v5111, %v5111
      %v5144 = vpack.c.bf16 %v5112, %v5112
      %v5145 = vpack.c.bf16 %v5113, %v5113
      %v5146 = vpack.c.bf16 %v5114, %v5114
      %v5147 = vpack.c.bf16 %v5115, %v5115
      %v5148 = vpack.c.bf16 %v5116, %v5116
      %v5149 = vpack.c.bf16 %v5117, %v5117
      %v5150 = vpack.c.bf16 %v5118, %v5118
      %v5151 = vpack.c.bf16 %v5119, %v5119
      %v5152 = vld [vmem:[#allocation2 + $0x1] sm:$0xff]
      %v5153 = vld [vmem:[#allocation2 + $0x9] sm:$0xff]
      %v5154 = vld [vmem:[#allocation2 + $0x19] sm:$0xff]
      %v5155 = vld [vmem:[#allocation2 + $0x21] sm:$0xff]
      %v5156 = vld [vmem:[#allocation2 + $0x31] sm:$0xff]
      %v5157 = vld [vmem:[#allocation2 + $0x39] sm:$0xff]
      %v5158 = vld [vmem:[#allocation2 + $0x49] sm:$0xff]
      %v5159 = vld [vmem:[#allocation2 + $0x51] sm:$0xff]
      %v5160 = vld [vmem:[#allocation2 + $0x61] sm:$0xff]
      %v5161 = vld [vmem:[#allocation2 + $0x69] sm:$0xff]
      %v5162 = vld [vmem:[#allocation2 + $0x79] sm:$0xff]
      %v5163 = vld [vmem:[#allocation2 + $0x81] sm:$0xff]
      %v5164 = vld [vmem:[#allocation2 + $0x91] sm:$0xff]
      %v5165 = vld [vmem:[#allocation2 + $0x99] sm:$0xff]
      %v5166 = vld [vmem:[#allocation2 + $0xa9] sm:$0xff]
      %v5167 = vld [vmem:[#allocation2 + $0xb1] sm:$0xff]
      %v5168 = vld [vmem:[#allocation2 + $0xc1] sm:$0xff]
      %v5169 = vld [vmem:[#allocation2 + $0xc9] sm:$0xff]
      %v5170 = vld [vmem:[#allocation2 + $0xd9] sm:$0xff]
      %v5171 = vld [vmem:[#allocation2 + $0xe1] sm:$0xff]
      %v5172 = vld [vmem:[#allocation2 + $0xf1] sm:$0xff]
      %v5173 = vld [vmem:[#allocation2 + $0xf9] sm:$0xff]
      %v5174 = vld [vmem:[#allocation2 + $0x109] sm:$0xff]
      %v5175 = vld [vmem:[#allocation2 + $0x111] sm:$0xff]
      %v5176 = vld [vmem:[#allocation2 + $0x121] sm:$0xff]
      %v5177 = vld [vmem:[#allocation2 + $0x129] sm:$0xff]
      %v5178 = vld [vmem:[#allocation2 + $0x139] sm:$0xff]
      %v5179 = vld [vmem:[#allocation2 + $0x141] sm:$0xff]
      %v5180 = vld [vmem:[#allocation2 + $0x151] sm:$0xff]
      %v5181 = vld [vmem:[#allocation2 + $0x159] sm:$0xff]
      %v5182 = vld [vmem:[#allocation2 + $0x169] sm:$0xff]
      %v5183 = vld [vmem:[#allocation2 + $0x171] sm:$0xff]
      %v5184 = vpack.c.bf16 %v5152, %v5152
      %v5185 = vpack.c.bf16 %v5153, %v5153
      %v5186 = vpack.c.bf16 %v5154, %v5154
      %v5187 = vpack.c.bf16 %v5155, %v5155
      %v5188 = vpack.c.bf16 %v5156, %v5156
      %v5189 = vpack.c.bf16 %v5157, %v5157
      %v5190 = vpack.c.bf16 %v5158, %v5158
      %v5191 = vpack.c.bf16 %v5159, %v5159
      %v5192 = vpack.c.bf16 %v5160, %v5160
      %v5193 = vpack.c.bf16 %v5161, %v5161
      %v5194 = vpack.c.bf16 %v5162, %v5162
      %v5195 = vpack.c.bf16 %v5163, %v5163
      %v5196 = vpack.c.bf16 %v5164, %v5164
      %v5197 = vpack.c.bf16 %v5165, %v5165
      %v5198 = vpack.c.bf16 %v5166, %v5166
      %v5199 = vpack.c.bf16 %v5167, %v5167
      %v5200 = vpack.c.bf16 %v5168, %v5168
      %v5201 = vpack.c.bf16 %v5169, %v5169
      %v5202 = vpack.c.bf16 %v5170, %v5170
      %v5203 = vpack.c.bf16 %v5171, %v5171
      %v5204 = vpack.c.bf16 %v5172, %v5172
      %v5205 = vpack.c.bf16 %v5173, %v5173
      %v5206 = vpack.c.bf16 %v5174, %v5174
      %v5207 = vpack.c.bf16 %v5175, %v5175
      %v5208 = vpack.c.bf16 %v5176, %v5176
      %v5209 = vpack.c.bf16 %v5177, %v5177
      %v5210 = vpack.c.bf16 %v5178, %v5178
      %v5211 = vpack.c.bf16 %v5179, %v5179
      %v5212 = vpack.c.bf16 %v5180, %v5180
      %v5213 = vpack.c.bf16 %v5181, %v5181
      %v5214 = vpack.c.bf16 %v5182, %v5182
      %v5215 = vpack.c.bf16 %v5183, %v5183
      %v5216 = vld [vmem:[#allocation2 + $0x2] sm:$0xff]
      %v5217 = vld [vmem:[#allocation2 + $0xa] sm:$0xff]
      %v5218 = vld [vmem:[#allocation2 + $0x1a] sm:$0xff]
      %v5219 = vld [vmem:[#allocation2 + $0x22] sm:$0xff]
      %v5220 = vld [vmem:[#allocation2 + $0x32] sm:$0xff]
      %v5221 = vld [vmem:[#allocation2 + $0x3a] sm:$0xff]
      %v5222 = vld [vmem:[#allocation2 + $0x4a] sm:$0xff]
      %v5223 = vld [vmem:[#allocation2 + $0x52] sm:$0xff]
      %v5224 = vld [vmem:[#allocation2 + $0x62] sm:$0xff]
      %v5225 = vld [vmem:[#allocation2 + $0x6a] sm:$0xff]
      %v5226 = vld [vmem:[#allocation2 + $0x7a] sm:$0xff]
      %v5227 = vld [vmem:[#allocation2 + $0x82] sm:$0xff]
      %v5228 = vld [vmem:[#allocation2 + $0x92] sm:$0xff]
      %v5229 = vld [vmem:[#allocation2 + $0x9a] sm:$0xff]
      %v5230 = vld [vmem:[#allocation2 + $0xaa] sm:$0xff]
      %v5231 = vld [vmem:[#allocation2 + $0xb2] sm:$0xff]
      %v5232 = vld [vmem:[#allocation2 + $0xc2] sm:$0xff]
      %v5233 = vld [vmem:[#allocation2 + $0xca] sm:$0xff]
      %v5234 = vld [vmem:[#allocation2 + $0xda] sm:$0xff]
      %v5235 = vld [vmem:[#allocation2 + $0xe2] sm:$0xff]
      %v5236 = vld [vmem:[#allocation2 + $0xf2] sm:$0xff]
      %v5237 = vld [vmem:[#allocation2 + $0xfa] sm:$0xff]
      %v5238 = vld [vmem:[#allocation2 + $0x10a] sm:$0xff]
      %v5239 = vld [vmem:[#allocation2 + $0x112] sm:$0xff]
      %v5240 = vld [vmem:[#allocation2 + $0x122] sm:$0xff]
      %v5241 = vld [vmem:[#allocation2 + $0x12a] sm:$0xff]
      %v5242 = vld [vmem:[#allocation2 + $0x13a] sm:$0xff]
      %v5243 = vld [vmem:[#allocation2 + $0x142] sm:$0xff]
      %v5244 = vld [vmem:[#allocation2 + $0x152] sm:$0xff]
      %v5245 = vld [vmem:[#allocation2 + $0x15a] sm:$0xff]
      %v5246 = vld [vmem:[#allocation2 + $0x16a] sm:$0xff]
      %v5247 = vld [vmem:[#allocation2 + $0x172] sm:$0xff]
      %v5248 = vpack.c.bf16 %v5216, %v5216
      %v5249 = vpack.c.bf16 %v5217, %v5217
      %v5250 = vpack.c.bf16 %v5218, %v5218
      %v5251 = vpack.c.bf16 %v5219, %v5219
      %v5252 = vpack.c.bf16 %v5220, %v5220
      %v5253 = vpack.c.bf16 %v5221, %v5221
      %v5254 = vpack.c.bf16 %v5222, %v5222
      %v5255 = vpack.c.bf16 %v5223, %v5223
      %v5256 = vpack.c.bf16 %v5224, %v5224
      %v5257 = vpack.c.bf16 %v5225, %v5225
      %v5258 = vpack.c.bf16 %v5226, %v5226
      %v5259 = vpack.c.bf16 %v5227, %v5227
      %v5260 = vpack.c.bf16 %v5228, %v5228
      %v5261 = vpack.c.bf16 %v5229, %v5229
      %v5262 = vpack.c.bf16 %v5230, %v5230
      %v5263 = vpack.c.bf16 %v5231, %v5231
      %v5264 = vpack.c.bf16 %v5232, %v5232
      %v5265 = vpack.c.bf16 %v5233, %v5233
      %v5266 = vpack.c.bf16 %v5234, %v5234
      %v5267 = vpack.c.bf16 %v5235, %v5235
      %v5268 = vpack.c.bf16 %v5236, %v5236
      %v5269 = vpack.c.bf16 %v5237, %v5237
      %v5270 = vpack.c.bf16 %v5238, %v5238
      %v5271 = vpack.c.bf16 %v5239, %v5239
      %v5272 = vpack.c.bf16 %v5240, %v5240
      %v5273 = vpack.c.bf16 %v5241, %v5241
      %v5274 = vpack.c.bf16 %v5242, %v5242
      %v5275 = vpack.c.bf16 %v5243, %v5243
      %v5276 = vpack.c.bf16 %v5244, %v5244
      %v5277 = vpack.c.bf16 %v5245, %v5245
      %v5278 = vpack.c.bf16 %v5246, %v5246
      %v5279 = vpack.c.bf16 %v5247, %v5247
      %v5280 = vld [vmem:[%s2589] sm:$0xff]
      %v5281 = vld [vmem:[%s2589 + $0x8] sm:$0xff]
      %v5282 = vld [vmem:[%s2589 + $0x18] sm:$0xff]
      %v5283 = vld [vmem:[%s2589 + $0x20] sm:$0xff]
      %v5284 = vld [vmem:[%s2589 + $0x30] sm:$0xff]
      %v5285 = vld [vmem:[%s2589 + $0x38] sm:$0xff]
      %v5286 = vld [vmem:[%s2589 + $0x48] sm:$0xff]
      %v5287 = vld [vmem:[%s2589 + $0x50] sm:$0xff]
      %v5288 = vld [vmem:[%s2589 + $0x60] sm:$0xff]
      %v5289 = vld [vmem:[%s2589 + $0x68] sm:$0xff]
      %v5290 = vld [vmem:[%s2589 + $0x78] sm:$0xff]
      %v5291 = vld [vmem:[%s2589 + $0x80] sm:$0xff]
      %v5292 = vld [vmem:[%s2589 + $0x90] sm:$0xff]
      %v5293 = vld [vmem:[%s2589 + $0x98] sm:$0xff]
      %v5294 = vld [vmem:[%s2589 + $0xa8] sm:$0xff]
      %v5295 = vld [vmem:[%s2589 + $0xb0] sm:$0xff]
      %v5296 = vld [vmem:[%s2589 + $0xc0] sm:$0xff]
      %v5297 = vld [vmem:[%s2589 + $0xc8] sm:$0xff]
      %v5298 = vld [vmem:[%s2589 + $0xd8] sm:$0xff]
      %v5299 = vld [vmem:[%s2589 + $0xe0] sm:$0xff]
      %v5300 = vld [vmem:[%s2589 + $0xf0] sm:$0xff]
      %v5301 = vld [vmem:[%s2589 + $0xf8] sm:$0xff]
      %v5302 = vld [vmem:[%s2589 + $0x108] sm:$0xff]
      %v5303 = vld [vmem:[%s2589 + $0x110] sm:$0xff]
      %v5304 = vld [vmem:[%s2589 + $0x120] sm:$0xff]
      %v5305 = vld [vmem:[%s2589 + $0x128] sm:$0xff]
      %v5306 = vld [vmem:[%s2589 + $0x138] sm:$0xff]
      %v5307 = vld [vmem:[%s2589 + $0x140] sm:$0xff]
      %v5308 = vld [vmem:[%s2589 + $0x150] sm:$0xff]
      %v5309 = vld [vmem:[%s2589 + $0x158] sm:$0xff]
      %v5310 = vld [vmem:[%s2589 + $0x168] sm:$0xff]
      %v5311 = vld [vmem:[%s2589 + $0x170] sm:$0xff]
      %v5312 = vpack.c.bf16 %v5280, %v5280
      %v5313 = vpack.c.bf16 %v5281, %v5281
      %v5314 = vpack.c.bf16 %v5282, %v5282
      %v5315 = vpack.c.bf16 %v5283, %v5283
      %v5316 = vpack.c.bf16 %v5284, %v5284
      %v5317 = vpack.c.bf16 %v5285, %v5285
      %v5318 = vpack.c.bf16 %v5286, %v5286
      %v5319 = vpack.c.bf16 %v5287, %v5287
      %v5320 = vpack.c.bf16 %v5288, %v5288
      %v5321 = vpack.c.bf16 %v5289, %v5289
      %v5322 = vpack.c.bf16 %v5290, %v5290
      %v5323 = vpack.c.bf16 %v5291, %v5291
      %v5324 = vpack.c.bf16 %v5292, %v5292
      %v5325 = vpack.c.bf16 %v5293, %v5293
      %v5326 = vpack.c.bf16 %v5294, %v5294
      %v5327 = vpack.c.bf16 %v5295, %v5295
      %v5328 = vpack.c.bf16 %v5296, %v5296
      %v5329 = vpack.c.bf16 %v5297, %v5297
      %v5330 = vpack.c.bf16 %v5298, %v5298
      %v5331 = vpack.c.bf16 %v5299, %v5299
      %v5332 = vpack.c.bf16 %v5300, %v5300
      %v5333 = vpack.c.bf16 %v5301, %v5301
      %v5334 = vpack.c.bf16 %v5302, %v5302
      %v5335 = vpack.c.bf16 %v5303, %v5303
      %v5336 = vpack.c.bf16 %v5304, %v5304
      %v5337 = vpack.c.bf16 %v5305, %v5305
      %v5338 = vpack.c.bf16 %v5306, %v5306
      %v5339 = vpack.c.bf16 %v5307, %v5307
      %v5340 = vpack.c.bf16 %v5308, %v5308
      %v5341 = vpack.c.bf16 %v5309, %v5309
      %v5342 = vpack.c.bf16 %v5310, %v5310
      %v5343 = vpack.c.bf16 %v5311, %v5311
      %v5344 = vld [vmem:[%s2589 + $0x1] sm:$0xff]
      %v5345 = vld [vmem:[%s2589 + $0x9] sm:$0xff]
      %v5346 = vld [vmem:[%s2589 + $0x19] sm:$0xff]
      %v5347 = vld [vmem:[%s2589 + $0x21] sm:$0xff]
      %v5348 = vld [vmem:[%s2589 + $0x31] sm:$0xff]
      %v5349 = vld [vmem:[%s2589 + $0x39] sm:$0xff]
      %v5350 = vld [vmem:[%s2589 + $0x49] sm:$0xff]
      %v5351 = vld [vmem:[%s2589 + $0x51] sm:$0xff]
      %v5352 = vld [vmem:[%s2589 + $0x61] sm:$0xff]
      %v5353 = vld [vmem:[%s2589 + $0x69] sm:$0xff]
      %v5354 = vld [vmem:[%s2589 + $0x79] sm:$0xff]
      %v5355 = vld [vmem:[%s2589 + $0x81] sm:$0xff]
      %v5356 = vld [vmem:[%s2589 + $0x91] sm:$0xff]
      %v5357 = vld [vmem:[%s2589 + $0x99] sm:$0xff]
      %v5358 = vld [vmem:[%s2589 + $0xa9] sm:$0xff]
      %v5359 = vld [vmem:[%s2589 + $0xb1] sm:$0xff]
      %v5360 = vld [vmem:[%s2589 + $0xc1] sm:$0xff]
      %v5361 = vld [vmem:[%s2589 + $0xc9] sm:$0xff]
      %v5362 = vld [vmem:[%s2589 + $0xd9] sm:$0xff]
      %v5363 = vld [vmem:[%s2589 + $0xe1] sm:$0xff]
      %v5364 = vld [vmem:[%s2589 + $0xf1] sm:$0xff]
      %v5365 = vld [vmem:[%s2589 + $0xf9] sm:$0xff]
      %v5366 = vld [vmem:[%s2589 + $0x109] sm:$0xff]
      %v5367 = vld [vmem:[%s2589 + $0x111] sm:$0xff]
      %v5368 = vld [vmem:[%s2589 + $0x121] sm:$0xff]
      %v5369 = vld [vmem:[%s2589 + $0x129] sm:$0xff]
      %v5370 = vld [vmem:[%s2589 + $0x139] sm:$0xff]
      %v5371 = vld [vmem:[%s2589 + $0x141] sm:$0xff]
      %v5372 = vld [vmem:[%s2589 + $0x151] sm:$0xff]
      %v5373 = vld [vmem:[%s2589 + $0x159] sm:$0xff]
      %v5374 = vld [vmem:[%s2589 + $0x169] sm:$0xff]
      %v5375 = vld [vmem:[%s2589 + $0x171] sm:$0xff]
      %v5376 = vpack.c.bf16 %v5344, %v5344
      %v5377 = vpack.c.bf16 %v5345, %v5345
      %v5378 = vpack.c.bf16 %v5346, %v5346
      %v5379 = vpack.c.bf16 %v5347, %v5347
      %v5380 = vpack.c.bf16 %v5348, %v5348
      %v5381 = vpack.c.bf16 %v5349, %v5349
      %v5382 = vpack.c.bf16 %v5350, %v5350
      %v5383 = vpack.c.bf16 %v5351, %v5351
      %v5384 = vpack.c.bf16 %v5352, %v5352
      %v5385 = vpack.c.bf16 %v5353, %v5353
      %v5386 = vpack.c.bf16 %v5354, %v5354
      %v5387 = vpack.c.bf16 %v5355, %v5355
      %v5388 = vpack.c.bf16 %v5356, %v5356
      %v5389 = vpack.c.bf16 %v5357, %v5357
      %v5390 = vpack.c.bf16 %v5358, %v5358
      %v5391 = vpack.c.bf16 %v5359, %v5359
      %v5392 = vpack.c.bf16 %v5360, %v5360
      %v5393 = vpack.c.bf16 %v5361, %v5361
      %v5394 = vpack.c.bf16 %v5362, %v5362
      %v5395 = vpack.c.bf16 %v5363, %v5363
      %v5396 = vpack.c.bf16 %v5364, %v5364
      %v5397 = vpack.c.bf16 %v5365, %v5365
      %v5398 = vpack.c.bf16 %v5366, %v5366
      %v5399 = vpack.c.bf16 %v5367, %v5367
      %v5400 = vpack.c.bf16 %v5368, %v5368
      %v5401 = vpack.c.bf16 %v5369, %v5369
      %v5402 = vpack.c.bf16 %v5370, %v5370
      %v5403 = vpack.c.bf16 %v5371, %v5371
      %v5404 = vpack.c.bf16 %v5372, %v5372
      %v5405 = vpack.c.bf16 %v5373, %v5373
      %v5406 = vpack.c.bf16 %v5374, %v5374
      %v5407 = vpack.c.bf16 %v5375, %v5375
      %v5408 = vld [vmem:[%s2589 + $0x2] sm:$0xff]
      %v5409 = vld [vmem:[%s2589 + $0xa] sm:$0xff]
      %v5410 = vld [vmem:[%s2589 + $0x1a] sm:$0xff]
      %v5411 = vld [vmem:[%s2589 + $0x22] sm:$0xff]
      %v5412 = vld [vmem:[%s2589 + $0x32] sm:$0xff]
      %v5413 = vld [vmem:[%s2589 + $0x3a] sm:$0xff]
      %v5414 = vld [vmem:[%s2589 + $0x4a] sm:$0xff]
      %v5415 = vld [vmem:[%s2589 + $0x52] sm:$0xff]
      %v5416 = vld [vmem:[%s2589 + $0x62] sm:$0xff]
      %v5417 = vld [vmem:[%s2589 + $0x6a] sm:$0xff]
      %v5418 = vld [vmem:[%s2589 + $0x7a] sm:$0xff]
      %v5419 = vld [vmem:[%s2589 + $0x82] sm:$0xff]
      %v5420 = vld [vmem:[%s2589 + $0x92] sm:$0xff]
      %v5421 = vld [vmem:[%s2589 + $0x9a] sm:$0xff]
      %v5422 = vld [vmem:[%s2589 + $0xaa] sm:$0xff]
      %v5423 = vld [vmem:[%s2589 + $0xb2] sm:$0xff]
      %v5424 = vld [vmem:[%s2589 + $0xc2] sm:$0xff]
      %v5425 = vld [vmem:[%s2589 + $0xca] sm:$0xff]
      %v5426 = vld [vmem:[%s2589 + $0xda] sm:$0xff]
      %v5427 = vld [vmem:[%s2589 + $0xe2] sm:$0xff]
      %v5428 = vld [vmem:[%s2589 + $0xf2] sm:$0xff]
      %v5429 = vld [vmem:[%s2589 + $0xfa] sm:$0xff]
      %v5430 = vld [vmem:[%s2589 + $0x10a] sm:$0xff]
      %v5431 = vld [vmem:[%s2589 + $0x112] sm:$0xff]
      %v5432 = vld [vmem:[%s2589 + $0x122] sm:$0xff]
      %v5433 = vld [vmem:[%s2589 + $0x12a] sm:$0xff]
      %v5434 = vld [vmem:[%s2589 + $0x13a] sm:$0xff]
      %v5435 = vld [vmem:[%s2589 + $0x142] sm:$0xff]
      %v5436 = vld [vmem:[%s2589 + $0x152] sm:$0xff]
      %v5437 = vld [vmem:[%s2589 + $0x15a] sm:$0xff]
      %v5438 = vld [vmem:[%s2589 + $0x16a] sm:$0xff]
      %v5439 = vld [vmem:[%s2589 + $0x172] sm:$0xff]
      %v5440 = vpack.c.bf16 %v5408, %v5408
      %v5441 = vpack.c.bf16 %v5409, %v5409
      %v5442 = vpack.c.bf16 %v5410, %v5410
      %v5443 = vpack.c.bf16 %v5411, %v5411
      %v5444 = vpack.c.bf16 %v5412, %v5412
      %v5445 = vpack.c.bf16 %v5413, %v5413
      %v5446 = vpack.c.bf16 %v5414, %v5414
      %v5447 = vpack.c.bf16 %v5415, %v5415
      %v5448 = vpack.c.bf16 %v5416, %v5416
      %v5449 = vpack.c.bf16 %v5417, %v5417
      %v5450 = vpack.c.bf16 %v5418, %v5418
      %v5451 = vpack.c.bf16 %v5419, %v5419
      %v5452 = vpack.c.bf16 %v5420, %v5420
      %v5453 = vpack.c.bf16 %v5421, %v5421
      %v5454 = vpack.c.bf16 %v5422, %v5422
      %v5455 = vpack.c.bf16 %v5423, %v5423
      %v5456 = vpack.c.bf16 %v5424, %v5424
      %v5457 = vpack.c.bf16 %v5425, %v5425
      %v5458 = vpack.c.bf16 %v5426, %v5426
      %v5459 = vpack.c.bf16 %v5427, %v5427
      %v5460 = vpack.c.bf16 %v5428, %v5428
      %v5461 = vpack.c.bf16 %v5429, %v5429
      %v5462 = vpack.c.bf16 %v5430, %v5430
      %v5463 = vpack.c.bf16 %v5431, %v5431
      %v5464 = vpack.c.bf16 %v5432, %v5432
      %v5465 = vpack.c.bf16 %v5433, %v5433
      %v5466 = vpack.c.bf16 %v5434, %v5434
      %v5467 = vpack.c.bf16 %v5435, %v5435
      %v5468 = vpack.c.bf16 %v5436, %v5436
      %v5469 = vpack.c.bf16 %v5437, %v5437
      %v5470 = vpack.c.bf16 %v5438, %v5438
      %v5471 = vpack.c.bf16 %v5439, %v5439
      %v5472 = vld [vmem:[%s3022] sm:$0xff]
      %v5473 = vld [vmem:[%s3022 + $0x8] sm:$0xff]
      %v5474 = vld [vmem:[%s3022 + $0x18] sm:$0xff]
      %v5475 = vld [vmem:[%s3022 + $0x20] sm:$0xff]
      %v5476 = vld [vmem:[%s3022 + $0x30] sm:$0xff]
      %v5477 = vld [vmem:[%s3022 + $0x38] sm:$0xff]
      %v5478 = vld [vmem:[%s3022 + $0x48] sm:$0xff]
      %v5479 = vld [vmem:[%s3022 + $0x50] sm:$0xff]
      %v5480 = vld [vmem:[%s3022 + $0x60] sm:$0xff]
      %v5481 = vld [vmem:[%s3022 + $0x68] sm:$0xff]
      %v5482 = vld [vmem:[%s3022 + $0x78] sm:$0xff]
      %v5483 = vld [vmem:[%s3022 + $0x80] sm:$0xff]
      %v5484 = vld [vmem:[%s3022 + $0x90] sm:$0xff]
      %v5485 = vld [vmem:[%s3022 + $0x98] sm:$0xff]
      %v5486 = vld [vmem:[%s3022 + $0xa8] sm:$0xff]
      %v5487 = vld [vmem:[%s3022 + $0xb0] sm:$0xff]
      %v5488 = vld [vmem:[%s3022 + $0xc0] sm:$0xff]
      %v5489 = vld [vmem:[%s3022 + $0xc8] sm:$0xff]
      %v5490 = vld [vmem:[%s3022 + $0xd8] sm:$0xff]
      %v5491 = vld [vmem:[%s3022 + $0xe0] sm:$0xff]
      %v5492 = vld [vmem:[%s3022 + $0xf0] sm:$0xff]
      %v5493 = vld [vmem:[%s3022 + $0xf8] sm:$0xff]
      %v5494 = vld [vmem:[%s3022 + $0x108] sm:$0xff]
      %v5495 = vld [vmem:[%s3022 + $0x110] sm:$0xff]
      %v5496 = vld [vmem:[%s3022 + $0x120] sm:$0xff]
      %v5497 = vld [vmem:[%s3022 + $0x128] sm:$0xff]
      %v5498 = vld [vmem:[%s3022 + $0x138] sm:$0xff]
      %v5499 = vld [vmem:[%s3022 + $0x140] sm:$0xff]
      %v5500 = vld [vmem:[%s3022 + $0x150] sm:$0xff]
      %v5501 = vld [vmem:[%s3022 + $0x158] sm:$0xff]
      %v5502 = vld [vmem:[%s3022 + $0x168] sm:$0xff]
      %v5503 = vld [vmem:[%s3022 + $0x170] sm:$0xff]
      %v5504 = vpack.c.bf16 %v5472, %v5472
      %v5505 = vpack.c.bf16 %v5473, %v5473
      %v5506 = vpack.c.bf16 %v5474, %v5474
      %v5507 = vpack.c.bf16 %v5475, %v5475
      %v5508 = vpack.c.bf16 %v5476, %v5476
      %v5509 = vpack.c.bf16 %v5477, %v5477
      %v5510 = vpack.c.bf16 %v5478, %v5478
      %v5511 = vpack.c.bf16 %v5479, %v5479
      %v5512 = vpack.c.bf16 %v5480, %v5480
      %v5513 = vpack.c.bf16 %v5481, %v5481
      %v5514 = vpack.c.bf16 %v5482, %v5482
      %v5515 = vpack.c.bf16 %v5483, %v5483
      %v5516 = vpack.c.bf16 %v5484, %v5484
      %v5517 = vpack.c.bf16 %v5485, %v5485
      %v5518 = vpack.c.bf16 %v5486, %v5486
      %v5519 = vpack.c.bf16 %v5487, %v5487
      %v5520 = vpack.c.bf16 %v5488, %v5488
      %v5521 = vpack.c.bf16 %v5489, %v5489
      %v5522 = vpack.c.bf16 %v5490, %v5490
      %v5523 = vpack.c.bf16 %v5491, %v5491
      %v5524 = vpack.c.bf16 %v5492, %v5492
      %v5525 = vpack.c.bf16 %v5493, %v5493
      %v5526 = vpack.c.bf16 %v5494, %v5494
      %v5527 = vpack.c.bf16 %v5495, %v5495
      %v5528 = vpack.c.bf16 %v5496, %v5496
      %v5529 = vpack.c.bf16 %v5497, %v5497
      %v5530 = vpack.c.bf16 %v5498, %v5498
      %v5531 = vpack.c.bf16 %v5499, %v5499
      %v5532 = vpack.c.bf16 %v5500, %v5500
      %v5533 = vpack.c.bf16 %v5501, %v5501
      %v5534 = vpack.c.bf16 %v5502, %v5502
      %v5535 = vpack.c.bf16 %v5503, %v5503
      %v5536 = vld [vmem:[%s3022 + $0x1] sm:$0xff]
      %v5537 = vld [vmem:[%s3022 + $0x9] sm:$0xff]
      %v5538 = vld [vmem:[%s3022 + $0x19] sm:$0xff]
      %v5539 = vld [vmem:[%s3022 + $0x21] sm:$0xff]
      %v5540 = vld [vmem:[%s3022 + $0x31] sm:$0xff]
      %v5541 = vld [vmem:[%s3022 + $0x39] sm:$0xff]
      %v5542 = vld [vmem:[%s3022 + $0x49] sm:$0xff]
      %v5543 = vld [vmem:[%s3022 + $0x51] sm:$0xff]
      %v5544 = vld [vmem:[%s3022 + $0x61] sm:$0xff]
      %v5545 = vld [vmem:[%s3022 + $0x69] sm:$0xff]
      %v5546 = vld [vmem:[%s3022 + $0x79] sm:$0xff]
      %v5547 = vld [vmem:[%s3022 + $0x81] sm:$0xff]
      %v5548 = vld [vmem:[%s3022 + $0x91] sm:$0xff]
      %v5549 = vld [vmem:[%s3022 + $0x99] sm:$0xff]
      %v5550 = vld [vmem:[%s3022 + $0xa9] sm:$0xff]
      %v5551 = vld [vmem:[%s3022 + $0xb1] sm:$0xff]
      %v5552 = vld [vmem:[%s3022 + $0xc1] sm:$0xff]
      %v5553 = vld [vmem:[%s3022 + $0xc9] sm:$0xff]
      %v5554 = vld [vmem:[%s3022 + $0xd9] sm:$0xff]
      %v5555 = vld [vmem:[%s3022 + $0xe1] sm:$0xff]
      %v5556 = vld [vmem:[%s3022 + $0xf1] sm:$0xff]
      %v5557 = vld [vmem:[%s3022 + $0xf9] sm:$0xff]
      %v5558 = vld [vmem:[%s3022 + $0x109] sm:$0xff]
      %v5559 = vld [vmem:[%s3022 + $0x111] sm:$0xff]
      %v5560 = vld [vmem:[%s3022 + $0x121] sm:$0xff]
      %v5561 = vld [vmem:[%s3022 + $0x129] sm:$0xff]
      %v5562 = vld [vmem:[%s3022 + $0x139] sm:$0xff]
      %v5563 = vld [vmem:[%s3022 + $0x141] sm:$0xff]
      %v5564 = vld [vmem:[%s3022 + $0x151] sm:$0xff]
      %v5565 = vld [vmem:[%s3022 + $0x159] sm:$0xff]
      %v5566 = vld [vmem:[%s3022 + $0x169] sm:$0xff]
      %v5567 = vld [vmem:[%s3022 + $0x171] sm:$0xff]
      %v5568 = vpack.c.bf16 %v5536, %v5536
      %v5569 = vpack.c.bf16 %v5537, %v5537
      %v5570 = vpack.c.bf16 %v5538, %v5538
      %v5571 = vpack.c.bf16 %v5539, %v5539
      %v5572 = vpack.c.bf16 %v5540, %v5540
      %v5573 = vpack.c.bf16 %v5541, %v5541
      %v5574 = vpack.c.bf16 %v5542, %v5542
      %v5575 = vpack.c.bf16 %v5543, %v5543
      %v5576 = vpack.c.bf16 %v5544, %v5544
      %v5577 = vpack.c.bf16 %v5545, %v5545
      %v5578 = vpack.c.bf16 %v5546, %v5546
      %v5579 = vpack.c.bf16 %v5547, %v5547
      %v5580 = vpack.c.bf16 %v5548, %v5548
      %v5581 = vpack.c.bf16 %v5549, %v5549
      %v5582 = vpack.c.bf16 %v5550, %v5550
      %v5583 = vpack.c.bf16 %v5551, %v5551
      %v5584 = vpack.c.bf16 %v5552, %v5552
      %v5585 = vpack.c.bf16 %v5553, %v5553
      %v5586 = vpack.c.bf16 %v5554, %v5554
      %v5587 = vpack.c.bf16 %v5555, %v5555
      %v5588 = vpack.c.bf16 %v5556, %v5556
      %v5589 = vpack.c.bf16 %v5557, %v5557
      %v5590 = vpack.c.bf16 %v5558, %v5558
      %v5591 = vpack.c.bf16 %v5559, %v5559
      %v5592 = vpack.c.bf16 %v5560, %v5560
      %v5593 = vpack.c.bf16 %v5561, %v5561
      %v5594 = vpack.c.bf16 %v5562, %v5562
      %v5595 = vpack.c.bf16 %v5563, %v5563
      %v5596 = vpack.c.bf16 %v5564, %v5564
      %v5597 = vpack.c.bf16 %v5565, %v5565
      %v5598 = vpack.c.bf16 %v5566, %v5566
      %v5599 = vpack.c.bf16 %v5567, %v5567
      %v5600 = vld [vmem:[%s3022 + $0x2] sm:$0xff]
      %v5601 = vld [vmem:[%s3022 + $0xa] sm:$0xff]
      %v5602 = vld [vmem:[%s3022 + $0x1a] sm:$0xff]
      %v5603 = vld [vmem:[%s3022 + $0x22] sm:$0xff]
      %v5604 = vld [vmem:[%s3022 + $0x32] sm:$0xff]
      %v5605 = vld [vmem:[%s3022 + $0x3a] sm:$0xff]
      %v5606 = vld [vmem:[%s3022 + $0x4a] sm:$0xff]
      %v5607 = vld [vmem:[%s3022 + $0x52] sm:$0xff]
      %v5608 = vld [vmem:[%s3022 + $0x62] sm:$0xff]
      %v5609 = vld [vmem:[%s3022 + $0x6a] sm:$0xff]
      %v5610 = vld [vmem:[%s3022 + $0x7a] sm:$0xff]
      %v5611 = vld [vmem:[%s3022 + $0x82] sm:$0xff]
      %v5612 = vld [vmem:[%s3022 + $0x92] sm:$0xff]
      %v5613 = vld [vmem:[%s3022 + $0x9a] sm:$0xff]
      %v5614 = vld [vmem:[%s3022 + $0xaa] sm:$0xff]
      %v5615 = vld [vmem:[%s3022 + $0xb2] sm:$0xff]
      %v5616 = vld [vmem:[%s3022 + $0xc2] sm:$0xff]
      %v5617 = vld [vmem:[%s3022 + $0xca] sm:$0xff]
      %v5618 = vld [vmem:[%s3022 + $0xda] sm:$0xff]
      %v5619 = vld [vmem:[%s3022 + $0xe2] sm:$0xff]
      %v5620 = vld [vmem:[%s3022 + $0xf2] sm:$0xff]
      %v5621 = vld [vmem:[%s3022 + $0xfa] sm:$0xff]
      %v5622 = vld [vmem:[%s3022 + $0x10a] sm:$0xff]
      %v5623 = vld [vmem:[%s3022 + $0x112] sm:$0xff]
      %v5624 = vld [vmem:[%s3022 + $0x122] sm:$0xff]
      %v5625 = vld [vmem:[%s3022 + $0x12a] sm:$0xff]
      %v5626 = vld [vmem:[%s3022 + $0x13a] sm:$0xff]
      %v5627 = vld [vmem:[%s3022 + $0x142] sm:$0xff]
      %v5628 = vld [vmem:[%s3022 + $0x152] sm:$0xff]
      %v5629 = vld [vmem:[%s3022 + $0x15a] sm:$0xff]
      %v5630 = vld [vmem:[%s3022 + $0x16a] sm:$0xff]
      %v5631 = vld [vmem:[%s3022 + $0x172] sm:$0xff]
      %v5632 = vpack.c.bf16 %v5600, %v5600
      %v5633 = vpack.c.bf16 %v5601, %v5601
      %v5634 = vpack.c.bf16 %v5602, %v5602
      %v5635 = vpack.c.bf16 %v5603, %v5603
      %v5636 = vpack.c.bf16 %v5604, %v5604
      %v5637 = vpack.c.bf16 %v5605, %v5605
      %v5638 = vpack.c.bf16 %v5606, %v5606
      %v5639 = vpack.c.bf16 %v5607, %v5607
      %v5640 = vpack.c.bf16 %v5608, %v5608
      %v5641 = vpack.c.bf16 %v5609, %v5609
      %v5642 = vpack.c.bf16 %v5610, %v5610
      %v5643 = vpack.c.bf16 %v5611, %v5611
      %v5644 = vpack.c.bf16 %v5612, %v5612
      %v5645 = vpack.c.bf16 %v5613, %v5613
      %v5646 = vpack.c.bf16 %v5614, %v5614
      %v5647 = vpack.c.bf16 %v5615, %v5615
      %v5648 = vpack.c.bf16 %v5616, %v5616
      %v5649 = vpack.c.bf16 %v5617, %v5617
      %v5650 = vpack.c.bf16 %v5618, %v5618
      %v5651 = vpack.c.bf16 %v5619, %v5619
      %v5652 = vpack.c.bf16 %v5620, %v5620
      %v5653 = vpack.c.bf16 %v5621, %v5621
      %v5654 = vpack.c.bf16 %v5622, %v5622
      %v5655 = vpack.c.bf16 %v5623, %v5623
      %v5656 = vpack.c.bf16 %v5624, %v5624
      %v5657 = vpack.c.bf16 %v5625, %v5625
      %v5658 = vpack.c.bf16 %v5626, %v5626
      %v5659 = vpack.c.bf16 %v5627, %v5627
      %v5660 = vpack.c.bf16 %v5628, %v5628
      %v5661 = vpack.c.bf16 %v5629, %v5629
      %v5662 = vpack.c.bf16 %v5630, %v5630
      %v5663 = vpack.c.bf16 %v5631, %v5631
      %v5696 = vunpack.c.l.b16 %v5120
      %v5697 = vunpack.c.l.b16 %v5121
      %v5698 = vunpack.c.l.b16 %v5122
      %v5699 = vunpack.c.l.b16 %v5123
      %v5700 = vunpack.c.l.b16 %v5124
      %v5701 = vunpack.c.l.b16 %v5125
      %v5702 = vunpack.c.l.b16 %v5126
      %v5703 = vunpack.c.l.b16 %v5127
      %v5704 = vunpack.c.l.b16 %v5128
      %v5705 = vunpack.c.l.b16 %v5129
      %v5706 = vunpack.c.l.b16 %v5130
      %v5707 = vunpack.c.l.b16 %v5131
      %v5708 = vunpack.c.l.b16 %v5132
      %v5709 = vunpack.c.l.b16 %v5133
      %v5710 = vunpack.c.l.b16 %v5134
      %v5711 = vunpack.c.l.b16 %v5135
      %v5712 = vunpack.c.l.b16 %v5136
      %v5713 = vunpack.c.l.b16 %v5137
      %v5714 = vunpack.c.l.b16 %v5138
      %v5715 = vunpack.c.l.b16 %v5139
      %v5716 = vunpack.c.l.b16 %v5140
      %v5717 = vunpack.c.l.b16 %v5141
      %v5718 = vunpack.c.l.b16 %v5142
      %v5719 = vunpack.c.l.b16 %v5143
      %v5720 = vunpack.c.l.b16 %v5144
      %v5721 = vunpack.c.l.b16 %v5145
      %v5722 = vunpack.c.l.b16 %v5146
      %v5723 = vunpack.c.l.b16 %v5147
      %v5724 = vunpack.c.l.b16 %v5148
      %v5725 = vunpack.c.l.b16 %v5149
      %v5726 = vunpack.c.l.b16 %v5150
      %v5727 = vunpack.c.l.b16 %v5151
      %v5728 = vpack.c.b16 %v5697, %v5696
      %v5729 = vpack.c.b16 %v5699, %v5698
      %v5730 = vpack.c.b16 %v5701, %v5700
      %v5731 = vpack.c.b16 %v5703, %v5702
      %v5732 = vpack.c.b16 %v5705, %v5704
      %v5733 = vpack.c.b16 %v5707, %v5706
      %v5734 = vpack.c.b16 %v5709, %v5708
      %v5735 = vpack.c.b16 %v5711, %v5710
      %v5736 = vpack.c.b16 %v5713, %v5712
      %v5737 = vpack.c.b16 %v5715, %v5714
      %v5738 = vpack.c.b16 %v5717, %v5716
      %v5739 = vpack.c.b16 %v5719, %v5718
      %v5740 = vpack.c.b16 %v5721, %v5720
      %v5741 = vpack.c.b16 %v5723, %v5722
      %v5742 = vpack.c.b16 %v5725, %v5724
      %v5743 = vpack.c.b16 %v5727, %v5726
      %v5776 = vunpack.c.l.b16 %v5184
      %v5777 = vunpack.c.l.b16 %v5185
      %v5778 = vunpack.c.l.b16 %v5186
      %v5779 = vunpack.c.l.b16 %v5187
      %v5780 = vunpack.c.l.b16 %v5188
      %v5781 = vunpack.c.l.b16 %v5189
      %v5782 = vunpack.c.l.b16 %v5190
      %v5783 = vunpack.c.l.b16 %v5191
      %v5784 = vunpack.c.l.b16 %v5192
      %v5785 = vunpack.c.l.b16 %v5193
      %v5786 = vunpack.c.l.b16 %v5194
      %v5787 = vunpack.c.l.b16 %v5195
      %v5788 = vunpack.c.l.b16 %v5196
      %v5789 = vunpack.c.l.b16 %v5197
      %v5790 = vunpack.c.l.b16 %v5198
      %v5791 = vunpack.c.l.b16 %v5199
      %v5792 = vunpack.c.l.b16 %v5200
      %v5793 = vunpack.c.l.b16 %v5201
      %v5794 = vunpack.c.l.b16 %v5202
      %v5795 = vunpack.c.l.b16 %v5203
      %v5796 = vunpack.c.l.b16 %v5204
      %v5797 = vunpack.c.l.b16 %v5205
      %v5798 = vunpack.c.l.b16 %v5206
      %v5799 = vunpack.c.l.b16 %v5207
      %v5800 = vunpack.c.l.b16 %v5208
      %v5801 = vunpack.c.l.b16 %v5209
      %v5802 = vunpack.c.l.b16 %v5210
      %v5803 = vunpack.c.l.b16 %v5211
      %v5804 = vunpack.c.l.b16 %v5212
      %v5805 = vunpack.c.l.b16 %v5213
      %v5806 = vunpack.c.l.b16 %v5214
      %v5807 = vunpack.c.l.b16 %v5215
      %v5808 = vpack.c.b16 %v5777, %v5776
      %v5809 = vpack.c.b16 %v5779, %v5778
      %v5810 = vpack.c.b16 %v5781, %v5780
      %v5811 = vpack.c.b16 %v5783, %v5782
      %v5812 = vpack.c.b16 %v5785, %v5784
      %v5813 = vpack.c.b16 %v5787, %v5786
      %v5814 = vpack.c.b16 %v5789, %v5788
      %v5815 = vpack.c.b16 %v5791, %v5790
      %v5816 = vpack.c.b16 %v5793, %v5792
      %v5817 = vpack.c.b16 %v5795, %v5794
      %v5818 = vpack.c.b16 %v5797, %v5796
      %v5819 = vpack.c.b16 %v5799, %v5798
      %v5820 = vpack.c.b16 %v5801, %v5800
      %v5821 = vpack.c.b16 %v5803, %v5802
      %v5822 = vpack.c.b16 %v5805, %v5804
      %v5823 = vpack.c.b16 %v5807, %v5806
      %5824 = vrot.lane.b32.xlu0 %v5808, 32
      %v5825 = vpop.permute.xlu0 %5824
      %5826 = vrot.lane.b32.xlu0 %v5809, 32
      %v5827 = vpop.permute.xlu0 %5826
      %5828 = vrot.lane.b32.xlu0 %v5810, 32
      %v5829 = vpop.permute.xlu0 %5828
      %5830 = vrot.lane.b32.xlu0 %v5811, 32
      %v5831 = vpop.permute.xlu0 %5830
      %5832 = vrot.lane.b32.xlu0 %v5812, 32
      %v5833 = vpop.permute.xlu0 %5832
      %5834 = vrot.lane.b32.xlu0 %v5813, 32
      %v5835 = vpop.permute.xlu0 %5834
      %5836 = vrot.lane.b32.xlu0 %v5814, 32
      %v5837 = vpop.permute.xlu0 %5836
      %5838 = vrot.lane.b32.xlu0 %v5815, 32
      %v5839 = vpop.permute.xlu0 %5838
      %5840 = vrot.lane.b32.xlu0 %v5816, 32
      %v5841 = vpop.permute.xlu0 %5840
      %5842 = vrot.lane.b32.xlu0 %v5817, 32
      %v5843 = vpop.permute.xlu0 %5842
      %5844 = vrot.lane.b32.xlu0 %v5818, 32
      %v5845 = vpop.permute.xlu0 %5844
      %5846 = vrot.lane.b32.xlu0 %v5819, 32
      %v5847 = vpop.permute.xlu0 %5846
      %5848 = vrot.lane.b32.xlu0 %v5820, 32
      %v5849 = vpop.permute.xlu0 %5848
      %5850 = vrot.lane.b32.xlu0 %v5821, 32
      %v5851 = vpop.permute.xlu0 %5850
      %5852 = vrot.lane.b32.xlu0 %v5822, 32
      %v5853 = vpop.permute.xlu0 %5852
      %5854 = vrot.lane.b32.xlu0 %v5823, 32
      %v5855 = vpop.permute.xlu0 %5854
      %v5888 = vunpack.c.l.b16 %v5248
      %v5889 = vunpack.c.l.b16 %v5249
      %v5890 = vunpack.c.l.b16 %v5250
      %v5891 = vunpack.c.l.b16 %v5251
      %v5892 = vunpack.c.l.b16 %v5252
      %v5893 = vunpack.c.l.b16 %v5253
      %v5894 = vunpack.c.l.b16 %v5254
      %v5895 = vunpack.c.l.b16 %v5255
      %v5896 = vunpack.c.l.b16 %v5256
      %v5897 = vunpack.c.l.b16 %v5257
      %v5898 = vunpack.c.l.b16 %v5258
      %v5899 = vunpack.c.l.b16 %v5259
      %v5900 = vunpack.c.l.b16 %v5260
      %v5901 = vunpack.c.l.b16 %v5261
      %v5902 = vunpack.c.l.b16 %v5262
      %v5903 = vunpack.c.l.b16 %v5263
      %v5904 = vunpack.c.l.b16 %v5264
      %v5905 = vunpack.c.l.b16 %v5265
      %v5906 = vunpack.c.l.b16 %v5266
      %v5907 = vunpack.c.l.b16 %v5267
      %v5908 = vunpack.c.l.b16 %v5268
      %v5909 = vunpack.c.l.b16 %v5269
      %v5910 = vunpack.c.l.b16 %v5270
      %v5911 = vunpack.c.l.b16 %v5271
      %v5912 = vunpack.c.l.b16 %v5272
      %v5913 = vunpack.c.l.b16 %v5273
      %v5914 = vunpack.c.l.b16 %v5274
      %v5915 = vunpack.c.l.b16 %v5275
      %v5916 = vunpack.c.l.b16 %v5276
      %v5917 = vunpack.c.l.b16 %v5277
      %v5918 = vunpack.c.l.b16 %v5278
      %v5919 = vunpack.c.l.b16 %v5279
      %v5920 = vpack.c.b16 %v5889, %v5888
      %v5921 = vpack.c.b16 %v5891, %v5890
      %v5922 = vpack.c.b16 %v5893, %v5892
      %v5923 = vpack.c.b16 %v5895, %v5894
      %v5924 = vpack.c.b16 %v5897, %v5896
      %v5925 = vpack.c.b16 %v5899, %v5898
      %v5926 = vpack.c.b16 %v5901, %v5900
      %v5927 = vpack.c.b16 %v5903, %v5902
      %v5928 = vpack.c.b16 %v5905, %v5904
      %v5929 = vpack.c.b16 %v5907, %v5906
      %v5930 = vpack.c.b16 %v5909, %v5908
      %v5931 = vpack.c.b16 %v5911, %v5910
      %v5932 = vpack.c.b16 %v5913, %v5912
      %v5933 = vpack.c.b16 %v5915, %v5914
      %v5934 = vpack.c.b16 %v5917, %v5916
      %v5935 = vpack.c.b16 %v5919, %v5918
      %5936 = vrot.lane.b32.xlu0 %v5920, 64
      %v5937 = vpop.permute.xlu0 %5936
      %5938 = vrot.lane.b32.xlu0 %v5921, 64
      %v5939 = vpop.permute.xlu0 %5938
      %5940 = vrot.lane.b32.xlu0 %v5922, 64
      %v5941 = vpop.permute.xlu0 %5940
      %5942 = vrot.lane.b32.xlu0 %v5923, 64
      %v5943 = vpop.permute.xlu0 %5942
      %5944 = vrot.lane.b32.xlu0 %v5924, 64
      %v5945 = vpop.permute.xlu0 %5944
      %5946 = vrot.lane.b32.xlu0 %v5925, 64
      %v5947 = vpop.permute.xlu0 %5946
      %5948 = vrot.lane.b32.xlu0 %v5926, 64
      %v5949 = vpop.permute.xlu0 %5948
      %5950 = vrot.lane.b32.xlu0 %v5927, 64
      %v5951 = vpop.permute.xlu0 %5950
      %5952 = vrot.lane.b32.xlu0 %v5928, 64
      %v5953 = vpop.permute.xlu0 %5952
      %5954 = vrot.lane.b32.xlu0 %v5929, 64
      %v5955 = vpop.permute.xlu0 %5954
      %5956 = vrot.lane.b32.xlu0 %v5930, 64
      %v5957 = vpop.permute.xlu0 %5956
      %5958 = vrot.lane.b32.xlu0 %v5931, 64
      %v5959 = vpop.permute.xlu0 %5958
      %5960 = vrot.lane.b32.xlu0 %v5932, 64
      %v5961 = vpop.permute.xlu0 %5960
      %5962 = vrot.lane.b32.xlu0 %v5933, 64
      %v5963 = vpop.permute.xlu0 %5962
      %5964 = vrot.lane.b32.xlu0 %v5934, 64
      %v5965 = vpop.permute.xlu0 %5964
      %5966 = vrot.lane.b32.xlu0 %v5935, 64
      %v5967 = vpop.permute.xlu0 %5966
      %v6000 = vunpack.c.l.b16 %v5312
      %v6001 = vunpack.c.l.b16 %v5313
      %v6002 = vunpack.c.l.b16 %v5314
      %v6003 = vunpack.c.l.b16 %v5315
      %v6004 = vunpack.c.l.b16 %v5316
      %v6005 = vunpack.c.l.b16 %v5317
      %v6006 = vunpack.c.l.b16 %v5318
      %v6007 = vunpack.c.l.b16 %v5319
      %v6008 = vunpack.c.l.b16 %v5320
      %v6009 = vunpack.c.l.b16 %v5321
      %v6010 = vunpack.c.l.b16 %v5322
      %v6011 = vunpack.c.l.b16 %v5323
      %v6012 = vunpack.c.l.b16 %v5324
      %v6013 = vunpack.c.l.b16 %v5325
      %v6014 = vunpack.c.l.b16 %v5326
      %v6015 = vunpack.c.l.b16 %v5327
      %v6016 = vunpack.c.l.b16 %v5328
      %v6017 = vunpack.c.l.b16 %v5329
      %v6018 = vunpack.c.l.b16 %v5330
      %v6019 = vunpack.c.l.b16 %v5331
      %v6020 = vunpack.c.l.b16 %v5332
      %v6021 = vunpack.c.l.b16 %v5333
      %v6022 = vunpack.c.l.b16 %v5334
      %v6023 = vunpack.c.l.b16 %v5335
      %v6024 = vunpack.c.l.b16 %v5336
      %v6025 = vunpack.c.l.b16 %v5337
      %v6026 = vunpack.c.l.b16 %v5338
      %v6027 = vunpack.c.l.b16 %v5339
      %v6028 = vunpack.c.l.b16 %v5340
      %v6029 = vunpack.c.l.b16 %v5341
      %v6030 = vunpack.c.l.b16 %v5342
      %v6031 = vunpack.c.l.b16 %v5343
      %v6032 = vpack.c.b16 %v6001, %v6000
      %v6033 = vpack.c.b16 %v6003, %v6002
      %v6034 = vpack.c.b16 %v6005, %v6004
      %v6035 = vpack.c.b16 %v6007, %v6006
      %v6036 = vpack.c.b16 %v6009, %v6008
      %v6037 = vpack.c.b16 %v6011, %v6010
      %v6038 = vpack.c.b16 %v6013, %v6012
      %v6039 = vpack.c.b16 %v6015, %v6014
      %v6040 = vpack.c.b16 %v6017, %v6016
      %v6041 = vpack.c.b16 %v6019, %v6018
      %v6042 = vpack.c.b16 %v6021, %v6020
      %v6043 = vpack.c.b16 %v6023, %v6022
      %v6044 = vpack.c.b16 %v6025, %v6024
      %v6045 = vpack.c.b16 %v6027, %v6026
      %v6046 = vpack.c.b16 %v6029, %v6028
      %v6047 = vpack.c.b16 %v6031, %v6030
      %6048 = vrot.lane.b32.xlu0 %v6032, 96
      %v6049 = vpop.permute.xlu0 %6048
      %6050 = vrot.lane.b32.xlu0 %v6033, 96
      %v6051 = vpop.permute.xlu0 %6050
      %6052 = vrot.lane.b32.xlu0 %v6034, 96
      %v6053 = vpop.permute.xlu0 %6052
      %6054 = vrot.lane.b32.xlu0 %v6035, 96
      %v6055 = vpop.permute.xlu0 %6054
      %6056 = vrot.lane.b32.xlu0 %v6036, 96
      %v6057 = vpop.permute.xlu0 %6056
      %6058 = vrot.lane.b32.xlu0 %v6037, 96
      %v6059 = vpop.permute.xlu0 %6058
      %6060 = vrot.lane.b32.xlu0 %v6038, 96
      %v6061 = vpop.permute.xlu0 %6060
      %6062 = vrot.lane.b32.xlu0 %v6039, 96
      %v6063 = vpop.permute.xlu0 %6062
      %6064 = vrot.lane.b32.xlu0 %v6040, 96
      %v6065 = vpop.permute.xlu0 %6064
      %6066 = vrot.lane.b32.xlu0 %v6041, 96
      %v6067 = vpop.permute.xlu0 %6066
      %6068 = vrot.lane.b32.xlu0 %v6042, 96
      %v6069 = vpop.permute.xlu0 %6068
      %6070 = vrot.lane.b32.xlu0 %v6043, 96
      %v6071 = vpop.permute.xlu0 %6070
      %6072 = vrot.lane.b32.xlu0 %v6044, 96
      %v6073 = vpop.permute.xlu0 %6072
      %6074 = vrot.lane.b32.xlu0 %v6045, 96
      %v6075 = vpop.permute.xlu0 %6074
      %6076 = vrot.lane.b32.xlu0 %v6046, 96
      %v6077 = vpop.permute.xlu0 %6076
      %6078 = vrot.lane.b32.xlu0 %v6047, 96
      %v6079 = vpop.permute.xlu0 %6078
      %v6112 = vunpack.c.l.b16 %v5376
      %v6113 = vunpack.c.l.b16 %v5377
      %v6114 = vunpack.c.l.b16 %v5378
      %v6115 = vunpack.c.l.b16 %v5379
      %v6116 = vunpack.c.l.b16 %v5380
      %v6117 = vunpack.c.l.b16 %v5381
      %v6118 = vunpack.c.l.b16 %v5382
      %v6119 = vunpack.c.l.b16 %v5383
      %v6120 = vunpack.c.l.b16 %v5384
      %v6121 = vunpack.c.l.b16 %v5385
      %v6122 = vunpack.c.l.b16 %v5386
      %v6123 = vunpack.c.l.b16 %v5387
      %v6124 = vunpack.c.l.b16 %v5388
      %v6125 = vunpack.c.l.b16 %v5389
      %v6126 = vunpack.c.l.b16 %v5390
      %v6127 = vunpack.c.l.b16 %v5391
      %v6128 = vunpack.c.l.b16 %v5392
      %v6129 = vunpack.c.l.b16 %v5393
      %v6130 = vunpack.c.l.b16 %v5394
      %v6131 = vunpack.c.l.b16 %v5395
      %v6132 = vunpack.c.l.b16 %v5396
      %v6133 = vunpack.c.l.b16 %v5397
      %v6134 = vunpack.c.l.b16 %v5398
      %v6135 = vunpack.c.l.b16 %v5399
      %v6136 = vunpack.c.l.b16 %v5400
      %v6137 = vunpack.c.l.b16 %v5401
      %v6138 = vunpack.c.l.b16 %v5402
      %v6139 = vunpack.c.l.b16 %v5403
      %v6140 = vunpack.c.l.b16 %v5404
      %v6141 = vunpack.c.l.b16 %v5405
      %v6142 = vunpack.c.l.b16 %v5406
      %v6143 = vunpack.c.l.b16 %v5407
      %v6144 = vpack.c.b16 %v6113, %v6112
      %v6145 = vpack.c.b16 %v6115, %v6114
      %v6146 = vpack.c.b16 %v6117, %v6116
      %v6147 = vpack.c.b16 %v6119, %v6118
      %v6148 = vpack.c.b16 %v6121, %v6120
      %v6149 = vpack.c.b16 %v6123, %v6122
      %v6150 = vpack.c.b16 %v6125, %v6124
      %v6151 = vpack.c.b16 %v6127, %v6126
      %v6152 = vpack.c.b16 %v6129, %v6128
      %v6153 = vpack.c.b16 %v6131, %v6130
      %v6154 = vpack.c.b16 %v6133, %v6132
      %v6155 = vpack.c.b16 %v6135, %v6134
      %v6156 = vpack.c.b16 %v6137, %v6136
      %v6157 = vpack.c.b16 %v6139, %v6138
      %v6158 = vpack.c.b16 %v6141, %v6140
      %v6159 = vpack.c.b16 %v6143, %v6142
      %v6192 = vunpack.c.l.b16 %v5440
      %v6193 = vunpack.c.l.b16 %v5441
      %v6194 = vunpack.c.l.b16 %v5442
      %v6195 = vunpack.c.l.b16 %v5443
      %v6196 = vunpack.c.l.b16 %v5444
      %v6197 = vunpack.c.l.b16 %v5445
      %v6198 = vunpack.c.l.b16 %v5446
      %v6199 = vunpack.c.l.b16 %v5447
      %v6200 = vunpack.c.l.b16 %v5448
      %v6201 = vunpack.c.l.b16 %v5449
      %v6202 = vunpack.c.l.b16 %v5450
      %v6203 = vunpack.c.l.b16 %v5451
      %v6204 = vunpack.c.l.b16 %v5452
      %v6205 = vunpack.c.l.b16 %v5453
      %v6206 = vunpack.c.l.b16 %v5454
      %v6207 = vunpack.c.l.b16 %v5455
      %v6208 = vunpack.c.l.b16 %v5456
      %v6209 = vunpack.c.l.b16 %v5457
      %v6210 = vunpack.c.l.b16 %v5458
      %v6211 = vunpack.c.l.b16 %v5459
      %v6212 = vunpack.c.l.b16 %v5460
      %v6213 = vunpack.c.l.b16 %v5461
      %v6214 = vunpack.c.l.b16 %v5462
      %v6215 = vunpack.c.l.b16 %v5463
      %v6216 = vunpack.c.l.b16 %v5464
      %v6217 = vunpack.c.l.b16 %v5465
      %v6218 = vunpack.c.l.b16 %v5466
      %v6219 = vunpack.c.l.b16 %v5467
      %v6220 = vunpack.c.l.b16 %v5468
      %v6221 = vunpack.c.l.b16 %v5469
      %v6222 = vunpack.c.l.b16 %v5470
      %v6223 = vunpack.c.l.b16 %v5471
      %v6224 = vpack.c.b16 %v6193, %v6192
      %v6225 = vpack.c.b16 %v6195, %v6194
      %v6226 = vpack.c.b16 %v6197, %v6196
      %v6227 = vpack.c.b16 %v6199, %v6198
      %v6228 = vpack.c.b16 %v6201, %v6200
      %v6229 = vpack.c.b16 %v6203, %v6202
      %v6230 = vpack.c.b16 %v6205, %v6204
      %v6231 = vpack.c.b16 %v6207, %v6206
      %v6232 = vpack.c.b16 %v6209, %v6208
      %v6233 = vpack.c.b16 %v6211, %v6210
      %v6234 = vpack.c.b16 %v6213, %v6212
      %v6235 = vpack.c.b16 %v6215, %v6214
      %v6236 = vpack.c.b16 %v6217, %v6216
      %v6237 = vpack.c.b16 %v6219, %v6218
      %v6238 = vpack.c.b16 %v6221, %v6220
      %v6239 = vpack.c.b16 %v6223, %v6222
      %6240 = vrot.lane.b32.xlu0 %v6224, 32
      %v6241 = vpop.permute.xlu0 %6240
      %6242 = vrot.lane.b32.xlu0 %v6225, 32
      %v6243 = vpop.permute.xlu0 %6242
      %6244 = vrot.lane.b32.xlu0 %v6226, 32
      %v6245 = vpop.permute.xlu0 %6244
      %6246 = vrot.lane.b32.xlu0 %v6227, 32
      %v6247 = vpop.permute.xlu0 %6246
      %6248 = vrot.lane.b32.xlu0 %v6228, 32
      %v6249 = vpop.permute.xlu0 %6248
      %6250 = vrot.lane.b32.xlu0 %v6229, 32
      %v6251 = vpop.permute.xlu0 %6250
      %6252 = vrot.lane.b32.xlu0 %v6230, 32
      %v6253 = vpop.permute.xlu0 %6252
      %6254 = vrot.lane.b32.xlu0 %v6231, 32
      %v6255 = vpop.permute.xlu0 %6254
      %6256 = vrot.lane.b32.xlu0 %v6232, 32
      %v6257 = vpop.permute.xlu0 %6256
      %6258 = vrot.lane.b32.xlu0 %v6233, 32
      %v6259 = vpop.permute.xlu0 %6258
      %6260 = vrot.lane.b32.xlu0 %v6234, 32
      %v6261 = vpop.permute.xlu0 %6260
      %6262 = vrot.lane.b32.xlu0 %v6235, 32
      %v6263 = vpop.permute.xlu0 %6262
      %6264 = vrot.lane.b32.xlu0 %v6236, 32
      %v6265 = vpop.permute.xlu0 %6264
      %6266 = vrot.lane.b32.xlu0 %v6237, 32
      %v6267 = vpop.permute.xlu0 %6266
      %6268 = vrot.lane.b32.xlu0 %v6238, 32
      %v6269 = vpop.permute.xlu0 %6268
      %6270 = vrot.lane.b32.xlu0 %v6239, 32
      %v6271 = vpop.permute.xlu0 %6270
      %v6304 = vunpack.c.l.b16 %v5504
      %v6305 = vunpack.c.l.b16 %v5505
      %v6306 = vunpack.c.l.b16 %v5506
      %v6307 = vunpack.c.l.b16 %v5507
      %v6308 = vunpack.c.l.b16 %v5508
      %v6309 = vunpack.c.l.b16 %v5509
      %v6310 = vunpack.c.l.b16 %v5510
      %v6311 = vunpack.c.l.b16 %v5511
      %v6312 = vunpack.c.l.b16 %v5512
      %v6313 = vunpack.c.l.b16 %v5513
      %v6314 = vunpack.c.l.b16 %v5514
      %v6315 = vunpack.c.l.b16 %v5515
      %v6316 = vunpack.c.l.b16 %v5516
      %v6317 = vunpack.c.l.b16 %v5517
      %v6318 = vunpack.c.l.b16 %v5518
      %v6319 = vunpack.c.l.b16 %v5519
      %v6320 = vunpack.c.l.b16 %v5520
      %v6321 = vunpack.c.l.b16 %v5521
      %v6322 = vunpack.c.l.b16 %v5522
      %v6323 = vunpack.c.l.b16 %v5523
      %v6324 = vunpack.c.l.b16 %v5524
      %v6325 = vunpack.c.l.b16 %v5525
      %v6326 = vunpack.c.l.b16 %v5526
      %v6327 = vunpack.c.l.b16 %v5527
      %v6328 = vunpack.c.l.b16 %v5528
      %v6329 = vunpack.c.l.b16 %v5529
      %v6330 = vunpack.c.l.b16 %v5530
      %v6331 = vunpack.c.l.b16 %v5531
      %v6332 = vunpack.c.l.b16 %v5532
      %v6333 = vunpack.c.l.b16 %v5533
      %v6334 = vunpack.c.l.b16 %v5534
      %v6335 = vunpack.c.l.b16 %v5535
      %v6336 = vpack.c.b16 %v6305, %v6304
      %v6337 = vpack.c.b16 %v6307, %v6306
      %v6338 = vpack.c.b16 %v6309, %v6308
      %v6339 = vpack.c.b16 %v6311, %v6310
      %v6340 = vpack.c.b16 %v6313, %v6312
      %v6341 = vpack.c.b16 %v6315, %v6314
      %v6342 = vpack.c.b16 %v6317, %v6316
      %v6343 = vpack.c.b16 %v6319, %v6318
      %v6344 = vpack.c.b16 %v6321, %v6320
      %v6345 = vpack.c.b16 %v6323, %v6322
      %v6346 = vpack.c.b16 %v6325, %v6324
      %v6347 = vpack.c.b16 %v6327, %v6326
      %v6348 = vpack.c.b16 %v6329, %v6328
      %v6349 = vpack.c.b16 %v6331, %v6330
      %v6350 = vpack.c.b16 %v6333, %v6332
      %v6351 = vpack.c.b16 %v6335, %v6334
      %6352 = vrot.lane.b32.xlu0 %v6336, 64
      %v6353 = vpop.permute.xlu0 %6352
      %6354 = vrot.lane.b32.xlu0 %v6337, 64
      %v6355 = vpop.permute.xlu0 %6354
      %6356 = vrot.lane.b32.xlu0 %v6338, 64
      %v6357 = vpop.permute.xlu0 %6356
      %6358 = vrot.lane.b32.xlu0 %v6339, 64
      %v6359 = vpop.permute.xlu0 %6358
      %6360 = vrot.lane.b32.xlu0 %v6340, 64
      %v6361 = vpop.permute.xlu0 %6360
      %6362 = vrot.lane.b32.xlu0 %v6341, 64
      %v6363 = vpop.permute.xlu0 %6362
      %6364 = vrot.lane.b32.xlu0 %v6342, 64
      %v6365 = vpop.permute.xlu0 %6364
      %6366 = vrot.lane.b32.xlu0 %v6343, 64
      %v6367 = vpop.permute.xlu0 %6366
      %6368 = vrot.lane.b32.xlu0 %v6344, 64
      %v6369 = vpop.permute.xlu0 %6368
      %6370 = vrot.lane.b32.xlu0 %v6345, 64
      %v6371 = vpop.permute.xlu0 %6370
      %6372 = vrot.lane.b32.xlu0 %v6346, 64
      %v6373 = vpop.permute.xlu0 %6372
      %6374 = vrot.lane.b32.xlu0 %v6347, 64
      %v6375 = vpop.permute.xlu0 %6374
      %6376 = vrot.lane.b32.xlu0 %v6348, 64
      %v6377 = vpop.permute.xlu0 %6376
      %6378 = vrot.lane.b32.xlu0 %v6349, 64
      %v6379 = vpop.permute.xlu0 %6378
      %6380 = vrot.lane.b32.xlu0 %v6350, 64
      %v6381 = vpop.permute.xlu0 %6380
      %6382 = vrot.lane.b32.xlu0 %v6351, 64
      %v6383 = vpop.permute.xlu0 %6382
      %v6416 = vunpack.c.l.b16 %v5568
      %v6417 = vunpack.c.l.b16 %v5569
      %v6418 = vunpack.c.l.b16 %v5570
      %v6419 = vunpack.c.l.b16 %v5571
      %v6420 = vunpack.c.l.b16 %v5572
      %v6421 = vunpack.c.l.b16 %v5573
      %v6422 = vunpack.c.l.b16 %v5574
      %v6423 = vunpack.c.l.b16 %v5575
      %v6424 = vunpack.c.l.b16 %v5576
      %v6425 = vunpack.c.l.b16 %v5577
      %v6426 = vunpack.c.l.b16 %v5578
      %v6427 = vunpack.c.l.b16 %v5579
      %v6428 = vunpack.c.l.b16 %v5580
      %v6429 = vunpack.c.l.b16 %v5581
      %v6430 = vunpack.c.l.b16 %v5582
      %v6431 = vunpack.c.l.b16 %v5583
      %v6432 = vunpack.c.l.b16 %v5584
      %v6433 = vunpack.c.l.b16 %v5585
      %v6434 = vunpack.c.l.b16 %v5586
      %v6435 = vunpack.c.l.b16 %v5587
      %v6436 = vunpack.c.l.b16 %v5588
      %v6437 = vunpack.c.l.b16 %v5589
      %v6438 = vunpack.c.l.b16 %v5590
      %v6439 = vunpack.c.l.b16 %v5591
      %v6440 = vunpack.c.l.b16 %v5592
      %v6441 = vunpack.c.l.b16 %v5593
      %v6442 = vunpack.c.l.b16 %v5594
      %v6443 = vunpack.c.l.b16 %v5595
      %v6444 = vunpack.c.l.b16 %v5596
      %v6445 = vunpack.c.l.b16 %v5597
      %v6446 = vunpack.c.l.b16 %v5598
      %v6447 = vunpack.c.l.b16 %v5599
      %v6448 = vpack.c.b16 %v6417, %v6416
      %v6449 = vpack.c.b16 %v6419, %v6418
      %v6450 = vpack.c.b16 %v6421, %v6420
      %v6451 = vpack.c.b16 %v6423, %v6422
      %v6452 = vpack.c.b16 %v6425, %v6424
      %v6453 = vpack.c.b16 %v6427, %v6426
      %v6454 = vpack.c.b16 %v6429, %v6428
      %v6455 = vpack.c.b16 %v6431, %v6430
      %v6456 = vpack.c.b16 %v6433, %v6432
      %v6457 = vpack.c.b16 %v6435, %v6434
      %v6458 = vpack.c.b16 %v6437, %v6436
      %v6459 = vpack.c.b16 %v6439, %v6438
      %v6460 = vpack.c.b16 %v6441, %v6440
      %v6461 = vpack.c.b16 %v6443, %v6442
      %v6462 = vpack.c.b16 %v6445, %v6444
      %v6463 = vpack.c.b16 %v6447, %v6446
      %6464 = vrot.lane.b32.xlu0 %v6448, 96
      %v6465 = vpop.permute.xlu0 %6464
      %6466 = vrot.lane.b32.xlu0 %v6449, 96
      %v6467 = vpop.permute.xlu0 %6466
      %6468 = vrot.lane.b32.xlu0 %v6450, 96
      %v6469 = vpop.permute.xlu0 %6468
      %6470 = vrot.lane.b32.xlu0 %v6451, 96
      %v6471 = vpop.permute.xlu0 %6470
      %6472 = vrot.lane.b32.xlu0 %v6452, 96
      %v6473 = vpop.permute.xlu0 %6472
      %6474 = vrot.lane.b32.xlu0 %v6453, 96
      %v6475 = vpop.permute.xlu0 %6474
      %6476 = vrot.lane.b32.xlu0 %v6454, 96
      %v6477 = vpop.permute.xlu0 %6476
      %6478 = vrot.lane.b32.xlu0 %v6455, 96
      %v6479 = vpop.permute.xlu0 %6478
      %6480 = vrot.lane.b32.xlu0 %v6456, 96
      %v6481 = vpop.permute.xlu0 %6480
      %6482 = vrot.lane.b32.xlu0 %v6457, 96
      %v6483 = vpop.permute.xlu0 %6482
      %6484 = vrot.lane.b32.xlu0 %v6458, 96
      %v6485 = vpop.permute.xlu0 %6484
      %6486 = vrot.lane.b32.xlu0 %v6459, 96
      %v6487 = vpop.permute.xlu0 %6486
      %6488 = vrot.lane.b32.xlu0 %v6460, 96
      %v6489 = vpop.permute.xlu0 %6488
      %6490 = vrot.lane.b32.xlu0 %v6461, 96
      %v6491 = vpop.permute.xlu0 %6490
      %6492 = vrot.lane.b32.xlu0 %v6462, 96
      %v6493 = vpop.permute.xlu0 %6492
      %6494 = vrot.lane.b32.xlu0 %v6463, 96
      %v6495 = vpop.permute.xlu0 %6494
      %v6528 = vunpack.c.l.b16 %v5632
      %v6529 = vunpack.c.l.b16 %v5633
      %v6530 = vunpack.c.l.b16 %v5634
      %v6531 = vunpack.c.l.b16 %v5635
      %v6532 = vunpack.c.l.b16 %v5636
      %v6533 = vunpack.c.l.b16 %v5637
      %v6534 = vunpack.c.l.b16 %v5638
      %v6535 = vunpack.c.l.b16 %v5639
      %v6536 = vunpack.c.l.b16 %v5640
      %v6537 = vunpack.c.l.b16 %v5641
      %v6538 = vunpack.c.l.b16 %v5642
      %v6539 = vunpack.c.l.b16 %v5643
      %v6540 = vunpack.c.l.b16 %v5644
      %v6541 = vunpack.c.l.b16 %v5645
      %v6542 = vunpack.c.l.b16 %v5646
      %v6543 = vunpack.c.l.b16 %v5647
      %v6544 = vunpack.c.l.b16 %v5648
      %v6545 = vunpack.c.l.b16 %v5649
      %v6546 = vunpack.c.l.b16 %v5650
      %v6547 = vunpack.c.l.b16 %v5651
      %v6548 = vunpack.c.l.b16 %v5652
      %v6549 = vunpack.c.l.b16 %v5653
      %v6550 = vunpack.c.l.b16 %v5654
      %v6551 = vunpack.c.l.b16 %v5655
      %v6552 = vunpack.c.l.b16 %v5656
      %v6553 = vunpack.c.l.b16 %v5657
      %v6554 = vunpack.c.l.b16 %v5658
      %v6555 = vunpack.c.l.b16 %v5659
      %v6556 = vunpack.c.l.b16 %v5660
      %v6557 = vunpack.c.l.b16 %v5661
      %v6558 = vunpack.c.l.b16 %v5662
      %v6559 = vunpack.c.l.b16 %v5663
      %v6560 = vpack.c.b16 %v6529, %v6528
      %v6561 = vpack.c.b16 %v6531, %v6530
      %v6562 = vpack.c.b16 %v6533, %v6532
      %v6563 = vpack.c.b16 %v6535, %v6534
      %v6564 = vpack.c.b16 %v6537, %v6536
      %v6565 = vpack.c.b16 %v6539, %v6538
      %v6566 = vpack.c.b16 %v6541, %v6540
      %v6567 = vpack.c.b16 %v6543, %v6542
      %v6568 = vpack.c.b16 %v6545, %v6544
      %v6569 = vpack.c.b16 %v6547, %v6546
      %v6570 = vpack.c.b16 %v6549, %v6548
      %v6571 = vpack.c.b16 %v6551, %v6550
      %v6572 = vpack.c.b16 %v6553, %v6552
      %v6573 = vpack.c.b16 %v6555, %v6554
      %v6574 = vpack.c.b16 %v6557, %v6556
      %v6575 = vpack.c.b16 %v6559, %v6558
      %v6578 = vsel %vm378, %v5728, %v5825
      %v6581 = vsel %vm378, %v5729, %v5827
      %v6584 = vsel %vm378, %v5730, %v5829
      %v6587 = vsel %vm378, %v5731, %v5831
      %v6590 = vsel %vm378, %v5732, %v5833
      %v6593 = vsel %vm378, %v5733, %v5835
      %v6596 = vsel %vm378, %v5734, %v5837
      %v6599 = vsel %vm378, %v5735, %v5839
      %v6602 = vsel %vm378, %v5736, %v5841
      %v6605 = vsel %vm378, %v5737, %v5843
      %v6608 = vsel %vm378, %v5738, %v5845
      %v6611 = vsel %vm378, %v5739, %v5847
      %v6614 = vsel %vm378, %v5740, %v5849
      %v6617 = vsel %vm378, %v5741, %v5851
      %v6620 = vsel %vm378, %v5742, %v5853
      %v6623 = vsel %vm378, %v5743, %v5855
      %v6625 = vsel %vm4175, %v6578, %v5937
      %v6627 = vsel %vm4175, %v6581, %v5939
      %v6629 = vsel %vm4175, %v6584, %v5941
      %v6631 = vsel %vm4175, %v6587, %v5943
      %v6633 = vsel %vm4175, %v6590, %v5945
      %v6635 = vsel %vm4175, %v6593, %v5947
      %v6637 = vsel %vm4175, %v6596, %v5949
      %v6639 = vsel %vm4175, %v6599, %v5951
      %v6641 = vsel %vm4175, %v6602, %v5953
      %v6643 = vsel %vm4175, %v6605, %v5955
      %v6645 = vsel %vm4175, %v6608, %v5957
      %v6647 = vsel %vm4175, %v6611, %v5959
      %v6649 = vsel %vm4175, %v6614, %v5961
      %v6651 = vsel %vm4175, %v6617, %v5963
      %v6653 = vsel %vm4175, %v6620, %v5965
      %v6655 = vsel %vm4175, %v6623, %v5967
      %v6657 = vsel %vm4208, %v6625, %v6049
      %v6660 = vsel %vm4208, %v6627, %v6051
      %v6663 = vsel %vm4208, %v6629, %v6053
      %v6666 = vsel %vm4208, %v6631, %v6055
      %v6669 = vsel %vm4208, %v6633, %v6057
      %v6672 = vsel %vm4208, %v6635, %v6059
      %v6675 = vsel %vm4208, %v6637, %v6061
      %v6678 = vsel %vm4208, %v6639, %v6063
      %v6681 = vsel %vm4208, %v6641, %v6065
      %v6684 = vsel %vm4208, %v6643, %v6067
      %v6687 = vsel %vm4208, %v6645, %v6069
      %v6690 = vsel %vm4208, %v6647, %v6071
      %v6693 = vsel %vm4208, %v6649, %v6073
      %v6696 = vsel %vm4208, %v6651, %v6075
      %v6699 = vsel %vm4208, %v6653, %v6077
      %v6702 = vsel %vm4208, %v6655, %v6079
      %v6706 = vsel %vm378, %v6144, %v6241
      %v6709 = vsel %vm378, %v6145, %v6243
      %v6712 = vsel %vm378, %v6146, %v6245
      %v6715 = vsel %vm378, %v6147, %v6247
      %v6718 = vsel %vm378, %v6148, %v6249
      %v6721 = vsel %vm378, %v6149, %v6251
      %v6724 = vsel %vm378, %v6150, %v6253
      %v6727 = vsel %vm378, %v6151, %v6255
      %v6730 = vsel %vm378, %v6152, %v6257
      %v6733 = vsel %vm378, %v6153, %v6259
      %v6736 = vsel %vm378, %v6154, %v6261
      %v6739 = vsel %vm378, %v6155, %v6263
      %v6742 = vsel %vm378, %v6156, %v6265
      %v6745 = vsel %vm378, %v6157, %v6267
      %v6748 = vsel %vm378, %v6158, %v6269
      %v6751 = vsel %vm378, %v6159, %v6271
      %v6753 = vsel %vm4175, %v6706, %v6353
      %v6755 = vsel %vm4175, %v6709, %v6355
      %v6757 = vsel %vm4175, %v6712, %v6357
      %v6759 = vsel %vm4175, %v6715, %v6359
      %v6761 = vsel %vm4175, %v6718, %v6361
      %v6763 = vsel %vm4175, %v6721, %v6363
      %v6765 = vsel %vm4175, %v6724, %v6365
      %v6767 = vsel %vm4175, %v6727, %v6367
      %v6769 = vsel %vm4175, %v6730, %v6369
      %v6771 = vsel %vm4175, %v6733, %v6371
      %v6773 = vsel %vm4175, %v6736, %v6373
      %v6775 = vsel %vm4175, %v6739, %v6375
      %v6777 = vsel %vm4175, %v6742, %v6377
      %v6779 = vsel %vm4175, %v6745, %v6379
      %v6781 = vsel %vm4175, %v6748, %v6381
      %v6783 = vsel %vm4175, %v6751, %v6383
      %v6785 = vsel %vm4208, %v6753, %v6465
      %v6788 = vsel %vm4208, %v6755, %v6467
      %v6791 = vsel %vm4208, %v6757, %v6469
      %v6794 = vsel %vm4208, %v6759, %v6471
      %v6797 = vsel %vm4208, %v6761, %v6473
      %v6800 = vsel %vm4208, %v6763, %v6475
      %v6803 = vsel %vm4208, %v6765, %v6477
      %v6806 = vsel %vm4208, %v6767, %v6479
      %v6809 = vsel %vm4208, %v6769, %v6481
      %v6812 = vsel %vm4208, %v6771, %v6483
      %v6815 = vsel %vm4208, %v6773, %v6485
      %v6818 = vsel %vm4208, %v6775, %v6487
      %v6821 = vsel %vm4208, %v6777, %v6489
      %v6824 = vsel %vm4208, %v6779, %v6491
      %v6827 = vsel %vm4208, %v6781, %v6493
      %v6830 = vsel %vm4208, %v6783, %v6495
      %v6832 = vld [vmem:[%s6] sm:$0xf]
      %v6833 = vld [vmem:[%s6 + $0x4] sm:$0xf]
      %v6834 = vld [vmem:[%s6 + $0x8] sm:$0xf]
      %v6835 = vld [vmem:[%s6 + $0xc] sm:$0xf]
      %v6836 = vld [vmem:[%s6 + $0x10] sm:$0xf]
      %v6837 = vld [vmem:[%s6 + $0x14] sm:$0xf]
      %v6838 = vld [vmem:[%s6 + $0x18] sm:$0xf]
      %v6839 = vld [vmem:[%s6 + $0x1c] sm:$0xf]
      %v6840 = vld [vmem:[%s6 + $0x20] sm:$0xf]
      %v6841 = vld [vmem:[%s6 + $0x24] sm:$0xf]
      %v6842 = vld [vmem:[%s6 + $0x28] sm:$0xf]
      %v6843 = vld [vmem:[%s6 + $0x2c] sm:$0xf]
      %v6844 = vld [vmem:[%s6 + $0x30] sm:$0xf]
      %v6845 = vld [vmem:[%s6 + $0x34] sm:$0xf]
      %v6846 = vld [vmem:[%s6 + $0x38] sm:$0xf]
      %v6847 = vld [vmem:[%s6 + $0x3c] sm:$0xf]
      %v6848 = vld [vmem:[%s6 + $0x40] sm:$0xf]
      %v6849 = vld [vmem:[%s6 + $0x44] sm:$0xf]
      %v6850 = vld [vmem:[%s6 + $0x48] sm:$0xf]
      %v6851 = vld [vmem:[%s6 + $0x4c] sm:$0xf]
      %v6852 = vld [vmem:[%s6 + $0x50] sm:$0xf]
      %v6853 = vld [vmem:[%s6 + $0x54] sm:$0xf]
      %v6854 = vld [vmem:[%s6 + $0x58] sm:$0xf]
      %v6855 = vld [vmem:[%s6 + $0x5c] sm:$0xf]
      %v6856 = vld [vmem:[%s6 + $0x60] sm:$0xf]
      %v6857 = vld [vmem:[%s6 + $0x64] sm:$0xf]
      %v6858 = vld [vmem:[%s6 + $0x68] sm:$0xf]
      %v6859 = vld [vmem:[%s6 + $0x6c] sm:$0xf]
      %v6860 = vld [vmem:[%s6 + $0x70] sm:$0xf]
      %v6861 = vld [vmem:[%s6 + $0x74] sm:$0xf]
      %v6862 = vld [vmem:[%s6 + $0x78] sm:$0xf]
      %v6863 = vld [vmem:[%s6 + $0x7c] sm:$0xf]
      %v6864 = vld [vmem:[%s6 + $0x80] sm:$0xf]
      %v6865 = vld [vmem:[%s6 + $0x84] sm:$0xf]
      %v6866 = vld [vmem:[%s6 + $0x88] sm:$0xf]
      %v6867 = vld [vmem:[%s6 + $0x8c] sm:$0xf]
      %v6868 = vld [vmem:[%s7] sm:$0x1]
      %v6870 = vperm.slane %v6868, 0
      %v6908 = vunpack.c.l.b16 %v6832
      %v6909 = vunpack.c.l.b16 %v6833
      %v6910 = vunpack.c.l.b16 %v6834
      %v6911 = vunpack.c.l.b16 %v6835
      %v6912 = vunpack.c.l.b16 %v6836
      %v6913 = vunpack.c.l.b16 %v6837
      %v6914 = vunpack.c.l.b16 %v6838
      %v6915 = vunpack.c.l.b16 %v6839
      %v6916 = vunpack.c.l.b16 %v6840
      %v6917 = vunpack.c.l.b16 %v6841
      %v6918 = vunpack.c.l.b16 %v6842
      %v6919 = vunpack.c.l.b16 %v6843
      %v6920 = vunpack.c.l.b16 %v6844
      %v6921 = vunpack.c.l.b16 %v6845
      %v6922 = vunpack.c.l.b16 %v6846
      %v6923 = vunpack.c.l.b16 %v6847
      %v6924 = vunpack.c.l.b16 %v6848
      %v6925 = vunpack.c.l.b16 %v6849
      %v6926 = vunpack.c.l.b16 %v6850
      %v6927 = vunpack.c.l.b16 %v6851
      %v6928 = vunpack.c.l.b16 %v6852
      %v6929 = vunpack.c.l.b16 %v6853
      %v6930 = vunpack.c.l.b16 %v6854
      %v6931 = vunpack.c.l.b16 %v6855
      %v6932 = vunpack.c.l.b16 %v6856
      %v6933 = vunpack.c.l.b16 %v6857
      %v6934 = vunpack.c.l.b16 %v6858
      %v6935 = vunpack.c.l.b16 %v6859
      %v6936 = vunpack.c.l.b16 %v6860
      %v6937 = vunpack.c.l.b16 %v6861
      %v6938 = vunpack.c.l.b16 %v6862
      %v6939 = vunpack.c.l.b16 %v6863
      %v6940 = vunpack.c.l.b16 %v6864
      %v6941 = vunpack.c.l.b16 %v6865
      %v6942 = vunpack.c.l.b16 %v6866
      %v6943 = vunpack.c.l.b16 %v6867
      %v6944 = vpack.c.b16 %v6909, %v6908
      %v6945 = vpack.c.b16 %v6911, %v6910
      %v6946 = vpack.c.b16 %v6913, %v6912
      %v6947 = vpack.c.b16 %v6915, %v6914
      %v6948 = vpack.c.b16 %v6917, %v6916
      %v6949 = vpack.c.b16 %v6919, %v6918
      %v6950 = vpack.c.b16 %v6921, %v6920
      %v6951 = vpack.c.b16 %v6923, %v6922
      %v6952 = vpack.c.b16 %v6925, %v6924
      %v6953 = vpack.c.b16 %v6927, %v6926
      %v6954 = vpack.c.b16 %v6929, %v6928
      %v6955 = vpack.c.b16 %v6931, %v6930
      %v6956 = vpack.c.b16 %v6933, %v6932
      %v6957 = vpack.c.b16 %v6935, %v6934
      %v6958 = vpack.c.b16 %v6937, %v6936
      %v6959 = vpack.c.b16 %v6939, %v6938
      %v6960 = vpack.c.b16 %v6941, %v6940
      %v6961 = vpack.c.b16 %v6943, %v6942
      %v6981 = vsel %vm378, %v6560, 0
      %v6984 = vsel %vm378, %v6561, 0
      %v6987 = vsel %vm378, %v6562, 0
      %v6990 = vsel %vm378, %v6563, 0
      %v6993 = vsel %vm378, %v6564, 0
      %v6996 = vsel %vm378, %v6565, 0
      %v6999 = vsel %vm378, %v6566, 0
      %v7002 = vsel %vm378, %v6567, 0
      %v7005 = vsel %vm378, %v6568, 0
      %v7008 = vsel %vm378, %v6569, 0
      %v7011 = vsel %vm378, %v6570, 0
      %v7014 = vsel %vm378, %v6571, 0
      %v7017 = vsel %vm378, %v6572, 0
      %v7020 = vsel %vm378, %v6573, 0
      %v7023 = vsel %vm378, %v6574, 0
      %v7026 = vsel %vm378, %v6575, 0
      %7028 = vmatpush.bf16.msra.mxu0 %v6951
      %7029 = vmatpush.bf16.msra.mxu0 %v6950
      %7030 = vmatpush.bf16.msra.mxu0 %v6949
      %7031 = vmatpush.bf16.msra.mxu0 %v6948
      %7032 = vmatpush.bf16.msra.mxu0 %v6947
      %7033 = vmatpush.bf16.msra.mxu0 %v6946
      %7034 = vmatpush.bf16.msra.mxu0 %v6945
      %7035 = vmatpush.bf16.msra.mxu0 %v6944
      %7036 = vmatmul.bf16.gmra.mxu0 %v6657
      %v7037 = vpop.f32.mrf.mxu0
      %v7038 = vadd.f32 %v6870, %v7037
      %v7039 = vpop.f32.mrf.mxu0
      %v7040 = vadd.f32 %v6870, %v7039
      %7041 = vmatmul.bf16.gmra.mxu0 %v6660
      %v7042 = vpop.f32.mrf.mxu0
      %v7043 = vadd.f32 %v6870, %v7042
      %v7044 = vpop.f32.mrf.mxu0
      %v7045 = vadd.f32 %v6870, %v7044
      %7046 = vmatmul.bf16.gmra.mxu0 %v6663
      %v7047 = vpop.f32.mrf.mxu0
      %v7048 = vadd.f32 %v6870, %v7047
      %v7049 = vpop.f32.mrf.mxu0
      %v7050 = vadd.f32 %v6870, %v7049
      %7051 = vmatmul.bf16.gmra.mxu0 %v6666
      %v7052 = vpop.f32.mrf.mxu0
      %v7053 = vadd.f32 %v6870, %v7052
      %v7054 = vpop.f32.mrf.mxu0
      %v7055 = vadd.f32 %v6870, %v7054
      %7056 = vmatmul.bf16.gmra.mxu0 %v6669
      %v7057 = vpop.f32.mrf.mxu0
      %v7058 = vadd.f32 %v6870, %v7057
      %v7059 = vpop.f32.mrf.mxu0
      %v7060 = vadd.f32 %v6870, %v7059
      %7061 = vmatmul.bf16.gmra.mxu0 %v6672
      %v7062 = vpop.f32.mrf.mxu0
      %v7063 = vadd.f32 %v6870, %v7062
      %v7064 = vpop.f32.mrf.mxu0
      %v7065 = vadd.f32 %v6870, %v7064
      %7066 = vmatmul.bf16.gmra.mxu0 %v6675
      %v7067 = vpop.f32.mrf.mxu0
      %v7068 = vadd.f32 %v6870, %v7067
      %v7069 = vpop.f32.mrf.mxu0
      %v7070 = vadd.f32 %v6870, %v7069
      %7071 = vmatmul.bf16.gmra.mxu0 %v6678
      %v7072 = vpop.f32.mrf.mxu0
      %v7073 = vadd.f32 %v6870, %v7072
      %v7074 = vpop.f32.mrf.mxu0
      %v7075 = vadd.f32 %v6870, %v7074
      %7076 = vmatmul.bf16.gmra.mxu0 %v6681
      %v7077 = vpop.f32.mrf.mxu0
      %v7078 = vadd.f32 %v6870, %v7077
      %v7079 = vpop.f32.mrf.mxu0
      %v7080 = vadd.f32 %v6870, %v7079
      %7081 = vmatmul.bf16.gmra.mxu0 %v6684
      %v7082 = vpop.f32.mrf.mxu0
      %v7083 = vadd.f32 %v6870, %v7082
      %v7084 = vpop.f32.mrf.mxu0
      %v7085 = vadd.f32 %v6870, %v7084
      %7086 = vmatmul.bf16.gmra.mxu0 %v6687
      %v7087 = vpop.f32.mrf.mxu0
      %v7088 = vadd.f32 %v6870, %v7087
      %v7089 = vpop.f32.mrf.mxu0
      %v7090 = vadd.f32 %v6870, %v7089
      %7091 = vmatmul.bf16.gmra.mxu0 %v6690
      %v7092 = vpop.f32.mrf.mxu0
      %v7093 = vadd.f32 %v6870, %v7092
      %v7094 = vpop.f32.mrf.mxu0
      %v7095 = vadd.f32 %v6870, %v7094
      %7096 = vmatmul.bf16.gmra.mxu0 %v6693
      %v7097 = vpop.f32.mrf.mxu0
      %v7098 = vadd.f32 %v6870, %v7097
      %v7099 = vpop.f32.mrf.mxu0
      %v7100 = vadd.f32 %v6870, %v7099
      %7101 = vmatmul.bf16.gmra.mxu0 %v6696
      %v7102 = vpop.f32.mrf.mxu0
      %v7103 = vadd.f32 %v6870, %v7102
      %v7104 = vpop.f32.mrf.mxu0
      %v7105 = vadd.f32 %v6870, %v7104
      %7106 = vmatmul.bf16.gmra.mxu0 %v6699
      %v7107 = vpop.f32.mrf.mxu0
      %v7108 = vadd.f32 %v6870, %v7107
      %v7109 = vpop.f32.mrf.mxu0
      %v7110 = vadd.f32 %v6870, %v7109
      %7111 = vmatmul.bf16.gmra.mxu0 %v6702
      %v7112 = vpop.f32.mrf.mxu0
      %v7113 = vadd.f32 %v6870, %v7112
      %v7114 = vpop.f32.mrf.mxu0
      %v7115 = vadd.f32 %v6870, %v7114
      %7116 = vdwg.mxu0
      %7117 = vmatpush.bf16.msra.mxu0 %v6959
      %7118 = vmatpush.bf16.msra.mxu0 %v6958
      %7119 = vmatpush.bf16.msra.mxu0 %v6957
      %7120 = vmatpush.bf16.msra.mxu0 %v6956
      %7121 = vmatpush.bf16.msra.mxu0 %v6955
      %7122 = vmatpush.bf16.msra.mxu0 %v6954
      %7123 = vmatpush.bf16.msra.mxu0 %v6953
      %7124 = vmatpush.bf16.msra.mxu0 %v6952
      %7125 = vmatmul.bf16.gmra.mxu0 %v6785
      %v7126 = vpop.f32.mrf.mxu0
      %v7127 = vadd.f32 %v7038, %v7126
      %v7128 = vpop.f32.mrf.mxu0
      %v7129 = vadd.f32 %v7040, %v7128
      %7130 = vmatmul.bf16.gmra.mxu0 %v6788
      %v7131 = vpop.f32.mrf.mxu0
      %v7132 = vadd.f32 %v7043, %v7131
      %v7133 = vpop.f32.mrf.mxu0
      %v7134 = vadd.f32 %v7045, %v7133
      %7135 = vmatmul.bf16.gmra.mxu0 %v6791
      %v7136 = vpop.f32.mrf.mxu0
      %v7137 = vadd.f32 %v7048, %v7136
      %v7138 = vpop.f32.mrf.mxu0
      %v7139 = vadd.f32 %v7050, %v7138
      %7140 = vmatmul.bf16.gmra.mxu0 %v6794
      %v7141 = vpop.f32.mrf.mxu0
      %v7142 = vadd.f32 %v7053, %v7141
      %v7143 = vpop.f32.mrf.mxu0
      %v7144 = vadd.f32 %v7055, %v7143
      %7145 = vmatmul.bf16.gmra.mxu0 %v6797
      %v7146 = vpop.f32.mrf.mxu0
      %v7147 = vadd.f32 %v7058, %v7146
      %v7148 = vpop.f32.mrf.mxu0
      %v7149 = vadd.f32 %v7060, %v7148
      %7150 = vmatmul.bf16.gmra.mxu0 %v6800
      %v7151 = vpop.f32.mrf.mxu0
      %v7152 = vadd.f32 %v7063, %v7151
      %v7153 = vpop.f32.mrf.mxu0
      %v7154 = vadd.f32 %v7065, %v7153
      %7155 = vmatmul.bf16.gmra.mxu0 %v6803
      %v7156 = vpop.f32.mrf.mxu0
      %v7157 = vadd.f32 %v7068, %v7156
      %v7158 = vpop.f32.mrf.mxu0
      %v7159 = vadd.f32 %v7070, %v7158
      %7160 = vmatmul.bf16.gmra.mxu0 %v6806
      %v7161 = vpop.f32.mrf.mxu0
      %v7162 = vadd.f32 %v7073, %v7161
      %v7163 = vpop.f32.mrf.mxu0
      %v7164 = vadd.f32 %v7075, %v7163
      %7165 = vmatmul.bf16.gmra.mxu0 %v6809
      %v7166 = vpop.f32.mrf.mxu0
      %v7167 = vadd.f32 %v7078, %v7166
      %v7168 = vpop.f32.mrf.mxu0
      %v7169 = vadd.f32 %v7080, %v7168
      %7170 = vmatmul.bf16.gmra.mxu0 %v6812
      %v7171 = vpop.f32.mrf.mxu0
      %v7172 = vadd.f32 %v7083, %v7171
      %v7173 = vpop.f32.mrf.mxu0
      %v7174 = vadd.f32 %v7085, %v7173
      %7175 = vmatmul.bf16.gmra.mxu0 %v6815
      %v7176 = vpop.f32.mrf.mxu0
      %v7177 = vadd.f32 %v7088, %v7176
      %v7178 = vpop.f32.mrf.mxu0
      %v7179 = vadd.f32 %v7090, %v7178
      %7180 = vmatmul.bf16.gmra.mxu0 %v6818
      %v7181 = vpop.f32.mrf.mxu0
      %v7182 = vadd.f32 %v7093, %v7181
      %v7183 = vpop.f32.mrf.mxu0
      %v7184 = vadd.f32 %v7095, %v7183
      %7185 = vmatmul.bf16.gmra.mxu0 %v6821
      %v7186 = vpop.f32.mrf.mxu0
      %v7187 = vadd.f32 %v7098, %v7186
      %v7188 = vpop.f32.mrf.mxu0
      %v7189 = vadd.f32 %v7100, %v7188
      %7190 = vmatmul.bf16.gmra.mxu0 %v6824
      %v7191 = vpop.f32.mrf.mxu0
      %v7192 = vadd.f32 %v7103, %v7191
      %v7193 = vpop.f32.mrf.mxu0
      %v7194 = vadd.f32 %v7105, %v7193
      %7195 = vmatmul.bf16.gmra.mxu0 %v6827
      %v7196 = vpop.f32.mrf.mxu0
      %v7197 = vadd.f32 %v7108, %v7196
      %v7198 = vpop.f32.mrf.mxu0
      %v7199 = vadd.f32 %v7110, %v7198
      %7200 = vmatmul.bf16.gmra.mxu0 %v6830
      %v7201 = vpop.f32.mrf.mxu0
      %v7202 = vadd.f32 %v7113, %v7201
      %v7203 = vpop.f32.mrf.mxu0
      %v7204 = vadd.f32 %v7115, %v7203
      %7205 = vdwg.mxu0
      %7206 = vmatpush.bf16.msra.mxu0 0
      %7207 = vmatpush.bf16.msra.mxu0 0
      %7208 = vmatpush.bf16.msra.mxu0 0
      %7209 = vmatpush.bf16.msra.mxu0 0
      %7210 = vmatpush.bf16.msra.mxu0 0
      %7211 = vmatpush.bf16.msra.mxu0 0
      %7212 = vmatpush.bf16.msra.mxu0 %v6961
      %7213 = vmatpush.bf16.msra.mxu0 %v6960
      %7214 = vmatmul.bf16.gmra.mxu0 %v6981
      %v7215 = vpop.f32.mrf.mxu0
      %v7216 = vadd.f32 %v7127, %v7215
      %v7217 = vpop.f32.mrf.mxu0
      %v7218 = vadd.f32 %v7129, %v7217
      %7219 = vmatmul.bf16.gmra.mxu0 %v6984
      %v7220 = vpop.f32.mrf.mxu0
      %v7221 = vadd.f32 %v7132, %v7220
      %v7222 = vpop.f32.mrf.mxu0
      %v7223 = vadd.f32 %v7134, %v7222
      %7224 = vmatmul.bf16.gmra.mxu0 %v6987
      %v7225 = vpop.f32.mrf.mxu0
      %v7226 = vadd.f32 %v7137, %v7225
      %v7227 = vpop.f32.mrf.mxu0
      %v7228 = vadd.f32 %v7139, %v7227
      %7229 = vmatmul.bf16.gmra.mxu0 %v6990
      %v7230 = vpop.f32.mrf.mxu0
      %v7231 = vadd.f32 %v7142, %v7230
      %v7232 = vpop.f32.mrf.mxu0
      %v7233 = vadd.f32 %v7144, %v7232
      %7234 = vmatmul.bf16.gmra.mxu0 %v6993
      %v7235 = vpop.f32.mrf.mxu0
      %v7236 = vadd.f32 %v7147, %v7235
      %v7237 = vpop.f32.mrf.mxu0
      %v7238 = vadd.f32 %v7149, %v7237
      %7239 = vmatmul.bf16.gmra.mxu0 %v6996
      %v7240 = vpop.f32.mrf.mxu0
      %v7241 = vadd.f32 %v7152, %v7240
      %v7242 = vpop.f32.mrf.mxu0
      %v7243 = vadd.f32 %v7154, %v7242
      %7244 = vmatmul.bf16.gmra.mxu0 %v6999
      %v7245 = vpop.f32.mrf.mxu0
      %v7246 = vadd.f32 %v7157, %v7245
      %v7247 = vpop.f32.mrf.mxu0
      %v7248 = vadd.f32 %v7159, %v7247
      %7249 = vmatmul.bf16.gmra.mxu0 %v7002
      %v7250 = vpop.f32.mrf.mxu0
      %v7251 = vadd.f32 %v7162, %v7250
      %v7252 = vpop.f32.mrf.mxu0
      %v7253 = vadd.f32 %v7164, %v7252
      %7254 = vmatmul.bf16.gmra.mxu0 %v7005
      %v7255 = vpop.f32.mrf.mxu0
      %v7256 = vadd.f32 %v7167, %v7255
      %v7257 = vpop.f32.mrf.mxu0
      %v7258 = vadd.f32 %v7169, %v7257
      %7259 = vmatmul.bf16.gmra.mxu0 %v7008
      %v7260 = vpop.f32.mrf.mxu0
      %v7261 = vadd.f32 %v7172, %v7260
      %v7262 = vpop.f32.mrf.mxu0
      %v7263 = vadd.f32 %v7174, %v7262
      %7264 = vmatmul.bf16.gmra.mxu0 %v7011
      %v7265 = vpop.f32.mrf.mxu0
      %v7266 = vadd.f32 %v7177, %v7265
      %v7267 = vpop.f32.mrf.mxu0
      %v7268 = vadd.f32 %v7179, %v7267
      %7269 = vmatmul.bf16.gmra.mxu0 %v7014
      %v7270 = vpop.f32.mrf.mxu0
      %v7271 = vadd.f32 %v7182, %v7270
      %v7272 = vpop.f32.mrf.mxu0
      %v7273 = vadd.f32 %v7184, %v7272
      %7274 = vmatmul.bf16.gmra.mxu0 %v7017
      %v7275 = vpop.f32.mrf.mxu0
      %v7276 = vadd.f32 %v7187, %v7275
      %v7277 = vpop.f32.mrf.mxu0
      %v7278 = vadd.f32 %v7189, %v7277
      %7279 = vmatmul.bf16.gmra.mxu0 %v7020
      %v7280 = vpop.f32.mrf.mxu0
      %v7281 = vadd.f32 %v7192, %v7280
      %v7282 = vpop.f32.mrf.mxu0
      %v7283 = vadd.f32 %v7194, %v7282
      %7284 = vmatmul.bf16.gmra.mxu0 %v7023
      %v7285 = vpop.f32.mrf.mxu0
      %v7286 = vadd.f32 %v7197, %v7285
      %v7287 = vpop.f32.mrf.mxu0
      %v7288 = vadd.f32 %v7199, %v7287
      %7289 = vmatmul.bf16.gmra.mxu0 %v7026
      %v7290 = vpop.f32.mrf.mxu0
      %v7291 = vadd.f32 %v7202, %v7290
      %v7292 = vpop.f32.mrf.mxu0
      %v7293 = vadd.f32 %v7204, %v7292
      %7294 = vdwg.mxu0
      %v7295 = vmax.f32 %v7216, 0.0
      %v7296 = vmax.f32 %v7218, 0.0
      %v7297 = vmax.f32 %v7221, 0.0
      %v7298 = vmax.f32 %v7223, 0.0
      %v7299 = vmax.f32 %v7226, 0.0
      %v7300 = vmax.f32 %v7228, 0.0
      %v7301 = vmax.f32 %v7231, 0.0
      %v7302 = vmax.f32 %v7233, 0.0
      %v7303 = vmax.f32 %v7236, 0.0
      %v7304 = vmax.f32 %v7238, 0.0
      %v7305 = vmax.f32 %v7241, 0.0
      %v7306 = vmax.f32 %v7243, 0.0
      %v7307 = vmax.f32 %v7246, 0.0
      %v7308 = vmax.f32 %v7248, 0.0
      %v7309 = vmax.f32 %v7251, 0.0
      %v7310 = vmax.f32 %v7253, 0.0
      %v7311 = vmax.f32 %v7256, 0.0
      %v7312 = vmax.f32 %v7258, 0.0
      %v7313 = vmax.f32 %v7261, 0.0
      %v7314 = vmax.f32 %v7263, 0.0
      %v7315 = vmax.f32 %v7266, 0.0
      %v7316 = vmax.f32 %v7268, 0.0
      %v7317 = vmax.f32 %v7271, 0.0
      %v7318 = vmax.f32 %v7273, 0.0
      %v7319 = vmax.f32 %v7276, 0.0
      %v7320 = vmax.f32 %v7278, 0.0
      %v7321 = vmax.f32 %v7281, 0.0
      %v7322 = vmax.f32 %v7283, 0.0
      %v7323 = vmax.f32 %v7286, 0.0
      %v7324 = vmax.f32 %v7288, 0.0
      %v7325 = vmax.f32 %v7291, 0.0
      %v7326 = vmax.f32 %v7293, 0.0
      %v7359 = vrot.slane %v7295, 7
      %v7360 = vrot.slane %v7296, 7
      %v7361 = vsel %vm2302, %v7359, %v7360
      %v7362 = vrot.slane %v7297, 7
      %v7363 = vrot.slane %v7298, 7
      %v7364 = vsel %vm2302, %v7362, %v7363
      %v7365 = vrot.slane %v7299, 7
      %v7366 = vrot.slane %v7300, 7
      %v7367 = vsel %vm2302, %v7365, %v7366
      %v7368 = vrot.slane %v7301, 7
      %v7369 = vrot.slane %v7302, 7
      %v7370 = vsel %vm2302, %v7368, %v7369
      %v7371 = vrot.slane %v7303, 7
      %v7372 = vrot.slane %v7304, 7
      %v7373 = vsel %vm2302, %v7371, %v7372
      %v7374 = vrot.slane %v7305, 7
      %v7375 = vrot.slane %v7306, 7
      %v7376 = vsel %vm2302, %v7374, %v7375
      %v7377 = vrot.slane %v7307, 7
      %v7378 = vrot.slane %v7308, 7
      %v7379 = vsel %vm2302, %v7377, %v7378
      %v7380 = vrot.slane %v7309, 7
      %v7381 = vrot.slane %v7310, 7
      %v7382 = vsel %vm2302, %v7380, %v7381
      %v7383 = vrot.slane %v7311, 7
      %v7384 = vrot.slane %v7312, 7
      %v7385 = vsel %vm2302, %v7383, %v7384
      %v7386 = vrot.slane %v7313, 7
      %v7387 = vrot.slane %v7314, 7
      %v7388 = vsel %vm2302, %v7386, %v7387
      %v7389 = vrot.slane %v7315, 7
      %v7390 = vrot.slane %v7316, 7
      %v7391 = vsel %vm2302, %v7389, %v7390
      %v7392 = vrot.slane %v7317, 7
      %v7393 = vrot.slane %v7318, 7
      %v7394 = vsel %vm2302, %v7392, %v7393
      %v7395 = vrot.slane %v7319, 7
      %v7396 = vrot.slane %v7320, 7
      %v7397 = vsel %vm2302, %v7395, %v7396
      %v7398 = vrot.slane %v7321, 7
      %v7399 = vrot.slane %v7322, 7
      %v7400 = vsel %vm2302, %v7398, %v7399
      %v7401 = vrot.slane %v7323, 7
      %v7402 = vrot.slane %v7324, 7
      %v7403 = vsel %vm2302, %v7401, %v7402
      %v7404 = vrot.slane %v7325, 7
      %v7405 = vrot.slane %v7326, 7
      %v7406 = vsel %vm2302, %v7404, %v7405
      %v7455 = vsel %vm2302, 0.0, %v7359
      %v7456 = vsel %vm2302, 0.0, %v7362
      %v7457 = vsel %vm2302, 0.0, %v7365
      %v7458 = vsel %vm2302, 0.0, %v7368
      %v7459 = vsel %vm2302, 0.0, %v7371
      %v7460 = vsel %vm2302, 0.0, %v7374
      %v7461 = vsel %vm2302, 0.0, %v7377
      %v7462 = vsel %vm2302, 0.0, %v7380
      %v7463 = vsel %vm2302, 0.0, %v7383
      %v7464 = vsel %vm2302, 0.0, %v7386
      %v7465 = vsel %vm2302, 0.0, %v7389
      %v7466 = vsel %vm2302, 0.0, %v7392
      %v7467 = vsel %vm2302, 0.0, %v7395
      %v7468 = vsel %vm2302, 0.0, %v7398
      %v7469 = vsel %vm2302, 0.0, %v7401
      %v7470 = vsel %vm2302, 0.0, %v7404
      %v7471 = vsel %vm2302, %v7360, 0.0
      %v7472 = vsel %vm2302, %v7363, 0.0
      %v7473 = vsel %vm2302, %v7366, 0.0
      %v7474 = vsel %vm2302, %v7369, 0.0
      %v7475 = vsel %vm2302, %v7372, 0.0
      %v7476 = vsel %vm2302, %v7375, 0.0
      %v7477 = vsel %vm2302, %v7378, 0.0
      %v7478 = vsel %vm2302, %v7381, 0.0
      %v7479 = vsel %vm2302, %v7384, 0.0
      %v7480 = vsel %vm2302, %v7387, 0.0
      %v7481 = vsel %vm2302, %v7390, 0.0
      %v7482 = vsel %vm2302, %v7393, 0.0
      %v7483 = vsel %vm2302, %v7396, 0.0
      %v7484 = vsel %vm2302, %v7399, 0.0
      %v7485 = vsel %vm2302, %v7402, 0.0
      %v7486 = vsel %vm2302, %v7405, 0.0
      %7487 = vst.msk [vmem:[%s2589] sm:$0xff] %vm378, %v7455
      %7488 = vst.msk [vmem:[%s2589 + $0x8] sm:$0xff] %vm378, %v7361
      %7489 = vst.msk [vmem:[%s2589 + $0x10] sm:$0x3] %vm381, %v7471
      %7490 = vst.msk [vmem:[%s2589 + $0x18] sm:$0xff] %vm378, %v7456
      %7491 = vst.msk [vmem:[%s2589 + $0x20] sm:$0xff] %vm378, %v7364
      %7492 = vst.msk [vmem:[%s2589 + $0x28] sm:$0x3] %vm381, %v7472
      %7493 = vst.msk [vmem:[%s2589 + $0x30] sm:$0xff] %vm378, %v7457
      %7494 = vst.msk [vmem:[%s2589 + $0x38] sm:$0xff] %vm378, %v7367
      %7495 = vst.msk [vmem:[%s2589 + $0x40] sm:$0x3] %vm381, %v7473
      %7496 = vst.msk [vmem:[%s2589 + $0x48] sm:$0xff] %vm378, %v7458
      %7497 = vst.msk [vmem:[%s2589 + $0x50] sm:$0xff] %vm378, %v7370
      %7498 = vst.msk [vmem:[%s2589 + $0x58] sm:$0x3] %vm381, %v7474
      %7499 = vst.msk [vmem:[%s2589 + $0x60] sm:$0xff] %vm378, %v7459
      %7500 = vst.msk [vmem:[%s2589 + $0x68] sm:$0xff] %vm378, %v7373
      %7501 = vst.msk [vmem:[%s2589 + $0x70] sm:$0x3] %vm381, %v7475
      %7502 = vst.msk [vmem:[%s2589 + $0x78] sm:$0xff] %vm378, %v7460
      %7503 = vst.msk [vmem:[%s2589 + $0x80] sm:$0xff] %vm378, %v7376
      %7504 = vst.msk [vmem:[%s2589 + $0x88] sm:$0x3] %vm381, %v7476
      %7505 = vst.msk [vmem:[%s2589 + $0x90] sm:$0xff] %vm378, %v7461
      %7506 = vst.msk [vmem:[%s2589 + $0x98] sm:$0xff] %vm378, %v7379
      %7507 = vst.msk [vmem:[%s2589 + $0xa0] sm:$0x3] %vm381, %v7477
      %7508 = vst.msk [vmem:[%s2589 + $0xa8] sm:$0xff] %vm378, %v7462
      %7509 = vst.msk [vmem:[%s2589 + $0xb0] sm:$0xff] %vm378, %v7382
      %7510 = vst.msk [vmem:[%s2589 + $0xb8] sm:$0x3] %vm381, %v7478
      %7511 = vst.msk [vmem:[%s2589 + $0xc0] sm:$0xff] %vm378, %v7463
      %7512 = vst.msk [vmem:[%s2589 + $0xc8] sm:$0xff] %vm378, %v7385
      %7513 = vst.msk [vmem:[%s2589 + $0xd0] sm:$0x3] %vm381, %v7479
      %7514 = vst.msk [vmem:[%s2589 + $0xd8] sm:$0xff] %vm378, %v7464
      %7515 = vst.msk [vmem:[%s2589 + $0xe0] sm:$0xff] %vm378, %v7388
      %7516 = vst.msk [vmem:[%s2589 + $0xe8] sm:$0x3] %vm381, %v7480
      %7517 = vst.msk [vmem:[%s2589 + $0xf0] sm:$0xff] %vm378, %v7465
      %7518 = vst.msk [vmem:[%s2589 + $0xf8] sm:$0xff] %vm378, %v7391
      %7519 = vst.msk [vmem:[%s2589 + $0x100] sm:$0x3] %vm381, %v7481
      %7520 = vst.msk [vmem:[%s2589 + $0x108] sm:$0xff] %vm378, %v7466
      %7521 = vst.msk [vmem:[%s2589 + $0x110] sm:$0xff] %vm378, %v7394
      %7522 = vst.msk [vmem:[%s2589 + $0x118] sm:$0x3] %vm381, %v7482
      %7523 = vst.msk [vmem:[%s2589 + $0x120] sm:$0xff] %vm378, %v7467
      %7524 = vst.msk [vmem:[%s2589 + $0x128] sm:$0xff] %vm378, %v7397
      %7525 = vst.msk [vmem:[%s2589 + $0x130] sm:$0x3] %vm381, %v7483
      %7526 = vst.msk [vmem:[%s2589 + $0x138] sm:$0xff] %vm378, %v7468
      %7527 = vst.msk [vmem:[%s2589 + $0x140] sm:$0xff] %vm378, %v7400
      %7528 = vst.msk [vmem:[%s2589 + $0x148] sm:$0x3] %vm381, %v7484
      %7529 = vst.msk [vmem:[%s2589 + $0x150] sm:$0xff] %vm378, %v7469
      %7530 = vst.msk [vmem:[%s2589 + $0x158] sm:$0xff] %vm378, %v7403
      %7531 = vst.msk [vmem:[%s2589 + $0x160] sm:$0x3] %vm381, %v7485
      %7532 = vst.msk [vmem:[%s2589 + $0x168] sm:$0xff] %vm378, %v7470
      %7533 = vst.msk [vmem:[%s2589 + $0x170] sm:$0xff] %vm378, %v7406
      %7534 = vst.msk [vmem:[%s2589 + $0x178] sm:$0x3] %vm381, %v7486
      %v7535 = vld [vmem:[#allocation2] sm:$0xff]
      %v7536 = vld [vmem:[#allocation2 + $0x8] sm:$0xff]
      %v7537 = vld [vmem:[#allocation2 + $0x18] sm:$0xff]
      %v7538 = vld [vmem:[#allocation2 + $0x20] sm:$0xff]
      %v7539 = vld [vmem:[#allocation2 + $0x30] sm:$0xff]
      %v7540 = vld [vmem:[#allocation2 + $0x38] sm:$0xff]
      %v7541 = vld [vmem:[#allocation2 + $0x48] sm:$0xff]
      %v7542 = vld [vmem:[#allocation2 + $0x50] sm:$0xff]
      %v7543 = vld [vmem:[#allocation2 + $0x60] sm:$0xff]
      %v7544 = vld [vmem:[#allocation2 + $0x68] sm:$0xff]
      %v7545 = vld [vmem:[#allocation2 + $0x78] sm:$0xff]
      %v7546 = vld [vmem:[#allocation2 + $0x80] sm:$0xff]
      %v7547 = vld [vmem:[#allocation2 + $0x90] sm:$0xff]
      %v7548 = vld [vmem:[#allocation2 + $0x98] sm:$0xff]
      %v7549 = vld [vmem:[#allocation2 + $0xa8] sm:$0xff]
      %v7550 = vld [vmem:[#allocation2 + $0xb0] sm:$0xff]
      %v7551 = vld [vmem:[#allocation2 + $0xc0] sm:$0xff]
      %v7552 = vld [vmem:[#allocation2 + $0xc8] sm:$0xff]
      %v7553 = vld [vmem:[#allocation2 + $0xd8] sm:$0xff]
      %v7554 = vld [vmem:[#allocation2 + $0xe0] sm:$0xff]
      %v7555 = vld [vmem:[#allocation2 + $0xf0] sm:$0xff]
      %v7556 = vld [vmem:[#allocation2 + $0xf8] sm:$0xff]
      %v7557 = vld [vmem:[#allocation2 + $0x108] sm:$0xff]
      %v7558 = vld [vmem:[#allocation2 + $0x110] sm:$0xff]
      %v7559 = vld [vmem:[#allocation2 + $0x120] sm:$0xff]
      %v7560 = vld [vmem:[#allocation2 + $0x128] sm:$0xff]
      %v7561 = vld [vmem:[#allocation2 + $0x138] sm:$0xff]
      %v7562 = vld [vmem:[#allocation2 + $0x140] sm:$0xff]
      %v7563 = vld [vmem:[#allocation2 + $0x150] sm:$0xff]
      %v7564 = vld [vmem:[#allocation2 + $0x158] sm:$0xff]
      %v7565 = vld [vmem:[#allocation2 + $0x168] sm:$0xff]
      %v7566 = vld [vmem:[#allocation2 + $0x170] sm:$0xff]
      %v7567 = vpack.c.bf16 %v7535, %v7535
      %v7568 = vpack.c.bf16 %v7536, %v7536
      %v7569 = vpack.c.bf16 %v7537, %v7537
      %v7570 = vpack.c.bf16 %v7538, %v7538
      %v7571 = vpack.c.bf16 %v7539, %v7539
      %v7572 = vpack.c.bf16 %v7540, %v7540
      %v7573 = vpack.c.bf16 %v7541, %v7541
      %v7574 = vpack.c.bf16 %v7542, %v7542
      %v7575 = vpack.c.bf16 %v7543, %v7543
      %v7576 = vpack.c.bf16 %v7544, %v7544
      %v7577 = vpack.c.bf16 %v7545, %v7545
      %v7578 = vpack.c.bf16 %v7546, %v7546
      %v7579 = vpack.c.bf16 %v7547, %v7547
      %v7580 = vpack.c.bf16 %v7548, %v7548
      %v7581 = vpack.c.bf16 %v7549, %v7549
      %v7582 = vpack.c.bf16 %v7550, %v7550
      %v7583 = vpack.c.bf16 %v7551, %v7551
      %v7584 = vpack.c.bf16 %v7552, %v7552
      %v7585 = vpack.c.bf16 %v7553, %v7553
      %v7586 = vpack.c.bf16 %v7554, %v7554
      %v7587 = vpack.c.bf16 %v7555, %v7555
      %v7588 = vpack.c.bf16 %v7556, %v7556
      %v7589 = vpack.c.bf16 %v7557, %v7557
      %v7590 = vpack.c.bf16 %v7558, %v7558
      %v7591 = vpack.c.bf16 %v7559, %v7559
      %v7592 = vpack.c.bf16 %v7560, %v7560
      %v7593 = vpack.c.bf16 %v7561, %v7561
      %v7594 = vpack.c.bf16 %v7562, %v7562
      %v7595 = vpack.c.bf16 %v7563, %v7563
      %v7596 = vpack.c.bf16 %v7564, %v7564
      %v7597 = vpack.c.bf16 %v7565, %v7565
      %v7598 = vpack.c.bf16 %v7566, %v7566
      %v7599 = vld [vmem:[#allocation2 + $0x1] sm:$0xff]
      %v7600 = vld [vmem:[#allocation2 + $0x9] sm:$0xff]
      %v7601 = vld [vmem:[#allocation2 + $0x19] sm:$0xff]
      %v7602 = vld [vmem:[#allocation2 + $0x21] sm:$0xff]
      %v7603 = vld [vmem:[#allocation2 + $0x31] sm:$0xff]
      %v7604 = vld [vmem:[#allocation2 + $0x39] sm:$0xff]
      %v7605 = vld [vmem:[#allocation2 + $0x49] sm:$0xff]
      %v7606 = vld [vmem:[#allocation2 + $0x51] sm:$0xff]
      %v7607 = vld [vmem:[#allocation2 + $0x61] sm:$0xff]
      %v7608 = vld [vmem:[#allocation2 + $0x69] sm:$0xff]
      %v7609 = vld [vmem:[#allocation2 + $0x79] sm:$0xff]
      %v7610 = vld [vmem:[#allocation2 + $0x81] sm:$0xff]
      %v7611 = vld [vmem:[#allocation2 + $0x91] sm:$0xff]
      %v7612 = vld [vmem:[#allocation2 + $0x99] sm:$0xff]
      %v7613 = vld [vmem:[#allocation2 + $0xa9] sm:$0xff]
      %v7614 = vld [vmem:[#allocation2 + $0xb1] sm:$0xff]
      %v7615 = vld [vmem:[#allocation2 + $0xc1] sm:$0xff]
      %v7616 = vld [vmem:[#allocation2 + $0xc9] sm:$0xff]
      %v7617 = vld [vmem:[#allocation2 + $0xd9] sm:$0xff]
      %v7618 = vld [vmem:[#allocation2 + $0xe1] sm:$0xff]
      %v7619 = vld [vmem:[#allocation2 + $0xf1] sm:$0xff]
      %v7620 = vld [vmem:[#allocation2 + $0xf9] sm:$0xff]
      %v7621 = vld [vmem:[#allocation2 + $0x109] sm:$0xff]
      %v7622 = vld [vmem:[#allocation2 + $0x111] sm:$0xff]
      %v7623 = vld [vmem:[#allocation2 + $0x121] sm:$0xff]
      %v7624 = vld [vmem:[#allocation2 + $0x129] sm:$0xff]
      %v7625 = vld [vmem:[#allocation2 + $0x139] sm:$0xff]
      %v7626 = vld [vmem:[#allocation2 + $0x141] sm:$0xff]
      %v7627 = vld [vmem:[#allocation2 + $0x151] sm:$0xff]
      %v7628 = vld [vmem:[#allocation2 + $0x159] sm:$0xff]
      %v7629 = vld [vmem:[#allocation2 + $0x169] sm:$0xff]
      %v7630 = vld [vmem:[#allocation2 + $0x171] sm:$0xff]
      %v7631 = vpack.c.bf16 %v7599, %v7599
      %v7632 = vpack.c.bf16 %v7600, %v7600
      %v7633 = vpack.c.bf16 %v7601, %v7601
      %v7634 = vpack.c.bf16 %v7602, %v7602
      %v7635 = vpack.c.bf16 %v7603, %v7603
      %v7636 = vpack.c.bf16 %v7604, %v7604
      %v7637 = vpack.c.bf16 %v7605, %v7605
      %v7638 = vpack.c.bf16 %v7606, %v7606
      %v7639 = vpack.c.bf16 %v7607, %v7607
      %v7640 = vpack.c.bf16 %v7608, %v7608
      %v7641 = vpack.c.bf16 %v7609, %v7609
      %v7642 = vpack.c.bf16 %v7610, %v7610
      %v7643 = vpack.c.bf16 %v7611, %v7611
      %v7644 = vpack.c.bf16 %v7612, %v7612
      %v7645 = vpack.c.bf16 %v7613, %v7613
      %v7646 = vpack.c.bf16 %v7614, %v7614
      %v7647 = vpack.c.bf16 %v7615, %v7615
      %v7648 = vpack.c.bf16 %v7616, %v7616
      %v7649 = vpack.c.bf16 %v7617, %v7617
      %v7650 = vpack.c.bf16 %v7618, %v7618
      %v7651 = vpack.c.bf16 %v7619, %v7619
      %v7652 = vpack.c.bf16 %v7620, %v7620
      %v7653 = vpack.c.bf16 %v7621, %v7621
      %v7654 = vpack.c.bf16 %v7622, %v7622
      %v7655 = vpack.c.bf16 %v7623, %v7623
      %v7656 = vpack.c.bf16 %v7624, %v7624
      %v7657 = vpack.c.bf16 %v7625, %v7625
      %v7658 = vpack.c.bf16 %v7626, %v7626
      %v7659 = vpack.c.bf16 %v7627, %v7627
      %v7660 = vpack.c.bf16 %v7628, %v7628
      %v7661 = vpack.c.bf16 %v7629, %v7629
      %v7662 = vpack.c.bf16 %v7630, %v7630
      %v7663 = vld [vmem:[#allocation2 + $0x2] sm:$0xff]
      %v7664 = vld [vmem:[#allocation2 + $0xa] sm:$0xff]
      %v7665 = vld [vmem:[#allocation2 + $0x1a] sm:$0xff]
      %v7666 = vld [vmem:[#allocation2 + $0x22] sm:$0xff]
      %v7667 = vld [vmem:[#allocation2 + $0x32] sm:$0xff]
      %v7668 = vld [vmem:[#allocation2 + $0x3a] sm:$0xff]
      %v7669 = vld [vmem:[#allocation2 + $0x4a] sm:$0xff]
      %v7670 = vld [vmem:[#allocation2 + $0x52] sm:$0xff]
      %v7671 = vld [vmem:[#allocation2 + $0x62] sm:$0xff]
      %v7672 = vld [vmem:[#allocation2 + $0x6a] sm:$0xff]
      %v7673 = vld [vmem:[#allocation2 + $0x7a] sm:$0xff]
      %v7674 = vld [vmem:[#allocation2 + $0x82] sm:$0xff]
      %v7675 = vld [vmem:[#allocation2 + $0x92] sm:$0xff]
      %v7676 = vld [vmem:[#allocation2 + $0x9a] sm:$0xff]
      %v7677 = vld [vmem:[#allocation2 + $0xaa] sm:$0xff]
      %v7678 = vld [vmem:[#allocation2 + $0xb2] sm:$0xff]
      %v7679 = vld [vmem:[#allocation2 + $0xc2] sm:$0xff]
      %v7680 = vld [vmem:[#allocation2 + $0xca] sm:$0xff]
      %v7681 = vld [vmem:[#allocation2 + $0xda] sm:$0xff]
      %v7682 = vld [vmem:[#allocation2 + $0xe2] sm:$0xff]
      %v7683 = vld [vmem:[#allocation2 + $0xf2] sm:$0xff]
      %v7684 = vld [vmem:[#allocation2 + $0xfa] sm:$0xff]
      %v7685 = vld [vmem:[#allocation2 + $0x10a] sm:$0xff]
      %v7686 = vld [vmem:[#allocation2 + $0x112] sm:$0xff]
      %v7687 = vld [vmem:[#allocation2 + $0x122] sm:$0xff]
      %v7688 = vld [vmem:[#allocation2 + $0x12a] sm:$0xff]
      %v7689 = vld [vmem:[#allocation2 + $0x13a] sm:$0xff]
      %v7690 = vld [vmem:[#allocation2 + $0x142] sm:$0xff]
      %v7691 = vld [vmem:[#allocation2 + $0x152] sm:$0xff]
      %v7692 = vld [vmem:[#allocation2 + $0x15a] sm:$0xff]
      %v7693 = vld [vmem:[#allocation2 + $0x16a] sm:$0xff]
      %v7694 = vld [vmem:[#allocation2 + $0x172] sm:$0xff]
      %v7695 = vpack.c.bf16 %v7663, %v7663
      %v7696 = vpack.c.bf16 %v7664, %v7664
      %v7697 = vpack.c.bf16 %v7665, %v7665
      %v7698 = vpack.c.bf16 %v7666, %v7666
      %v7699 = vpack.c.bf16 %v7667, %v7667
      %v7700 = vpack.c.bf16 %v7668, %v7668
      %v7701 = vpack.c.bf16 %v7669, %v7669
      %v7702 = vpack.c.bf16 %v7670, %v7670
      %v7703 = vpack.c.bf16 %v7671, %v7671
      %v7704 = vpack.c.bf16 %v7672, %v7672
      %v7705 = vpack.c.bf16 %v7673, %v7673
      %v7706 = vpack.c.bf16 %v7674, %v7674
      %v7707 = vpack.c.bf16 %v7675, %v7675
      %v7708 = vpack.c.bf16 %v7676, %v7676
      %v7709 = vpack.c.bf16 %v7677, %v7677
      %v7710 = vpack.c.bf16 %v7678, %v7678
      %v7711 = vpack.c.bf16 %v7679, %v7679
      %v7712 = vpack.c.bf16 %v7680, %v7680
      %v7713 = vpack.c.bf16 %v7681, %v7681
      %v7714 = vpack.c.bf16 %v7682, %v7682
      %v7715 = vpack.c.bf16 %v7683, %v7683
      %v7716 = vpack.c.bf16 %v7684, %v7684
      %v7717 = vpack.c.bf16 %v7685, %v7685
      %v7718 = vpack.c.bf16 %v7686, %v7686
      %v7719 = vpack.c.bf16 %v7687, %v7687
      %v7720 = vpack.c.bf16 %v7688, %v7688
      %v7721 = vpack.c.bf16 %v7689, %v7689
      %v7722 = vpack.c.bf16 %v7690, %v7690
      %v7723 = vpack.c.bf16 %v7691, %v7691
      %v7724 = vpack.c.bf16 %v7692, %v7692
      %v7725 = vpack.c.bf16 %v7693, %v7693
      %v7726 = vpack.c.bf16 %v7694, %v7694
      %v7727 = vld [vmem:[%s2589] sm:$0xff]
      %v7728 = vld [vmem:[%s2589 + $0x8] sm:$0xff]
      %v7729 = vld [vmem:[%s2589 + $0x18] sm:$0xff]
      %v7730 = vld [vmem:[%s2589 + $0x20] sm:$0xff]
      %v7731 = vld [vmem:[%s2589 + $0x30] sm:$0xff]
      %v7732 = vld [vmem:[%s2589 + $0x38] sm:$0xff]
      %v7733 = vld [vmem:[%s2589 + $0x48] sm:$0xff]
      %v7734 = vld [vmem:[%s2589 + $0x50] sm:$0xff]
      %v7735 = vld [vmem:[%s2589 + $0x60] sm:$0xff]
      %v7736 = vld [vmem:[%s2589 + $0x68] sm:$0xff]
      %v7737 = vld [vmem:[%s2589 + $0x78] sm:$0xff]
      %v7738 = vld [vmem:[%s2589 + $0x80] sm:$0xff]
      %v7739 = vld [vmem:[%s2589 + $0x90] sm:$0xff]
      %v7740 = vld [vmem:[%s2589 + $0x98] sm:$0xff]
      %v7741 = vld [vmem:[%s2589 + $0xa8] sm:$0xff]
      %v7742 = vld [vmem:[%s2589 + $0xb0] sm:$0xff]
      %v7743 = vld [vmem:[%s2589 + $0xc0] sm:$0xff]
      %v7744 = vld [vmem:[%s2589 + $0xc8] sm:$0xff]
      %v7745 = vld [vmem:[%s2589 + $0xd8] sm:$0xff]
      %v7746 = vld [vmem:[%s2589 + $0xe0] sm:$0xff]
      %v7747 = vld [vmem:[%s2589 + $0xf0] sm:$0xff]
      %v7748 = vld [vmem:[%s2589 + $0xf8] sm:$0xff]
      %v7749 = vld [vmem:[%s2589 + $0x108] sm:$0xff]
      %v7750 = vld [vmem:[%s2589 + $0x110] sm:$0xff]
      %v7751 = vld [vmem:[%s2589 + $0x120] sm:$0xff]
      %v7752 = vld [vmem:[%s2589 + $0x128] sm:$0xff]
      %v7753 = vld [vmem:[%s2589 + $0x138] sm:$0xff]
      %v7754 = vld [vmem:[%s2589 + $0x140] sm:$0xff]
      %v7755 = vld [vmem:[%s2589 + $0x150] sm:$0xff]
      %v7756 = vld [vmem:[%s2589 + $0x158] sm:$0xff]
      %v7757 = vld [vmem:[%s2589 + $0x168] sm:$0xff]
      %v7758 = vld [vmem:[%s2589 + $0x170] sm:$0xff]
      %v7759 = vpack.c.bf16 %v7727, %v7727
      %v7760 = vpack.c.bf16 %v7728, %v7728
      %v7761 = vpack.c.bf16 %v7729, %v7729
      %v7762 = vpack.c.bf16 %v7730, %v7730
      %v7763 = vpack.c.bf16 %v7731, %v7731
      %v7764 = vpack.c.bf16 %v7732, %v7732
      %v7765 = vpack.c.bf16 %v7733, %v7733
      %v7766 = vpack.c.bf16 %v7734, %v7734
      %v7767 = vpack.c.bf16 %v7735, %v7735
      %v7768 = vpack.c.bf16 %v7736, %v7736
      %v7769 = vpack.c.bf16 %v7737, %v7737
      %v7770 = vpack.c.bf16 %v7738, %v7738
      %v7771 = vpack.c.bf16 %v7739, %v7739
      %v7772 = vpack.c.bf16 %v7740, %v7740
      %v7773 = vpack.c.bf16 %v7741, %v7741
      %v7774 = vpack.c.bf16 %v7742, %v7742
      %v7775 = vpack.c.bf16 %v7743, %v7743
      %v7776 = vpack.c.bf16 %v7744, %v7744
      %v7777 = vpack.c.bf16 %v7745, %v7745
      %v7778 = vpack.c.bf16 %v7746, %v7746
      %v7779 = vpack.c.bf16 %v7747, %v7747
      %v7780 = vpack.c.bf16 %v7748, %v7748
      %v7781 = vpack.c.bf16 %v7749, %v7749
      %v7782 = vpack.c.bf16 %v7750, %v7750
      %v7783 = vpack.c.bf16 %v7751, %v7751
      %v7784 = vpack.c.bf16 %v7752, %v7752
      %v7785 = vpack.c.bf16 %v7753, %v7753
      %v7786 = vpack.c.bf16 %v7754, %v7754
      %v7787 = vpack.c.bf16 %v7755, %v7755
      %v7788 = vpack.c.bf16 %v7756, %v7756
      %v7789 = vpack.c.bf16 %v7757, %v7757
      %v7790 = vpack.c.bf16 %v7758, %v7758
      %v7791 = vld [vmem:[%s2589 + $0x1] sm:$0xff]
      %v7792 = vld [vmem:[%s2589 + $0x9] sm:$0xff]
      %v7793 = vld [vmem:[%s2589 + $0x19] sm:$0xff]
      %v7794 = vld [vmem:[%s2589 + $0x21] sm:$0xff]
      %v7795 = vld [vmem:[%s2589 + $0x31] sm:$0xff]
      %v7796 = vld [vmem:[%s2589 + $0x39] sm:$0xff]
      %v7797 = vld [vmem:[%s2589 + $0x49] sm:$0xff]
      %v7798 = vld [vmem:[%s2589 + $0x51] sm:$0xff]
      %v7799 = vld [vmem:[%s2589 + $0x61] sm:$0xff]
      %v7800 = vld [vmem:[%s2589 + $0x69] sm:$0xff]
      %v7801 = vld [vmem:[%s2589 + $0x79] sm:$0xff]
      %v7802 = vld [vmem:[%s2589 + $0x81] sm:$0xff]
      %v7803 = vld [vmem:[%s2589 + $0x91] sm:$0xff]
      %v7804 = vld [vmem:[%s2589 + $0x99] sm:$0xff]
      %v7805 = vld [vmem:[%s2589 + $0xa9] sm:$0xff]
      %v7806 = vld [vmem:[%s2589 + $0xb1] sm:$0xff]
      %v7807 = vld [vmem:[%s2589 + $0xc1] sm:$0xff]
      %v7808 = vld [vmem:[%s2589 + $0xc9] sm:$0xff]
      %v7809 = vld [vmem:[%s2589 + $0xd9] sm:$0xff]
      %v7810 = vld [vmem:[%s2589 + $0xe1] sm:$0xff]
      %v7811 = vld [vmem:[%s2589 + $0xf1] sm:$0xff]
      %v7812 = vld [vmem:[%s2589 + $0xf9] sm:$0xff]
      %v7813 = vld [vmem:[%s2589 + $0x109] sm:$0xff]
      %v7814 = vld [vmem:[%s2589 + $0x111] sm:$0xff]
      %v7815 = vld [vmem:[%s2589 + $0x121] sm:$0xff]
      %v7816 = vld [vmem:[%s2589 + $0x129] sm:$0xff]
      %v7817 = vld [vmem:[%s2589 + $0x139] sm:$0xff]
      %v7818 = vld [vmem:[%s2589 + $0x141] sm:$0xff]
      %v7819 = vld [vmem:[%s2589 + $0x151] sm:$0xff]
      %v7820 = vld [vmem:[%s2589 + $0x159] sm:$0xff]
      %v7821 = vld [vmem:[%s2589 + $0x169] sm:$0xff]
      %v7822 = vld [vmem:[%s2589 + $0x171] sm:$0xff]
      %v7823 = vpack.c.bf16 %v7791, %v7791
      %v7824 = vpack.c.bf16 %v7792, %v7792
      %v7825 = vpack.c.bf16 %v7793, %v7793
      %v7826 = vpack.c.bf16 %v7794, %v7794
      %v7827 = vpack.c.bf16 %v7795, %v7795
      %v7828 = vpack.c.bf16 %v7796, %v7796
      %v7829 = vpack.c.bf16 %v7797, %v7797
      %v7830 = vpack.c.bf16 %v7798, %v7798
      %v7831 = vpack.c.bf16 %v7799, %v7799
      %v7832 = vpack.c.bf16 %v7800, %v7800
      %v7833 = vpack.c.bf16 %v7801, %v7801
      %v7834 = vpack.c.bf16 %v7802, %v7802
      %v7835 = vpack.c.bf16 %v7803, %v7803
      %v7836 = vpack.c.bf16 %v7804, %v7804
      %v7837 = vpack.c.bf16 %v7805, %v7805
      %v7838 = vpack.c.bf16 %v7806, %v7806
      %v7839 = vpack.c.bf16 %v7807, %v7807
      %v7840 = vpack.c.bf16 %v7808, %v7808
      %v7841 = vpack.c.bf16 %v7809, %v7809
      %v7842 = vpack.c.bf16 %v7810, %v7810
      %v7843 = vpack.c.bf16 %v7811, %v7811
      %v7844 = vpack.c.bf16 %v7812, %v7812
      %v7845 = vpack.c.bf16 %v7813, %v7813
      %v7846 = vpack.c.bf16 %v7814, %v7814
      %v7847 = vpack.c.bf16 %v7815, %v7815
      %v7848 = vpack.c.bf16 %v7816, %v7816
      %v7849 = vpack.c.bf16 %v7817, %v7817
      %v7850 = vpack.c.bf16 %v7818, %v7818
      %v7851 = vpack.c.bf16 %v7819, %v7819
      %v7852 = vpack.c.bf16 %v7820, %v7820
      %v7853 = vpack.c.bf16 %v7821, %v7821
      %v7854 = vpack.c.bf16 %v7822, %v7822
      %v7855 = vld [vmem:[%s2589 + $0x2] sm:$0xff]
      %v7856 = vld [vmem:[%s2589 + $0xa] sm:$0xff]
      %v7857 = vld [vmem:[%s2589 + $0x1a] sm:$0xff]
      %v7858 = vld [vmem:[%s2589 + $0x22] sm:$0xff]
      %v7859 = vld [vmem:[%s2589 + $0x32] sm:$0xff]
      %v7860 = vld [vmem:[%s2589 + $0x3a] sm:$0xff]
      %v7861 = vld [vmem:[%s2589 + $0x4a] sm:$0xff]
      %v7862 = vld [vmem:[%s2589 + $0x52] sm:$0xff]
      %v7863 = vld [vmem:[%s2589 + $0x62] sm:$0xff]
      %v7864 = vld [vmem:[%s2589 + $0x6a] sm:$0xff]
      %v7865 = vld [vmem:[%s2589 + $0x7a] sm:$0xff]
      %v7866 = vld [vmem:[%s2589 + $0x82] sm:$0xff]
      %v7867 = vld [vmem:[%s2589 + $0x92] sm:$0xff]
      %v7868 = vld [vmem:[%s2589 + $0x9a] sm:$0xff]
      %v7869 = vld [vmem:[%s2589 + $0xaa] sm:$0xff]
      %v7870 = vld [vmem:[%s2589 + $0xb2] sm:$0xff]
      %v7871 = vld [vmem:[%s2589 + $0xc2] sm:$0xff]
      %v7872 = vld [vmem:[%s2589 + $0xca] sm:$0xff]
      %v7873 = vld [vmem:[%s2589 + $0xda] sm:$0xff]
      %v7874 = vld [vmem:[%s2589 + $0xe2] sm:$0xff]
      %v7875 = vld [vmem:[%s2589 + $0xf2] sm:$0xff]
      %v7876 = vld [vmem:[%s2589 + $0xfa] sm:$0xff]
      %v7877 = vld [vmem:[%s2589 + $0x10a] sm:$0xff]
      %v7878 = vld [vmem:[%s2589 + $0x112] sm:$0xff]
      %v7879 = vld [vmem:[%s2589 + $0x122] sm:$0xff]
      %v7880 = vld [vmem:[%s2589 + $0x12a] sm:$0xff]
      %v7881 = vld [vmem:[%s2589 + $0x13a] sm:$0xff]
      %v7882 = vld [vmem:[%s2589 + $0x142] sm:$0xff]
      %v7883 = vld [vmem:[%s2589 + $0x152] sm:$0xff]
      %v7884 = vld [vmem:[%s2589 + $0x15a] sm:$0xff]
      %v7885 = vld [vmem:[%s2589 + $0x16a] sm:$0xff]
      %v7886 = vld [vmem:[%s2589 + $0x172] sm:$0xff]
      %v7887 = vpack.c.bf16 %v7855, %v7855
      %v7888 = vpack.c.bf16 %v7856, %v7856
      %v7889 = vpack.c.bf16 %v7857, %v7857
      %v7890 = vpack.c.bf16 %v7858, %v7858
      %v7891 = vpack.c.bf16 %v7859, %v7859
      %v7892 = vpack.c.bf16 %v7860, %v7860
      %v7893 = vpack.c.bf16 %v7861, %v7861
      %v7894 = vpack.c.bf16 %v7862, %v7862
      %v7895 = vpack.c.bf16 %v7863, %v7863
      %v7896 = vpack.c.bf16 %v7864, %v7864
      %v7897 = vpack.c.bf16 %v7865, %v7865
      %v7898 = vpack.c.bf16 %v7866, %v7866
      %v7899 = vpack.c.bf16 %v7867, %v7867
      %v7900 = vpack.c.bf16 %v7868, %v7868
      %v7901 = vpack.c.bf16 %v7869, %v7869
      %v7902 = vpack.c.bf16 %v7870, %v7870
      %v7903 = vpack.c.bf16 %v7871, %v7871
      %v7904 = vpack.c.bf16 %v7872, %v7872
      %v7905 = vpack.c.bf16 %v7873, %v7873
      %v7906 = vpack.c.bf16 %v7874, %v7874
      %v7907 = vpack.c.bf16 %v7875, %v7875
      %v7908 = vpack.c.bf16 %v7876, %v7876
      %v7909 = vpack.c.bf16 %v7877, %v7877
      %v7910 = vpack.c.bf16 %v7878, %v7878
      %v7911 = vpack.c.bf16 %v7879, %v7879
      %v7912 = vpack.c.bf16 %v7880, %v7880
      %v7913 = vpack.c.bf16 %v7881, %v7881
      %v7914 = vpack.c.bf16 %v7882, %v7882
      %v7915 = vpack.c.bf16 %v7883, %v7883
      %v7916 = vpack.c.bf16 %v7884, %v7884
      %v7917 = vpack.c.bf16 %v7885, %v7885
      %v7918 = vpack.c.bf16 %v7886, %v7886
      %v7919 = vld [vmem:[%s3022] sm:$0xff]
      %v7920 = vld [vmem:[%s3022 + $0x8] sm:$0xff]
      %v7921 = vld [vmem:[%s3022 + $0x18] sm:$0xff]
      %v7922 = vld [vmem:[%s3022 + $0x20] sm:$0xff]
      %v7923 = vld [vmem:[%s3022 + $0x30] sm:$0xff]
      %v7924 = vld [vmem:[%s3022 + $0x38] sm:$0xff]
      %v7925 = vld [vmem:[%s3022 + $0x48] sm:$0xff]
      %v7926 = vld [vmem:[%s3022 + $0x50] sm:$0xff]
      %v7927 = vld [vmem:[%s3022 + $0x60] sm:$0xff]
      %v7928 = vld [vmem:[%s3022 + $0x68] sm:$0xff]
      %v7929 = vld [vmem:[%s3022 + $0x78] sm:$0xff]
      %v7930 = vld [vmem:[%s3022 + $0x80] sm:$0xff]
      %v7931 = vld [vmem:[%s3022 + $0x90] sm:$0xff]
      %v7932 = vld [vmem:[%s3022 + $0x98] sm:$0xff]
      %v7933 = vld [vmem:[%s3022 + $0xa8] sm:$0xff]
      %v7934 = vld [vmem:[%s3022 + $0xb0] sm:$0xff]
      %v7935 = vld [vmem:[%s3022 + $0xc0] sm:$0xff]
      %v7936 = vld [vmem:[%s3022 + $0xc8] sm:$0xff]
      %v7937 = vld [vmem:[%s3022 + $0xd8] sm:$0xff]
      %v7938 = vld [vmem:[%s3022 + $0xe0] sm:$0xff]
      %v7939 = vld [vmem:[%s3022 + $0xf0] sm:$0xff]
      %v7940 = vld [vmem:[%s3022 + $0xf8] sm:$0xff]
      %v7941 = vld [vmem:[%s3022 + $0x108] sm:$0xff]
      %v7942 = vld [vmem:[%s3022 + $0x110] sm:$0xff]
      %v7943 = vld [vmem:[%s3022 + $0x120] sm:$0xff]
      %v7944 = vld [vmem:[%s3022 + $0x128] sm:$0xff]
      %v7945 = vld [vmem:[%s3022 + $0x138] sm:$0xff]
      %v7946 = vld [vmem:[%s3022 + $0x140] sm:$0xff]
      %v7947 = vld [vmem:[%s3022 + $0x150] sm:$0xff]
      %v7948 = vld [vmem:[%s3022 + $0x158] sm:$0xff]
      %v7949 = vld [vmem:[%s3022 + $0x168] sm:$0xff]
      %v7950 = vld [vmem:[%s3022 + $0x170] sm:$0xff]
      %v7951 = vpack.c.bf16 %v7919, %v7919
      %v7952 = vpack.c.bf16 %v7920, %v7920
      %v7953 = vpack.c.bf16 %v7921, %v7921
      %v7954 = vpack.c.bf16 %v7922, %v7922
      %v7955 = vpack.c.bf16 %v7923, %v7923
      %v7956 = vpack.c.bf16 %v7924, %v7924
      %v7957 = vpack.c.bf16 %v7925, %v7925
      %v7958 = vpack.c.bf16 %v7926, %v7926
      %v7959 = vpack.c.bf16 %v7927, %v7927
      %v7960 = vpack.c.bf16 %v7928, %v7928
      %v7961 = vpack.c.bf16 %v7929, %v7929
      %v7962 = vpack.c.bf16 %v7930, %v7930
      %v7963 = vpack.c.bf16 %v7931, %v7931
      %v7964 = vpack.c.bf16 %v7932, %v7932
      %v7965 = vpack.c.bf16 %v7933, %v7933
      %v7966 = vpack.c.bf16 %v7934, %v7934
      %v7967 = vpack.c.bf16 %v7935, %v7935
      %v7968 = vpack.c.bf16 %v7936, %v7936
      %v7969 = vpack.c.bf16 %v7937, %v7937
      %v7970 = vpack.c.bf16 %v7938, %v7938
      %v7971 = vpack.c.bf16 %v7939, %v7939
      %v7972 = vpack.c.bf16 %v7940, %v7940
      %v7973 = vpack.c.bf16 %v7941, %v7941
      %v7974 = vpack.c.bf16 %v7942, %v7942
      %v7975 = vpack.c.bf16 %v7943, %v7943
      %v7976 = vpack.c.bf16 %v7944, %v7944
      %v7977 = vpack.c.bf16 %v7945, %v7945
      %v7978 = vpack.c.bf16 %v7946, %v7946
      %v7979 = vpack.c.bf16 %v7947, %v7947
      %v7980 = vpack.c.bf16 %v7948, %v7948
      %v7981 = vpack.c.bf16 %v7949, %v7949
      %v7982 = vpack.c.bf16 %v7950, %v7950
      %v7983 = vld [vmem:[%s3022 + $0x1] sm:$0xff]
      %v7984 = vld [vmem:[%s3022 + $0x9] sm:$0xff]
      %v7985 = vld [vmem:[%s3022 + $0x19] sm:$0xff]
      %v7986 = vld [vmem:[%s3022 + $0x21] sm:$0xff]
      %v7987 = vld [vmem:[%s3022 + $0x31] sm:$0xff]
      %v7988 = vld [vmem:[%s3022 + $0x39] sm:$0xff]
      %v7989 = vld [vmem:[%s3022 + $0x49] sm:$0xff]
      %v7990 = vld [vmem:[%s3022 + $0x51] sm:$0xff]
      %v7991 = vld [vmem:[%s3022 + $0x61] sm:$0xff]
      %v7992 = vld [vmem:[%s3022 + $0x69] sm:$0xff]
      %v7993 = vld [vmem:[%s3022 + $0x79] sm:$0xff]
      %v7994 = vld [vmem:[%s3022 + $0x81] sm:$0xff]
      %v7995 = vld [vmem:[%s3022 + $0x91] sm:$0xff]
      %v7996 = vld [vmem:[%s3022 + $0x99] sm:$0xff]
      %v7997 = vld [vmem:[%s3022 + $0xa9] sm:$0xff]
      %v7998 = vld [vmem:[%s3022 + $0xb1] sm:$0xff]
      %v7999 = vld [vmem:[%s3022 + $0xc1] sm:$0xff]
      %v8000 = vld [vmem:[%s3022 + $0xc9] sm:$0xff]
      %v8001 = vld [vmem:[%s3022 + $0xd9] sm:$0xff]
      %v8002 = vld [vmem:[%s3022 + $0xe1] sm:$0xff]
      %v8003 = vld [vmem:[%s3022 + $0xf1] sm:$0xff]
      %v8004 = vld [vmem:[%s3022 + $0xf9] sm:$0xff]
      %v8005 = vld [vmem:[%s3022 + $0x109] sm:$0xff]
      %v8006 = vld [vmem:[%s3022 + $0x111] sm:$0xff]
      %v8007 = vld [vmem:[%s3022 + $0x121] sm:$0xff]
      %v8008 = vld [vmem:[%s3022 + $0x129] sm:$0xff]
      %v8009 = vld [vmem:[%s3022 + $0x139] sm:$0xff]
      %v8010 = vld [vmem:[%s3022 + $0x141] sm:$0xff]
      %v8011 = vld [vmem:[%s3022 + $0x151] sm:$0xff]
      %v8012 = vld [vmem:[%s3022 + $0x159] sm:$0xff]
      %v8013 = vld [vmem:[%s3022 + $0x169] sm:$0xff]
      %v8014 = vld [vmem:[%s3022 + $0x171] sm:$0xff]
      %v8015 = vpack.c.bf16 %v7983, %v7983
      %v8016 = vpack.c.bf16 %v7984, %v7984
      %v8017 = vpack.c.bf16 %v7985, %v7985
      %v8018 = vpack.c.bf16 %v7986, %v7986
      %v8019 = vpack.c.bf16 %v7987, %v7987
      %v8020 = vpack.c.bf16 %v7988, %v7988
      %v8021 = vpack.c.bf16 %v7989, %v7989
      %v8022 = vpack.c.bf16 %v7990, %v7990
      %v8023 = vpack.c.bf16 %v7991, %v7991
      %v8024 = vpack.c.bf16 %v7992, %v7992
      %v8025 = vpack.c.bf16 %v7993, %v7993
      %v8026 = vpack.c.bf16 %v7994, %v7994
      %v8027 = vpack.c.bf16 %v7995, %v7995
      %v8028 = vpack.c.bf16 %v7996, %v7996
      %v8029 = vpack.c.bf16 %v7997, %v7997
      %v8030 = vpack.c.bf16 %v7998, %v7998
      %v8031 = vpack.c.bf16 %v7999, %v7999
      %v8032 = vpack.c.bf16 %v8000, %v8000
      %v8033 = vpack.c.bf16 %v8001, %v8001
      %v8034 = vpack.c.bf16 %v8002, %v8002
      %v8035 = vpack.c.bf16 %v8003, %v8003
      %v8036 = vpack.c.bf16 %v8004, %v8004
      %v8037 = vpack.c.bf16 %v8005, %v8005
      %v8038 = vpack.c.bf16 %v8006, %v8006
      %v8039 = vpack.c.bf16 %v8007, %v8007
      %v8040 = vpack.c.bf16 %v8008, %v8008
      %v8041 = vpack.c.bf16 %v8009, %v8009
      %v8042 = vpack.c.bf16 %v8010, %v8010
      %v8043 = vpack.c.bf16 %v8011, %v8011
      %v8044 = vpack.c.bf16 %v8012, %v8012
      %v8045 = vpack.c.bf16 %v8013, %v8013
      %v8046 = vpack.c.bf16 %v8014, %v8014
      %v8047 = vld [vmem:[%s3022 + $0x2] sm:$0xff]
      %v8048 = vld [vmem:[%s3022 + $0xa] sm:$0xff]
      %v8049 = vld [vmem:[%s3022 + $0x1a] sm:$0xff]
      %v8050 = vld [vmem:[%s3022 + $0x22] sm:$0xff]
      %v8051 = vld [vmem:[%s3022 + $0x32] sm:$0xff]
      %v8052 = vld [vmem:[%s3022 + $0x3a] sm:$0xff]
      %v8053 = vld [vmem:[%s3022 + $0x4a] sm:$0xff]
      %v8054 = vld [vmem:[%s3022 + $0x52] sm:$0xff]
      %v8055 = vld [vmem:[%s3022 + $0x62] sm:$0xff]
      %v8056 = vld [vmem:[%s3022 + $0x6a] sm:$0xff]
      %v8057 = vld [vmem:[%s3022 + $0x7a] sm:$0xff]
      %v8058 = vld [vmem:[%s3022 + $0x82] sm:$0xff]
      %v8059 = vld [vmem:[%s3022 + $0x92] sm:$0xff]
      %v8060 = vld [vmem:[%s3022 + $0x9a] sm:$0xff]
      %v8061 = vld [vmem:[%s3022 + $0xaa] sm:$0xff]
      %v8062 = vld [vmem:[%s3022 + $0xb2] sm:$0xff]
      %v8063 = vld [vmem:[%s3022 + $0xc2] sm:$0xff]
      %v8064 = vld [vmem:[%s3022 + $0xca] sm:$0xff]
      %v8065 = vld [vmem:[%s3022 + $0xda] sm:$0xff]
      %v8066 = vld [vmem:[%s3022 + $0xe2] sm:$0xff]
      %v8067 = vld [vmem:[%s3022 + $0xf2] sm:$0xff]
      %v8068 = vld [vmem:[%s3022 + $0xfa] sm:$0xff]
      %v8069 = vld [vmem:[%s3022 + $0x10a] sm:$0xff]
      %v8070 = vld [vmem:[%s3022 + $0x112] sm:$0xff]
      %v8071 = vld [vmem:[%s3022 + $0x122] sm:$0xff]
      %v8072 = vld [vmem:[%s3022 + $0x12a] sm:$0xff]
      %v8073 = vld [vmem:[%s3022 + $0x13a] sm:$0xff]
      %v8074 = vld [vmem:[%s3022 + $0x142] sm:$0xff]
      %v8075 = vld [vmem:[%s3022 + $0x152] sm:$0xff]
      %v8076 = vld [vmem:[%s3022 + $0x15a] sm:$0xff]
      %v8077 = vld [vmem:[%s3022 + $0x16a] sm:$0xff]
      %v8078 = vld [vmem:[%s3022 + $0x172] sm:$0xff]
      %v8079 = vpack.c.bf16 %v8047, %v8047
      %v8080 = vpack.c.bf16 %v8048, %v8048
      %v8081 = vpack.c.bf16 %v8049, %v8049
      %v8082 = vpack.c.bf16 %v8050, %v8050
      %v8083 = vpack.c.bf16 %v8051, %v8051
      %v8084 = vpack.c.bf16 %v8052, %v8052
      %v8085 = vpack.c.bf16 %v8053, %v8053
      %v8086 = vpack.c.bf16 %v8054, %v8054
      %v8087 = vpack.c.bf16 %v8055, %v8055
      %v8088 = vpack.c.bf16 %v8056, %v8056
      %v8089 = vpack.c.bf16 %v8057, %v8057
      %v8090 = vpack.c.bf16 %v8058, %v8058
      %v8091 = vpack.c.bf16 %v8059, %v8059
      %v8092 = vpack.c.bf16 %v8060, %v8060
      %v8093 = vpack.c.bf16 %v8061, %v8061
      %v8094 = vpack.c.bf16 %v8062, %v8062
      %v8095 = vpack.c.bf16 %v8063, %v8063
      %v8096 = vpack.c.bf16 %v8064, %v8064
      %v8097 = vpack.c.bf16 %v8065, %v8065
      %v8098 = vpack.c.bf16 %v8066, %v8066
      %v8099 = vpack.c.bf16 %v8067, %v8067
      %v8100 = vpack.c.bf16 %v8068, %v8068
      %v8101 = vpack.c.bf16 %v8069, %v8069
      %v8102 = vpack.c.bf16 %v8070, %v8070
      %v8103 = vpack.c.bf16 %v8071, %v8071
      %v8104 = vpack.c.bf16 %v8072, %v8072
      %v8105 = vpack.c.bf16 %v8073, %v8073
      %v8106 = vpack.c.bf16 %v8074, %v8074
      %v8107 = vpack.c.bf16 %v8075, %v8075
      %v8108 = vpack.c.bf16 %v8076, %v8076
      %v8109 = vpack.c.bf16 %v8077, %v8077
      %v8110 = vpack.c.bf16 %v8078, %v8078
      %v8143 = vunpack.c.l.b16 %v7567
      %v8144 = vunpack.c.l.b16 %v7568
      %v8145 = vunpack.c.l.b16 %v7569
      %v8146 = vunpack.c.l.b16 %v7570
      %v8147 = vunpack.c.l.b16 %v7571
      %v8148 = vunpack.c.l.b16 %v7572
      %v8149 = vunpack.c.l.b16 %v7573
      %v8150 = vunpack.c.l.b16 %v7574
      %v8151 = vunpack.c.l.b16 %v7575
      %v8152 = vunpack.c.l.b16 %v7576
      %v8153 = vunpack.c.l.b16 %v7577
      %v8154 = vunpack.c.l.b16 %v7578
      %v8155 = vunpack.c.l.b16 %v7579
      %v8156 = vunpack.c.l.b16 %v7580
      %v8157 = vunpack.c.l.b16 %v7581
      %v8158 = vunpack.c.l.b16 %v7582
      %v8159 = vunpack.c.l.b16 %v7583
      %v8160 = vunpack.c.l.b16 %v7584
      %v8161 = vunpack.c.l.b16 %v7585
      %v8162 = vunpack.c.l.b16 %v7586
      %v8163 = vunpack.c.l.b16 %v7587
      %v8164 = vunpack.c.l.b16 %v7588
      %v8165 = vunpack.c.l.b16 %v7589
      %v8166 = vunpack.c.l.b16 %v7590
      %v8167 = vunpack.c.l.b16 %v7591
      %v8168 = vunpack.c.l.b16 %v7592
      %v8169 = vunpack.c.l.b16 %v7593
      %v8170 = vunpack.c.l.b16 %v7594
      %v8171 = vunpack.c.l.b16 %v7595
      %v8172 = vunpack.c.l.b16 %v7596
      %v8173 = vunpack.c.l.b16 %v7597
      %v8174 = vunpack.c.l.b16 %v7598
      %v8175 = vpack.c.b16 %v8144, %v8143
      %v8176 = vpack.c.b16 %v8146, %v8145
      %v8177 = vpack.c.b16 %v8148, %v8147
      %v8178 = vpack.c.b16 %v8150, %v8149
      %v8179 = vpack.c.b16 %v8152, %v8151
      %v8180 = vpack.c.b16 %v8154, %v8153
      %v8181 = vpack.c.b16 %v8156, %v8155
      %v8182 = vpack.c.b16 %v8158, %v8157
      %v8183 = vpack.c.b16 %v8160, %v8159
      %v8184 = vpack.c.b16 %v8162, %v8161
      %v8185 = vpack.c.b16 %v8164, %v8163
      %v8186 = vpack.c.b16 %v8166, %v8165
      %v8187 = vpack.c.b16 %v8168, %v8167
      %v8188 = vpack.c.b16 %v8170, %v8169
      %v8189 = vpack.c.b16 %v8172, %v8171
      %v8190 = vpack.c.b16 %v8174, %v8173
      %v8223 = vunpack.c.l.b16 %v7631
      %v8224 = vunpack.c.l.b16 %v7632
      %v8225 = vunpack.c.l.b16 %v7633
      %v8226 = vunpack.c.l.b16 %v7634
      %v8227 = vunpack.c.l.b16 %v7635
      %v8228 = vunpack.c.l.b16 %v7636
      %v8229 = vunpack.c.l.b16 %v7637
      %v8230 = vunpack.c.l.b16 %v7638
      %v8231 = vunpack.c.l.b16 %v7639
      %v8232 = vunpack.c.l.b16 %v7640
      %v8233 = vunpack.c.l.b16 %v7641
      %v8234 = vunpack.c.l.b16 %v7642
      %v8235 = vunpack.c.l.b16 %v7643
      %v8236 = vunpack.c.l.b16 %v7644
      %v8237 = vunpack.c.l.b16 %v7645
      %v8238 = vunpack.c.l.b16 %v7646
      %v8239 = vunpack.c.l.b16 %v7647
      %v8240 = vunpack.c.l.b16 %v7648
      %v8241 = vunpack.c.l.b16 %v7649
      %v8242 = vunpack.c.l.b16 %v7650
      %v8243 = vunpack.c.l.b16 %v7651
      %v8244 = vunpack.c.l.b16 %v7652
      %v8245 = vunpack.c.l.b16 %v7653
      %v8246 = vunpack.c.l.b16 %v7654
      %v8247 = vunpack.c.l.b16 %v7655
      %v8248 = vunpack.c.l.b16 %v7656
      %v8249 = vunpack.c.l.b16 %v7657
      %v8250 = vunpack.c.l.b16 %v7658
      %v8251 = vunpack.c.l.b16 %v7659
      %v8252 = vunpack.c.l.b16 %v7660
      %v8253 = vunpack.c.l.b16 %v7661
      %v8254 = vunpack.c.l.b16 %v7662
      %v8255 = vpack.c.b16 %v8224, %v8223
      %v8256 = vpack.c.b16 %v8226, %v8225
      %v8257 = vpack.c.b16 %v8228, %v8227
      %v8258 = vpack.c.b16 %v8230, %v8229
      %v8259 = vpack.c.b16 %v8232, %v8231
      %v8260 = vpack.c.b16 %v8234, %v8233
      %v8261 = vpack.c.b16 %v8236, %v8235
      %v8262 = vpack.c.b16 %v8238, %v8237
      %v8263 = vpack.c.b16 %v8240, %v8239
      %v8264 = vpack.c.b16 %v8242, %v8241
      %v8265 = vpack.c.b16 %v8244, %v8243
      %v8266 = vpack.c.b16 %v8246, %v8245
      %v8267 = vpack.c.b16 %v8248, %v8247
      %v8268 = vpack.c.b16 %v8250, %v8249
      %v8269 = vpack.c.b16 %v8252, %v8251
      %v8270 = vpack.c.b16 %v8254, %v8253
      %8271 = vrot.lane.b32.xlu0 %v8255, 32
      %v8272 = vpop.permute.xlu0 %8271
      %8273 = vrot.lane.b32.xlu0 %v8256, 32
      %v8274 = vpop.permute.xlu0 %8273
      %8275 = vrot.lane.b32.xlu0 %v8257, 32
      %v8276 = vpop.permute.xlu0 %8275
      %8277 = vrot.lane.b32.xlu0 %v8258, 32
      %v8278 = vpop.permute.xlu0 %8277
      %8279 = vrot.lane.b32.xlu0 %v8259, 32
      %v8280 = vpop.permute.xlu0 %8279
      %8281 = vrot.lane.b32.xlu0 %v8260, 32
      %v8282 = vpop.permute.xlu0 %8281
      %8283 = vrot.lane.b32.xlu0 %v8261, 32
      %v8284 = vpop.permute.xlu0 %8283
      %8285 = vrot.lane.b32.xlu0 %v8262, 32
      %v8286 = vpop.permute.xlu0 %8285
      %8287 = vrot.lane.b32.xlu0 %v8263, 32
      %v8288 = vpop.permute.xlu0 %8287
      %8289 = vrot.lane.b32.xlu0 %v8264, 32
      %v8290 = vpop.permute.xlu0 %8289
      %8291 = vrot.lane.b32.xlu0 %v8265, 32
      %v8292 = vpop.permute.xlu0 %8291
      %8293 = vrot.lane.b32.xlu0 %v8266, 32
      %v8294 = vpop.permute.xlu0 %8293
      %8295 = vrot.lane.b32.xlu0 %v8267, 32
      %v8296 = vpop.permute.xlu0 %8295
      %8297 = vrot.lane.b32.xlu0 %v8268, 32
      %v8298 = vpop.permute.xlu0 %8297
      %8299 = vrot.lane.b32.xlu0 %v8269, 32
      %v8300 = vpop.permute.xlu0 %8299
      %8301 = vrot.lane.b32.xlu0 %v8270, 32
      %v8302 = vpop.permute.xlu0 %8301
      %v8335 = vunpack.c.l.b16 %v7695
      %v8336 = vunpack.c.l.b16 %v7696
      %v8337 = vunpack.c.l.b16 %v7697
      %v8338 = vunpack.c.l.b16 %v7698
      %v8339 = vunpack.c.l.b16 %v7699
      %v8340 = vunpack.c.l.b16 %v7700
      %v8341 = vunpack.c.l.b16 %v7701
      %v8342 = vunpack.c.l.b16 %v7702
      %v8343 = vunpack.c.l.b16 %v7703
      %v8344 = vunpack.c.l.b16 %v7704
      %v8345 = vunpack.c.l.b16 %v7705
      %v8346 = vunpack.c.l.b16 %v7706
      %v8347 = vunpack.c.l.b16 %v7707
      %v8348 = vunpack.c.l.b16 %v7708
      %v8349 = vunpack.c.l.b16 %v7709
      %v8350 = vunpack.c.l.b16 %v7710
      %v8351 = vunpack.c.l.b16 %v7711
      %v8352 = vunpack.c.l.b16 %v7712
      %v8353 = vunpack.c.l.b16 %v7713
      %v8354 = vunpack.c.l.b16 %v7714
      %v8355 = vunpack.c.l.b16 %v7715
      %v8356 = vunpack.c.l.b16 %v7716
      %v8357 = vunpack.c.l.b16 %v7717
      %v8358 = vunpack.c.l.b16 %v7718
      %v8359 = vunpack.c.l.b16 %v7719
      %v8360 = vunpack.c.l.b16 %v7720
      %v8361 = vunpack.c.l.b16 %v7721
      %v8362 = vunpack.c.l.b16 %v7722
      %v8363 = vunpack.c.l.b16 %v7723
      %v8364 = vunpack.c.l.b16 %v7724
      %v8365 = vunpack.c.l.b16 %v7725
      %v8366 = vunpack.c.l.b16 %v7726
      %v8367 = vpack.c.b16 %v8336, %v8335
      %v8368 = vpack.c.b16 %v8338, %v8337
      %v8369 = vpack.c.b16 %v8340, %v8339
      %v8370 = vpack.c.b16 %v8342, %v8341
      %v8371 = vpack.c.b16 %v8344, %v8343
      %v8372 = vpack.c.b16 %v8346, %v8345
      %v8373 = vpack.c.b16 %v8348, %v8347
      %v8374 = vpack.c.b16 %v8350, %v8349
      %v8375 = vpack.c.b16 %v8352, %v8351
      %v8376 = vpack.c.b16 %v8354, %v8353
      %v8377 = vpack.c.b16 %v8356, %v8355
      %v8378 = vpack.c.b16 %v8358, %v8357
      %v8379 = vpack.c.b16 %v8360, %v8359
      %v8380 = vpack.c.b16 %v8362, %v8361
      %v8381 = vpack.c.b16 %v8364, %v8363
      %v8382 = vpack.c.b16 %v8366, %v8365
      %8383 = vrot.lane.b32.xlu0 %v8367, 64
      %v8384 = vpop.permute.xlu0 %8383
      %8385 = vrot.lane.b32.xlu0 %v8368, 64
      %v8386 = vpop.permute.xlu0 %8385
      %8387 = vrot.lane.b32.xlu0 %v8369, 64
      %v8388 = vpop.permute.xlu0 %8387
      %8389 = vrot.lane.b32.xlu0 %v8370, 64
      %v8390 = vpop.permute.xlu0 %8389
      %8391 = vrot.lane.b32.xlu0 %v8371, 64
      %v8392 = vpop.permute.xlu0 %8391
      %8393 = vrot.lane.b32.xlu0 %v8372, 64
      %v8394 = vpop.permute.xlu0 %8393
      %8395 = vrot.lane.b32.xlu0 %v8373, 64
      %v8396 = vpop.permute.xlu0 %8395
      %8397 = vrot.lane.b32.xlu0 %v8374, 64
      %v8398 = vpop.permute.xlu0 %8397
      %8399 = vrot.lane.b32.xlu0 %v8375, 64
      %v8400 = vpop.permute.xlu0 %8399
      %8401 = vrot.lane.b32.xlu0 %v8376, 64
      %v8402 = vpop.permute.xlu0 %8401
      %8403 = vrot.lane.b32.xlu0 %v8377, 64
      %v8404 = vpop.permute.xlu0 %8403
      %8405 = vrot.lane.b32.xlu0 %v8378, 64
      %v8406 = vpop.permute.xlu0 %8405
      %8407 = vrot.lane.b32.xlu0 %v8379, 64
      %v8408 = vpop.permute.xlu0 %8407
      %8409 = vrot.lane.b32.xlu0 %v8380, 64
      %v8410 = vpop.permute.xlu0 %8409
      %8411 = vrot.lane.b32.xlu0 %v8381, 64
      %v8412 = vpop.permute.xlu0 %8411
      %8413 = vrot.lane.b32.xlu0 %v8382, 64
      %v8414 = vpop.permute.xlu0 %8413
      %v8447 = vunpack.c.l.b16 %v7759
      %v8448 = vunpack.c.l.b16 %v7760
      %v8449 = vunpack.c.l.b16 %v7761
      %v8450 = vunpack.c.l.b16 %v7762
      %v8451 = vunpack.c.l.b16 %v7763
      %v8452 = vunpack.c.l.b16 %v7764
      %v8453 = vunpack.c.l.b16 %v7765
      %v8454 = vunpack.c.l.b16 %v7766
      %v8455 = vunpack.c.l.b16 %v7767
      %v8456 = vunpack.c.l.b16 %v7768
      %v8457 = vunpack.c.l.b16 %v7769
      %v8458 = vunpack.c.l.b16 %v7770
      %v8459 = vunpack.c.l.b16 %v7771
      %v8460 = vunpack.c.l.b16 %v7772
      %v8461 = vunpack.c.l.b16 %v7773
      %v8462 = vunpack.c.l.b16 %v7774
      %v8463 = vunpack.c.l.b16 %v7775
      %v8464 = vunpack.c.l.b16 %v7776
      %v8465 = vunpack.c.l.b16 %v7777
      %v8466 = vunpack.c.l.b16 %v7778
      %v8467 = vunpack.c.l.b16 %v7779
      %v8468 = vunpack.c.l.b16 %v7780
      %v8469 = vunpack.c.l.b16 %v7781
      %v8470 = vunpack.c.l.b16 %v7782
      %v8471 = vunpack.c.l.b16 %v7783
      %v8472 = vunpack.c.l.b16 %v7784
      %v8473 = vunpack.c.l.b16 %v7785
      %v8474 = vunpack.c.l.b16 %v7786
      %v8475 = vunpack.c.l.b16 %v7787
      %v8476 = vunpack.c.l.b16 %v7788
      %v8477 = vunpack.c.l.b16 %v7789
      %v8478 = vunpack.c.l.b16 %v7790
      %v8479 = vpack.c.b16 %v8448, %v8447
      %v8480 = vpack.c.b16 %v8450, %v8449
      %v8481 = vpack.c.b16 %v8452, %v8451
      %v8482 = vpack.c.b16 %v8454, %v8453
      %v8483 = vpack.c.b16 %v8456, %v8455
      %v8484 = vpack.c.b16 %v8458, %v8457
      %v8485 = vpack.c.b16 %v8460, %v8459
      %v8486 = vpack.c.b16 %v8462, %v8461
      %v8487 = vpack.c.b16 %v8464, %v8463
      %v8488 = vpack.c.b16 %v8466, %v8465
      %v8489 = vpack.c.b16 %v8468, %v8467
      %v8490 = vpack.c.b16 %v8470, %v8469
      %v8491 = vpack.c.b16 %v8472, %v8471
      %v8492 = vpack.c.b16 %v8474, %v8473
      %v8493 = vpack.c.b16 %v8476, %v8475
      %v8494 = vpack.c.b16 %v8478, %v8477
      %8495 = vrot.lane.b32.xlu0 %v8479, 96
      %v8496 = vpop.permute.xlu0 %8495
      %8497 = vrot.lane.b32.xlu0 %v8480, 96
      %v8498 = vpop.permute.xlu0 %8497
      %8499 = vrot.lane.b32.xlu0 %v8481, 96
      %v8500 = vpop.permute.xlu0 %8499
      %8501 = vrot.lane.b32.xlu0 %v8482, 96
      %v8502 = vpop.permute.xlu0 %8501
      %8503 = vrot.lane.b32.xlu0 %v8483, 96
      %v8504 = vpop.permute.xlu0 %8503
      %8505 = vrot.lane.b32.xlu0 %v8484, 96
      %v8506 = vpop.permute.xlu0 %8505
      %8507 = vrot.lane.b32.xlu0 %v8485, 96
      %v8508 = vpop.permute.xlu0 %8507
      %8509 = vrot.lane.b32.xlu0 %v8486, 96
      %v8510 = vpop.permute.xlu0 %8509
      %8511 = vrot.lane.b32.xlu0 %v8487, 96
      %v8512 = vpop.permute.xlu0 %8511
      %8513 = vrot.lane.b32.xlu0 %v8488, 96
      %v8514 = vpop.permute.xlu0 %8513
      %8515 = vrot.lane.b32.xlu0 %v8489, 96
      %v8516 = vpop.permute.xlu0 %8515
      %8517 = vrot.lane.b32.xlu0 %v8490, 96
      %v8518 = vpop.permute.xlu0 %8517
      %8519 = vrot.lane.b32.xlu0 %v8491, 96
      %v8520 = vpop.permute.xlu0 %8519
      %8521 = vrot.lane.b32.xlu0 %v8492, 96
      %v8522 = vpop.permute.xlu0 %8521
      %8523 = vrot.lane.b32.xlu0 %v8493, 96
      %v8524 = vpop.permute.xlu0 %8523
      %8525 = vrot.lane.b32.xlu0 %v8494, 96
      %v8526 = vpop.permute.xlu0 %8525
      %v8559 = vunpack.c.l.b16 %v7823
      %v8560 = vunpack.c.l.b16 %v7824
      %v8561 = vunpack.c.l.b16 %v7825
      %v8562 = vunpack.c.l.b16 %v7826
      %v8563 = vunpack.c.l.b16 %v7827
      %v8564 = vunpack.c.l.b16 %v7828
      %v8565 = vunpack.c.l.b16 %v7829
      %v8566 = vunpack.c.l.b16 %v7830
      %v8567 = vunpack.c.l.b16 %v7831
      %v8568 = vunpack.c.l.b16 %v7832
      %v8569 = vunpack.c.l.b16 %v7833
      %v8570 = vunpack.c.l.b16 %v7834
      %v8571 = vunpack.c.l.b16 %v7835
      %v8572 = vunpack.c.l.b16 %v7836
      %v8573 = vunpack.c.l.b16 %v7837
      %v8574 = vunpack.c.l.b16 %v7838
      %v8575 = vunpack.c.l.b16 %v7839
      %v8576 = vunpack.c.l.b16 %v7840
      %v8577 = vunpack.c.l.b16 %v7841
      %v8578 = vunpack.c.l.b16 %v7842
      %v8579 = vunpack.c.l.b16 %v7843
      %v8580 = vunpack.c.l.b16 %v7844
      %v8581 = vunpack.c.l.b16 %v7845
      %v8582 = vunpack.c.l.b16 %v7846
      %v8583 = vunpack.c.l.b16 %v7847
      %v8584 = vunpack.c.l.b16 %v7848
      %v8585 = vunpack.c.l.b16 %v7849
      %v8586 = vunpack.c.l.b16 %v7850
      %v8587 = vunpack.c.l.b16 %v7851
      %v8588 = vunpack.c.l.b16 %v7852
      %v8589 = vunpack.c.l.b16 %v7853
      %v8590 = vunpack.c.l.b16 %v7854
      %v8591 = vpack.c.b16 %v8560, %v8559
      %v8592 = vpack.c.b16 %v8562, %v8561
      %v8593 = vpack.c.b16 %v8564, %v8563
      %v8594 = vpack.c.b16 %v8566, %v8565
      %v8595 = vpack.c.b16 %v8568, %v8567
      %v8596 = vpack.c.b16 %v8570, %v8569
      %v8597 = vpack.c.b16 %v8572, %v8571
      %v8598 = vpack.c.b16 %v8574, %v8573
      %v8599 = vpack.c.b16 %v8576, %v8575
      %v8600 = vpack.c.b16 %v8578, %v8577
      %v8601 = vpack.c.b16 %v8580, %v8579
      %v8602 = vpack.c.b16 %v8582, %v8581
      %v8603 = vpack.c.b16 %v8584, %v8583
      %v8604 = vpack.c.b16 %v8586, %v8585
      %v8605 = vpack.c.b16 %v8588, %v8587
      %v8606 = vpack.c.b16 %v8590, %v8589
      %v8639 = vunpack.c.l.b16 %v7887
      %v8640 = vunpack.c.l.b16 %v7888
      %v8641 = vunpack.c.l.b16 %v7889
      %v8642 = vunpack.c.l.b16 %v7890
      %v8643 = vunpack.c.l.b16 %v7891
      %v8644 = vunpack.c.l.b16 %v7892
      %v8645 = vunpack.c.l.b16 %v7893
      %v8646 = vunpack.c.l.b16 %v7894
      %v8647 = vunpack.c.l.b16 %v7895
      %v8648 = vunpack.c.l.b16 %v7896
      %v8649 = vunpack.c.l.b16 %v7897
      %v8650 = vunpack.c.l.b16 %v7898
      %v8651 = vunpack.c.l.b16 %v7899
      %v8652 = vunpack.c.l.b16 %v7900
      %v8653 = vunpack.c.l.b16 %v7901
      %v8654 = vunpack.c.l.b16 %v7902
      %v8655 = vunpack.c.l.b16 %v7903
      %v8656 = vunpack.c.l.b16 %v7904
      %v8657 = vunpack.c.l.b16 %v7905
      %v8658 = vunpack.c.l.b16 %v7906
      %v8659 = vunpack.c.l.b16 %v7907
      %v8660 = vunpack.c.l.b16 %v7908
      %v8661 = vunpack.c.l.b16 %v7909
      %v8662 = vunpack.c.l.b16 %v7910
      %v8663 = vunpack.c.l.b16 %v7911
      %v8664 = vunpack.c.l.b16 %v7912
      %v8665 = vunpack.c.l.b16 %v7913
      %v8666 = vunpack.c.l.b16 %v7914
      %v8667 = vunpack.c.l.b16 %v7915
      %v8668 = vunpack.c.l.b16 %v7916
      %v8669 = vunpack.c.l.b16 %v7917
      %v8670 = vunpack.c.l.b16 %v7918
      %v8671 = vpack.c.b16 %v8640, %v8639
      %v8672 = vpack.c.b16 %v8642, %v8641
      %v8673 = vpack.c.b16 %v8644, %v8643
      %v8674 = vpack.c.b16 %v8646, %v8645
      %v8675 = vpack.c.b16 %v8648, %v8647
      %v8676 = vpack.c.b16 %v8650, %v8649
      %v8677 = vpack.c.b16 %v8652, %v8651
      %v8678 = vpack.c.b16 %v8654, %v8653
      %v8679 = vpack.c.b16 %v8656, %v8655
      %v8680 = vpack.c.b16 %v8658, %v8657
      %v8681 = vpack.c.b16 %v8660, %v8659
      %v8682 = vpack.c.b16 %v8662, %v8661
      %v8683 = vpack.c.b16 %v8664, %v8663
      %v8684 = vpack.c.b16 %v8666, %v8665
      %v8685 = vpack.c.b16 %v8668, %v8667
      %v8686 = vpack.c.b16 %v8670, %v8669
      %8687 = vrot.lane.b32.xlu0 %v8671, 32
      %v8688 = vpop.permute.xlu0 %8687
      %8689 = vrot.lane.b32.xlu0 %v8672, 32
      %v8690 = vpop.permute.xlu0 %8689
      %8691 = vrot.lane.b32.xlu0 %v8673, 32
      %v8692 = vpop.permute.xlu0 %8691
      %8693 = vrot.lane.b32.xlu0 %v8674, 32
      %v8694 = vpop.permute.xlu0 %8693
      %8695 = vrot.lane.b32.xlu0 %v8675, 32
      %v8696 = vpop.permute.xlu0 %8695
      %8697 = vrot.lane.b32.xlu0 %v8676, 32
      %v8698 = vpop.permute.xlu0 %8697
      %8699 = vrot.lane.b32.xlu0 %v8677, 32
      %v8700 = vpop.permute.xlu0 %8699
      %8701 = vrot.lane.b32.xlu0 %v8678, 32
      %v8702 = vpop.permute.xlu0 %8701
      %8703 = vrot.lane.b32.xlu0 %v8679, 32
      %v8704 = vpop.permute.xlu0 %8703
      %8705 = vrot.lane.b32.xlu0 %v8680, 32
      %v8706 = vpop.permute.xlu0 %8705
      %8707 = vrot.lane.b32.xlu0 %v8681, 32
      %v8708 = vpop.permute.xlu0 %8707
      %8709 = vrot.lane.b32.xlu0 %v8682, 32
      %v8710 = vpop.permute.xlu0 %8709
      %8711 = vrot.lane.b32.xlu0 %v8683, 32
      %v8712 = vpop.permute.xlu0 %8711
      %8713 = vrot.lane.b32.xlu0 %v8684, 32
      %v8714 = vpop.permute.xlu0 %8713
      %8715 = vrot.lane.b32.xlu0 %v8685, 32
      %v8716 = vpop.permute.xlu0 %8715
      %8717 = vrot.lane.b32.xlu0 %v8686, 32
      %v8718 = vpop.permute.xlu0 %8717
      %v8751 = vunpack.c.l.b16 %v7951
      %v8752 = vunpack.c.l.b16 %v7952
      %v8753 = vunpack.c.l.b16 %v7953
      %v8754 = vunpack.c.l.b16 %v7954
      %v8755 = vunpack.c.l.b16 %v7955
      %v8756 = vunpack.c.l.b16 %v7956
      %v8757 = vunpack.c.l.b16 %v7957
      %v8758 = vunpack.c.l.b16 %v7958
      %v8759 = vunpack.c.l.b16 %v7959
      %v8760 = vunpack.c.l.b16 %v7960
      %v8761 = vunpack.c.l.b16 %v7961
      %v8762 = vunpack.c.l.b16 %v7962
      %v8763 = vunpack.c.l.b16 %v7963
      %v8764 = vunpack.c.l.b16 %v7964
      %v8765 = vunpack.c.l.b16 %v7965
      %v8766 = vunpack.c.l.b16 %v7966
      %v8767 = vunpack.c.l.b16 %v7967
      %v8768 = vunpack.c.l.b16 %v7968
      %v8769 = vunpack.c.l.b16 %v7969
      %v8770 = vunpack.c.l.b16 %v7970
      %v8771 = vunpack.c.l.b16 %v7971
      %v8772 = vunpack.c.l.b16 %v7972
      %v8773 = vunpack.c.l.b16 %v7973
      %v8774 = vunpack.c.l.b16 %v7974
      %v8775 = vunpack.c.l.b16 %v7975
      %v8776 = vunpack.c.l.b16 %v7976
      %v8777 = vunpack.c.l.b16 %v7977
      %v8778 = vunpack.c.l.b16 %v7978
      %v8779 = vunpack.c.l.b16 %v7979
      %v8780 = vunpack.c.l.b16 %v7980
      %v8781 = vunpack.c.l.b16 %v7981
      %v8782 = vunpack.c.l.b16 %v7982
      %v8783 = vpack.c.b16 %v8752, %v8751
      %v8784 = vpack.c.b16 %v8754, %v8753
      %v8785 = vpack.c.b16 %v8756, %v8755
      %v8786 = vpack.c.b16 %v8758, %v8757
      %v8787 = vpack.c.b16 %v8760, %v8759
      %v8788 = vpack.c.b16 %v8762, %v8761
      %v8789 = vpack.c.b16 %v8764, %v8763
      %v8790 = vpack.c.b16 %v8766, %v8765
      %v8791 = vpack.c.b16 %v8768, %v8767
      %v8792 = vpack.c.b16 %v8770, %v8769
      %v8793 = vpack.c.b16 %v8772, %v8771
      %v8794 = vpack.c.b16 %v8774, %v8773
      %v8795 = vpack.c.b16 %v8776, %v8775
      %v8796 = vpack.c.b16 %v8778, %v8777
      %v8797 = vpack.c.b16 %v8780, %v8779
      %v8798 = vpack.c.b16 %v8782, %v8781
      %8799 = vrot.lane.b32.xlu0 %v8783, 64
      %v8800 = vpop.permute.xlu0 %8799
      %8801 = vrot.lane.b32.xlu0 %v8784, 64
      %v8802 = vpop.permute.xlu0 %8801
      %8803 = vrot.lane.b32.xlu0 %v8785, 64
      %v8804 = vpop.permute.xlu0 %8803
      %8805 = vrot.lane.b32.xlu0 %v8786, 64
      %v8806 = vpop.permute.xlu0 %8805
      %8807 = vrot.lane.b32.xlu0 %v8787, 64
      %v8808 = vpop.permute.xlu0 %8807
      %8809 = vrot.lane.b32.xlu0 %v8788, 64
      %v8810 = vpop.permute.xlu0 %8809
      %8811 = vrot.lane.b32.xlu0 %v8789, 64
      %v8812 = vpop.permute.xlu0 %8811
      %8813 = vrot.lane.b32.xlu0 %v8790, 64
      %v8814 = vpop.permute.xlu0 %8813
      %8815 = vrot.lane.b32.xlu0 %v8791, 64
      %v8816 = vpop.permute.xlu0 %8815
      %8817 = vrot.lane.b32.xlu0 %v8792, 64
      %v8818 = vpop.permute.xlu0 %8817
      %8819 = vrot.lane.b32.xlu0 %v8793, 64
      %v8820 = vpop.permute.xlu0 %8819
      %8821 = vrot.lane.b32.xlu0 %v8794, 64
      %v8822 = vpop.permute.xlu0 %8821
      %8823 = vrot.lane.b32.xlu0 %v8795, 64
      %v8824 = vpop.permute.xlu0 %8823
      %8825 = vrot.lane.b32.xlu0 %v8796, 64
      %v8826 = vpop.permute.xlu0 %8825
      %8827 = vrot.lane.b32.xlu0 %v8797, 64
      %v8828 = vpop.permute.xlu0 %8827
      %8829 = vrot.lane.b32.xlu0 %v8798, 64
      %v8830 = vpop.permute.xlu0 %8829
      %v8863 = vunpack.c.l.b16 %v8015
      %v8864 = vunpack.c.l.b16 %v8016
      %v8865 = vunpack.c.l.b16 %v8017
      %v8866 = vunpack.c.l.b16 %v8018
      %v8867 = vunpack.c.l.b16 %v8019
      %v8868 = vunpack.c.l.b16 %v8020
      %v8869 = vunpack.c.l.b16 %v8021
      %v8870 = vunpack.c.l.b16 %v8022
      %v8871 = vunpack.c.l.b16 %v8023
      %v8872 = vunpack.c.l.b16 %v8024
      %v8873 = vunpack.c.l.b16 %v8025
      %v8874 = vunpack.c.l.b16 %v8026
      %v8875 = vunpack.c.l.b16 %v8027
      %v8876 = vunpack.c.l.b16 %v8028
      %v8877 = vunpack.c.l.b16 %v8029
      %v8878 = vunpack.c.l.b16 %v8030
      %v8879 = vunpack.c.l.b16 %v8031
      %v8880 = vunpack.c.l.b16 %v8032
      %v8881 = vunpack.c.l.b16 %v8033
      %v8882 = vunpack.c.l.b16 %v8034
      %v8883 = vunpack.c.l.b16 %v8035
      %v8884 = vunpack.c.l.b16 %v8036
      %v8885 = vunpack.c.l.b16 %v8037
      %v8886 = vunpack.c.l.b16 %v8038
      %v8887 = vunpack.c.l.b16 %v8039
      %v8888 = vunpack.c.l.b16 %v8040
      %v8889 = vunpack.c.l.b16 %v8041
      %v8890 = vunpack.c.l.b16 %v8042
      %v8891 = vunpack.c.l.b16 %v8043
      %v8892 = vunpack.c.l.b16 %v8044
      %v8893 = vunpack.c.l.b16 %v8045
      %v8894 = vunpack.c.l.b16 %v8046
      %v8895 = vpack.c.b16 %v8864, %v8863
      %v8896 = vpack.c.b16 %v8866, %v8865
      %v8897 = vpack.c.b16 %v8868, %v8867
      %v8898 = vpack.c.b16 %v8870, %v8869
      %v8899 = vpack.c.b16 %v8872, %v8871
      %v8900 = vpack.c.b16 %v8874, %v8873
      %v8901 = vpack.c.b16 %v8876, %v8875
      %v8902 = vpack.c.b16 %v8878, %v8877
      %v8903 = vpack.c.b16 %v8880, %v8879
      %v8904 = vpack.c.b16 %v8882, %v8881
      %v8905 = vpack.c.b16 %v8884, %v8883
      %v8906 = vpack.c.b16 %v8886, %v8885
      %v8907 = vpack.c.b16 %v8888, %v8887
      %v8908 = vpack.c.b16 %v8890, %v8889
      %v8909 = vpack.c.b16 %v8892, %v8891
      %v8910 = vpack.c.b16 %v8894, %v8893
      %8911 = vrot.lane.b32.xlu0 %v8895, 96
      %v8912 = vpop.permute.xlu0 %8911
      %8913 = vrot.lane.b32.xlu0 %v8896, 96
      %v8914 = vpop.permute.xlu0 %8913
      %8915 = vrot.lane.b32.xlu0 %v8897, 96
      %v8916 = vpop.permute.xlu0 %8915
      %8917 = vrot.lane.b32.xlu0 %v8898, 96
      %v8918 = vpop.permute.xlu0 %8917
      %8919 = vrot.lane.b32.xlu0 %v8899, 96
      %v8920 = vpop.permute.xlu0 %8919
      %8921 = vrot.lane.b32.xlu0 %v8900, 96
      %v8922 = vpop.permute.xlu0 %8921
      %8923 = vrot.lane.b32.xlu0 %v8901, 96
      %v8924 = vpop.permute.xlu0 %8923
      %8925 = vrot.lane.b32.xlu0 %v8902, 96
      %v8926 = vpop.permute.xlu0 %8925
      %8927 = vrot.lane.b32.xlu0 %v8903, 96
      %v8928 = vpop.permute.xlu0 %8927
      %8929 = vrot.lane.b32.xlu0 %v8904, 96
      %v8930 = vpop.permute.xlu0 %8929
      %8931 = vrot.lane.b32.xlu0 %v8905, 96
      %v8932 = vpop.permute.xlu0 %8931
      %8933 = vrot.lane.b32.xlu0 %v8906, 96
      %v8934 = vpop.permute.xlu0 %8933
      %8935 = vrot.lane.b32.xlu0 %v8907, 96
      %v8936 = vpop.permute.xlu0 %8935
      %8937 = vrot.lane.b32.xlu0 %v8908, 96
      %v8938 = vpop.permute.xlu0 %8937
      %8939 = vrot.lane.b32.xlu0 %v8909, 96
      %v8940 = vpop.permute.xlu0 %8939
      %8941 = vrot.lane.b32.xlu0 %v8910, 96
      %v8942 = vpop.permute.xlu0 %8941
      %v8975 = vunpack.c.l.b16 %v8079
      %v8976 = vunpack.c.l.b16 %v8080
      %v8977 = vunpack.c.l.b16 %v8081
      %v8978 = vunpack.c.l.b16 %v8082
      %v8979 = vunpack.c.l.b16 %v8083
      %v8980 = vunpack.c.l.b16 %v8084
      %v8981 = vunpack.c.l.b16 %v8085
      %v8982 = vunpack.c.l.b16 %v8086
      %v8983 = vunpack.c.l.b16 %v8087
      %v8984 = vunpack.c.l.b16 %v8088
      %v8985 = vunpack.c.l.b16 %v8089
      %v8986 = vunpack.c.l.b16 %v8090
      %v8987 = vunpack.c.l.b16 %v8091
      %v8988 = vunpack.c.l.b16 %v8092
      %v8989 = vunpack.c.l.b16 %v8093
      %v8990 = vunpack.c.l.b16 %v8094
      %v8991 = vunpack.c.l.b16 %v8095
      %v8992 = vunpack.c.l.b16 %v8096
      %v8993 = vunpack.c.l.b16 %v8097
      %v8994 = vunpack.c.l.b16 %v8098
      %v8995 = vunpack.c.l.b16 %v8099
      %v8996 = vunpack.c.l.b16 %v8100
      %v8997 = vunpack.c.l.b16 %v8101
      %v8998 = vunpack.c.l.b16 %v8102
      %v8999 = vunpack.c.l.b16 %v8103
      %v9000 = vunpack.c.l.b16 %v8104
      %v9001 = vunpack.c.l.b16 %v8105
      %v9002 = vunpack.c.l.b16 %v8106
      %v9003 = vunpack.c.l.b16 %v8107
      %v9004 = vunpack.c.l.b16 %v8108
      %v9005 = vunpack.c.l.b16 %v8109
      %v9006 = vunpack.c.l.b16 %v8110
      %v9007 = vpack.c.b16 %v8976, %v8975
      %v9008 = vpack.c.b16 %v8978, %v8977
      %v9009 = vpack.c.b16 %v8980, %v8979
      %v9010 = vpack.c.b16 %v8982, %v8981
      %v9011 = vpack.c.b16 %v8984, %v8983
      %v9012 = vpack.c.b16 %v8986, %v8985
      %v9013 = vpack.c.b16 %v8988, %v8987
      %v9014 = vpack.c.b16 %v8990, %v8989
      %v9015 = vpack.c.b16 %v8992, %v8991
      %v9016 = vpack.c.b16 %v8994, %v8993
      %v9017 = vpack.c.b16 %v8996, %v8995
      %v9018 = vpack.c.b16 %v8998, %v8997
      %v9019 = vpack.c.b16 %v9000, %v8999
      %v9020 = vpack.c.b16 %v9002, %v9001
      %v9021 = vpack.c.b16 %v9004, %v9003
      %v9022 = vpack.c.b16 %v9006, %v9005
      %v9025 = vsel %vm378, %v8175, %v8272
      %v9028 = vsel %vm378, %v8176, %v8274
      %v9031 = vsel %vm378, %v8177, %v8276
      %v9034 = vsel %vm378, %v8178, %v8278
      %v9037 = vsel %vm378, %v8179, %v8280
      %v9040 = vsel %vm378, %v8180, %v8282
      %v9043 = vsel %vm378, %v8181, %v8284
      %v9046 = vsel %vm378, %v8182, %v8286
      %v9049 = vsel %vm378, %v8183, %v8288
      %v9052 = vsel %vm378, %v8184, %v8290
      %v9055 = vsel %vm378, %v8185, %v8292
      %v9058 = vsel %vm378, %v8186, %v8294
      %v9061 = vsel %vm378, %v8187, %v8296
      %v9064 = vsel %vm378, %v8188, %v8298
      %v9067 = vsel %vm378, %v8189, %v8300
      %v9070 = vsel %vm378, %v8190, %v8302
      %v9072 = vsel %vm4175, %v9025, %v8384
      %v9074 = vsel %vm4175, %v9028, %v8386
      %v9076 = vsel %vm4175, %v9031, %v8388
      %v9078 = vsel %vm4175, %v9034, %v8390
      %v9080 = vsel %vm4175, %v9037, %v8392
      %v9082 = vsel %vm4175, %v9040, %v8394
      %v9084 = vsel %vm4175, %v9043, %v8396
      %v9086 = vsel %vm4175, %v9046, %v8398
      %v9088 = vsel %vm4175, %v9049, %v8400
      %v9090 = vsel %vm4175, %v9052, %v8402
      %v9092 = vsel %vm4175, %v9055, %v8404
      %v9094 = vsel %vm4175, %v9058, %v8406
      %v9096 = vsel %vm4175, %v9061, %v8408
      %v9098 = vsel %vm4175, %v9064, %v8410
      %v9100 = vsel %vm4175, %v9067, %v8412
      %v9102 = vsel %vm4175, %v9070, %v8414
      %v9104 = vsel %vm4208, %v9072, %v8496
      %v9107 = vsel %vm4208, %v9074, %v8498
      %v9110 = vsel %vm4208, %v9076, %v8500
      %v9113 = vsel %vm4208, %v9078, %v8502
      %v9116 = vsel %vm4208, %v9080, %v8504
      %v9119 = vsel %vm4208, %v9082, %v8506
      %v9122 = vsel %vm4208, %v9084, %v8508
      %v9125 = vsel %vm4208, %v9086, %v8510
      %v9128 = vsel %vm4208, %v9088, %v8512
      %v9131 = vsel %vm4208, %v9090, %v8514
      %v9134 = vsel %vm4208, %v9092, %v8516
      %v9137 = vsel %vm4208, %v9094, %v8518
      %v9140 = vsel %vm4208, %v9096, %v8520
      %v9143 = vsel %vm4208, %v9098, %v8522
      %v9146 = vsel %vm4208, %v9100, %v8524
      %v9149 = vsel %vm4208, %v9102, %v8526
      %v9153 = vsel %vm378, %v8591, %v8688
      %v9156 = vsel %vm378, %v8592, %v8690
      %v9159 = vsel %vm378, %v8593, %v8692
      %v9162 = vsel %vm378, %v8594, %v8694
      %v9165 = vsel %vm378, %v8595, %v8696
      %v9168 = vsel %vm378, %v8596, %v8698
      %v9171 = vsel %vm378, %v8597, %v8700
      %v9174 = vsel %vm378, %v8598, %v8702
      %v9177 = vsel %vm378, %v8599, %v8704
      %v9180 = vsel %vm378, %v8600, %v8706
      %v9183 = vsel %vm378, %v8601, %v8708
      %v9186 = vsel %vm378, %v8602, %v8710
      %v9189 = vsel %vm378, %v8603, %v8712
      %v9192 = vsel %vm378, %v8604, %v8714
      %v9195 = vsel %vm378, %v8605, %v8716
      %v9198 = vsel %vm378, %v8606, %v8718
      %v9200 = vsel %vm4175, %v9153, %v8800
      %v9202 = vsel %vm4175, %v9156, %v8802
      %v9204 = vsel %vm4175, %v9159, %v8804
      %v9206 = vsel %vm4175, %v9162, %v8806
      %v9208 = vsel %vm4175, %v9165, %v8808
      %v9210 = vsel %vm4175, %v9168, %v8810
      %v9212 = vsel %vm4175, %v9171, %v8812
      %v9214 = vsel %vm4175, %v9174, %v8814
      %v9216 = vsel %vm4175, %v9177, %v8816
      %v9218 = vsel %vm4175, %v9180, %v8818
      %v9220 = vsel %vm4175, %v9183, %v8820
      %v9222 = vsel %vm4175, %v9186, %v8822
      %v9224 = vsel %vm4175, %v9189, %v8824
      %v9226 = vsel %vm4175, %v9192, %v8826
      %v9228 = vsel %vm4175, %v9195, %v8828
      %v9230 = vsel %vm4175, %v9198, %v8830
      %v9232 = vsel %vm4208, %v9200, %v8912
      %v9235 = vsel %vm4208, %v9202, %v8914
      %v9238 = vsel %vm4208, %v9204, %v8916
      %v9241 = vsel %vm4208, %v9206, %v8918
      %v9244 = vsel %vm4208, %v9208, %v8920
      %v9247 = vsel %vm4208, %v9210, %v8922
      %v9250 = vsel %vm4208, %v9212, %v8924
      %v9253 = vsel %vm4208, %v9214, %v8926
      %v9256 = vsel %vm4208, %v9216, %v8928
      %v9259 = vsel %vm4208, %v9218, %v8930
      %v9262 = vsel %vm4208, %v9220, %v8932
      %v9265 = vsel %vm4208, %v9222, %v8934
      %v9268 = vsel %vm4208, %v9224, %v8936
      %v9271 = vsel %vm4208, %v9226, %v8938
      %v9274 = vsel %vm4208, %v9228, %v8940
      %v9277 = vsel %vm4208, %v9230, %v8942
      %v9279 = vld [vmem:[%s8] sm:$0x3f]
      %v9280 = vld [vmem:[%s9] sm:$0xf]
      %9282 = vset.pattern.permute.xlu0 0
      %9283 = vperm.xlu0 %9282, %v9280
      %v9284 = vpop.permute.xlu0 %9283
      %9287 = vst [vmem:[#allocation1] ss:$4 sm:$0xff] %v9279
      %v9288 = vld.sshfl [vmem:[#allocation1] sm:$0xff pattern:$0x73625140]
      %v9289 = vld.sshfl [vmem:[#allocation1 + $0x8] sm:$0xff pattern:$0x73625140]
      %v9290 = vld.sshfl [vmem:[#allocation1 + $0x10] sm:$0xff pattern:$0x73625140]
      %v9293 = vsel %vm378, %v9290, 0
      %v9296 = vsel %vm378, %v9007, 0
      %v9299 = vsel %vm378, %v9008, 0
      %v9302 = vsel %vm378, %v9009, 0
      %v9305 = vsel %vm378, %v9010, 0
      %v9308 = vsel %vm378, %v9011, 0
      %v9311 = vsel %vm378, %v9012, 0
      %v9314 = vsel %vm378, %v9013, 0
      %v9317 = vsel %vm378, %v9014, 0
      %v9320 = vsel %vm378, %v9015, 0
      %v9323 = vsel %vm378, %v9016, 0
      %v9326 = vsel %vm378, %v9017, 0
      %v9329 = vsel %vm378, %v9018, 0
      %v9332 = vsel %vm378, %v9019, 0
      %v9335 = vsel %vm378, %v9020, 0
      %v9338 = vsel %vm378, %v9021, 0
      %v9341 = vsel %vm378, %v9022, 0
      %9343 = vmatpush.bf16.xpose.msra.mxu0 %v9125
      %9344 = vmatpush.bf16.xpose.msra.mxu0 %v9122
      %9345 = vmatpush.bf16.xpose.msra.mxu0 %v9119
      %9346 = vmatpush.bf16.xpose.msra.mxu0 %v9116
      %9347 = vmatpush.bf16.xpose.msra.mxu0 %v9113
      %9348 = vmatpush.bf16.xpose.msra.mxu0 %v9110
      %9349 = vmatpush.bf16.xpose.msra.mxu0 %v9107
      %9350 = vmatpush.bf16.xpose.msra.mxu0 %v9104
      %9351 = vmatmul.bf16.gmra.mxu0 %v9288
      %v9352 = vpop.f32.mrf.mxu0
      %v9353 = vadd.f32 %v9284, %v9352
      %v9354 = vpop.f32.mrf.mxu0
      %9355 = vdwg.mxu0
      %9356 = vmatpush.bf16.xpose.msra.mxu0 %v9253
      %9357 = vmatpush.bf16.xpose.msra.mxu0 %v9250
      %9358 = vmatpush.bf16.xpose.msra.mxu0 %v9247
      %9359 = vmatpush.bf16.xpose.msra.mxu0 %v9244
      %9360 = vmatpush.bf16.xpose.msra.mxu0 %v9241
      %9361 = vmatpush.bf16.xpose.msra.mxu0 %v9238
      %9362 = vmatpush.bf16.xpose.msra.mxu0 %v9235
      %9363 = vmatpush.bf16.xpose.msra.mxu0 %v9232
      %9364 = vmatmul.bf16.gmra.mxu0 %v9289
      %v9365 = vpop.f32.mrf.mxu0
      %v9366 = vadd.f32 %v9353, %v9365
      %v9367 = vpop.f32.mrf.mxu0
      %9368 = vdwg.mxu0
      %9369 = vmatpush.bf16.xpose.msra.mxu0 %v9317
      %9370 = vmatpush.bf16.xpose.msra.mxu0 %v9314
      %9371 = vmatpush.bf16.xpose.msra.mxu0 %v9311
      %9372 = vmatpush.bf16.xpose.msra.mxu0 %v9308
      %9373 = vmatpush.bf16.xpose.msra.mxu0 %v9305
      %9374 = vmatpush.bf16.xpose.msra.mxu0 %v9302
      %9375 = vmatpush.bf16.xpose.msra.mxu0 %v9299
      %9376 = vmatpush.bf16.xpose.msra.mxu0 %v9296
      %9377 = vmatmul.bf16.gmra.mxu0 %v9293
      %v9378 = vpop.f32.mrf.mxu0
      %v9379 = vadd.f32 %v9366, %v9378
      %v9380 = vpop.f32.mrf.mxu0
      %9381 = vdwg.mxu0
      %9382 = vmatpush.bf16.xpose.msra.mxu0 %v9149
      %9383 = vmatpush.bf16.xpose.msra.mxu0 %v9146
      %9384 = vmatpush.bf16.xpose.msra.mxu0 %v9143
      %9385 = vmatpush.bf16.xpose.msra.mxu0 %v9140
      %9386 = vmatpush.bf16.xpose.msra.mxu0 %v9137
      %9387 = vmatpush.bf16.xpose.msra.mxu0 %v9134
      %9388 = vmatpush.bf16.xpose.msra.mxu0 %v9131
      %9389 = vmatpush.bf16.xpose.msra.mxu0 %v9128
      %9390 = vmatmul.bf16.gmra.mxu0 %v9288
      %v9391 = vpop.f32.mrf.mxu0
      %v9392 = vadd.f32 %v9284, %v9391
      %v9393 = vpop.f32.mrf.mxu0
      %9394 = vdwg.mxu0
      %9395 = vmatpush.bf16.xpose.msra.mxu0 %v9277
      %9396 = vmatpush.bf16.xpose.msra.mxu0 %v9274
      %9397 = vmatpush.bf16.xpose.msra.mxu0 %v9271
      %9398 = vmatpush.bf16.xpose.msra.mxu0 %v9268
      %9399 = vmatpush.bf16.xpose.msra.mxu0 %v9265
      %9400 = vmatpush.bf16.xpose.msra.mxu0 %v9262
      %9401 = vmatpush.bf16.xpose.msra.mxu0 %v9259
      %9402 = vmatpush.bf16.xpose.msra.mxu0 %v9256
      %9403 = vmatmul.bf16.gmra.mxu0 %v9289
      %v9404 = vpop.f32.mrf.mxu0
      %v9405 = vadd.f32 %v9392, %v9404
      %v9406 = vpop.f32.mrf.mxu0
      %9407 = vdwg.mxu0
      %9408 = vmatpush.bf16.xpose.msra.mxu0 %v9341
      %9409 = vmatpush.bf16.xpose.msra.mxu0 %v9338
      %9410 = vmatpush.bf16.xpose.msra.mxu0 %v9335
      %9411 = vmatpush.bf16.xpose.msra.mxu0 %v9332
      %9412 = vmatpush.bf16.xpose.msra.mxu0 %v9329
      %9413 = vmatpush.bf16.xpose.msra.mxu0 %v9326
      %9414 = vmatpush.bf16.xpose.msra.mxu0 %v9323
      %9415 = vmatpush.bf16.xpose.msra.mxu0 %v9320
      %9416 = vmatmul.bf16.gmra.mxu0 %v9293
      %v9417 = vpop.f32.mrf.mxu0
      %v9418 = vadd.f32 %v9405, %v9417
      %v9419 = vpop.f32.mrf.mxu0
      %9420 = vdwg.mxu0
      %v9421 = vld [vmem:[%s371] sm:$0x3]
      %v9423 = vperm.slane %v9421, 0
      %v9424 = vperm.slane %v9421, 1
      %v9427 = vadd.f32 %v9379, %v9423
      %v9428 = vadd.f32 %v9418, %v9424
      %v9431 = vrot.slane %v9428, 4
      %vm9432 = vcmask 1043456
      %v9433 = vsel %vm9432, %v9427, %v9431
      %9435 = vst [vmem:[%s376] sm:$0xff] %v9433
      %p9436 = scmp.lt.s32.totalorder %s21, 1
      %s9437 = scalar_select %p9436, %s21, 1
      %s9438 = smul.addr %s9437, 2
      %s9439 = smul.addr %s9438, 4
      %s9440 = scalar_lea.vmem %s10, %s9439
      // Predicated region
      $region61: #{rfs3_forward.1} parent=59 // pred_check
        %p9441 = pneg %p259
      $region62: #{rfs3_forward.1} parent=59 // pred_check_branch
        %9443 = sbr.rel (%p9441) target = $region64
      $region63: #{rfs3_forward.1} parent=59 // pred_region
        _
      $region64: #{rfs3_forward.1} parent=59 // pred_fallthru
        _
    $region60: #{rfs3_forward.1} parent=5 // pred_fallthru
      _
    %p9444 = scmp.le.s32.totalorder 2, %s16
    // Predicated region
    $region65: #{rfs3_forward.1} parent=5 // pred_check
      %p9445 = pneg %p9444
    $region66: #{rfs3_forward.1} parent=5 // pred_check_branch
      %9447 = sbr.rel (%p9445) target = $region68
    $region67: #{rfs3_forward.1} parent=5 // pred_region
      %s9448 = ssub.s32 %s16, 2
      // Predicated region
      $region69: #{rfs3_forward.1} parent=67 // pred_check
        %p9449 = pneg %p265
      $region70: #{rfs3_forward.1} parent=67 // pred_check_branch
        %9451 = sbr.rel (%p9449) target = $region72
      $region71: #{rfs3_forward.1} parent=67 // pred_region
        %p9452 = scmp.lt.s32.totalorder %s22, 1
        %s9453 = scalar_select %p9452, %s22, 1
        %s9454 = smul.addr %s9453, 2
        %s9455 = smul.addr %s9454, 4
        %s9456 = scalar_lea.vmem %s10, %s9455
      $region72: #{rfs3_forward.1} parent=67 // pred_fallthru
        _
    $region68: #{rfs3_forward.1} parent=5 // pred_fallthru
      _
  $region6: #{rfs3_forward.1} parent=0 // loop_footer
    %s20 = sadd.s32 1, %s16
  $region7: #{rfs3_forward.1} parent=0 // loop_footer_branch
    %15 = sbr.rel target = $region3
  $region8: #{rfs3_forward.1} parent=0 // loop_exit
    _

</llo_original>
